<compile_context>
chip_gen: v6e
topology: v6e:2x2x1
jax: 0.10.0
libtpu: 0.0.40
codegen_flags: <defaults>
</compile_context>

<pallas_src>
import functools

import jax
import jax.numpy as jnp
from jax import lax
from jax.experimental import pallas as pl
from jax.experimental.pallas import tpu as pltpu

EPS = 1e-5


# ----------------------------- in-kernel helpers -----------------------------
def _layernorm(x, w, b):
    mu = jnp.mean(x, axis=-1, keepdims=True)
    var = jnp.mean((x - mu) ** 2, axis=-1, keepdims=True)
    return (x - mu) * lax.rsqrt(var + EPS) * w + b


def _gelu(x):
    # TODO(synk): PyTorch nn.GELU defaults to exact erf; tanh approximation kept for
    # robust Mosaic lowering (erf primitive availability on this stack is uncertain).
    c = 0.7978845608028654  # sqrt(2/pi)
    return 0.5 * x * (1.0 + jnp.tanh(c * (x + 0.044715 * x * x * x)))


def _mm(a_bf16, w_bf16):
    """MXU matmul; callers cast the activation to bf16 ONCE and reuse it. f32 accumulate."""
    return jnp.dot(a_bf16, w_bf16, preferred_element_type=jnp.float32)


# --------------------------------- fused kernel --------------------------------
def _booster_kernel(*refs, num_layers, focal_level, kernel_sizes, rates):
    attn_ref, char_ref, fmap_ref, mask_ref, n1w, n1b = refs[:6]
    idx = 6
    blocks = []
    for _ in range(num_layers):
        blocks.append(refs[idx:idx + 21])
        idx += 21
    n2w, n2b, mf_w, mf_b0, mf_br, mf_bp, mf_wproj, mf_bproj = refs[idx:idx + 8]
    out_ref = refs[idx + 8]

    Bt, N, C = fmap_ref.shape          # batch-block, tokens per image, channels
    M = Bt * N                         # rows fed to every MXU matmul
    L = focal_level

    # Token-position plane + shift masks built once and cached (iota/cmp are VPU work
    # and JAX does not CSE broadcast_in_dim — rev1 rebuilt them per tap).
    pos = lax.broadcasted_iota(jnp.int32, (Bt, N, C), 1).reshape(M, C)
    shift_masks = {}

    def shift(x, d):
        """y[b, i] = x[b, i + d] along each image's token axis (length N), zero padded
        at the image borders. x is the (M, C) flattened view; the mask kills both the
        wrap-around and any cross-image leakage of the flat roll."""
        if d == 0:
            return x
        if abs(d) >= N:
            return jnp.zeros_like(x)
        y = pltpu.roll(x, (-d) % M, axis=0)            # XLU roll over the flat token axis
        if d not in shift_masks:
            shift_masks[d] = (pos < (N - d)) if d > 0 else (pos >= (-d))
        return jnp.where(shift_masks[d], y, 0.0)

    # ---- stage 1: char fusion : feat_map + LayerNorm(attn^T @ feat_char) ----
    cfm = jnp.einsum("bnt,btc->bnc", attn_ref[...], char_ref[...],
                     preferred_element_type=jnp.float32).reshape(M, C)
    x = fmap_ref[...].reshape(M, C) + _layernorm(cfm, n1w[0], n1b[0])

    # ---- stage 2: FocalNet block(s) ----
    # TODO(synk): source of the custom FocalNetBlock (mask / max_kh handling) was not
    # provided; standard FocalNet block with 1-D depthwise kernels (h=1 => 3/5/7 along
    # w) is implemented (vis_mask is all-ones in the merge layers here).
    for blk in blocks:
        (ln1w, ln1b, fq_w, fq_b, fc_w, fc_b, fg_w, fg_b, kw,
         h_w, h_b, p_w, p_b, ln2w, ln2b, m_w1, m_b1, m_w2, m_b2, g1, g2) = blk
        shortcut = x
        xn_b = _layernorm(x, ln1w[0], ln1b[0]).astype(jnp.bfloat16)   # one cast, 3 matmuls

        q = _mm(xn_b, fq_w[...]) + fq_b[0]           # [M, C]
        ctx = _mm(xn_b, fc_w[...]) + fc_b[0]         # [M, C]
        gates = _mm(xn_b, fg_w[...]) + fg_b[0]       # [M, L+1]

        ctx_all = jnp.zeros_like(ctx)
        for level, k in enumerate(kernel_sizes):
            half = k // 2
            acc = jnp.zeros_like(ctx)
            for j in range(k):   # depthwise 1-D conv along the token (width) axis
                acc = acc + shift(ctx, j - half) * kw[level, j][None, :]
            ctx = _gelu(acc)
            ctx_all = ctx_all + ctx * gates[:, level:level + 1]
        ctx_g = _gelu(jnp.mean(ctx.reshape(Bt, N, C), axis=1, keepdims=True))   # [Bt,1,C]
        ctx_all = ctx_all + (ctx_g * gates[:, L:L + 1].reshape(Bt, N, 1)).reshape(M, C)

        modulator = _mm(ctx_all.astype(jnp.bfloat16), h_w[...]) + h_b[0]
        xo = _mm((q * modulator).astype(jnp.bfloat16), p_w[...]) + p_b[0]
        x = shortcut + g1[0] * xo

        xn2_b = _layernorm(x, ln2w[0], ln2b[0]).astype(jnp.bfloat16)
        m = _gelu(_mm(xn2_b, m_w1[...]) + m_b1[0])
        m = _mm(m.astype(jnp.bfloat16), m_w2[...]) + m_b2[0]
        x = x + g2[0] * m

    # ---- stage 3: norm2 + visibility-mask multiply (dropout p=0 is identity) ----
    x = _layernorm(x, n2w[0], n2b[0]) * mask_ref[...].reshape(M, 1)

    # ---- stage 4: MFAC (ASPP-style) fused with the final residual add ----
    # One packed matmul: columns = [w0 | 9 dilated taps (rates x (-r,0,+r)) | wp].
    # shift(x, d) @ W == shift(x @ W, d), so all taps share one wide MXU push; the
    # [M, 11C] f32 intermediate is bounded per grid step by the batch-block size Bt.
    y = _mm(x.astype(jnp.bfloat16), mf_w[...])                     # [M, (2+3*len(rates))*C]
    acc = _mm(jax.nn.relu(y[:, 0:C] + mf_b0[0]).astype(jnp.bfloat16), mf_wproj[0])
    col = C
    for ri, r in enumerate(rates):                                 # dilated 1x3 branches
        s = jnp.zeros((M, C), jnp.float32)
        for d in (-r, 0, r):
            s = s + shift(y[:, col:col + C], d)
            col += C
        acc = acc + _mm(jax.nn.relu(s + mf_br[ri, 0]).astype(jnp.bfloat16), mf_wproj[1 + ri])
    # global-pool branch: the per-image mean commutes with the 1x1 conv
    gp = jax.nn.relu(jnp.mean(y[:, col:col + C].reshape(Bt, N, C), axis=1) + mf_bp[0])  # [Bt,C]
    gp = _mm(gp.astype(jnp.bfloat16), mf_wproj[1 + len(rates)])                          # [Bt,C]
    acc = (acc.reshape(Bt, N, C) + gp[:, None, :]).reshape(M, C)
    proj = jax.nn.relu(acc + mf_bproj[0])
    out_ref[...] = (x + proj).reshape(Bt, N, C).astype(out_ref.dtype)   # residual add


# --------------------------------- wrappers -----------------------------------
_BLOCK_ORDER = ("ln1_w", "ln1_b", "fq_w", "fq_b", "fc_w", "fc_b", "fg_w", "fg_b", "kw",
                "h_w", "h_b", "proj_w", "proj_b", "ln2_w", "ln2_b",
                "mlp_w1", "mlp_b1", "mlp_w2", "mlp_b2", "g1", "g2")


def _batched_spec(shape, bt):
    nd = len(shape)
    return pl.BlockSpec((bt,) + tuple(shape[1:]),
                        lambda i, nd=nd: (i,) + (0,) * (nd - 1))


def _weight_spec(arr, single_buffer):
    nd = arr.ndim
    idx = lambda i, nd=nd: (0,) * nd
    if single_buffer and hasattr(pl, "Buffered"):
        try:
            # Grid-invariant weights: single-buffer to halve their resident VMEM.
            return pl.BlockSpec(tuple(arr.shape), idx, pipeline_mode=pl.Buffered(1))
        except TypeError:   # pragma: no cover — BlockSpec without pipeline_mode
            pass
    return pl.BlockSpec(tuple(arr.shape), idx)


def _pick_batch_block(b, n_tokens, target_rows=256, max_rows=512):
    """Largest divisor of b whose row count Bt*N reaches ~target (MXU M-fill) without
    blowing past max_rows (bounds the per-step MFAC intermediate / VMEM footprint)."""
    best = 1
    for bt in range(1, b + 1):
        if b % bt:
            continue
        if bt > 1 and bt * n_tokens > max_rows:
            break
        best = bt
        if bt * n_tokens >= target_rows:
            break
    return best


def feature_map_booster(params, feat_map, feat_char, char_attn_map, vis_mask, h=1,
                        focal_level=3, kernel_sizes=(3, 5, 7), rates=(6, 12, 18),
                        batch_block=None):
    """feat_map [b,N,C], feat_char [b,T,C], char_attn_map [b,T,N], vis_mask [b,N] -> [b,C,h,w]"""
    b, N, C = feat_map.shape
    if h != 1:
        # TODO(synk): token-axis shifts assume a 1-D feature map (h == 1); the 2-D
        # depthwise path (max_kh > 1) is not implemented.
        raise NotImplementedError("feature_map_booster kernel supports h == 1 only")
    w = N // h
    T = feat_char.shape[1]

    # Layout / DMA prep in XLA (cheap, outside the kernel): transpose attn to [b, N, T]
    # so stage 1 is a plain batched matmul, and pre-cast matmul-only inputs to bf16.
    attn_t = jnp.transpose(char_attn_map, (0, 2, 1)).astype(jnp.bfloat16)
    char_b = feat_char.astype(jnp.bfloat16)
    mask3 = vis_mask.reshape(b, N, 1).astype(feat_map.dtype)

    bt = batch_block or _pick_batch_block(b, N)
    assert b % bt == 0, "batch_block must divide the batch size"
    grid = (b // bt,)

    args = [attn_t, char_b, feat_map, mask3, params["norm1_w"], params["norm1_b"]]
    num_layers = len(params["blocks"])
    for blk in params["blocks"]:
        args += [blk[k] for k in _BLOCK_ORDER]
    mf = params["mfac"]
    args += [params["norm2_w"], params["norm2_b"],
             mf["w_packed"], mf["b0"], mf["br"], mf["bp"], mf["wproj"], mf["bproj"]]

    # Explicit scoped-VMEM budget: actual weight + per-step IO/activation bytes with
    # headroom, clamped below v7x's 64 MiB physical VMEM.
    weight_bytes = sum(int(a.size) * a.dtype.itemsize for a in args[4:])
    io_bytes = bt * (N * T * 2 + T * C * 2 + 2 * N * C * 4 + N * 4)
    act_bytes = bt * N * C * 4 * (2 + 3 * len(rates) + 16)   # MFAC packed y + working set
    vmem_limit = int(min(max(2 * weight_bytes + 2 * io_bytes + act_bytes + (8 << 20),
                             16 << 20), 56 << 20))

    kern = functools.partial(_booster_kernel, num_layers=num_layers,
                             focal_level=focal_level,
                             kernel_sizes=tuple(kernel_sizes), rates=tuple(rates))

    def call(single_buffer_weights):
        in_specs = ([_batched_spec(a.shape, bt) for a in args[:4]]
                    + [_weight_spec(a, single_buffer_weights) for a in args[4:]])
        return pl.pallas_call(
            kern,
            out_shape=jax.ShapeDtypeStruct((b, N, C), feat_map.dtype),
            grid=grid,
            in_specs=in_specs,
            out_specs=_batched_spec((b, N, C), bt),
            compiler_params=pltpu.CompilerParams(
                dimension_semantics=("parallel",),
                vmem_limit_bytes=vmem_limit),
        )(*args)

    try:
        y = call(True)
    except Exception:   # pragma: no cover — fall back if Buffered(1) is unsupported
        y = call(False)

    # glue: back to NCHW [b, C, h, w]
    return jnp.transpose(y, (0, 2, 1)).reshape(b, C, h, w)


# --------------------------- deterministic parameters --------------------------
def init_params(key, C, focal_level=3, num_layers=1, rates=(6, 12, 18), layerscale=1e-6):
    def nrm(k, shape, scale=0.02):
        return (scale * jax.random.normal(k, shape)).astype(jnp.float32)

    bf = lambda a: a.astype(jnp.bfloat16)  # MXU weights in bf16 (f32 accumulate in-kernel)
    keys = iter(jax.random.split(key, 8 * num_layers + 8))
    L = focal_level
    p = {
        "norm1_w": jnp.ones((1, C), jnp.float32), "norm1_b": jnp.zeros((1, C), jnp.float32),
        "norm2_w": jnp.ones((1, C), jnp.float32), "norm2_b": jnp.zeros((1, C), jnp.float32),
        "blocks": [],
    }
    for _ in range(num_layers):
        blk = {
            "ln1_w": jnp.ones((1, C), jnp.float32), "ln1_b": jnp.zeros((1, C), jnp.float32),
            # focal f-projection split into q / ctx / gates (lane-aligned matmul outputs)
            "fq_w": bf(nrm(next(keys), (C, C))), "fq_b": jnp.zeros((1, C), jnp.float32),
            "fc_w": bf(nrm(next(keys), (C, C))), "fc_b": jnp.zeros((1, C), jnp.float32),
            "fg_w": bf(nrm(next(keys), (C, L + 1))), "fg_b": jnp.zeros((1, L + 1), jnp.float32),
            # depthwise kernels: level l uses taps kw[l, 0:kernel_size_l] (zero-padded to 7)
            "kw": nrm(next(keys), (L, 7, C)),
            "h_w": bf(nrm(next(keys), (C, C))), "h_b": jnp.zeros((1, C), jnp.float32),
            "proj_w": bf(nrm(next(keys), (C, C))), "proj_b": jnp.zeros((1, C), jnp.float32),
            "ln2_w": jnp.ones((1, C), jnp.float32), "ln2_b": jnp.zeros((1, C), jnp.float32),
            "mlp_w1": bf(nrm(next(keys), (C, 4 * C))), "mlp_b1": jnp.zeros((1, 4 * C), jnp.float32),
            "mlp_w2": bf(nrm(next(keys), (4 * C, C))), "mlp_b2": jnp.zeros((1, C), jnp.float32),
            "g1": jnp.full((1, C), layerscale, jnp.float32),
            "g2": jnp.full((1, C), layerscale, jnp.float32),
        }
        p["blocks"].append(blk)

    # MFAC: 1x1 conv, dilated 1x3 convs (rates), global-pool 1x1, concat-project, ReLU.
    # Packed as one [C, (2+3*len(rates))*C] weight; projection split into per-branch
    # [C,C] chunks so branch slices stay on 128-lane boundaries when C % 128 == 0.
    # TODO(synk): MFAC source not provided; ASPP-style block (no BatchNorm) is used.
    w0 = nrm(next(keys), (C, C))
    wr = nrm(next(keys), (len(rates), 3, C, C))
    wp = nrm(next(keys), (C, C))
    w_packed = jnp.concatenate(
        [w0] + [wr[ri, ti] for ri in range(len(rates)) for ti in range(3)] + [wp], axis=1)
    p["mfac"] = {
        "w_packed": bf(w_packed),
        "b0": jnp.zeros((1, C), jnp.float32),
        "br": jnp.zeros((len(rates), 1, C), jnp.float32),
        "bp": jnp.zeros((1, C), jnp.float32),
        "wproj": bf(nrm(next(keys), (2 + len(rates), C, C))),
        "bproj": jnp.zeros((1, C), jnp.float32),
    }
    return p


# ------------------------------------ main -------------------------------------
if __name__ == "__main__":
    # C is a multiple of 128 (lane-dense channels) per the performance review.
    b, T, C = 2, 8, 128
    h, w = 1, 16
    N = h * w

    key = jax.random.PRNGKey(0)
    k_fm, k_fc, k_at, k_pr = jax.random.split(key, 4)

    feat_map = jax.random.normal(k_fm, (b, N, C), jnp.float32)
    feat_char = jax.random.normal(k_fc, (b, T, C), jnp.float32)
    char_attn_map = jax.nn.softmax(jax.random.normal(k_at, (b, T, N), jnp.float32), axis=-1)
    vis_mask = jnp.ones((b, N), jnp.float32)

    params = init_params(k_pr, C, focal_level=3, num_layers=1)

    out = feature_map_booster(params, feat_map, feat_char, char_attn_map, vis_mask, h=h)
    out = jax.block_until_ready(out)
    assert out.shape == (b, C, h, w)
    assert bool(jnp.all(jnp.isfinite(out)))
    print("KERNEL_OK")
</pallas_src>

<mosaic_0001>
module attributes {stable_mosaic.version = 11 : i64} {
  func.func @_booster_kernel(%arg0: i32, %arg1: memref<2x16x8xbf16, #tpu.memory_space<vmem>>, %arg2: memref<2x8x128xbf16, #tpu.memory_space<vmem>>, %arg3: memref<2x16x128xf32, #tpu.memory_space<vmem>>, %arg4: memref<2x16x1xf32, #tpu.memory_space<vmem>>, %arg5: memref<1x128xf32, #tpu.memory_space<vmem>>, %arg6: memref<1x128xf32, #tpu.memory_space<vmem>>, %arg7: memref<1x128xf32, #tpu.memory_space<vmem>>, %arg8: memref<1x128xf32, #tpu.memory_space<vmem>>, %arg9: memref<128x128xbf16, #tpu.memory_space<vmem>>, %arg10: memref<1x128xf32, #tpu.memory_space<vmem>>, %arg11: memref<128x128xbf16, #tpu.memory_space<vmem>>, %arg12: memref<1x128xf32, #tpu.memory_space<vmem>>, %arg13: memref<128x4xbf16, #tpu.memory_space<vmem>>, %arg14: memref<1x4xf32, #tpu.memory_space<vmem>>, %arg15: memref<3x7x128xf32, #tpu.memory_space<vmem>>, %arg16: memref<128x128xbf16, #tpu.memory_space<vmem>>, %arg17: memref<1x128xf32, #tpu.memory_space<vmem>>, %arg18: memref<128x128xbf16, #tpu.memory_space<vmem>>, %arg19: memref<1x128xf32, #tpu.memory_space<vmem>>, %arg20: memref<1x128xf32, #tpu.memory_space<vmem>>, %arg21: memref<1x128xf32, #tpu.memory_space<vmem>>, %arg22: memref<128x512xbf16, #tpu.memory_space<vmem>>, %arg23: memref<1x512xf32, #tpu.memory_space<vmem>>, %arg24: memref<512x128xbf16, #tpu.memory_space<vmem>>, %arg25: memref<1x128xf32, #tpu.memory_space<vmem>>, %arg26: memref<1x128xf32, #tpu.memory_space<vmem>>, %arg27: memref<1x128xf32, #tpu.memory_space<vmem>>, %arg28: memref<1x128xf32, #tpu.memory_space<vmem>>, %arg29: memref<1x128xf32, #tpu.memory_space<vmem>>, %arg30: memref<128x1408xbf16, #tpu.memory_space<vmem>>, %arg31: memref<1x128xf32, #tpu.memory_space<vmem>>, %arg32: memref<3x1x128xf32, #tpu.memory_space<vmem>>, %arg33: memref<1x128xf32, #tpu.memory_space<vmem>>, %arg34: memref<5x128x128xbf16, #tpu.memory_space<vmem>>, %arg35: memref<1x128xf32, #tpu.memory_space<vmem>>, %arg36: memref<2x16x128xf32, #tpu.memory_space<vmem>>) attributes {dimension_semantics = [#tpu.dimension_semantics<parallel>], iteration_bounds = array<i64: 1>, scalar_prefetch = 0 : i64, scratch_operands = 0 : i64, tpu.core_type = #tpu.core_type<tc>, window_params = [{transform_indices = @transform_0, window_bounds = array<i64: 2, 16, 8>}, {transform_indices = @transform_1, window_bounds = array<i64: 2, 8, 128>}, {transform_indices = @transform_2, window_bounds = array<i64: 2, 16, 128>}, {transform_indices = @transform_3, window_bounds = array<i64: 2, 16, 1>}, {pipeline_mode = #tpu.pipeline_mode<synchronous>, transform_indices = @transform_4, window_bounds = array<i64: 1, 128>}, {pipeline_mode = #tpu.pipeline_mode<synchronous>, transform_indices = @transform_5, window_bounds = array<i64: 1, 128>}, {pipeline_mode = #tpu.pipeline_mode<synchronous>, transform_indices = @transform_6, window_bounds = array<i64: 1, 128>}, {pipeline_mode = #tpu.pipeline_mode<synchronous>, transform_indices = @transform_7, window_bounds = array<i64: 1, 128>}, {pipeline_mode = #tpu.pipeline_mode<synchronous>, transform_indices = @transform_8, window_bounds = array<i64: 128, 128>}, {pipeline_mode = #tpu.pipeline_mode<synchronous>, transform_indices = @transform_9, window_bounds = array<i64: 1, 128>}, {pipeline_mode = #tpu.pipeline_mode<synchronous>, transform_indices = @transform_10, window_bounds = array<i64: 128, 128>}, {pipeline_mode = #tpu.pipeline_mode<synchronous>, transform_indices = @transform_11, window_bounds = array<i64: 1, 128>}, {pipeline_mode = #tpu.pipeline_mode<synchronous>, transform_indices = @transform_12, window_bounds = array<i64: 128, 4>}, {pipeline_mode = #tpu.pipeline_mode<synchronous>, transform_indices = @transform_13, window_bounds = array<i64: 1, 4>}, {pipeline_mode = #tpu.pipeline_mode<synchronous>, transform_indices = @transform_14, window_bounds = array<i64: 3, 7, 128>}, {pipeline_mode = #tpu.pipeline_mode<synchronous>, transform_indices = @transform_15, window_bounds = array<i64: 128, 128>}, {pipeline_mode = #tpu.pipeline_mode<synchronous>, transform_indices = @transform_16, window_bounds = array<i64: 1, 128>}, {pipeline_mode = #tpu.pipeline_mode<synchronous>, transform_indices = @transform_17, window_bounds = array<i64: 128, 128>}, {pipeline_mode = #tpu.pipeline_mode<synchronous>, transform_indices = @transform_18, window_bounds = array<i64: 1, 128>}, {pipeline_mode = #tpu.pipeline_mode<synchronous>, transform_indices = @transform_19, window_bounds = array<i64: 1, 128>}, {pipeline_mode = #tpu.pipeline_mode<synchronous>, transform_indices = @transform_20, window_bounds = array<i64: 1, 128>}, {pipeline_mode = #tpu.pipeline_mode<synchronous>, transform_indices = @transform_21, window_bounds = array<i64: 128, 512>}, {pipeline_mode = #tpu.pipeline_mode<synchronous>, transform_indices = @transform_22, window_bounds = array<i64: 1, 512>}, {pipeline_mode = #tpu.pipeline_mode<synchronous>, transform_indices = @transform_23, window_bounds = array<i64: 512, 128>}, {pipeline_mode = #tpu.pipeline_mode<synchronous>, transform_indices = @transform_24, window_bounds = array<i64: 1, 128>}, {pipeline_mode = #tpu.pipeline_mode<synchronous>, transform_indices = @transform_25, window_bounds = array<i64: 1, 128>}, {pipeline_mode = #tpu.pipeline_mode<synchronous>, transform_indices = @transform_26, window_bounds = array<i64: 1, 128>}, {pipeline_mode = #tpu.pipeline_mode<synchronous>, transform_indices = @transform_27, window_bounds = array<i64: 1, 128>}, {pipeline_mode = #tpu.pipeline_mode<synchronous>, transform_indices = @transform_28, window_bounds = array<i64: 1, 128>}, {pipeline_mode = #tpu.pipeline_mode<synchronous>, transform_indices = @transform_29, window_bounds = array<i64: 128, 1408>}, {pipeline_mode = #tpu.pipeline_mode<synchronous>, transform_indices = @transform_30, window_bounds = array<i64: 1, 128>}, {pipeline_mode = #tpu.pipeline_mode<synchronous>, transform_indices = @transform_31, window_bounds = array<i64: 3, 1, 128>}, {pipeline_mode = #tpu.pipeline_mode<synchronous>, transform_indices = @transform_32, window_bounds = array<i64: 1, 128>}, {pipeline_mode = #tpu.pipeline_mode<synchronous>, transform_indices = @transform_33, window_bounds = array<i64: 5, 128, 128>}, {pipeline_mode = #tpu.pipeline_mode<synchronous>, transform_indices = @transform_34, window_bounds = array<i64: 1, 128>}, {transform_indices = @transform_35, window_bounds = array<i64: 2, 16, 128>}]} {
    %0 = tpu.iota {dimensions = array<i32: 1>} : vector<2x16x128xi32>
    %1 = vector.shape_cast %0 : vector<2x16x128xi32> to vector<32x128xi32>
    %c0 = arith.constant 0 : index
    %c0_0 = arith.constant 0 : index
    %c0_1 = arith.constant 0 : index
    %2 = vector.load %arg1[%c0, %c0_0, %c0_1] : memref<2x16x8xbf16, #tpu.memory_space<vmem>>, vector<2x16x8xbf16>
    %c0_2 = arith.constant 0 : index
    %c0_3 = arith.constant 0 : index
    %c0_4 = arith.constant 0 : index
    %3 = vector.load %arg2[%c0_2, %c0_3, %c0_4] : memref<2x8x128xbf16, #tpu.memory_space<vmem>>, vector<2x8x128xbf16>
    "tpu.trace_start"() <{level = 10 : i32, message = "bnt,btc->bnc"}> : () -> ()
    %cst = arith.constant dense<0.000000e+00> : vector<2x16x128xf32>
    %4 = tpu.matmul %2, %3, %cst {dimension_numbers = #tpu.dot_dimension_numbers<[2], [1], [1], [2], [0, 0, 0, 1, 1, 2], [0], [0]>} : vector<2x16x8xbf16>, vector<2x8x128xbf16>, vector<2x16x128xf32> -> vector<2x16x128xf32>
    "tpu.trace_stop"() : () -> ()
    %5 = vector.shape_cast %4 : vector<2x16x128xf32> to vector<32x128xf32>
    %c0_5 = arith.constant 0 : index
    %c0_6 = arith.constant 0 : index
    %c0_7 = arith.constant 0 : index
    %6 = vector.load %arg3[%c0_5, %c0_6, %c0_7] : memref<2x16x128xf32, #tpu.memory_space<vmem>>, vector<2x16x128xf32>
    %7 = vector.shape_cast %6 : vector<2x16x128xf32> to vector<32x128xf32>
    %c0_8 = arith.constant 0 : index
    %c0_9 = arith.constant 0 : index
    %8 = vector.load %arg5[%c0_8, %c0_9] : memref<1x128xf32, #tpu.memory_space<vmem>>, vector<1x128xf32>
    %9 = vector.shape_cast %8 : vector<1x128xf32> to vector<128xf32>
    %c0_10 = arith.constant 0 : index
    %c0_11 = arith.constant 0 : index
    %10 = vector.load %arg6[%c0_10, %c0_11] : memref<1x128xf32, #tpu.memory_space<vmem>>, vector<1x128xf32>
    %11 = vector.shape_cast %10 : vector<1x128xf32> to vector<128xf32>
    %cst_12 = arith.constant dense<0.000000e+00> : vector<32xf32>
    %12 = vector.multi_reduction <add>, %5, %cst_12 [1] : vector<32x128xf32> to vector<32xf32>
    %13 = vector.shape_cast %12 : vector<32xf32> to vector<32x1xf32>
    %cst_13 = arith.constant 1.280000e+02 : f32
    %14 = vector.broadcast %cst_13 : f32 to vector<32x1xf32>
    %15 = arith.divf %13, %14 : vector<32x1xf32>
    %16 = vector.broadcast %15 : vector<32x1xf32> to vector<32x128xf32>
    %17 = arith.subf %5, %16 : vector<32x128xf32>
    %18 = arith.mulf %17, %17 : vector<32x128xf32>
    %cst_14 = arith.constant dense<0.000000e+00> : vector<32xf32>
    %19 = vector.multi_reduction <add>, %18, %cst_14 [1] : vector<32x128xf32> to vector<32xf32>
    %20 = vector.shape_cast %19 : vector<32xf32> to vector<32x1xf32>
    %cst_15 = arith.constant 1.280000e+02 : f32
    %21 = vector.broadcast %cst_15 : f32 to vector<32x1xf32>
    %22 = arith.divf %20, %21 : vector<32x1xf32>
    %23 = vector.broadcast %15 : vector<32x1xf32> to vector<32x128xf32>
    %24 = arith.subf %5, %23 : vector<32x128xf32>
    %cst_16 = arith.constant 9.99999974E-6 : f32
    %25 = vector.broadcast %cst_16 : f32 to vector<32x1xf32>
    %26 = arith.addf %22, %25 : vector<32x1xf32>
    %27 = math.rsqrt %26 : vector<32x1xf32>
    %28 = vector.broadcast %27 : vector<32x1xf32> to vector<32x128xf32>
    %29 = arith.mulf %24, %28 : vector<32x128xf32>
    %30 = vector.shape_cast %9 : vector<128xf32> to vector<1x128xf32>
    %31 = vector.broadcast %30 : vector<1x128xf32> to vector<32x128xf32>
    %32 = arith.mulf %29, %31 : vector<32x128xf32>
    %33 = vector.shape_cast %11 : vector<128xf32> to vector<1x128xf32>
    %34 = vector.broadcast %33 : vector<1x128xf32> to vector<32x128xf32>
    %35 = arith.addf %32, %34 : vector<32x128xf32>
    %36 = arith.addf %7, %35 : vector<32x128xf32>
    %c0_17 = arith.constant 0 : index
    %c0_18 = arith.constant 0 : index
    %37 = vector.load %arg7[%c0_17, %c0_18] : memref<1x128xf32, #tpu.memory_space<vmem>>, vector<1x128xf32>
    %38 = vector.shape_cast %37 : vector<1x128xf32> to vector<128xf32>
    %c0_19 = arith.constant 0 : index
    %c0_20 = arith.constant 0 : index
    %39 = vector.load %arg8[%c0_19, %c0_20] : memref<1x128xf32, #tpu.memory_space<vmem>>, vector<1x128xf32>
    %40 = vector.shape_cast %39 : vector<1x128xf32> to vector<128xf32>
    %cst_21 = arith.constant dense<0.000000e+00> : vector<32xf32>
    %41 = vector.multi_reduction <add>, %36, %cst_21 [1] : vector<32x128xf32> to vector<32xf32>
    %42 = vector.shape_cast %41 : vector<32xf32> to vector<32x1xf32>
    %cst_22 = arith.constant 1.280000e+02 : f32
    %43 = vector.broadcast %cst_22 : f32 to vector<32x1xf32>
    %44 = arith.divf %42, %43 : vector<32x1xf32>
    %45 = vector.broadcast %44 : vector<32x1xf32> to vector<32x128xf32>
    %46 = arith.subf %36, %45 : vector<32x128xf32>
    %47 = arith.mulf %46, %46 : vector<32x128xf32>
    %cst_23 = arith.constant dense<0.000000e+00> : vector<32xf32>
    %48 = vector.multi_reduction <add>, %47, %cst_23 [1] : vector<32x128xf32> to vector<32xf32>
    %49 = vector.shape_cast %48 : vector<32xf32> to vector<32x1xf32>
    %cst_24 = arith.constant 1.280000e+02 : f32
    %50 = vector.broadcast %cst_24 : f32 to vector<32x1xf32>
    %51 = arith.divf %49, %50 : vector<32x1xf32>
    %52 = vector.broadcast %44 : vector<32x1xf32> to vector<32x128xf32>
    %53 = arith.subf %36, %52 : vector<32x128xf32>
    %cst_25 = arith.constant 9.99999974E-6 : f32
    %54 = vector.broadcast %cst_25 : f32 to vector<32x1xf32>
    %55 = arith.addf %51, %54 : vector<32x1xf32>
    %56 = math.rsqrt %55 : vector<32x1xf32>
    %57 = vector.broadcast %56 : vector<32x1xf32> to vector<32x128xf32>
    %58 = arith.mulf %53, %57 : vector<32x128xf32>
    %59 = vector.shape_cast %38 : vector<128xf32> to vector<1x128xf32>
    %60 = vector.broadcast %59 : vector<1x128xf32> to vector<32x128xf32>
    %61 = arith.mulf %58, %60 : vector<32x128xf32>
    %62 = vector.shape_cast %40 : vector<128xf32> to vector<1x128xf32>
    %63 = vector.broadcast %62 : vector<1x128xf32> to vector<32x128xf32>
    %64 = arith.addf %61, %63 : vector<32x128xf32>
    %65 = arith.truncf %64 : vector<32x128xf32> to vector<32x128xbf16>
    %c0_26 = arith.constant 0 : index
    %c0_27 = arith.constant 0 : index
    %66 = vector.load %arg9[%c0_26, %c0_27] : memref<128x128xbf16, #tpu.memory_space<vmem>>, vector<128x128xbf16>
    %cst_28 = arith.constant dense<0.000000e+00> : vector<32x128xf32>
    %67 = tpu.matmul %65, %66, %cst_28 {dimension_numbers = #tpu.dot_dimension_numbers<[1], [0], [0], [1], [0, 0, 1, 1], [], []>} : vector<32x128xbf16>, vector<128x128xbf16>, vector<32x128xf32> -> vector<32x128xf32>
    %c0_29 = arith.constant 0 : index
    %c0_30 = arith.constant 0 : index
    %68 = vector.load %arg10[%c0_29, %c0_30] : memref<1x128xf32, #tpu.memory_space<vmem>>, vector<1x128xf32>
    %69 = vector.shape_cast %68 : vector<1x128xf32> to vector<128xf32>
    %70 = vector.shape_cast %69 : vector<128xf32> to vector<1x128xf32>
    %71 = vector.broadcast %70 : vector<1x128xf32> to vector<32x128xf32>
    %72 = arith.addf %67, %71 : vector<32x128xf32>
    %c0_31 = arith.constant 0 : index
    %c0_32 = arith.constant 0 : index
    %73 = vector.load %arg11[%c0_31, %c0_32] : memref<128x128xbf16, #tpu.memory_space<vmem>>, vector<128x128xbf16>
    %cst_33 = arith.constant dense<0.000000e+00> : vector<32x128xf32>
    %74 = tpu.matmul %65, %73, %cst_33 {dimension_numbers = #tpu.dot_dimension_numbers<[1], [0], [0], [1], [0, 0, 1, 1], [], []>} : vector<32x128xbf16>, vector<128x128xbf16>, vector<32x128xf32> -> vector<32x128xf32>
    %c0_34 = arith.constant 0 : index
    %c0_35 = arith.constant 0 : index
    %75 = vector.load %arg12[%c0_34, %c0_35] : memref<1x128xf32, #tpu.memory_space<vmem>>, vector<1x128xf32>
    %76 = vector.shape_cast %75 : vector<1x128xf32> to vector<128xf32>
    %77 = vector.shape_cast %76 : vector<128xf32> to vector<1x128xf32>
    %78 = vector.broadcast %77 : vector<1x128xf32> to vector<32x128xf32>
    %79 = arith.addf %74, %78 : vector<32x128xf32>
    %c0_36 = arith.constant 0 : index
    %c0_37 = arith.constant 0 : index
    %80 = vector.load %arg13[%c0_36, %c0_37] : memref<128x4xbf16, #tpu.memory_space<vmem>>, vector<128x4xbf16>
    %cst_38 = arith.constant dense<0.000000e+00> : vector<32x4xf32>
    %81 = tpu.matmul %65, %80, %cst_38 {dimension_numbers = #tpu.dot_dimension_numbers<[1], [0], [0], [1], [0, 0, 1, 1], [], []>} : vector<32x128xbf16>, vector<128x4xbf16>, vector<32x4xf32> -> vector<32x4xf32>
    %c0_39 = arith.constant 0 : index
    %c0_40 = arith.constant 0 : index
    %82 = vector.load %arg14[%c0_39, %c0_40] : memref<1x4xf32, #tpu.memory_space<vmem>>, vector<1x4xf32>
    %83 = vector.shape_cast %82 : vector<1x4xf32> to vector<4xf32>
    %84 = vector.shape_cast %83 : vector<4xf32> to vector<1x4xf32>
    %85 = vector.broadcast %84 : vector<1x4xf32> to vector<32x4xf32>
    %86 = arith.addf %81, %85 : vector<32x4xf32>
    %cst_41 = arith.constant 0.000000e+00 : f32
    %87 = vector.broadcast %cst_41 : f32 to vector<32x128xf32>
    %cst_42 = arith.constant 0.000000e+00 : f32
    %88 = vector.broadcast %cst_42 : f32 to vector<32x128xf32>
    %c1_i32 = arith.constant 1 : i32
    %89 = tpu.dynamic_rotate %79 by %c1_i32 dim 0 : vector<32x128xf32>, i32 -> vector<32x128xf32>
    %c1_i32_43 = arith.constant 1 : i32
    %90 = vector.broadcast %c1_i32_43 : i32 to vector<32x128xi32>
    %91 = arith.cmpi sge, %1, %90 : vector<32x128xi32>
    %cst_44 = arith.constant 0.000000e+00 : f32
    %92 = vector.broadcast %cst_44 : f32 to vector<32x128xf32>
    %93 = arith.select %91, %89, %92 : vector<32x128xi1>, vector<32x128xf32>
    %c0_45 = arith.constant 0 : index
    %c0_46 = arith.constant 0 : index
    %c0_47 = arith.constant 0 : index
    %94 = vector.load %arg15[%c0_45, %c0_46, %c0_47] : memref<3x7x128xf32, #tpu.memory_space<vmem>>, vector<1x1x128xf32>
    %95 = vector.shape_cast %94 : vector<1x1x128xf32> to vector<128xf32>
    %96 = vector.shape_cast %95 : vector<128xf32> to vector<1x128xf32>
    %97 = vector.broadcast %96 : vector<1x128xf32> to vector<32x128xf32>
    %98 = arith.mulf %93, %97 : vector<32x128xf32>
    %99 = arith.addf %88, %98 : vector<32x128xf32>
    %c0_48 = arith.constant 0 : index
    %c1 = arith.constant 1 : index
    %c0_49 = arith.constant 0 : index
    %100 = vector.load %arg15[%c0_48, %c1, %c0_49] : memref<3x7x128xf32, #tpu.memory_space<vmem>>, vector<1x1x128xf32>
    %101 = vector.shape_cast %100 : vector<1x1x128xf32> to vector<128xf32>
    %102 = vector.shape_cast %101 : vector<128xf32> to vector<1x128xf32>
    %103 = vector.broadcast %102 : vector<1x128xf32> to vector<32x128xf32>
    %104 = arith.mulf %79, %103 : vector<32x128xf32>
    %105 = arith.addf %99, %104 : vector<32x128xf32>
    %c31_i32 = arith.constant 31 : i32
    %106 = tpu.dynamic_rotate %79 by %c31_i32 dim 0 : vector<32x128xf32>, i32 -> vector<32x128xf32>
    %c15_i32 = arith.constant 15 : i32
    %107 = vector.broadcast %c15_i32 : i32 to vector<32x128xi32>
    %108 = arith.cmpi slt, %1, %107 : vector<32x128xi32>
    %cst_50 = arith.constant 0.000000e+00 : f32
    %109 = vector.broadcast %cst_50 : f32 to vector<32x128xf32>
    %110 = arith.select %108, %106, %109 : vector<32x128xi1>, vector<32x128xf32>
    %c0_51 = arith.constant 0 : index
    %c2 = arith.constant 2 : index
    %c0_52 = arith.constant 0 : index
    %111 = vector.load %arg15[%c0_51, %c2, %c0_52] : memref<3x7x128xf32, #tpu.memory_space<vmem>>, vector<1x1x128xf32>
    %112 = vector.shape_cast %111 : vector<1x1x128xf32> to vector<128xf32>
    %113 = vector.shape_cast %112 : vector<128xf32> to vector<1x128xf32>
    %114 = vector.broadcast %113 : vector<1x128xf32> to vector<32x128xf32>
    %115 = arith.mulf %110, %114 : vector<32x128xf32>
    %116 = arith.addf %105, %115 : vector<32x128xf32>
    %cst_53 = arith.constant 5.000000e-01 : f32
    %117 = vector.broadcast %cst_53 : f32 to vector<32x128xf32>
    %118 = arith.mulf %117, %116 : vector<32x128xf32>
    %cst_54 = arith.constant 4.471500e-02 : f32
    %119 = vector.broadcast %cst_54 : f32 to vector<32x128xf32>
    %120 = arith.mulf %119, %116 : vector<32x128xf32>
    %121 = arith.mulf %120, %116 : vector<32x128xf32>
    %122 = arith.mulf %121, %116 : vector<32x128xf32>
    %123 = arith.addf %116, %122 : vector<32x128xf32>
    %cst_55 = arith.constant 0.797884583 : f32
    %124 = vector.broadcast %cst_55 : f32 to vector<32x128xf32>
    %125 = arith.mulf %124, %123 : vector<32x128xf32>
    %126 = math.tanh %125 : vector<32x128xf32>
    %cst_56 = arith.constant 1.000000e+00 : f32
    %127 = vector.broadcast %cst_56 : f32 to vector<32x128xf32>
    %128 = arith.addf %127, %126 : vector<32x128xf32>
    %129 = arith.mulf %118, %128 : vector<32x128xf32>
    %130 = vector.extract_strided_slice %86 {offsets = [0, 0], sizes = [32, 1], strides = [1, 1]} : vector<32x4xf32> to vector<32x1xf32>
    %131 = vector.broadcast %130 : vector<32x1xf32> to vector<32x128xf32>
    %132 = arith.mulf %129, %131 : vector<32x128xf32>
    %133 = arith.addf %87, %132 : vector<32x128xf32>
    %cst_57 = arith.constant 0.000000e+00 : f32
    %134 = vector.broadcast %cst_57 : f32 to vector<32x128xf32>
    %c2_i32 = arith.constant 2 : i32
    %135 = tpu.dynamic_rotate %129 by %c2_i32 dim 0 : vector<32x128xf32>, i32 -> vector<32x128xf32>
    %c2_i32_58 = arith.constant 2 : i32
    %136 = vector.broadcast %c2_i32_58 : i32 to vector<32x128xi32>
    %137 = arith.cmpi sge, %1, %136 : vector<32x128xi32>
    %cst_59 = arith.constant 0.000000e+00 : f32
    %138 = vector.broadcast %cst_59 : f32 to vector<32x128xf32>
    %139 = arith.select %137, %135, %138 : vector<32x128xi1>, vector<32x128xf32>
    %c1_60 = arith.constant 1 : index
    %c0_61 = arith.constant 0 : index
    %c0_62 = arith.constant 0 : index
    %140 = vector.load %arg15[%c1_60, %c0_61, %c0_62] : memref<3x7x128xf32, #tpu.memory_space<vmem>>, vector<1x1x128xf32>
    %141 = vector.shape_cast %140 : vector<1x1x128xf32> to vector<128xf32>
    %142 = vector.shape_cast %141 : vector<128xf32> to vector<1x128xf32>
    %143 = vector.broadcast %142 : vector<1x128xf32> to vector<32x128xf32>
    %144 = arith.mulf %139, %143 : vector<32x128xf32>
    %145 = arith.addf %134, %144 : vector<32x128xf32>
    %c1_i32_63 = arith.constant 1 : i32
    %146 = tpu.dynamic_rotate %129 by %c1_i32_63 dim 0 : vector<32x128xf32>, i32 -> vector<32x128xf32>
    %cst_64 = arith.constant 0.000000e+00 : f32
    %147 = vector.broadcast %cst_64 : f32 to vector<32x128xf32>
    %148 = arith.select %91, %146, %147 : vector<32x128xi1>, vector<32x128xf32>
    %c1_65 = arith.constant 1 : index
    %c1_66 = arith.constant 1 : index
    %c0_67 = arith.constant 0 : index
    %149 = vector.load %arg15[%c1_65, %c1_66, %c0_67] : memref<3x7x128xf32, #tpu.memory_space<vmem>>, vector<1x1x128xf32>
    %150 = vector.shape_cast %149 : vector<1x1x128xf32> to vector<128xf32>
    %151 = vector.shape_cast %150 : vector<128xf32> to vector<1x128xf32>
    %152 = vector.broadcast %151 : vector<1x128xf32> to vector<32x128xf32>
    %153 = arith.mulf %148, %152 : vector<32x128xf32>
    %154 = arith.addf %145, %153 : vector<32x128xf32>
    %c1_68 = arith.constant 1 : index
    %c2_69 = arith.constant 2 : index
    %c0_70 = arith.constant 0 : index
    %155 = vector.load %arg15[%c1_68, %c2_69, %c0_70] : memref<3x7x128xf32, #tpu.memory_space<vmem>>, vector<1x1x128xf32>
    %156 = vector.shape_cast %155 : vector<1x1x128xf32> to vector<128xf32>
    %157 = vector.shape_cast %156 : vector<128xf32> to vector<1x128xf32>
    %158 = vector.broadcast %157 : vector<1x128xf32> to vector<32x128xf32>
    %159 = arith.mulf %129, %158 : vector<32x128xf32>
    %160 = arith.addf %154, %159 : vector<32x128xf32>
    %c31_i32_71 = arith.constant 31 : i32
    %161 = tpu.dynamic_rotate %129 by %c31_i32_71 dim 0 : vector<32x128xf32>, i32 -> vector<32x128xf32>
    %cst_72 = arith.constant 0.000000e+00 : f32
    %162 = vector.broadcast %cst_72 : f32 to vector<32x128xf32>
    %163 = arith.select %108, %161, %162 : vector<32x128xi1>, vector<32x128xf32>
    %c1_73 = arith.constant 1 : index
    %c3 = arith.constant 3 : index
    %c0_74 = arith.constant 0 : index
    %164 = vector.load %arg15[%c1_73, %c3, %c0_74] : memref<3x7x128xf32, #tpu.memory_space<vmem>>, vector<1x1x128xf32>
    %165 = vector.shape_cast %164 : vector<1x1x128xf32> to vector<128xf32>
    %166 = vector.shape_cast %165 : vector<128xf32> to vector<1x128xf32>
    %167 = vector.broadcast %166 : vector<1x128xf32> to vector<32x128xf32>
    %168 = arith.mulf %163, %167 : vector<32x128xf32>
    %169 = arith.addf %160, %168 : vector<32x128xf32>
    %c30_i32 = arith.constant 30 : i32
    %170 = tpu.dynamic_rotate %129 by %c30_i32 dim 0 : vector<32x128xf32>, i32 -> vector<32x128xf32>
    %c14_i32 = arith.constant 14 : i32
    %171 = vector.broadcast %c14_i32 : i32 to vector<32x128xi32>
    %172 = arith.cmpi slt, %1, %171 : vector<32x128xi32>
    %cst_75 = arith.constant 0.000000e+00 : f32
    %173 = vector.broadcast %cst_75 : f32 to vector<32x128xf32>
    %174 = arith.select %172, %170, %173 : vector<32x128xi1>, vector<32x128xf32>
    %c1_76 = arith.constant 1 : index
    %c4 = arith.constant 4 : index
    %c0_77 = arith.constant 0 : index
    %175 = vector.load %arg15[%c1_76, %c4, %c0_77] : memref<3x7x128xf32, #tpu.memory_space<vmem>>, vector<1x1x128xf32>
    %176 = vector.shape_cast %175 : vector<1x1x128xf32> to vector<128xf32>
    %177 = vector.shape_cast %176 : vector<128xf32> to vector<1x128xf32>
    %178 = vector.broadcast %177 : vector<1x128xf32> to vector<32x128xf32>
    %179 = arith.mulf %174, %178 : vector<32x128xf32>
    %180 = arith.addf %169, %179 : vector<32x128xf32>
    %cst_78 = arith.constant 5.000000e-01 : f32
    %181 = vector.broadcast %cst_78 : f32 to vector<32x128xf32>
    %182 = arith.mulf %181, %180 : vector<32x128xf32>
    %cst_79 = arith.constant 4.471500e-02 : f32
    %183 = vector.broadcast %cst_79 : f32 to vector<32x128xf32>
    %184 = arith.mulf %183, %180 : vector<32x128xf32>
    %185 = arith.mulf %184, %180 : vector<32x128xf32>
    %186 = arith.mulf %185, %180 : vector<32x128xf32>
    %187 = arith.addf %180, %186 : vector<32x128xf32>
    %cst_80 = arith.constant 0.797884583 : f32
    %188 = vector.broadcast %cst_80 : f32 to vector<32x128xf32>
    %189 = arith.mulf %188, %187 : vector<32x128xf32>
    %190 = math.tanh %189 : vector<32x128xf32>
    %cst_81 = arith.constant 1.000000e+00 : f32
    %191 = vector.broadcast %cst_81 : f32 to vector<32x128xf32>
    %192 = arith.addf %191, %190 : vector<32x128xf32>
    %193 = arith.mulf %182, %192 : vector<32x128xf32>
    %194 = vector.extract_strided_slice %86 {offsets = [0, 1], sizes = [32, 1], strides = [1, 1]} : vector<32x4xf32> to vector<32x1xf32>
    %195 = vector.broadcast %194 : vector<32x1xf32> to vector<32x128xf32>
    %196 = arith.mulf %193, %195 : vector<32x128xf32>
    %197 = arith.addf %133, %196 : vector<32x128xf32>
    %cst_82 = arith.constant 0.000000e+00 : f32
    %198 = vector.broadcast %cst_82 : f32 to vector<32x128xf32>
    %c3_i32 = arith.constant 3 : i32
    %199 = tpu.dynamic_rotate %193 by %c3_i32 dim 0 : vector<32x128xf32>, i32 -> vector<32x128xf32>
    %c3_i32_83 = arith.constant 3 : i32
    %200 = vector.broadcast %c3_i32_83 : i32 to vector<32x128xi32>
    %201 = arith.cmpi sge, %1, %200 : vector<32x128xi32>
    %cst_84 = arith.constant 0.000000e+00 : f32
    %202 = vector.broadcast %cst_84 : f32 to vector<32x128xf32>
    %203 = arith.select %201, %199, %202 : vector<32x128xi1>, vector<32x128xf32>
    %c2_85 = arith.constant 2 : index
    %c0_86 = arith.constant 0 : index
    %c0_87 = arith.constant 0 : index
    %204 = vector.load %arg15[%c2_85, %c0_86, %c0_87] : memref<3x7x128xf32, #tpu.memory_space<vmem>>, vector<1x1x128xf32>
    %205 = vector.shape_cast %204 : vector<1x1x128xf32> to vector<128xf32>
    %206 = vector.shape_cast %205 : vector<128xf32> to vector<1x128xf32>
    %207 = vector.broadcast %206 : vector<1x128xf32> to vector<32x128xf32>
    %208 = arith.mulf %203, %207 : vector<32x128xf32>
    %209 = arith.addf %198, %208 : vector<32x128xf32>
    %c2_i32_88 = arith.constant 2 : i32
    %210 = tpu.dynamic_rotate %193 by %c2_i32_88 dim 0 : vector<32x128xf32>, i32 -> vector<32x128xf32>
    %cst_89 = arith.constant 0.000000e+00 : f32
    %211 = vector.broadcast %cst_89 : f32 to vector<32x128xf32>
    %212 = arith.select %137, %210, %211 : vector<32x128xi1>, vector<32x128xf32>
    %c2_90 = arith.constant 2 : index
    %c1_91 = arith.constant 1 : index
    %c0_92 = arith.constant 0 : index
    %213 = vector.load %arg15[%c2_90, %c1_91, %c0_92] : memref<3x7x128xf32, #tpu.memory_space<vmem>>, vector<1x1x128xf32>
    %214 = vector.shape_cast %213 : vector<1x1x128xf32> to vector<128xf32>
    %215 = vector.shape_cast %214 : vector<128xf32> to vector<1x128xf32>
    %216 = vector.broadcast %215 : vector<1x128xf32> to vector<32x128xf32>
    %217 = arith.mulf %212, %216 : vector<32x128xf32>
    %218 = arith.addf %209, %217 : vector<32x128xf32>
    %c1_i32_93 = arith.constant 1 : i32
    %219 = tpu.dynamic_rotate %193 by %c1_i32_93 dim 0 : vector<32x128xf32>, i32 -> vector<32x128xf32>
    %cst_94 = arith.constant 0.000000e+00 : f32
    %220 = vector.broadcast %cst_94 : f32 to vector<32x128xf32>
    %221 = arith.select %91, %219, %220 : vector<32x128xi1>, vector<32x128xf32>
    %c2_95 = arith.constant 2 : index
    %c2_96 = arith.constant 2 : index
    %c0_97 = arith.constant 0 : index
    %222 = vector.load %arg15[%c2_95, %c2_96, %c0_97] : memref<3x7x128xf32, #tpu.memory_space<vmem>>, vector<1x1x128xf32>
    %223 = vector.shape_cast %222 : vector<1x1x128xf32> to vector<128xf32>
    %224 = vector.shape_cast %223 : vector<128xf32> to vector<1x128xf32>
    %225 = vector.broadcast %224 : vector<1x128xf32> to vector<32x128xf32>
    %226 = arith.mulf %221, %225 : vector<32x128xf32>
    %227 = arith.addf %218, %226 : vector<32x128xf32>
    %c2_98 = arith.constant 2 : index
    %c3_99 = arith.constant 3 : index
    %c0_100 = arith.constant 0 : index
    %228 = vector.load %arg15[%c2_98, %c3_99, %c0_100] : memref<3x7x128xf32, #tpu.memory_space<vmem>>, vector<1x1x128xf32>
    %229 = vector.shape_cast %228 : vector<1x1x128xf32> to vector<128xf32>
    %230 = vector.shape_cast %229 : vector<128xf32> to vector<1x128xf32>
    %231 = vector.broadcast %230 : vector<1x128xf32> to vector<32x128xf32>
    %232 = arith.mulf %193, %231 : vector<32x128xf32>
    %233 = arith.addf %227, %232 : vector<32x128xf32>
    %c31_i32_101 = arith.constant 31 : i32
    %234 = tpu.dynamic_rotate %193 by %c31_i32_101 dim 0 : vector<32x128xf32>, i32 -> vector<32x128xf32>
    %cst_102 = arith.constant 0.000000e+00 : f32
    %235 = vector.broadcast %cst_102 : f32 to vector<32x128xf32>
    %236 = arith.select %108, %234, %235 : vector<32x128xi1>, vector<32x128xf32>
    %c2_103 = arith.constant 2 : index
    %c4_104 = arith.constant 4 : index
    %c0_105 = arith.constant 0 : index
    %237 = vector.load %arg15[%c2_103, %c4_104, %c0_105] : memref<3x7x128xf32, #tpu.memory_space<vmem>>, vector<1x1x128xf32>
    %238 = vector.shape_cast %237 : vector<1x1x128xf32> to vector<128xf32>
    %239 = vector.shape_cast %238 : vector<128xf32> to vector<1x128xf32>
    %240 = vector.broadcast %239 : vector<1x128xf32> to vector<32x128xf32>
    %241 = arith.mulf %236, %240 : vector<32x128xf32>
    %242 = arith.addf %233, %241 : vector<32x128xf32>
    %c30_i32_106 = arith.constant 30 : i32
    %243 = tpu.dynamic_rotate %193 by %c30_i32_106 dim 0 : vector<32x128xf32>, i32 -> vector<32x128xf32>
    %cst_107 = arith.constant 0.000000e+00 : f32
    %244 = vector.broadcast %cst_107 : f32 to vector<32x128xf32>
    %245 = arith.select %172, %243, %244 : vector<32x128xi1>, vector<32x128xf32>
    %c2_108 = arith.constant 2 : index
    %c5 = arith.constant 5 : index
    %c0_109 = arith.constant 0 : index
    %246 = vector.load %arg15[%c2_108, %c5, %c0_109] : memref<3x7x128xf32, #tpu.memory_space<vmem>>, vector<1x1x128xf32>
    %247 = vector.shape_cast %246 : vector<1x1x128xf32> to vector<128xf32>
    %248 = vector.shape_cast %247 : vector<128xf32> to vector<1x128xf32>
    %249 = vector.broadcast %248 : vector<1x128xf32> to vector<32x128xf32>
    %250 = arith.mulf %245, %249 : vector<32x128xf32>
    %251 = arith.addf %242, %250 : vector<32x128xf32>
    %c29_i32 = arith.constant 29 : i32
    %252 = tpu.dynamic_rotate %193 by %c29_i32 dim 0 : vector<32x128xf32>, i32 -> vector<32x128xf32>
    %c13_i32 = arith.constant 13 : i32
    %253 = vector.broadcast %c13_i32 : i32 to vector<32x128xi32>
    %254 = arith.cmpi slt, %1, %253 : vector<32x128xi32>
    %cst_110 = arith.constant 0.000000e+00 : f32
    %255 = vector.broadcast %cst_110 : f32 to vector<32x128xf32>
    %256 = arith.select %254, %252, %255 : vector<32x128xi1>, vector<32x128xf32>
    %c2_111 = arith.constant 2 : index
    %c6 = arith.constant 6 : index
    %c0_112 = arith.constant 0 : index
    %257 = vector.load %arg15[%c2_111, %c6, %c0_112] : memref<3x7x128xf32, #tpu.memory_space<vmem>>, vector<1x1x128xf32>
    %258 = vector.shape_cast %257 : vector<1x1x128xf32> to vector<128xf32>
    %259 = vector.shape_cast %258 : vector<128xf32> to vector<1x128xf32>
    %260 = vector.broadcast %259 : vector<1x128xf32> to vector<32x128xf32>
    %261 = arith.mulf %256, %260 : vector<32x128xf32>
    %262 = arith.addf %251, %261 : vector<32x128xf32>
    %cst_113 = arith.constant 5.000000e-01 : f32
    %263 = vector.broadcast %cst_113 : f32 to vector<32x128xf32>
    %264 = arith.mulf %263, %262 : vector<32x128xf32>
    %cst_114 = arith.constant 4.471500e-02 : f32
    %265 = vector.broadcast %cst_114 : f32 to vector<32x128xf32>
    %266 = arith.mulf %265, %262 : vector<32x128xf32>
    %267 = arith.mulf %266, %262 : vector<32x128xf32>
    %268 = arith.mulf %267, %262 : vector<32x128xf32>
    %269 = arith.addf %262, %268 : vector<32x128xf32>
    %cst_115 = arith.constant 0.797884583 : f32
    %270 = vector.broadcast %cst_115 : f32 to vector<32x128xf32>
    %271 = arith.mulf %270, %269 : vector<32x128xf32>
    %272 = math.tanh %271 : vector<32x128xf32>
    %cst_116 = arith.constant 1.000000e+00 : f32
    %273 = vector.broadcast %cst_116 : f32 to vector<32x128xf32>
    %274 = arith.addf %273, %272 : vector<32x128xf32>
    %275 = arith.mulf %264, %274 : vector<32x128xf32>
    %276 = vector.extract_strided_slice %86 {offsets = [0, 2], sizes = [32, 1], strides = [1, 1]} : vector<32x4xf32> to vector<32x1xf32>
    %277 = vector.broadcast %276 : vector<32x1xf32> to vector<32x128xf32>
    %278 = arith.mulf %275, %277 : vector<32x128xf32>
    %279 = arith.addf %197, %278 : vector<32x128xf32>
    %280 = vector.shape_cast %275 : vector<32x128xf32> to vector<2x16x128xf32>
    %cst_117 = arith.constant dense<0.000000e+00> : vector<2x128xf32>
    %281 = vector.multi_reduction <add>, %280, %cst_117 [1] : vector<2x16x128xf32> to vector<2x128xf32>
    %282 = vector.shape_cast %281 : vector<2x128xf32> to vector<2x1x128xf32>
    %cst_118 = arith.constant 1.600000e+01 : f32
    %283 = vector.broadcast %cst_118 : f32 to vector<2x1x128xf32>
    %284 = arith.divf %282, %283 : vector<2x1x128xf32>
    %cst_119 = arith.constant 5.000000e-01 : f32
    %285 = vector.broadcast %cst_119 : f32 to vector<2x1x128xf32>
    %286 = arith.mulf %285, %284 : vector<2x1x128xf32>
    %cst_120 = arith.constant 4.471500e-02 : f32
    %287 = vector.broadcast %cst_120 : f32 to vector<2x1x128xf32>
    %288 = arith.mulf %287, %284 : vector<2x1x128xf32>
    %289 = arith.mulf %288, %284 : vector<2x1x128xf32>
    %290 = arith.mulf %289, %284 : vector<2x1x128xf32>
    %291 = arith.addf %284, %290 : vector<2x1x128xf32>
    %cst_121 = arith.constant 0.797884583 : f32
    %292 = vector.broadcast %cst_121 : f32 to vector<2x1x128xf32>
    %293 = arith.mulf %292, %291 : vector<2x1x128xf32>
    %294 = math.tanh %293 : vector<2x1x128xf32>
    %cst_122 = arith.constant 1.000000e+00 : f32
    %295 = vector.broadcast %cst_122 : f32 to vector<2x1x128xf32>
    %296 = arith.addf %295, %294 : vector<2x1x128xf32>
    %297 = arith.mulf %286, %296 : vector<2x1x128xf32>
    %298 = vector.extract_strided_slice %86 {offsets = [0, 3], sizes = [32, 1], strides = [1, 1]} : vector<32x4xf32> to vector<32x1xf32>
    %299 = vector.shape_cast %298 : vector<32x1xf32> to vector<2x16x1xf32>
    %300 = vector.broadcast %297 : vector<2x1x128xf32> to vector<2x16x128xf32>
    %301 = vector.broadcast %299 : vector<2x16x1xf32> to vector<2x16x128xf32>
    %302 = arith.mulf %300, %301 : vector<2x16x128xf32>
    %303 = vector.shape_cast %302 : vector<2x16x128xf32> to vector<32x128xf32>
    %304 = arith.addf %279, %303 : vector<32x128xf32>
    %305 = arith.truncf %304 : vector<32x128xf32> to vector<32x128xbf16>
    %c0_123 = arith.constant 0 : index
    %c0_124 = arith.constant 0 : index
    %306 = vector.load %arg16[%c0_123, %c0_124] : memref<128x128xbf16, #tpu.memory_space<vmem>>, vector<128x128xbf16>
    %cst_125 = arith.constant dense<0.000000e+00> : vector<32x128xf32>
    %307 = tpu.matmul %305, %306, %cst_125 {dimension_numbers = #tpu.dot_dimension_numbers<[1], [0], [0], [1], [0, 0, 1, 1], [], []>} : vector<32x128xbf16>, vector<128x128xbf16>, vector<32x128xf32> -> vector<32x128xf32>
    %c0_126 = arith.constant 0 : index
    %c0_127 = arith.constant 0 : index
    %308 = vector.load %arg17[%c0_126, %c0_127] : memref<1x128xf32, #tpu.memory_space<vmem>>, vector<1x128xf32>
    %309 = vector.shape_cast %308 : vector<1x128xf32> to vector<128xf32>
    %310 = vector.shape_cast %309 : vector<128xf32> to vector<1x128xf32>
    %311 = vector.broadcast %310 : vector<1x128xf32> to vector<32x128xf32>
    %312 = arith.addf %307, %311 : vector<32x128xf32>
    %313 = arith.mulf %72, %312 : vector<32x128xf32>
    %314 = arith.truncf %313 : vector<32x128xf32> to vector<32x128xbf16>
    %c0_128 = arith.constant 0 : index
    %c0_129 = arith.constant 0 : index
    %315 = vector.load %arg18[%c0_128, %c0_129] : memref<128x128xbf16, #tpu.memory_space<vmem>>, vector<128x128xbf16>
    %cst_130 = arith.constant dense<0.000000e+00> : vector<32x128xf32>
    %316 = tpu.matmul %314, %315, %cst_130 {dimension_numbers = #tpu.dot_dimension_numbers<[1], [0], [0], [1], [0, 0, 1, 1], [], []>} : vector<32x128xbf16>, vector<128x128xbf16>, vector<32x128xf32> -> vector<32x128xf32>
    %c0_131 = arith.constant 0 : index
    %c0_132 = arith.constant 0 : index
    %317 = vector.load %arg19[%c0_131, %c0_132] : memref<1x128xf32, #tpu.memory_space<vmem>>, vector<1x128xf32>
    %318 = vector.shape_cast %317 : vector<1x128xf32> to vector<128xf32>
    %319 = vector.shape_cast %318 : vector<128xf32> to vector<1x128xf32>
    %320 = vector.broadcast %319 : vector<1x128xf32> to vector<32x128xf32>
    %321 = arith.addf %316, %320 : vector<32x128xf32>
    %c0_133 = arith.constant 0 : index
    %c0_134 = arith.constant 0 : index
    %322 = vector.load %arg26[%c0_133, %c0_134] : memref<1x128xf32, #tpu.memory_space<vmem>>, vector<1x128xf32>
    %323 = vector.shape_cast %322 : vector<1x128xf32> to vector<128xf32>
    %324 = vector.shape_cast %323 : vector<128xf32> to vector<1x128xf32>
    %325 = vector.broadcast %324 : vector<1x128xf32> to vector<32x128xf32>
    %326 = arith.mulf %325, %321 : vector<32x128xf32>
    %327 = arith.addf %36, %326 : vector<32x128xf32>
    %c0_135 = arith.constant 0 : index
    %c0_136 = arith.constant 0 : index
    %328 = vector.load %arg20[%c0_135, %c0_136] : memref<1x128xf32, #tpu.memory_space<vmem>>, vector<1x128xf32>
    %329 = vector.shape_cast %328 : vector<1x128xf32> to vector<128xf32>
    %c0_137 = arith.constant 0 : index
    %c0_138 = arith.constant 0 : index
    %330 = vector.load %arg21[%c0_137, %c0_138] : memref<1x128xf32, #tpu.memory_space<vmem>>, vector<1x128xf32>
    %331 = vector.shape_cast %330 : vector<1x128xf32> to vector<128xf32>
    %cst_139 = arith.constant dense<0.000000e+00> : vector<32xf32>
    %332 = vector.multi_reduction <add>, %327, %cst_139 [1] : vector<32x128xf32> to vector<32xf32>
    %333 = vector.shape_cast %332 : vector<32xf32> to vector<32x1xf32>
    %cst_140 = arith.constant 1.280000e+02 : f32
    %334 = vector.broadcast %cst_140 : f32 to vector<32x1xf32>
    %335 = arith.divf %333, %334 : vector<32x1xf32>
    %336 = vector.broadcast %335 : vector<32x1xf32> to vector<32x128xf32>
    %337 = arith.subf %327, %336 : vector<32x128xf32>
    %338 = arith.mulf %337, %337 : vector<32x128xf32>
    %cst_141 = arith.constant dense<0.000000e+00> : vector<32xf32>
    %339 = vector.multi_reduction <add>, %338, %cst_141 [1] : vector<32x128xf32> to vector<32xf32>
    %340 = vector.shape_cast %339 : vector<32xf32> to vector<32x1xf32>
    %cst_142 = arith.constant 1.280000e+02 : f32
    %341 = vector.broadcast %cst_142 : f32 to vector<32x1xf32>
    %342 = arith.divf %340, %341 : vector<32x1xf32>
    %343 = vector.broadcast %335 : vector<32x1xf32> to vector<32x128xf32>
    %344 = arith.subf %327, %343 : vector<32x128xf32>
    %cst_143 = arith.constant 9.99999974E-6 : f32
    %345 = vector.broadcast %cst_143 : f32 to vector<32x1xf32>
    %346 = arith.addf %342, %345 : vector<32x1xf32>
    %347 = math.rsqrt %346 : vector<32x1xf32>
    %348 = vector.broadcast %347 : vector<32x1xf32> to vector<32x128xf32>
    %349 = arith.mulf %344, %348 : vector<32x128xf32>
    %350 = vector.shape_cast %329 : vector<128xf32> to vector<1x128xf32>
    %351 = vector.broadcast %350 : vector<1x128xf32> to vector<32x128xf32>
    %352 = arith.mulf %349, %351 : vector<32x128xf32>
    %353 = vector.shape_cast %331 : vector<128xf32> to vector<1x128xf32>
    %354 = vector.broadcast %353 : vector<1x128xf32> to vector<32x128xf32>
    %355 = arith.addf %352, %354 : vector<32x128xf32>
    %356 = arith.truncf %355 : vector<32x128xf32> to vector<32x128xbf16>
    %c0_144 = arith.constant 0 : index
    %c0_145 = arith.constant 0 : index
    %357 = vector.load %arg22[%c0_144, %c0_145] : memref<128x512xbf16, #tpu.memory_space<vmem>>, vector<128x512xbf16>
    %cst_146 = arith.constant dense<0.000000e+00> : vector<32x512xf32>
    %358 = tpu.matmul %356, %357, %cst_146 {dimension_numbers = #tpu.dot_dimension_numbers<[1], [0], [0], [1], [0, 0, 1, 1], [], []>} : vector<32x128xbf16>, vector<128x512xbf16>, vector<32x512xf32> -> vector<32x512xf32>
    %c0_147 = arith.constant 0 : index
    %c0_148 = arith.constant 0 : index
    %359 = vector.load %arg23[%c0_147, %c0_148] : memref<1x512xf32, #tpu.memory_space<vmem>>, vector<1x512xf32>
    %360 = vector.shape_cast %359 : vector<1x512xf32> to vector<512xf32>
    %361 = vector.shape_cast %360 : vector<512xf32> to vector<1x512xf32>
    %362 = vector.broadcast %361 : vector<1x512xf32> to vector<32x512xf32>
    %363 = arith.addf %358, %362 : vector<32x512xf32>
    %cst_149 = arith.constant 5.000000e-01 : f32
    %364 = vector.broadcast %cst_149 : f32 to vector<32x512xf32>
    %365 = arith.mulf %364, %363 : vector<32x512xf32>
    %cst_150 = arith.constant 4.471500e-02 : f32
    %366 = vector.broadcast %cst_150 : f32 to vector<32x512xf32>
    %367 = arith.mulf %366, %363 : vector<32x512xf32>
    %368 = arith.mulf %367, %363 : vector<32x512xf32>
    %369 = arith.mulf %368, %363 : vector<32x512xf32>
    %370 = arith.addf %363, %369 : vector<32x512xf32>
    %cst_151 = arith.constant 0.797884583 : f32
    %371 = vector.broadcast %cst_151 : f32 to vector<32x512xf32>
    %372 = arith.mulf %371, %370 : vector<32x512xf32>
    %373 = math.tanh %372 : vector<32x512xf32>
    %cst_152 = arith.constant 1.000000e+00 : f32
    %374 = vector.broadcast %cst_152 : f32 to vector<32x512xf32>
    %375 = arith.addf %374, %373 : vector<32x512xf32>
    %376 = arith.mulf %365, %375 : vector<32x512xf32>
    %377 = arith.truncf %376 : vector<32x512xf32> to vector<32x512xbf16>
    %c0_153 = arith.constant 0 : index
    %c0_154 = arith.constant 0 : index
    %378 = vector.load %arg24[%c0_153, %c0_154] : memref<512x128xbf16, #tpu.memory_space<vmem>>, vector<512x128xbf16>
    %cst_155 = arith.constant dense<0.000000e+00> : vector<32x128xf32>
    %379 = tpu.matmul %377, %378, %cst_155 {dimension_numbers = #tpu.dot_dimension_numbers<[1], [0], [0], [1], [0, 0, 1, 1], [], []>} : vector<32x512xbf16>, vector<512x128xbf16>, vector<32x128xf32> -> vector<32x128xf32>
    %c0_156 = arith.constant 0 : index
    %c0_157 = arith.constant 0 : index
    %380 = vector.load %arg25[%c0_156, %c0_157] : memref<1x128xf32, #tpu.memory_space<vmem>>, vector<1x128xf32>
    %381 = vector.shape_cast %380 : vector<1x128xf32> to vector<128xf32>
    %382 = vector.shape_cast %381 : vector<128xf32> to vector<1x128xf32>
    %383 = vector.broadcast %382 : vector<1x128xf32> to vector<32x128xf32>
    %384 = arith.addf %379, %383 : vector<32x128xf32>
    %c0_158 = arith.constant 0 : index
    %c0_159 = arith.constant 0 : index
    %385 = vector.load %arg27[%c0_158, %c0_159] : memref<1x128xf32, #tpu.memory_space<vmem>>, vector<1x128xf32>
    %386 = vector.shape_cast %385 : vector<1x128xf32> to vector<128xf32>
    %387 = vector.shape_cast %386 : vector<128xf32> to vector<1x128xf32>
    %388 = vector.broadcast %387 : vector<1x128xf32> to vector<32x128xf32>
    %389 = arith.mulf %388, %384 : vector<32x128xf32>
    %390 = arith.addf %327, %389 : vector<32x128xf32>
    %c0_160 = arith.constant 0 : index
    %c0_161 = arith.constant 0 : index
    %391 = vector.load %arg28[%c0_160, %c0_161] : memref<1x128xf32, #tpu.memory_space<vmem>>, vector<1x128xf32>
    %392 = vector.shape_cast %391 : vector<1x128xf32> to vector<128xf32>
    %c0_162 = arith.constant 0 : index
    %c0_163 = arith.constant 0 : index
    %393 = vector.load %arg29[%c0_162, %c0_163] : memref<1x128xf32, #tpu.memory_space<vmem>>, vector<1x128xf32>
    %394 = vector.shape_cast %393 : vector<1x128xf32> to vector<128xf32>
    %cst_164 = arith.constant dense<0.000000e+00> : vector<32xf32>
    %395 = vector.multi_reduction <add>, %390, %cst_164 [1] : vector<32x128xf32> to vector<32xf32>
    %396 = vector.shape_cast %395 : vector<32xf32> to vector<32x1xf32>
    %cst_165 = arith.constant 1.280000e+02 : f32
    %397 = vector.broadcast %cst_165 : f32 to vector<32x1xf32>
    %398 = arith.divf %396, %397 : vector<32x1xf32>
    %399 = vector.broadcast %398 : vector<32x1xf32> to vector<32x128xf32>
    %400 = arith.subf %390, %399 : vector<32x128xf32>
    %401 = arith.mulf %400, %400 : vector<32x128xf32>
    %cst_166 = arith.constant dense<0.000000e+00> : vector<32xf32>
    %402 = vector.multi_reduction <add>, %401, %cst_166 [1] : vector<32x128xf32> to vector<32xf32>
    %403 = vector.shape_cast %402 : vector<32xf32> to vector<32x1xf32>
    %cst_167 = arith.constant 1.280000e+02 : f32
    %404 = vector.broadcast %cst_167 : f32 to vector<32x1xf32>
    %405 = arith.divf %403, %404 : vector<32x1xf32>
    %406 = vector.broadcast %398 : vector<32x1xf32> to vector<32x128xf32>
    %407 = arith.subf %390, %406 : vector<32x128xf32>
    %cst_168 = arith.constant 9.99999974E-6 : f32
    %408 = vector.broadcast %cst_168 : f32 to vector<32x1xf32>
    %409 = arith.addf %405, %408 : vector<32x1xf32>
    %410 = math.rsqrt %409 : vector<32x1xf32>
    %411 = vector.broadcast %410 : vector<32x1xf32> to vector<32x128xf32>
    %412 = arith.mulf %407, %411 : vector<32x128xf32>
    %413 = vector.shape_cast %392 : vector<128xf32> to vector<1x128xf32>
    %414 = vector.broadcast %413 : vector<1x128xf32> to vector<32x128xf32>
    %415 = arith.mulf %412, %414 : vector<32x128xf32>
    %416 = vector.shape_cast %394 : vector<128xf32> to vector<1x128xf32>
    %417 = vector.broadcast %416 : vector<1x128xf32> to vector<32x128xf32>
    %418 = arith.addf %415, %417 : vector<32x128xf32>
    %c0_169 = arith.constant 0 : index
    %c0_170 = arith.constant 0 : index
    %c0_171 = arith.constant 0 : index
    %419 = vector.load %arg4[%c0_169, %c0_170, %c0_171] : memref<2x16x1xf32, #tpu.memory_space<vmem>>, vector<2x16x1xf32>
    %420 = vector.shape_cast %419 : vector<2x16x1xf32> to vector<32x1xf32>
    %421 = vector.broadcast %420 : vector<32x1xf32> to vector<32x128xf32>
    %422 = arith.mulf %418, %421 : vector<32x128xf32>
    %423 = arith.truncf %422 : vector<32x128xf32> to vector<32x128xbf16>
    %c0_172 = arith.constant 0 : index
    %c0_173 = arith.constant 0 : index
    %424 = vector.load %arg30[%c0_172, %c0_173] : memref<128x1408xbf16, #tpu.memory_space<vmem>>, vector<128x1408xbf16>
    %cst_174 = arith.constant dense<0.000000e+00> : vector<32x1408xf32>
    %425 = tpu.matmul %423, %424, %cst_174 {dimension_numbers = #tpu.dot_dimension_numbers<[1], [0], [0], [1], [0, 0, 1, 1], [], []>} : vector<32x128xbf16>, vector<128x1408xbf16>, vector<32x1408xf32> -> vector<32x1408xf32>
    %426 = vector.extract_strided_slice %425 {offsets = [0, 0], sizes = [32, 128], strides = [1, 1]} : vector<32x1408xf32> to vector<32x128xf32>
    %c0_175 = arith.constant 0 : index
    %c0_176 = arith.constant 0 : index
    %427 = vector.load %arg31[%c0_175, %c0_176] : memref<1x128xf32, #tpu.memory_space<vmem>>, vector<1x128xf32>
    %428 = vector.shape_cast %427 : vector<1x128xf32> to vector<128xf32>
    %429 = vector.shape_cast %428 : vector<128xf32> to vector<1x128xf32>
    %430 = vector.broadcast %429 : vector<1x128xf32> to vector<32x128xf32>
    %431 = arith.addf %426, %430 : vector<32x128xf32>
    %cst_177 = arith.constant 0.000000e+00 : f32
    %432 = vector.broadcast %cst_177 : f32 to vector<32x128xf32>
    %433 = arith.maximumf %431, %432 : vector<32x128xf32>
    %434 = arith.truncf %433 : vector<32x128xf32> to vector<32x128xbf16>
    %c0_178 = arith.constant 0 : index
    %c0_179 = arith.constant 0 : index
    %c0_180 = arith.constant 0 : index
    %435 = vector.load %arg34[%c0_178, %c0_179, %c0_180] : memref<5x128x128xbf16, #tpu.memory_space<vmem>>, vector<1x128x128xbf16>
    %436 = vector.shape_cast %435 : vector<1x128x128xbf16> to vector<128x128xbf16>
    %cst_181 = arith.constant dense<0.000000e+00> : vector<32x128xf32>
    %437 = tpu.matmul %434, %436, %cst_181 {dimension_numbers = #tpu.dot_dimension_numbers<[1], [0], [0], [1], [0, 0, 1, 1], [], []>} : vector<32x128xbf16>, vector<128x128xbf16>, vector<32x128xf32> -> vector<32x128xf32>
    %cst_182 = arith.constant 0.000000e+00 : f32
    %438 = vector.broadcast %cst_182 : f32 to vector<32x128xf32>
    %439 = vector.extract_strided_slice %425 {offsets = [0, 128], sizes = [32, 128], strides = [1, 1]} : vector<32x1408xf32> to vector<32x128xf32>
    %c6_i32 = arith.constant 6 : i32
    %440 = tpu.dynamic_rotate %439 by %c6_i32 dim 0 : vector<32x128xf32>, i32 -> vector<32x128xf32>
    %c6_i32_183 = arith.constant 6 : i32
    %441 = vector.broadcast %c6_i32_183 : i32 to vector<32x128xi32>
    %442 = arith.cmpi sge, %1, %441 : vector<32x128xi32>
    %cst_184 = arith.constant 0.000000e+00 : f32
    %443 = vector.broadcast %cst_184 : f32 to vector<32x128xf32>
    %444 = arith.select %442, %440, %443 : vector<32x128xi1>, vector<32x128xf32>
    %445 = arith.addf %438, %444 : vector<32x128xf32>
    %446 = vector.extract_strided_slice %425 {offsets = [0, 256], sizes = [32, 128], strides = [1, 1]} : vector<32x1408xf32> to vector<32x128xf32>
    %447 = arith.addf %445, %446 : vector<32x128xf32>
    %448 = vector.extract_strided_slice %425 {offsets = [0, 384], sizes = [32, 128], strides = [1, 1]} : vector<32x1408xf32> to vector<32x128xf32>
    %c26_i32 = arith.constant 26 : i32
    %449 = tpu.dynamic_rotate %448 by %c26_i32 dim 0 : vector<32x128xf32>, i32 -> vector<32x128xf32>
    %c10_i32 = arith.constant 10 : i32
    %450 = vector.broadcast %c10_i32 : i32 to vector<32x128xi32>
    %451 = arith.cmpi slt, %1, %450 : vector<32x128xi32>
    %cst_185 = arith.constant 0.000000e+00 : f32
    %452 = vector.broadcast %cst_185 : f32 to vector<32x128xf32>
    %453 = arith.select %451, %449, %452 : vector<32x128xi1>, vector<32x128xf32>
    %454 = arith.addf %447, %453 : vector<32x128xf32>
    %c0_186 = arith.constant 0 : index
    %c0_187 = arith.constant 0 : index
    %c0_188 = arith.constant 0 : index
    %455 = vector.load %arg32[%c0_186, %c0_187, %c0_188] : memref<3x1x128xf32, #tpu.memory_space<vmem>>, vector<1x1x128xf32>
    %456 = vector.shape_cast %455 : vector<1x1x128xf32> to vector<128xf32>
    %457 = vector.shape_cast %456 : vector<128xf32> to vector<1x128xf32>
    %458 = vector.broadcast %457 : vector<1x128xf32> to vector<32x128xf32>
    %459 = arith.addf %454, %458 : vector<32x128xf32>
    %cst_189 = arith.constant 0.000000e+00 : f32
    %460 = vector.broadcast %cst_189 : f32 to vector<32x128xf32>
    %461 = arith.maximumf %459, %460 : vector<32x128xf32>
    %462 = arith.truncf %461 : vector<32x128xf32> to vector<32x128xbf16>
    %c1_190 = arith.constant 1 : index
    %c0_191 = arith.constant 0 : index
    %c0_192 = arith.constant 0 : index
    %463 = vector.load %arg34[%c1_190, %c0_191, %c0_192] : memref<5x128x128xbf16, #tpu.memory_space<vmem>>, vector<1x128x128xbf16>
    %464 = vector.shape_cast %463 : vector<1x128x128xbf16> to vector<128x128xbf16>
    %cst_193 = arith.constant dense<0.000000e+00> : vector<32x128xf32>
    %465 = tpu.matmul %462, %464, %cst_193 {dimension_numbers = #tpu.dot_dimension_numbers<[1], [0], [0], [1], [0, 0, 1, 1], [], []>} : vector<32x128xbf16>, vector<128x128xbf16>, vector<32x128xf32> -> vector<32x128xf32>
    %466 = arith.addf %437, %465 : vector<32x128xf32>
    %cst_194 = arith.constant 0.000000e+00 : f32
    %467 = vector.broadcast %cst_194 : f32 to vector<32x128xf32>
    %468 = vector.extract_strided_slice %425 {offsets = [0, 512], sizes = [32, 128], strides = [1, 1]} : vector<32x1408xf32> to vector<32x128xf32>
    %c12_i32 = arith.constant 12 : i32
    %469 = tpu.dynamic_rotate %468 by %c12_i32 dim 0 : vector<32x128xf32>, i32 -> vector<32x128xf32>
    %c12_i32_195 = arith.constant 12 : i32
    %470 = vector.broadcast %c12_i32_195 : i32 to vector<32x128xi32>
    %471 = arith.cmpi sge, %1, %470 : vector<32x128xi32>
    %cst_196 = arith.constant 0.000000e+00 : f32
    %472 = vector.broadcast %cst_196 : f32 to vector<32x128xf32>
    %473 = arith.select %471, %469, %472 : vector<32x128xi1>, vector<32x128xf32>
    %474 = arith.addf %467, %473 : vector<32x128xf32>
    %475 = vector.extract_strided_slice %425 {offsets = [0, 640], sizes = [32, 128], strides = [1, 1]} : vector<32x1408xf32> to vector<32x128xf32>
    %476 = arith.addf %474, %475 : vector<32x128xf32>
    %477 = vector.extract_strided_slice %425 {offsets = [0, 768], sizes = [32, 128], strides = [1, 1]} : vector<32x1408xf32> to vector<32x128xf32>
    %c20_i32 = arith.constant 20 : i32
    %478 = tpu.dynamic_rotate %477 by %c20_i32 dim 0 : vector<32x128xf32>, i32 -> vector<32x128xf32>
    %c4_i32 = arith.constant 4 : i32
    %479 = vector.broadcast %c4_i32 : i32 to vector<32x128xi32>
    %480 = arith.cmpi slt, %1, %479 : vector<32x128xi32>
    %cst_197 = arith.constant 0.000000e+00 : f32
    %481 = vector.broadcast %cst_197 : f32 to vector<32x128xf32>
    %482 = arith.select %480, %478, %481 : vector<32x128xi1>, vector<32x128xf32>
    %483 = arith.addf %476, %482 : vector<32x128xf32>
    %c1_198 = arith.constant 1 : index
    %c0_199 = arith.constant 0 : index
    %c0_200 = arith.constant 0 : index
    %484 = vector.load %arg32[%c1_198, %c0_199, %c0_200] : memref<3x1x128xf32, #tpu.memory_space<vmem>>, vector<1x1x128xf32>
    %485 = vector.shape_cast %484 : vector<1x1x128xf32> to vector<128xf32>
    %486 = vector.shape_cast %485 : vector<128xf32> to vector<1x128xf32>
    %487 = vector.broadcast %486 : vector<1x128xf32> to vector<32x128xf32>
    %488 = arith.addf %483, %487 : vector<32x128xf32>
    %cst_201 = arith.constant 0.000000e+00 : f32
    %489 = vector.broadcast %cst_201 : f32 to vector<32x128xf32>
    %490 = arith.maximumf %488, %489 : vector<32x128xf32>
    %491 = arith.truncf %490 : vector<32x128xf32> to vector<32x128xbf16>
    %c2_202 = arith.constant 2 : index
    %c0_203 = arith.constant 0 : index
    %c0_204 = arith.constant 0 : index
    %492 = vector.load %arg34[%c2_202, %c0_203, %c0_204] : memref<5x128x128xbf16, #tpu.memory_space<vmem>>, vector<1x128x128xbf16>
    %493 = vector.shape_cast %492 : vector<1x128x128xbf16> to vector<128x128xbf16>
    %cst_205 = arith.constant dense<0.000000e+00> : vector<32x128xf32>
    %494 = tpu.matmul %491, %493, %cst_205 {dimension_numbers = #tpu.dot_dimension_numbers<[1], [0], [0], [1], [0, 0, 1, 1], [], []>} : vector<32x128xbf16>, vector<128x128xbf16>, vector<32x128xf32> -> vector<32x128xf32>
    %495 = arith.addf %466, %494 : vector<32x128xf32>
    %cst_206 = arith.constant 0.000000e+00 : f32
    %496 = vector.broadcast %cst_206 : f32 to vector<32x128xf32>
    %cst_207 = arith.constant 0.000000e+00 : f32
    %497 = vector.broadcast %cst_207 : f32 to vector<32x128xf32>
    %498 = arith.addf %496, %497 : vector<32x128xf32>
    %499 = vector.extract_strided_slice %425 {offsets = [0, 1024], sizes = [32, 128], strides = [1, 1]} : vector<32x1408xf32> to vector<32x128xf32>
    %500 = arith.addf %498, %499 : vector<32x128xf32>
    %cst_208 = arith.constant 0.000000e+00 : f32
    %501 = vector.broadcast %cst_208 : f32 to vector<32x128xf32>
    %502 = arith.addf %500, %501 : vector<32x128xf32>
    %c2_209 = arith.constant 2 : index
    %c0_210 = arith.constant 0 : index
    %c0_211 = arith.constant 0 : index
    %503 = vector.load %arg32[%c2_209, %c0_210, %c0_211] : memref<3x1x128xf32, #tpu.memory_space<vmem>>, vector<1x1x128xf32>
    %504 = vector.shape_cast %503 : vector<1x1x128xf32> to vector<128xf32>
    %505 = vector.shape_cast %504 : vector<128xf32> to vector<1x128xf32>
    %506 = vector.broadcast %505 : vector<1x128xf32> to vector<32x128xf32>
    %507 = arith.addf %502, %506 : vector<32x128xf32>
    %cst_212 = arith.constant 0.000000e+00 : f32
    %508 = vector.broadcast %cst_212 : f32 to vector<32x128xf32>
    %509 = arith.maximumf %507, %508 : vector<32x128xf32>
    %510 = arith.truncf %509 : vector<32x128xf32> to vector<32x128xbf16>
    %c3_213 = arith.constant 3 : index
    %c0_214 = arith.constant 0 : index
    %c0_215 = arith.constant 0 : index
    %511 = vector.load %arg34[%c3_213, %c0_214, %c0_215] : memref<5x128x128xbf16, #tpu.memory_space<vmem>>, vector<1x128x128xbf16>
    %512 = vector.shape_cast %511 : vector<1x128x128xbf16> to vector<128x128xbf16>
    %cst_216 = arith.constant dense<0.000000e+00> : vector<32x128xf32>
    %513 = tpu.matmul %510, %512, %cst_216 {dimension_numbers = #tpu.dot_dimension_numbers<[1], [0], [0], [1], [0, 0, 1, 1], [], []>} : vector<32x128xbf16>, vector<128x128xbf16>, vector<32x128xf32> -> vector<32x128xf32>
    %514 = arith.addf %495, %513 : vector<32x128xf32>
    %515 = vector.extract_strided_slice %425 {offsets = [0, 1280], sizes = [32, 128], strides = [1, 1]} : vector<32x1408xf32> to vector<32x128xf32>
    %516 = vector.shape_cast %515 : vector<32x128xf32> to vector<2x16x128xf32>
    %cst_217 = arith.constant dense<0.000000e+00> : vector<2x128xf32>
    %517 = vector.multi_reduction <add>, %516, %cst_217 [1] : vector<2x16x128xf32> to vector<2x128xf32>
    %cst_218 = arith.constant 1.600000e+01 : f32
    %518 = vector.broadcast %cst_218 : f32 to vector<2x128xf32>
    %519 = arith.divf %517, %518 : vector<2x128xf32>
    %c0_219 = arith.constant 0 : index
    %c0_220 = arith.constant 0 : index
    %520 = vector.load %arg33[%c0_219, %c0_220] : memref<1x128xf32, #tpu.memory_space<vmem>>, vector<1x128xf32>
    %521 = vector.shape_cast %520 : vector<1x128xf32> to vector<128xf32>
    %522 = vector.shape_cast %521 : vector<128xf32> to vector<1x128xf32>
    %523 = vector.broadcast %522 : vector<1x128xf32> to vector<2x128xf32>
    %524 = arith.addf %519, %523 : vector<2x128xf32>
    %cst_221 = arith.constant 0.000000e+00 : f32
    %525 = vector.broadcast %cst_221 : f32 to vector<2x128xf32>
    %526 = arith.maximumf %524, %525 : vector<2x128xf32>
    %527 = arith.truncf %526 : vector<2x128xf32> to vector<2x128xbf16>
    %c4_222 = arith.constant 4 : index
    %c0_223 = arith.constant 0 : index
    %c0_224 = arith.constant 0 : index
    %528 = vector.load %arg34[%c4_222, %c0_223, %c0_224] : memref<5x128x128xbf16, #tpu.memory_space<vmem>>, vector<1x128x128xbf16>
    %529 = vector.shape_cast %528 : vector<1x128x128xbf16> to vector<128x128xbf16>
    %cst_225 = arith.constant dense<0.000000e+00> : vector<2x128xf32>
    %530 = tpu.matmul %527, %529, %cst_225 {dimension_numbers = #tpu.dot_dimension_numbers<[1], [0], [0], [1], [0, 0, 1, 1], [], []>} : vector<2x128xbf16>, vector<128x128xbf16>, vector<2x128xf32> -> vector<2x128xf32>
    %531 = vector.shape_cast %514 : vector<32x128xf32> to vector<2x16x128xf32>
    %532 = vector.shape_cast %530 : vector<2x128xf32> to vector<2x1x128xf32>
    %533 = vector.broadcast %532 : vector<2x1x128xf32> to vector<2x16x128xf32>
    %534 = arith.addf %531, %533 : vector<2x16x128xf32>
    %535 = vector.shape_cast %534 : vector<2x16x128xf32> to vector<32x128xf32>
    %c0_226 = arith.constant 0 : index
    %c0_227 = arith.constant 0 : index
    %536 = vector.load %arg35[%c0_226, %c0_227] : memref<1x128xf32, #tpu.memory_space<vmem>>, vector<1x128xf32>
    %537 = vector.shape_cast %536 : vector<1x128xf32> to vector<128xf32>
    %538 = vector.shape_cast %537 : vector<128xf32> to vector<1x128xf32>
    %539 = vector.broadcast %538 : vector<1x128xf32> to vector<32x128xf32>
    %540 = arith.addf %535, %539 : vector<32x128xf32>
    %cst_228 = arith.constant 0.000000e+00 : f32
    %541 = vector.broadcast %cst_228 : f32 to vector<32x128xf32>
    %542 = arith.maximumf %540, %541 : vector<32x128xf32>
    %543 = arith.addf %422, %542 : vector<32x128xf32>
    %544 = vector.shape_cast %543 : vector<32x128xf32> to vector<2x16x128xf32>
    %c0_229 = arith.constant 0 : index
    %c0_230 = arith.constant 0 : index
    %c0_231 = arith.constant 0 : index
    %545 = vector.load %arg36[%c0_229, %c0_230, %c0_231] : memref<2x16x128xf32, #tpu.memory_space<vmem>>, vector<2x16x128xf32>
    tpu.vector_store %arg36[%c0_229, %c0_230, %c0_231], %544 {strides = array<i32>} : memref<2x16x128xf32, #tpu.memory_space<vmem>>, vector<2x16x128xf32>,
    return
  }
  func.func @transform_0(%arg0: i32) -> (i32, i32, i32) {
    %c0_i32 = arith.constant 0 : i32
    %c0_i32_0 = arith.constant 0 : i32
    %c0_i32_1 = arith.constant 0 : i32
    return %arg0, %c0_i32, %c0_i32_0 : i32, i32, i32
  }
  func.func @transform_1(%arg0: i32) -> (i32, i32, i32) {
    %c0_i32 = arith.constant 0 : i32
    %c0_i32_0 = arith.constant 0 : i32
    %c0_i32_1 = arith.constant 0 : i32
    return %arg0, %c0_i32, %c0_i32_0 : i32, i32, i32
  }
  func.func @transform_2(%arg0: i32) -> (i32, i32, i32) {
    %c0_i32 = arith.constant 0 : i32
    %c0_i32_0 = arith.constant 0 : i32
    %c0_i32_1 = arith.constant 0 : i32
    return %arg0, %c0_i32, %c0_i32_0 : i32, i32, i32
  }
  func.func @transform_3(%arg0: i32) -> (i32, i32, i32) {
    %c0_i32 = arith.constant 0 : i32
    %c0_i32_0 = arith.constant 0 : i32
    %c0_i32_1 = arith.constant 0 : i32
    return %arg0, %c0_i32, %c0_i32_0 : i32, i32, i32
  }
  func.func @transform_4(%arg0: i32) -> (i32, i32) {
    %c0_i32 = arith.constant 0 : i32
    %c0_i32_0 = arith.constant 0 : i32
    %c0_i32_1 = arith.constant 0 : i32
    return %c0_i32, %c0_i32_0 : i32, i32
  }
  func.func @transform_5(%arg0: i32) -> (i32, i32) {
    %c0_i32 = arith.constant 0 : i32
    %c0_i32_0 = arith.constant 0 : i32
    %c0_i32_1 = arith.constant 0 : i32
    return %c0_i32, %c0_i32_0 : i32, i32
  }
  func.func @transform_6(%arg0: i32) -> (i32, i32) {
    %c0_i32 = arith.constant 0 : i32
    %c0_i32_0 = arith.constant 0 : i32
    %c0_i32_1 = arith.constant 0 : i32
    return %c0_i32, %c0_i32_0 : i32, i32
  }
  func.func @transform_7(%arg0: i32) -> (i32, i32) {
    %c0_i32 = arith.constant 0 : i32
    %c0_i32_0 = arith.constant 0 : i32
    %c0_i32_1 = arith.constant 0 : i32
    return %c0_i32, %c0_i32_0 : i32, i32
  }
  func.func @transform_8(%arg0: i32) -> (i32, i32) {
    %c0_i32 = arith.constant 0 : i32
    %c0_i32_0 = arith.constant 0 : i32
    %c0_i32_1 = arith.constant 0 : i32
    return %c0_i32, %c0_i32_0 : i32, i32
  }
  func.func @transform_9(%arg0: i32) -> (i32, i32) {
    %c0_i32 = arith.constant 0 : i32
    %c0_i32_0 = arith.constant 0 : i32
    %c0_i32_1 = arith.constant 0 : i32
    return %c0_i32, %c0_i32_0 : i32, i32
  }
  func.func @transform_10(%arg0: i32) -> (i32, i32) {
    %c0_i32 = arith.constant 0 : i32
    %c0_i32_0 = arith.constant 0 : i32
    %c0_i32_1 = arith.constant 0 : i32
    return %c0_i32, %c0_i32_0 : i32, i32
  }
  func.func @transform_11(%arg0: i32) -> (i32, i32) {
    %c0_i32 = arith.constant 0 : i32
    %c0_i32_0 = arith.constant 0 : i32
    %c0_i32_1 = arith.constant 0 : i32
    return %c0_i32, %c0_i32_0 : i32, i32
  }
  func.func @transform_12(%arg0: i32) -> (i32, i32) {
    %c0_i32 = arith.constant 0 : i32
    %c0_i32_0 = arith.constant 0 : i32
    %c0_i32_1 = arith.constant 0 : i32
    return %c0_i32, %c0_i32_0 : i32, i32
  }
  func.func @transform_13(%arg0: i32) -> (i32, i32) {
    %c0_i32 = arith.constant 0 : i32
    %c0_i32_0 = arith.constant 0 : i32
    %c0_i32_1 = arith.constant 0 : i32
    return %c0_i32, %c0_i32_0 : i32, i32
  }
  func.func @transform_14(%arg0: i32) -> (i32, i32, i32) {
    %c0_i32 = arith.constant 0 : i32
    %c0_i32_0 = arith.constant 0 : i32
    %c0_i32_1 = arith.constant 0 : i32
    %c0_i32_2 = arith.constant 0 : i32
    return %c0_i32, %c0_i32_0, %c0_i32_1 : i32, i32, i32
  }
  func.func @transform_15(%arg0: i32) -> (i32, i32) {
    %c0_i32 = arith.constant 0 : i32
    %c0_i32_0 = arith.constant 0 : i32
    %c0_i32_1 = arith.constant 0 : i32
    return %c0_i32, %c0_i32_0 : i32, i32
  }
  func.func @transform_16(%arg0: i32) -> (i32, i32) {
    %c0_i32 = arith.constant 0 : i32
    %c0_i32_0 = arith.constant 0 : i32
    %c0_i32_1 = arith.constant 0 : i32
    return %c0_i32, %c0_i32_0 : i32, i32
  }
  func.func @transform_17(%arg0: i32) -> (i32, i32) {
    %c0_i32 = arith.constant 0 : i32
    %c0_i32_0 = arith.constant 0 : i32
    %c0_i32_1 = arith.constant 0 : i32
    return %c0_i32, %c0_i32_0 : i32, i32
  }
  func.func @transform_18(%arg0: i32) -> (i32, i32) {
    %c0_i32 = arith.constant 0 : i32
    %c0_i32_0 = arith.constant 0 : i32
    %c0_i32_1 = arith.constant 0 : i32
    return %c0_i32, %c0_i32_0 : i32, i32
  }
  func.func @transform_19(%arg0: i32) -> (i32, i32) {
    %c0_i32 = arith.constant 0 : i32
    %c0_i32_0 = arith.constant 0 : i32
    %c0_i32_1 = arith.constant 0 : i32
    return %c0_i32, %c0_i32_0 : i32, i32
  }
  func.func @transform_20(%arg0: i32) -> (i32, i32) {
    %c0_i32 = arith.constant 0 : i32
    %c0_i32_0 = arith.constant 0 : i32
    %c0_i32_1 = arith.constant 0 : i32
    return %c0_i32, %c0_i32_0 : i32, i32
  }
  func.func @transform_21(%arg0: i32) -> (i32, i32) {
    %c0_i32 = arith.constant 0 : i32
    %c0_i32_0 = arith.constant 0 : i32
    %c0_i32_1 = arith.constant 0 : i32
    return %c0_i32, %c0_i32_0 : i32, i32
  }
  func.func @transform_22(%arg0: i32) -> (i32, i32) {
    %c0_i32 = arith.constant 0 : i32
    %c0_i32_0 = arith.constant 0 : i32
    %c0_i32_1 = arith.constant 0 : i32
    return %c0_i32, %c0_i32_0 : i32, i32
  }
  func.func @transform_23(%arg0: i32) -> (i32, i32) {
    %c0_i32 = arith.constant 0 : i32
    %c0_i32_0 = arith.constant 0 : i32
    %c0_i32_1 = arith.constant 0 : i32
    return %c0_i32, %c0_i32_0 : i32, i32
  }
  func.func @transform_24(%arg0: i32) -> (i32, i32) {
    %c0_i32 = arith.constant 0 : i32
    %c0_i32_0 = arith.constant 0 : i32
    %c0_i32_1 = arith.constant 0 : i32
    return %c0_i32, %c0_i32_0 : i32, i32
  }
  func.func @transform_25(%arg0: i32) -> (i32, i32) {
    %c0_i32 = arith.constant 0 : i32
    %c0_i32_0 = arith.constant 0 : i32
    %c0_i32_1 = arith.constant 0 : i32
    return %c0_i32, %c0_i32_0 : i32, i32
  }
  func.func @transform_26(%arg0: i32) -> (i32, i32) {
    %c0_i32 = arith.constant 0 : i32
    %c0_i32_0 = arith.constant 0 : i32
    %c0_i32_1 = arith.constant 0 : i32
    return %c0_i32, %c0_i32_0 : i32, i32
  }
  func.func @transform_27(%arg0: i32) -> (i32, i32) {
    %c0_i32 = arith.constant 0 : i32
    %c0_i32_0 = arith.constant 0 : i32
    %c0_i32_1 = arith.constant 0 : i32
    return %c0_i32, %c0_i32_0 : i32, i32
  }
  func.func @transform_28(%arg0: i32) -> (i32, i32) {
    %c0_i32 = arith.constant 0 : i32
    %c0_i32_0 = arith.constant 0 : i32
    %c0_i32_1 = arith.constant 0 : i32
    return %c0_i32, %c0_i32_0 : i32, i32
  }
  func.func @transform_29(%arg0: i32) -> (i32, i32) {
    %c0_i32 = arith.constant 0 : i32
    %c0_i32_0 = arith.constant 0 : i32
    %c0_i32_1 = arith.constant 0 : i32
    return %c0_i32, %c0_i32_0 : i32, i32
  }
  func.func @transform_30(%arg0: i32) -> (i32, i32) {
    %c0_i32 = arith.constant 0 : i32
    %c0_i32_0 = arith.constant 0 : i32
    %c0_i32_1 = arith.constant 0 : i32
    return %c0_i32, %c0_i32_0 : i32, i32
  }
  func.func @transform_31(%arg0: i32) -> (i32, i32, i32) {
    %c0_i32 = arith.constant 0 : i32
    %c0_i32_0 = arith.constant 0 : i32
    %c0_i32_1 = arith.constant 0 : i32
    %c0_i32_2 = arith.constant 0 : i32
    return %c0_i32, %c0_i32_0, %c0_i32_1 : i32, i32, i32
  }
  func.func @transform_32(%arg0: i32) -> (i32, i32) {
    %c0_i32 = arith.constant 0 : i32
    %c0_i32_0 = arith.constant 0 : i32
    %c0_i32_1 = arith.constant 0 : i32
    return %c0_i32, %c0_i32_0 : i32, i32
  }
  func.func @transform_33(%arg0: i32) -> (i32, i32, i32) {
    %c0_i32 = arith.constant 0 : i32
    %c0_i32_0 = arith.constant 0 : i32
    %c0_i32_1 = arith.constant 0 : i32
    %c0_i32_2 = arith.constant 0 : i32
    return %c0_i32, %c0_i32_0, %c0_i32_1 : i32, i32, i32
  }
  func.func @transform_34(%arg0: i32) -> (i32, i32) {
    %c0_i32 = arith.constant 0 : i32
    %c0_i32_0 = arith.constant 0 : i32
    %c0_i32_1 = arith.constant 0 : i32
    return %c0_i32, %c0_i32_0 : i32, i32
  }
  func.func @transform_35(%arg0: i32) -> (i32, i32, i32) {
    %c0_i32 = arith.constant 0 : i32
    %c0_i32_0 = arith.constant 0 : i32
    %c0_i32_1 = arith.constant 0 : i32
    return %arg0, %c0_i32, %c0_i32_0 : i32, i32, i32
  }
}

module attributes {stable_mosaic.version = 11 : i64} {
  func.func @_booster_kernel(%arg0: i32, %arg1: memref<2x16x8xbf16, #tpu.memory_space<vmem>>, %arg2: memref<2x8x128xbf16, #tpu.memory_space<vmem>>, %arg3: memref<2x16x128xf32, #tpu.memory_space<vmem>>, %arg4: memref<2x16x1xf32, #tpu.memory_space<vmem>>, %arg5: memref<1x128xf32, #tpu.memory_space<vmem>>, %arg6: memref<1x128xf32, #tpu.memory_space<vmem>>, %arg7: memref<1x128xf32, #tpu.memory_space<vmem>>, %arg8: memref<1x128xf32, #tpu.memory_space<vmem>>, %arg9: memref<128x128xbf16, #tpu.memory_space<vmem>>, %arg10: memref<1x128xf32, #tpu.memory_space<vmem>>, %arg11: memref<128x128xbf16, #tpu.memory_space<vmem>>, %arg12: memref<1x128xf32, #tpu.memory_space<vmem>>, %arg13: memref<128x4xbf16, #tpu.memory_space<vmem>>, %arg14: memref<1x4xf32, #tpu.memory_space<vmem>>, %arg15: memref<3x7x128xf32, #tpu.memory_space<vmem>>, %arg16: memref<128x128xbf16, #tpu.memory_space<vmem>>, %arg17: memref<1x128xf32, #tpu.memory_space<vmem>>, %arg18: memref<128x128xbf16, #tpu.memory_space<vmem>>, %arg19: memref<1x128xf32, #tpu.memory_space<vmem>>, %arg20: memref<1x128xf32, #tpu.memory_space<vmem>>, %arg21: memref<1x128xf32, #tpu.memory_space<vmem>>, %arg22: memref<128x512xbf16, #tpu.memory_space<vmem>>, %arg23: memref<1x512xf32, #tpu.memory_space<vmem>>, %arg24: memref<512x128xbf16, #tpu.memory_space<vmem>>, %arg25: memref<1x128xf32, #tpu.memory_space<vmem>>, %arg26: memref<1x128xf32, #tpu.memory_space<vmem>>, %arg27: memref<1x128xf32, #tpu.memory_space<vmem>>, %arg28: memref<1x128xf32, #tpu.memory_space<vmem>>, %arg29: memref<1x128xf32, #tpu.memory_space<vmem>>, %arg30: memref<128x1408xbf16, #tpu.memory_space<vmem>>, %arg31: memref<1x128xf32, #tpu.memory_space<vmem>>, %arg32: memref<3x1x128xf32, #tpu.memory_space<vmem>>, %arg33: memref<1x128xf32, #tpu.memory_space<vmem>>, %arg34: memref<5x128x128xbf16, #tpu.memory_space<vmem>>, %arg35: memref<1x128xf32, #tpu.memory_space<vmem>>, %arg36: memref<2x16x128xf32, #tpu.memory_space<vmem>>) attributes {dimension_semantics = [#tpu.dimension_semantics<parallel>], iteration_bounds = array<i64: 1>, scalar_prefetch = 0 : i64, scratch_operands = 0 : i64, tpu.core_type = #tpu.core_type<tc>, window_params = [{transform_indices = @transform_0, window_bounds = array<i64: 2, 16, 8>}, {transform_indices = @transform_1, window_bounds = array<i64: 2, 8, 128>}, {transform_indices = @transform_2, window_bounds = array<i64: 2, 16, 128>}, {transform_indices = @transform_3, window_bounds = array<i64: 2, 16, 1>}, {pipeline_mode = #tpu.pipeline_mode<synchronous>, transform_indices = @transform_4, window_bounds = array<i64: 1, 128>}, {pipeline_mode = #tpu.pipeline_mode<synchronous>, transform_indices = @transform_5, window_bounds = array<i64: 1, 128>}, {pipeline_mode = #tpu.pipeline_mode<synchronous>, transform_indices = @transform_6, window_bounds = array<i64: 1, 128>}, {pipeline_mode = #tpu.pipeline_mode<synchronous>, transform_indices = @transform_7, window_bounds = array<i64: 1, 128>}, {pipeline_mode = #tpu.pipeline_mode<synchronous>, transform_indices = @transform_8, window_bounds = array<i64: 128, 128>}, {pipeline_mode = #tpu.pipeline_mode<synchronous>, transform_indices = @transform_9, window_bounds = array<i64: 1, 128>}, {pipeline_mode = #tpu.pipeline_mode<synchronous>, transform_indices = @transform_10, window_bounds = array<i64: 128, 128>}, {pipeline_mode = #tpu.pipeline_mode<synchronous>, transform_indices = @transform_11, window_bounds = array<i64: 1, 128>}, {pipeline_mode = #tpu.pipeline_mode<synchronous>, transform_indices = @transform_12, window_bounds = array<i64: 128, 4>}, {pipeline_mode = #tpu.pipeline_mode<synchronous>, transform_indices = @transform_13, window_bounds = array<i64: 1, 4>}, {pipeline_mode = #tpu.pipeline_mode<synchronous>, transform_indices = @transform_14, window_bounds = array<i64: 3, 7, 128>}, {pipeline_mode = #tpu.pipeline_mode<synchronous>, transform_indices = @transform_15, window_bounds = array<i64: 128, 128>}, {pipeline_mode = #tpu.pipeline_mode<synchronous>, transform_indices = @transform_16, window_bounds = array<i64: 1, 128>}, {pipeline_mode = #tpu.pipeline_mode<synchronous>, transform_indices = @transform_17, window_bounds = array<i64: 128, 128>}, {pipeline_mode = #tpu.pipeline_mode<synchronous>, transform_indices = @transform_18, window_bounds = array<i64: 1, 128>}, {pipeline_mode = #tpu.pipeline_mode<synchronous>, transform_indices = @transform_19, window_bounds = array<i64: 1, 128>}, {pipeline_mode = #tpu.pipeline_mode<synchronous>, transform_indices = @transform_20, window_bounds = array<i64: 1, 128>}, {pipeline_mode = #tpu.pipeline_mode<synchronous>, transform_indices = @transform_21, window_bounds = array<i64: 128, 512>}, {pipeline_mode = #tpu.pipeline_mode<synchronous>, transform_indices = @transform_22, window_bounds = array<i64: 1, 512>}, {pipeline_mode = #tpu.pipeline_mode<synchronous>, transform_indices = @transform_23, window_bounds = array<i64: 512, 128>}, {pipeline_mode = #tpu.pipeline_mode<synchronous>, transform_indices = @transform_24, window_bounds = array<i64: 1, 128>}, {pipeline_mode = #tpu.pipeline_mode<synchronous>, transform_indices = @transform_25, window_bounds = array<i64: 1, 128>}, {pipeline_mode = #tpu.pipeline_mode<synchronous>, transform_indices = @transform_26, window_bounds = array<i64: 1, 128>}, {pipeline_mode = #tpu.pipeline_mode<synchronous>, transform_indices = @transform_27, window_bounds = array<i64: 1, 128>}, {pipeline_mode = #tpu.pipeline_mode<synchronous>, transform_indices = @transform_28, window_bounds = array<i64: 1, 128>}, {pipeline_mode = #tpu.pipeline_mode<synchronous>, transform_indices = @transform_29, window_bounds = array<i64: 128, 1408>}, {pipeline_mode = #tpu.pipeline_mode<synchronous>, transform_indices = @transform_30, window_bounds = array<i64: 1, 128>}, {pipeline_mode = #tpu.pipeline_mode<synchronous>, transform_indices = @transform_31, window_bounds = array<i64: 3, 1, 128>}, {pipeline_mode = #tpu.pipeline_mode<synchronous>, transform_indices = @transform_32, window_bounds = array<i64: 1, 128>}, {pipeline_mode = #tpu.pipeline_mode<synchronous>, transform_indices = @transform_33, window_bounds = array<i64: 5, 128, 128>}, {pipeline_mode = #tpu.pipeline_mode<synchronous>, transform_indices = @transform_34, window_bounds = array<i64: 1, 128>}, {transform_indices = @transform_35, window_bounds = array<i64: 2, 16, 128>}]} {
    %0 = tpu.iota {dimensions = array<i32: 1>} : vector<2x16x128xi32>
    %1 = vector.shape_cast %0 : vector<2x16x128xi32> to vector<32x128xi32>
    %c0 = arith.constant 0 : index
    %c0_0 = arith.constant 0 : index
    %c0_1 = arith.constant 0 : index
    %2 = vector.load %arg1[%c0, %c0_0, %c0_1] : memref<2x16x8xbf16, #tpu.memory_space<vmem>>, vector<2x16x8xbf16>
    %c0_2 = arith.constant 0 : index
    %c0_3 = arith.constant 0 : index
    %c0_4 = arith.constant 0 : index
    %3 = vector.load %arg2[%c0_2, %c0_3, %c0_4] : memref<2x8x128xbf16, #tpu.memory_space<vmem>>, vector<2x8x128xbf16>
    "tpu.trace_start"() <{level = 10 : i32, message = "bnt,btc->bnc"}> : () -> ()
    %cst = arith.constant dense<0.000000e+00> : vector<2x16x128xf32>
    %4 = tpu.matmul %2, %3, %cst {dimension_numbers = #tpu.dot_dimension_numbers<[2], [1], [1], [2], [0, 0, 0, 1, 1, 2], [0], [0]>} : vector<2x16x8xbf16>, vector<2x8x128xbf16>, vector<2x16x128xf32> -> vector<2x16x128xf32>
    "tpu.trace_stop"() : () -> ()
    %5 = vector.shape_cast %4 : vector<2x16x128xf32> to vector<32x128xf32>
    %c0_5 = arith.constant 0 : index
    %c0_6 = arith.constant 0 : index
    %c0_7 = arith.constant 0 : index
    %6 = vector.load %arg3[%c0_5, %c0_6, %c0_7] : memref<2x16x128xf32, #tpu.memory_space<vmem>>, vector<2x16x128xf32>
    %7 = vector.shape_cast %6 : vector<2x16x128xf32> to vector<32x128xf32>
    %c0_8 = arith.constant 0 : index
    %c0_9 = arith.constant 0 : index
    %8 = vector.load %arg5[%c0_8, %c0_9] : memref<1x128xf32, #tpu.memory_space<vmem>>, vector<1x128xf32>
    %9 = vector.shape_cast %8 : vector<1x128xf32> to vector<128xf32>
    %c0_10 = arith.constant 0 : index
    %c0_11 = arith.constant 0 : index
    %10 = vector.load %arg6[%c0_10, %c0_11] : memref<1x128xf32, #tpu.memory_space<vmem>>, vector<1x128xf32>
    %11 = vector.shape_cast %10 : vector<1x128xf32> to vector<128xf32>
    %cst_12 = arith.constant dense<0.000000e+00> : vector<32xf32>
    %12 = vector.multi_reduction <add>, %5, %cst_12 [1] : vector<32x128xf32> to vector<32xf32>
    %13 = vector.shape_cast %12 : vector<32xf32> to vector<32x1xf32>
    %cst_13 = arith.constant 1.280000e+02 : f32
    %14 = vector.broadcast %cst_13 : f32 to vector<32x1xf32>
    %15 = arith.divf %13, %14 : vector<32x1xf32>
    %16 = vector.broadcast %15 : vector<32x1xf32> to vector<32x128xf32>
    %17 = arith.subf %5, %16 : vector<32x128xf32>
    %18 = arith.mulf %17, %17 : vector<32x128xf32>
    %cst_14 = arith.constant dense<0.000000e+00> : vector<32xf32>
    %19 = vector.multi_reduction <add>, %18, %cst_14 [1] : vector<32x128xf32> to vector<32xf32>
    %20 = vector.shape_cast %19 : vector<32xf32> to vector<32x1xf32>
    %cst_15 = arith.constant 1.280000e+02 : f32
    %21 = vector.broadcast %cst_15 : f32 to vector<32x1xf32>
    %22 = arith.divf %20, %21 : vector<32x1xf32>
    %23 = vector.broadcast %15 : vector<32x1xf32> to vector<32x128xf32>
    %24 = arith.subf %5, %23 : vector<32x128xf32>
    %cst_16 = arith.constant 9.99999974E-6 : f32
    %25 = vector.broadcast %cst_16 : f32 to vector<32x1xf32>
    %26 = arith.addf %22, %25 : vector<32x1xf32>
    %27 = math.rsqrt %26 : vector<32x1xf32>
    %28 = vector.broadcast %27 : vector<32x1xf32> to vector<32x128xf32>
    %29 = arith.mulf %24, %28 : vector<32x128xf32>
    %30 = vector.shape_cast %9 : vector<128xf32> to vector<1x128xf32>
    %31 = vector.broadcast %30 : vector<1x128xf32> to vector<32x128xf32>
    %32 = arith.mulf %29, %31 : vector<32x128xf32>
    %33 = vector.shape_cast %11 : vector<128xf32> to vector<1x128xf32>
    %34 = vector.broadcast %33 : vector<1x128xf32> to vector<32x128xf32>
    %35 = arith.addf %32, %34 : vector<32x128xf32>
    %36 = arith.addf %7, %35 : vector<32x128xf32>
    %c0_17 = arith.constant 0 : index
    %c0_18 = arith.constant 0 : index
    %37 = vector.load %arg7[%c0_17, %c0_18] : memref<1x128xf32, #tpu.memory_space<vmem>>, vector<1x128xf32>
    %38 = vector.shape_cast %37 : vector<1x128xf32> to vector<128xf32>
    %c0_19 = arith.constant 0 : index
    %c0_20 = arith.constant 0 : index
    %39 = vector.load %arg8[%c0_19, %c0_20] : memref<1x128xf32, #tpu.memory_space<vmem>>, vector<1x128xf32>
    %40 = vector.shape_cast %39 : vector<1x128xf32> to vector<128xf32>
    %cst_21 = arith.constant dense<0.000000e+00> : vector<32xf32>
    %41 = vector.multi_reduction <add>, %36, %cst_21 [1] : vector<32x128xf32> to vector<32xf32>
    %42 = vector.shape_cast %41 : vector<32xf32> to vector<32x1xf32>
    %cst_22 = arith.constant 1.280000e+02 : f32
    %43 = vector.broadcast %cst_22 : f32 to vector<32x1xf32>
    %44 = arith.divf %42, %43 : vector<32x1xf32>
    %45 = vector.broadcast %44 : vector<32x1xf32> to vector<32x128xf32>
    %46 = arith.subf %36, %45 : vector<32x128xf32>
    %47 = arith.mulf %46, %46 : vector<32x128xf32>
    %cst_23 = arith.constant dense<0.000000e+00> : vector<32xf32>
    %48 = vector.multi_reduction <add>, %47, %cst_23 [1] : vector<32x128xf32> to vector<32xf32>
    %49 = vector.shape_cast %48 : vector<32xf32> to vector<32x1xf32>
    %cst_24 = arith.constant 1.280000e+02 : f32
    %50 = vector.broadcast %cst_24 : f32 to vector<32x1xf32>
    %51 = arith.divf %49, %50 : vector<32x1xf32>
    %52 = vector.broadcast %44 : vector<32x1xf32> to vector<32x128xf32>
    %53 = arith.subf %36, %52 : vector<32x128xf32>
    %cst_25 = arith.constant 9.99999974E-6 : f32
    %54 = vector.broadcast %cst_25 : f32 to vector<32x1xf32>
    %55 = arith.addf %51, %54 : vector<32x1xf32>
    %56 = math.rsqrt %55 : vector<32x1xf32>
    %57 = vector.broadcast %56 : vector<32x1xf32> to vector<32x128xf32>
    %58 = arith.mulf %53, %57 : vector<32x128xf32>
    %59 = vector.shape_cast %38 : vector<128xf32> to vector<1x128xf32>
    %60 = vector.broadcast %59 : vector<1x128xf32> to vector<32x128xf32>
    %61 = arith.mulf %58, %60 : vector<32x128xf32>
    %62 = vector.shape_cast %40 : vector<128xf32> to vector<1x128xf32>
    %63 = vector.broadcast %62 : vector<1x128xf32> to vector<32x128xf32>
    %64 = arith.addf %61, %63 : vector<32x128xf32>
    %65 = arith.truncf %64 : vector<32x128xf32> to vector<32x128xbf16>
    %c0_26 = arith.constant 0 : index
    %c0_27 = arith.constant 0 : index
    %66 = vector.load %arg9[%c0_26, %c0_27] : memref<128x128xbf16, #tpu.memory_space<vmem>>, vector<128x128xbf16>
    %cst_28 = arith.constant dense<0.000000e+00> : vector<32x128xf32>
    %67 = tpu.matmul %65, %66, %cst_28 {dimension_numbers = #tpu.dot_dimension_numbers<[1], [0], [0], [1], [0, 0, 1, 1], [], []>} : vector<32x128xbf16>, vector<128x128xbf16>, vector<32x128xf32> -> vector<32x128xf32>
    %c0_29 = arith.constant 0 : index
    %c0_30 = arith.constant 0 : index
    %68 = vector.load %arg10[%c0_29, %c0_30] : memref<1x128xf32, #tpu.memory_space<vmem>>, vector<1x128xf32>
    %69 = vector.shape_cast %68 : vector<1x128xf32> to vector<128xf32>
    %70 = vector.shape_cast %69 : vector<128xf32> to vector<1x128xf32>
    %71 = vector.broadcast %70 : vector<1x128xf32> to vector<32x128xf32>
    %72 = arith.addf %67, %71 : vector<32x128xf32>
    %c0_31 = arith.constant 0 : index
    %c0_32 = arith.constant 0 : index
    %73 = vector.load %arg11[%c0_31, %c0_32] : memref<128x128xbf16, #tpu.memory_space<vmem>>, vector<128x128xbf16>
    %cst_33 = arith.constant dense<0.000000e+00> : vector<32x128xf32>
    %74 = tpu.matmul %65, %73, %cst_33 {dimension_numbers = #tpu.dot_dimension_numbers<[1], [0], [0], [1], [0, 0, 1, 1], [], []>} : vector<32x128xbf16>, vector<128x128xbf16>, vector<32x128xf32> -> vector<32x128xf32>
    %c0_34 = arith.constant 0 : index
    %c0_35 = arith.constant 0 : index
    %75 = vector.load %arg12[%c0_34, %c0_35] : memref<1x128xf32, #tpu.memory_space<vmem>>, vector<1x128xf32>
    %76 = vector.shape_cast %75 : vector<1x128xf32> to vector<128xf32>
    %77 = vector.shape_cast %76 : vector<128xf32> to vector<1x128xf32>
    %78 = vector.broadcast %77 : vector<1x128xf32> to vector<32x128xf32>
    %79 = arith.addf %74, %78 : vector<32x128xf32>
    %c0_36 = arith.constant 0 : index
    %c0_37 = arith.constant 0 : index
    %80 = vector.load %arg13[%c0_36, %c0_37] : memref<128x4xbf16, #tpu.memory_space<vmem>>, vector<128x4xbf16>
    %cst_38 = arith.constant dense<0.000000e+00> : vector<32x4xf32>
    %81 = tpu.matmul %65, %80, %cst_38 {dimension_numbers = #tpu.dot_dimension_numbers<[1], [0], [0], [1], [0, 0, 1, 1], [], []>} : vector<32x128xbf16>, vector<128x4xbf16>, vector<32x4xf32> -> vector<32x4xf32>
    %c0_39 = arith.constant 0 : index
    %c0_40 = arith.constant 0 : index
    %82 = vector.load %arg14[%c0_39, %c0_40] : memref<1x4xf32, #tpu.memory_space<vmem>>, vector<1x4xf32>
    %83 = vector.shape_cast %82 : vector<1x4xf32> to vector<4xf32>
    %84 = vector.shape_cast %83 : vector<4xf32> to vector<1x4xf32>
    %85 = vector.broadcast %84 : vector<1x4xf32> to vector<32x4xf32>
    %86 = arith.addf %81, %85 : vector<32x4xf32>
    %cst_41 = arith.constant 0.000000e+00 : f32
    %87 = vector.broadcast %cst_41 : f32 to vector<32x128xf32>
    %cst_42 = arith.constant 0.000000e+00 : f32
    %88 = vector.broadcast %cst_42 : f32 to vector<32x128xf32>
    %c1_i32 = arith.constant 1 : i32
    %89 = tpu.dynamic_rotate %79 by %c1_i32 dim 0 : vector<32x128xf32>, i32 -> vector<32x128xf32>
    %c1_i32_43 = arith.constant 1 : i32
    %90 = vector.broadcast %c1_i32_43 : i32 to vector<32x128xi32>
    %91 = arith.cmpi sge, %1, %90 : vector<32x128xi32>
    %cst_44 = arith.constant 0.000000e+00 : f32
    %92 = vector.broadcast %cst_44 : f32 to vector<32x128xf32>
    %93 = arith.select %91, %89, %92 : vector<32x128xi1>, vector<32x128xf32>
    %c0_45 = arith.constant 0 : index
    %c0_46 = arith.constant 0 : index
    %c0_47 = arith.constant 0 : index
    %94 = vector.load %arg15[%c0_45, %c0_46, %c0_47] : memref<3x7x128xf32, #tpu.memory_space<vmem>>, vector<1x1x128xf32>
    %95 = vector.shape_cast %94 : vector<1x1x128xf32> to vector<128xf32>
    %96 = vector.shape_cast %95 : vector<128xf32> to vector<1x128xf32>
    %97 = vector.broadcast %96 : vector<1x128xf32> to vector<32x128xf32>
    %98 = arith.mulf %93, %97 : vector<32x128xf32>
    %99 = arith.addf %88, %98 : vector<32x128xf32>
    %c0_48 = arith.constant 0 : index
    %c1 = arith.constant 1 : index
    %c0_49 = arith.constant 0 : index
    %100 = vector.load %arg15[%c0_48, %c1, %c0_49] : memref<3x7x128xf32, #tpu.memory_space<vmem>>, vector<1x1x128xf32>
    %101 = vector.shape_cast %100 : vector<1x1x128xf32> to vector<128xf32>
    %102 = vector.shape_cast %101 : vector<128xf32> to vector<1x128xf32>
    %103 = vector.broadcast %102 : vector<1x128xf32> to vector<32x128xf32>
    %104 = arith.mulf %79, %103 : vector<32x128xf32>
    %105 = arith.addf %99, %104 : vector<32x128xf32>
    %c31_i32 = arith.constant 31 : i32
    %106 = tpu.dynamic_rotate %79 by %c31_i32 dim 0 : vector<32x128xf32>, i32 -> vector<32x128xf32>
    %c15_i32 = arith.constant 15 : i32
    %107 = vector.broadcast %c15_i32 : i32 to vector<32x128xi32>
    %108 = arith.cmpi slt, %1, %107 : vector<32x128xi32>
    %cst_50 = arith.constant 0.000000e+00 : f32
    %109 = vector.broadcast %cst_50 : f32 to vector<32x128xf32>
    %110 = arith.select %108, %106, %109 : vector<32x128xi1>, vector<32x128xf32>
    %c0_51 = arith.constant 0 : index
    %c2 = arith.constant 2 : index
    %c0_52 = arith.constant 0 : index
    %111 = vector.load %arg15[%c0_51, %c2, %c0_52] : memref<3x7x128xf32, #tpu.memory_space<vmem>>, vector<1x1x128xf32>
    %112 = vector.shape_cast %111 : vector<1x1x128xf32> to vector<128xf32>
    %113 = vector.shape_cast %112 : vector<128xf32> to vector<1x128xf32>
    %114 = vector.broadcast %113 : vector<1x128xf32> to vector<32x128xf32>
    %115 = arith.mulf %110, %114 : vector<32x128xf32>
    %116 = arith.addf %105, %115 : vector<32x128xf32>
    %cst_53 = arith.constant 5.000000e-01 : f32
    %117 = vector.broadcast %cst_53 : f32 to vector<32x128xf32>
    %118 = arith.mulf %117, %116 : vector<32x128xf32>
    %cst_54 = arith.constant 4.471500e-02 : f32
    %119 = vector.broadcast %cst_54 : f32 to vector<32x128xf32>
    %120 = arith.mulf %119, %116 : vector<32x128xf32>
    %121 = arith.mulf %120, %116 : vector<32x128xf32>
    %122 = arith.mulf %121, %116 : vector<32x128xf32>
    %123 = arith.addf %116, %122 : vector<32x128xf32>
    %cst_55 = arith.constant 0.797884583 : f32
    %124 = vector.broadcast %cst_55 : f32 to vector<32x128xf32>
    %125 = arith.mulf %124, %123 : vector<32x128xf32>
    %126 = math.tanh %125 : vector<32x128xf32>
    %cst_56 = arith.constant 1.000000e+00 : f32
    %127 = vector.broadcast %cst_56 : f32 to vector<32x128xf32>
    %128 = arith.addf %127, %126 : vector<32x128xf32>
    %129 = arith.mulf %118, %128 : vector<32x128xf32>
    %130 = vector.extract_strided_slice %86 {offsets = [0, 0], sizes = [32, 1], strides = [1, 1]} : vector<32x4xf32> to vector<32x1xf32>
    %131 = vector.broadcast %130 : vector<32x1xf32> to vector<32x128xf32>
    %132 = arith.mulf %129, %131 : vector<32x128xf32>
    %133 = arith.addf %87, %132 : vector<32x128xf32>
    %cst_57 = arith.constant 0.000000e+00 : f32
    %134 = vector.broadcast %cst_57 : f32 to vector<32x128xf32>
    %c2_i32 = arith.constant 2 : i32
    %135 = tpu.dynamic_rotate %129 by %c2_i32 dim 0 : vector<32x128xf32>, i32 -> vector<32x128xf32>
    %c2_i32_58 = arith.constant 2 : i32
    %136 = vector.broadcast %c2_i32_58 : i32 to vector<32x128xi32>
    %137 = arith.cmpi sge, %1, %136 : vector<32x128xi32>
    %cst_59 = arith.constant 0.000000e+00 : f32
    %138 = vector.broadcast %cst_59 : f32 to vector<32x128xf32>
    %139 = arith.select %137, %135, %138 : vector<32x128xi1>, vector<32x128xf32>
    %c1_60 = arith.constant 1 : index
    %c0_61 = arith.constant 0 : index
    %c0_62 = arith.constant 0 : index
    %140 = vector.load %arg15[%c1_60, %c0_61, %c0_62] : memref<3x7x128xf32, #tpu.memory_space<vmem>>, vector<1x1x128xf32>
    %141 = vector.shape_cast %140 : vector<1x1x128xf32> to vector<128xf32>
    %142 = vector.shape_cast %141 : vector<128xf32> to vector<1x128xf32>
    %143 = vector.broadcast %142 : vector<1x128xf32> to vector<32x128xf32>
    %144 = arith.mulf %139, %143 : vector<32x128xf32>
    %145 = arith.addf %134, %144 : vector<32x128xf32>
    %c1_i32_63 = arith.constant 1 : i32
    %146 = tpu.dynamic_rotate %129 by %c1_i32_63 dim 0 : vector<32x128xf32>, i32 -> vector<32x128xf32>
    %cst_64 = arith.constant 0.000000e+00 : f32
    %147 = vector.broadcast %cst_64 : f32 to vector<32x128xf32>
    %148 = arith.select %91, %146, %147 : vector<32x128xi1>, vector<32x128xf32>
    %c1_65 = arith.constant 1 : index
    %c1_66 = arith.constant 1 : index
    %c0_67 = arith.constant 0 : index
    %149 = vector.load %arg15[%c1_65, %c1_66, %c0_67] : memref<3x7x128xf32, #tpu.memory_space<vmem>>, vector<1x1x128xf32>
    %150 = vector.shape_cast %149 : vector<1x1x128xf32> to vector<128xf32>
    %151 = vector.shape_cast %150 : vector<128xf32> to vector<1x128xf32>
    %152 = vector.broadcast %151 : vector<1x128xf32> to vector<32x128xf32>
    %153 = arith.mulf %148, %152 : vector<32x128xf32>
    %154 = arith.addf %145, %153 : vector<32x128xf32>
    %c1_68 = arith.constant 1 : index
    %c2_69 = arith.constant 2 : index
    %c0_70 = arith.constant 0 : index
    %155 = vector.load %arg15[%c1_68, %c2_69, %c0_70] : memref<3x7x128xf32, #tpu.memory_space<vmem>>, vector<1x1x128xf32>
    %156 = vector.shape_cast %155 : vector<1x1x128xf32> to vector<128xf32>
    %157 = vector.shape_cast %156 : vector<128xf32> to vector<1x128xf32>
    %158 = vector.broadcast %157 : vector<1x128xf32> to vector<32x128xf32>
    %159 = arith.mulf %129, %158 : vector<32x128xf32>
    %160 = arith.addf %154, %159 : vector<32x128xf32>
    %c31_i32_71 = arith.constant 31 : i32
    %161 = tpu.dynamic_rotate %129 by %c31_i32_71 dim 0 : vector<32x128xf32>, i32 -> vector<32x128xf32>
    %cst_72 = arith.constant 0.000000e+00 : f32
    %162 = vector.broadcast %cst_72 : f32 to vector<32x128xf32>
    %163 = arith.select %108, %161, %162 : vector<32x128xi1>, vector<32x128xf32>
    %c1_73 = arith.constant 1 : index
    %c3 = arith.constant 3 : index
    %c0_74 = arith.constant 0 : index
    %164 = vector.load %arg15[%c1_73, %c3, %c0_74] : memref<3x7x128xf32, #tpu.memory_space<vmem>>, vector<1x1x128xf32>
    %165 = vector.shape_cast %164 : vector<1x1x128xf32> to vector<128xf32>
    %166 = vector.shape_cast %165 : vector<128xf32> to vector<1x128xf32>
    %167 = vector.broadcast %166 : vector<1x128xf32> to vector<32x128xf32>
    %168 = arith.mulf %163, %167 : vector<32x128xf32>
    %169 = arith.addf %160, %168 : vector<32x128xf32>
    %c30_i32 = arith.constant 30 : i32
    %170 = tpu.dynamic_rotate %129 by %c30_i32 dim 0 : vector<32x128xf32>, i32 -> vector<32x128xf32>
    %c14_i32 = arith.constant 14 : i32
    %171 = vector.broadcast %c14_i32 : i32 to vector<32x128xi32>
    %172 = arith.cmpi slt, %1, %171 : vector<32x128xi32>
    %cst_75 = arith.constant 0.000000e+00 : f32
    %173 = vector.broadcast %cst_75 : f32 to vector<32x128xf32>
    %174 = arith.select %172, %170, %173 : vector<32x128xi1>, vector<32x128xf32>
    %c1_76 = arith.constant 1 : index
    %c4 = arith.constant 4 : index
    %c0_77 = arith.constant 0 : index
    %175 = vector.load %arg15[%c1_76, %c4, %c0_77] : memref<3x7x128xf32, #tpu.memory_space<vmem>>, vector<1x1x128xf32>
    %176 = vector.shape_cast %175 : vector<1x1x128xf32> to vector<128xf32>
    %177 = vector.shape_cast %176 : vector<128xf32> to vector<1x128xf32>
    %178 = vector.broadcast %177 : vector<1x128xf32> to vector<32x128xf32>
    %179 = arith.mulf %174, %178 : vector<32x128xf32>
    %180 = arith.addf %169, %179 : vector<32x128xf32>
    %cst_78 = arith.constant 5.000000e-01 : f32
    %181 = vector.broadcast %cst_78 : f32 to vector<32x128xf32>
    %182 = arith.mulf %181, %180 : vector<32x128xf32>
    %cst_79 = arith.constant 4.471500e-02 : f32
    %183 = vector.broadcast %cst_79 : f32 to vector<32x128xf32>
    %184 = arith.mulf %183, %180 : vector<32x128xf32>
    %185 = arith.mulf %184, %180 : vector<32x128xf32>
    %186 = arith.mulf %185, %180 : vector<32x128xf32>
    %187 = arith.addf %180, %186 : vector<32x128xf32>
    %cst_80 = arith.constant 0.797884583 : f32
    %188 = vector.broadcast %cst_80 : f32 to vector<32x128xf32>
    %189 = arith.mulf %188, %187 : vector<32x128xf32>
    %190 = math.tanh %189 : vector<32x128xf32>
    %cst_81 = arith.constant 1.000000e+00 : f32
    %191 = vector.broadcast %cst_81 : f32 to vector<32x128xf32>
    %192 = arith.addf %191, %190 : vector<32x128xf32>
    %193 = arith.mulf %182, %192 : vector<32x128xf32>
    %194 = vector.extract_strided_slice %86 {offsets = [0, 1], sizes = [32, 1], strides = [1, 1]} : vector<32x4xf32> to vector<32x1xf32>
    %195 = vector.broadcast %194 : vector<32x1xf32> to vector<32x128xf32>
    %196 = arith.mulf %193, %195 : vector<32x128xf32>
    %197 = arith.addf %133, %196 : vector<32x128xf32>
    %cst_82 = arith.constant 0.000000e+00 : f32
    %198 = vector.broadcast %cst_82 : f32 to vector<32x128xf32>
    %c3_i32 = arith.constant 3 : i32
    %199 = tpu.dynamic_rotate %193 by %c3_i32 dim 0 : vector<32x128xf32>, i32 -> vector<32x128xf32>
    %c3_i32_83 = arith.constant 3 : i32
    %200 = vector.broadcast %c3_i32_83 : i32 to vector<32x128xi32>
    %201 = arith.cmpi sge, %1, %200 : vector<32x128xi32>
    %cst_84 = arith.constant 0.000000e+00 : f32
    %202 = vector.broadcast %cst_84 : f32 to vector<32x128xf32>
    %203 = arith.select %201, %199, %202 : vector<32x128xi1>, vector<32x128xf32>
    %c2_85 = arith.constant 2 : index
    %c0_86 = arith.constant 0 : index
    %c0_87 = arith.constant 0 : index
    %204 = vector.load %arg15[%c2_85, %c0_86, %c0_87] : memref<3x7x128xf32, #tpu.memory_space<vmem>>, vector<1x1x128xf32>
    %205 = vector.shape_cast %204 : vector<1x1x128xf32> to vector<128xf32>
    %206 = vector.shape_cast %205 : vector<128xf32> to vector<1x128xf32>
    %207 = vector.broadcast %206 : vector<1x128xf32> to vector<32x128xf32>
    %208 = arith.mulf %203, %207 : vector<32x128xf32>
    %209 = arith.addf %198, %208 : vector<32x128xf32>
    %c2_i32_88 = arith.constant 2 : i32
    %210 = tpu.dynamic_rotate %193 by %c2_i32_88 dim 0 : vector<32x128xf32>, i32 -> vector<32x128xf32>
    %cst_89 = arith.constant 0.000000e+00 : f32
    %211 = vector.broadcast %cst_89 : f32 to vector<32x128xf32>
    %212 = arith.select %137, %210, %211 : vector<32x128xi1>, vector<32x128xf32>
    %c2_90 = arith.constant 2 : index
    %c1_91 = arith.constant 1 : index
    %c0_92 = arith.constant 0 : index
    %213 = vector.load %arg15[%c2_90, %c1_91, %c0_92] : memref<3x7x128xf32, #tpu.memory_space<vmem>>, vector<1x1x128xf32>
    %214 = vector.shape_cast %213 : vector<1x1x128xf32> to vector<128xf32>
    %215 = vector.shape_cast %214 : vector<128xf32> to vector<1x128xf32>
    %216 = vector.broadcast %215 : vector<1x128xf32> to vector<32x128xf32>
    %217 = arith.mulf %212, %216 : vector<32x128xf32>
    %218 = arith.addf %209, %217 : vector<32x128xf32>
    %c1_i32_93 = arith.constant 1 : i32
    %219 = tpu.dynamic_rotate %193 by %c1_i32_93 dim 0 : vector<32x128xf32>, i32 -> vector<32x128xf32>
    %cst_94 = arith.constant 0.000000e+00 : f32
    %220 = vector.broadcast %cst_94 : f32 to vector<32x128xf32>
    %221 = arith.select %91, %219, %220 : vector<32x128xi1>, vector<32x128xf32>
    %c2_95 = arith.constant 2 : index
    %c2_96 = arith.constant 2 : index
    %c0_97 = arith.constant 0 : index
    %222 = vector.load %arg15[%c2_95, %c2_96, %c0_97] : memref<3x7x128xf32, #tpu.memory_space<vmem>>, vector<1x1x128xf32>
    %223 = vector.shape_cast %222 : vector<1x1x128xf32> to vector<128xf32>
    %224 = vector.shape_cast %223 : vector<128xf32> to vector<1x128xf32>
    %225 = vector.broadcast %224 : vector<1x128xf32> to vector<32x128xf32>
    %226 = arith.mulf %221, %225 : vector<32x128xf32>
    %227 = arith.addf %218, %226 : vector<32x128xf32>
    %c2_98 = arith.constant 2 : index
    %c3_99 = arith.constant 3 : index
    %c0_100 = arith.constant 0 : index
    %228 = vector.load %arg15[%c2_98, %c3_99, %c0_100] : memref<3x7x128xf32, #tpu.memory_space<vmem>>, vector<1x1x128xf32>
    %229 = vector.shape_cast %228 : vector<1x1x128xf32> to vector<128xf32>
    %230 = vector.shape_cast %229 : vector<128xf32> to vector<1x128xf32>
    %231 = vector.broadcast %230 : vector<1x128xf32> to vector<32x128xf32>
    %232 = arith.mulf %193, %231 : vector<32x128xf32>
    %233 = arith.addf %227, %232 : vector<32x128xf32>
    %c31_i32_101 = arith.constant 31 : i32
    %234 = tpu.dynamic_rotate %193 by %c31_i32_101 dim 0 : vector<32x128xf32>, i32 -> vector<32x128xf32>
    %cst_102 = arith.constant 0.000000e+00 : f32
    %235 = vector.broadcast %cst_102 : f32 to vector<32x128xf32>
    %236 = arith.select %108, %234, %235 : vector<32x128xi1>, vector<32x128xf32>
    %c2_103 = arith.constant 2 : index
    %c4_104 = arith.constant 4 : index
    %c0_105 = arith.constant 0 : index
    %237 = vector.load %arg15[%c2_103, %c4_104, %c0_105] : memref<3x7x128xf32, #tpu.memory_space<vmem>>, vector<1x1x128xf32>
    %238 = vector.shape_cast %237 : vector<1x1x128xf32> to vector<128xf32>
    %239 = vector.shape_cast %238 : vector<128xf32> to vector<1x128xf32>
    %240 = vector.broadcast %239 : vector<1x128xf32> to vector<32x128xf32>
    %241 = arith.mulf %236, %240 : vector<32x128xf32>
    %242 = arith.addf %233, %241 : vector<32x128xf32>
    %c30_i32_106 = arith.constant 30 : i32
    %243 = tpu.dynamic_rotate %193 by %c30_i32_106 dim 0 : vector<32x128xf32>, i32 -> vector<32x128xf32>
    %cst_107 = arith.constant 0.000000e+00 : f32
    %244 = vector.broadcast %cst_107 : f32 to vector<32x128xf32>
    %245 = arith.select %172, %243, %244 : vector<32x128xi1>, vector<32x128xf32>
    %c2_108 = arith.constant 2 : index
    %c5 = arith.constant 5 : index
    %c0_109 = arith.constant 0 : index
    %246 = vector.load %arg15[%c2_108, %c5, %c0_109] : memref<3x7x128xf32, #tpu.memory_space<vmem>>, vector<1x1x128xf32>
    %247 = vector.shape_cast %246 : vector<1x1x128xf32> to vector<128xf32>
    %248 = vector.shape_cast %247 : vector<128xf32> to vector<1x128xf32>
    %249 = vector.broadcast %248 : vector<1x128xf32> to vector<32x128xf32>
    %250 = arith.mulf %245, %249 : vector<32x128xf32>
    %251 = arith.addf %242, %250 : vector<32x128xf32>
    %c29_i32 = arith.constant 29 : i32
    %252 = tpu.dynamic_rotate %193 by %c29_i32 dim 0 : vector<32x128xf32>, i32 -> vector<32x128xf32>
    %c13_i32 = arith.constant 13 : i32
    %253 = vector.broadcast %c13_i32 : i32 to vector<32x128xi32>
    %254 = arith.cmpi slt, %1, %253 : vector<32x128xi32>
    %cst_110 = arith.constant 0.000000e+00 : f32
    %255 = vector.broadcast %cst_110 : f32 to vector<32x128xf32>
    %256 = arith.select %254, %252, %255 : vector<32x128xi1>, vector<32x128xf32>
    %c2_111 = arith.constant 2 : index
    %c6 = arith.constant 6 : index
    %c0_112 = arith.constant 0 : index
    %257 = vector.load %arg15[%c2_111, %c6, %c0_112] : memref<3x7x128xf32, #tpu.memory_space<vmem>>, vector<1x1x128xf32>
    %258 = vector.shape_cast %257 : vector<1x1x128xf32> to vector<128xf32>
    %259 = vector.shape_cast %258 : vector<128xf32> to vector<1x128xf32>
    %260 = vector.broadcast %259 : vector<1x128xf32> to vector<32x128xf32>
    %261 = arith.mulf %256, %260 : vector<32x128xf32>
    %262 = arith.addf %251, %261 : vector<32x128xf32>
    %cst_113 = arith.constant 5.000000e-01 : f32
    %263 = vector.broadcast %cst_113 : f32 to vector<32x128xf32>
    %264 = arith.mulf %263, %262 : vector<32x128xf32>
    %cst_114 = arith.constant 4.471500e-02 : f32
    %265 = vector.broadcast %cst_114 : f32 to vector<32x128xf32>
    %266 = arith.mulf %265, %262 : vector<32x128xf32>
    %267 = arith.mulf %266, %262 : vector<32x128xf32>
    %268 = arith.mulf %267, %262 : vector<32x128xf32>
    %269 = arith.addf %262, %268 : vector<32x128xf32>
    %cst_115 = arith.constant 0.797884583 : f32
    %270 = vector.broadcast %cst_115 : f32 to vector<32x128xf32>
    %271 = arith.mulf %270, %269 : vector<32x128xf32>
    %272 = math.tanh %271 : vector<32x128xf32>
    %cst_116 = arith.constant 1.000000e+00 : f32
    %273 = vector.broadcast %cst_116 : f32 to vector<32x128xf32>
    %274 = arith.addf %273, %272 : vector<32x128xf32>
    %275 = arith.mulf %264, %274 : vector<32x128xf32>
    %276 = vector.extract_strided_slice %86 {offsets = [0, 2], sizes = [32, 1], strides = [1, 1]} : vector<32x4xf32> to vector<32x1xf32>
    %277 = vector.broadcast %276 : vector<32x1xf32> to vector<32x128xf32>
    %278 = arith.mulf %275, %277 : vector<32x128xf32>
    %279 = arith.addf %197, %278 : vector<32x128xf32>
    %280 = vector.shape_cast %275 : vector<32x128xf32> to vector<2x16x128xf32>
    %cst_117 = arith.constant dense<0.000000e+00> : vector<2x128xf32>
    %281 = vector.multi_reduction <add>, %280, %cst_117 [1] : vector<2x16x128xf32> to vector<2x128xf32>
    %282 = vector.shape_cast %281 : vector<2x128xf32> to vector<2x1x128xf32>
    %cst_118 = arith.constant 1.600000e+01 : f32
    %283 = vector.broadcast %cst_118 : f32 to vector<2x1x128xf32>
    %284 = arith.divf %282, %283 : vector<2x1x128xf32>
    %cst_119 = arith.constant 5.000000e-01 : f32
    %285 = vector.broadcast %cst_119 : f32 to vector<2x1x128xf32>
    %286 = arith.mulf %285, %284 : vector<2x1x128xf32>
    %cst_120 = arith.constant 4.471500e-02 : f32
    %287 = vector.broadcast %cst_120 : f32 to vector<2x1x128xf32>
    %288 = arith.mulf %287, %284 : vector<2x1x128xf32>
    %289 = arith.mulf %288, %284 : vector<2x1x128xf32>
    %290 = arith.mulf %289, %284 : vector<2x1x128xf32>
    %291 = arith.addf %284, %290 : vector<2x1x128xf32>
    %cst_121 = arith.constant 0.797884583 : f32
    %292 = vector.broadcast %cst_121 : f32 to vector<2x1x128xf32>
    %293 = arith.mulf %292, %291 : vector<2x1x128xf32>
    %294 = math.tanh %293 : vector<2x1x128xf32>
    %cst_122 = arith.constant 1.000000e+00 : f32
    %295 = vector.broadcast %cst_122 : f32 to vector<2x1x128xf32>
    %296 = arith.addf %295, %294 : vector<2x1x128xf32>
    %297 = arith.mulf %286, %296 : vector<2x1x128xf32>
    %298 = vector.extract_strided_slice %86 {offsets = [0, 3], sizes = [32, 1], strides = [1, 1]} : vector<32x4xf32> to vector<32x1xf32>
    %299 = vector.shape_cast %298 : vector<32x1xf32> to vector<2x16x1xf32>
    %300 = vector.broadcast %297 : vector<2x1x128xf32> to vector<2x16x128xf32>
    %301 = vector.broadcast %299 : vector<2x16x1xf32> to vector<2x16x128xf32>
    %302 = arith.mulf %300, %301 : vector<2x16x128xf32>
    %303 = vector.shape_cast %302 : vector<2x16x128xf32> to vector<32x128xf32>
    %304 = arith.addf %279, %303 : vector<32x128xf32>
    %305 = arith.truncf %304 : vector<32x128xf32> to vector<32x128xbf16>
    %c0_123 = arith.constant 0 : index
    %c0_124 = arith.constant 0 : index
    %306 = vector.load %arg16[%c0_123, %c0_124] : memref<128x128xbf16, #tpu.memory_space<vmem>>, vector<128x128xbf16>
    %cst_125 = arith.constant dense<0.000000e+00> : vector<32x128xf32>
    %307 = tpu.matmul %305, %306, %cst_125 {dimension_numbers = #tpu.dot_dimension_numbers<[1], [0], [0], [1], [0, 0, 1, 1], [], []>} : vector<32x128xbf16>, vector<128x128xbf16>, vector<32x128xf32> -> vector<32x128xf32>
    %c0_126 = arith.constant 0 : index
    %c0_127 = arith.constant 0 : index
    %308 = vector.load %arg17[%c0_126, %c0_127] : memref<1x128xf32, #tpu.memory_space<vmem>>, vector<1x128xf32>
    %309 = vector.shape_cast %308 : vector<1x128xf32> to vector<128xf32>
    %310 = vector.shape_cast %309 : vector<128xf32> to vector<1x128xf32>
    %311 = vector.broadcast %310 : vector<1x128xf32> to vector<32x128xf32>
    %312 = arith.addf %307, %311 : vector<32x128xf32>
    %313 = arith.mulf %72, %312 : vector<32x128xf32>
    %314 = arith.truncf %313 : vector<32x128xf32> to vector<32x128xbf16>
    %c0_128 = arith.constant 0 : index
    %c0_129 = arith.constant 0 : index
    %315 = vector.load %arg18[%c0_128, %c0_129] : memref<128x128xbf16, #tpu.memory_space<vmem>>, vector<128x128xbf16>
    %cst_130 = arith.constant dense<0.000000e+00> : vector<32x128xf32>
    %316 = tpu.matmul %314, %315, %cst_130 {dimension_numbers = #tpu.dot_dimension_numbers<[1], [0], [0], [1], [0, 0, 1, 1], [], []>} : vector<32x128xbf16>, vector<128x128xbf16>, vector<32x128xf32> -> vector<32x128xf32>
    %c0_131 = arith.constant 0 : index
    %c0_132 = arith.constant 0 : index
    %317 = vector.load %arg19[%c0_131, %c0_132] : memref<1x128xf32, #tpu.memory_space<vmem>>, vector<1x128xf32>
    %318 = vector.shape_cast %317 : vector<1x128xf32> to vector<128xf32>
    %319 = vector.shape_cast %318 : vector<128xf32> to vector<1x128xf32>
    %320 = vector.broadcast %319 : vector<1x128xf32> to vector<32x128xf32>
    %321 = arith.addf %316, %320 : vector<32x128xf32>
    %c0_133 = arith.constant 0 : index
    %c0_134 = arith.constant 0 : index
    %322 = vector.load %arg26[%c0_133, %c0_134] : memref<1x128xf32, #tpu.memory_space<vmem>>, vector<1x128xf32>
    %323 = vector.shape_cast %322 : vector<1x128xf32> to vector<128xf32>
    %324 = vector.shape_cast %323 : vector<128xf32> to vector<1x128xf32>
    %325 = vector.broadcast %324 : vector<1x128xf32> to vector<32x128xf32>
    %326 = arith.mulf %325, %321 : vector<32x128xf32>
    %327 = arith.addf %36, %326 : vector<32x128xf32>
    %c0_135 = arith.constant 0 : index
    %c0_136 = arith.constant 0 : index
    %328 = vector.load %arg20[%c0_135, %c0_136] : memref<1x128xf32, #tpu.memory_space<vmem>>, vector<1x128xf32>
    %329 = vector.shape_cast %328 : vector<1x128xf32> to vector<128xf32>
    %c0_137 = arith.constant 0 : index
    %c0_138 = arith.constant 0 : index
    %330 = vector.load %arg21[%c0_137, %c0_138] : memref<1x128xf32, #tpu.memory_space<vmem>>, vector<1x128xf32>
    %331 = vector.shape_cast %330 : vector<1x128xf32> to vector<128xf32>
    %cst_139 = arith.constant dense<0.000000e+00> : vector<32xf32>
    %332 = vector.multi_reduction <add>, %327, %cst_139 [1] : vector<32x128xf32> to vector<32xf32>
    %333 = vector.shape_cast %332 : vector<32xf32> to vector<32x1xf32>
    %cst_140 = arith.constant 1.280000e+02 : f32
    %334 = vector.broadcast %cst_140 : f32 to vector<32x1xf32>
    %335 = arith.divf %333, %334 : vector<32x1xf32>
    %336 = vector.broadcast %335 : vector<32x1xf32> to vector<32x128xf32>
    %337 = arith.subf %327, %336 : vector<32x128xf32>
    %338 = arith.mulf %337, %337 : vector<32x128xf32>
    %cst_141 = arith.constant dense<0.000000e+00> : vector<32xf32>
    %339 = vector.multi_reduction <add>, %338, %cst_141 [1] : vector<32x128xf32> to vector<32xf32>
    %340 = vector.shape_cast %339 : vector<32xf32> to vector<32x1xf32>
    %cst_142 = arith.constant 1.280000e+02 : f32
    %341 = vector.broadcast %cst_142 : f32 to vector<32x1xf32>
    %342 = arith.divf %340, %341 : vector<32x1xf32>
    %343 = vector.broadcast %335 : vector<32x1xf32> to vector<32x128xf32>
    %344 = arith.subf %327, %343 : vector<32x128xf32>
    %cst_143 = arith.constant 9.99999974E-6 : f32
    %345 = vector.broadcast %cst_143 : f32 to vector<32x1xf32>
    %346 = arith.addf %342, %345 : vector<32x1xf32>
    %347 = math.rsqrt %346 : vector<32x1xf32>
    %348 = vector.broadcast %347 : vector<32x1xf32> to vector<32x128xf32>
    %349 = arith.mulf %344, %348 : vector<32x128xf32>
    %350 = vector.shape_cast %329 : vector<128xf32> to vector<1x128xf32>
    %351 = vector.broadcast %350 : vector<1x128xf32> to vector<32x128xf32>
    %352 = arith.mulf %349, %351 : vector<32x128xf32>
    %353 = vector.shape_cast %331 : vector<128xf32> to vector<1x128xf32>
    %354 = vector.broadcast %353 : vector<1x128xf32> to vector<32x128xf32>
    %355 = arith.addf %352, %354 : vector<32x128xf32>
    %356 = arith.truncf %355 : vector<32x128xf32> to vector<32x128xbf16>
    %c0_144 = arith.constant 0 : index
    %c0_145 = arith.constant 0 : index
    %357 = vector.load %arg22[%c0_144, %c0_145] : memref<128x512xbf16, #tpu.memory_space<vmem>>, vector<128x512xbf16>
    %cst_146 = arith.constant dense<0.000000e+00> : vector<32x512xf32>
    %358 = tpu.matmul %356, %357, %cst_146 {dimension_numbers = #tpu.dot_dimension_numbers<[1], [0], [0], [1], [0, 0, 1, 1], [], []>} : vector<32x128xbf16>, vector<128x512xbf16>, vector<32x512xf32> -> vector<32x512xf32>
    %c0_147 = arith.constant 0 : index
    %c0_148 = arith.constant 0 : index
    %359 = vector.load %arg23[%c0_147, %c0_148] : memref<1x512xf32, #tpu.memory_space<vmem>>, vector<1x512xf32>
    %360 = vector.shape_cast %359 : vector<1x512xf32> to vector<512xf32>
    %361 = vector.shape_cast %360 : vector<512xf32> to vector<1x512xf32>
    %362 = vector.broadcast %361 : vector<1x512xf32> to vector<32x512xf32>
    %363 = arith.addf %358, %362 : vector<32x512xf32>
    %cst_149 = arith.constant 5.000000e-01 : f32
    %364 = vector.broadcast %cst_149 : f32 to vector<32x512xf32>
    %365 = arith.mulf %364, %363 : vector<32x512xf32>
    %cst_150 = arith.constant 4.471500e-02 : f32
    %366 = vector.broadcast %cst_150 : f32 to vector<32x512xf32>
    %367 = arith.mulf %366, %363 : vector<32x512xf32>
    %368 = arith.mulf %367, %363 : vector<32x512xf32>
    %369 = arith.mulf %368, %363 : vector<32x512xf32>
    %370 = arith.addf %363, %369 : vector<32x512xf32>
    %cst_151 = arith.constant 0.797884583 : f32
    %371 = vector.broadcast %cst_151 : f32 to vector<32x512xf32>
    %372 = arith.mulf %371, %370 : vector<32x512xf32>
    %373 = math.tanh %372 : vector<32x512xf32>
    %cst_152 = arith.constant 1.000000e+00 : f32
    %374 = vector.broadcast %cst_152 : f32 to vector<32x512xf32>
    %375 = arith.addf %374, %373 : vector<32x512xf32>
    %376 = arith.mulf %365, %375 : vector<32x512xf32>
    %377 = arith.truncf %376 : vector<32x512xf32> to vector<32x512xbf16>
    %c0_153 = arith.constant 0 : index
    %c0_154 = arith.constant 0 : index
    %378 = vector.load %arg24[%c0_153, %c0_154] : memref<512x128xbf16, #tpu.memory_space<vmem>>, vector<512x128xbf16>
    %cst_155 = arith.constant dense<0.000000e+00> : vector<32x128xf32>
    %379 = tpu.matmul %377, %378, %cst_155 {dimension_numbers = #tpu.dot_dimension_numbers<[1], [0], [0], [1], [0, 0, 1, 1], [], []>} : vector<32x512xbf16>, vector<512x128xbf16>, vector<32x128xf32> -> vector<32x128xf32>
    %c0_156 = arith.constant 0 : index
    %c0_157 = arith.constant 0 : index
    %380 = vector.load %arg25[%c0_156, %c0_157] : memref<1x128xf32, #tpu.memory_space<vmem>>, vector<1x128xf32>
    %381 = vector.shape_cast %380 : vector<1x128xf32> to vector<128xf32>
    %382 = vector.shape_cast %381 : vector<128xf32> to vector<1x128xf32>
    %383 = vector.broadcast %382 : vector<1x128xf32> to vector<32x128xf32>
    %384 = arith.addf %379, %383 : vector<32x128xf32>
    %c0_158 = arith.constant 0 : index
    %c0_159 = arith.constant 0 : index
    %385 = vector.load %arg27[%c0_158, %c0_159] : memref<1x128xf32, #tpu.memory_space<vmem>>, vector<1x128xf32>
    %386 = vector.shape_cast %385 : vector<1x128xf32> to vector<128xf32>
    %387 = vector.shape_cast %386 : vector<128xf32> to vector<1x128xf32>
    %388 = vector.broadcast %387 : vector<1x128xf32> to vector<32x128xf32>
    %389 = arith.mulf %388, %384 : vector<32x128xf32>
    %390 = arith.addf %327, %389 : vector<32x128xf32>
    %c0_160 = arith.constant 0 : index
    %c0_161 = arith.constant 0 : index
    %391 = vector.load %arg28[%c0_160, %c0_161] : memref<1x128xf32, #tpu.memory_space<vmem>>, vector<1x128xf32>
    %392 = vector.shape_cast %391 : vector<1x128xf32> to vector<128xf32>
    %c0_162 = arith.constant 0 : index
    %c0_163 = arith.constant 0 : index
    %393 = vector.load %arg29[%c0_162, %c0_163] : memref<1x128xf32, #tpu.memory_space<vmem>>, vector<1x128xf32>
    %394 = vector.shape_cast %393 : vector<1x128xf32> to vector<128xf32>
    %cst_164 = arith.constant dense<0.000000e+00> : vector<32xf32>
    %395 = vector.multi_reduction <add>, %390, %cst_164 [1] : vector<32x128xf32> to vector<32xf32>
    %396 = vector.shape_cast %395 : vector<32xf32> to vector<32x1xf32>
    %cst_165 = arith.constant 1.280000e+02 : f32
    %397 = vector.broadcast %cst_165 : f32 to vector<32x1xf32>
    %398 = arith.divf %396, %397 : vector<32x1xf32>
    %399 = vector.broadcast %398 : vector<32x1xf32> to vector<32x128xf32>
    %400 = arith.subf %390, %399 : vector<32x128xf32>
    %401 = arith.mulf %400, %400 : vector<32x128xf32>
    %cst_166 = arith.constant dense<0.000000e+00> : vector<32xf32>
    %402 = vector.multi_reduction <add>, %401, %cst_166 [1] : vector<32x128xf32> to vector<32xf32>
    %403 = vector.shape_cast %402 : vector<32xf32> to vector<32x1xf32>
    %cst_167 = arith.constant 1.280000e+02 : f32
    %404 = vector.broadcast %cst_167 : f32 to vector<32x1xf32>
    %405 = arith.divf %403, %404 : vector<32x1xf32>
    %406 = vector.broadcast %398 : vector<32x1xf32> to vector<32x128xf32>
    %407 = arith.subf %390, %406 : vector<32x128xf32>
    %cst_168 = arith.constant 9.99999974E-6 : f32
    %408 = vector.broadcast %cst_168 : f32 to vector<32x1xf32>
    %409 = arith.addf %405, %408 : vector<32x1xf32>
    %410 = math.rsqrt %409 : vector<32x1xf32>
    %411 = vector.broadcast %410 : vector<32x1xf32> to vector<32x128xf32>
    %412 = arith.mulf %407, %411 : vector<32x128xf32>
    %413 = vector.shape_cast %392 : vector<128xf32> to vector<1x128xf32>
    %414 = vector.broadcast %413 : vector<1x128xf32> to vector<32x128xf32>
    %415 = arith.mulf %412, %414 : vector<32x128xf32>
    %416 = vector.shape_cast %394 : vector<128xf32> to vector<1x128xf32>
    %417 = vector.broadcast %416 : vector<1x128xf32> to vector<32x128xf32>
    %418 = arith.addf %415, %417 : vector<32x128xf32>
    %c0_169 = arith.constant 0 : index
    %c0_170 = arith.constant 0 : index
    %c0_171 = arith.constant 0 : index
    %419 = vector.load %arg4[%c0_169, %c0_170, %c0_171] : memref<2x16x1xf32, #tpu.memory_space<vmem>>, vector<2x16x1xf32>
    %420 = vector.shape_cast %419 : vector<2x16x1xf32> to vector<32x1xf32>
    %421 = vector.broadcast %420 : vector<32x1xf32> to vector<32x128xf32>
    %422 = arith.mulf %418, %421 : vector<32x128xf32>
    %423 = arith.truncf %422 : vector<32x128xf32> to vector<32x128xbf16>
    %c0_172 = arith.constant 0 : index
    %c0_173 = arith.constant 0 : index
    %424 = vector.load %arg30[%c0_172, %c0_173] : memref<128x1408xbf16, #tpu.memory_space<vmem>>, vector<128x1408xbf16>
    %cst_174 = arith.constant dense<0.000000e+00> : vector<32x1408xf32>
    %425 = tpu.matmul %423, %424, %cst_174 {dimension_numbers = #tpu.dot_dimension_numbers<[1], [0], [0], [1], [0, 0, 1, 1], [], []>} : vector<32x128xbf16>, vector<128x1408xbf16>, vector<32x1408xf32> -> vector<32x1408xf32>
    %426 = vector.extract_strided_slice %425 {offsets = [0, 0], sizes = [32, 128], strides = [1, 1]} : vector<32x1408xf32> to vector<32x128xf32>
    %c0_175 = arith.constant 0 : index
    %c0_176 = arith.constant 0 : index
    %427 = vector.load %arg31[%c0_175, %c0_176] : memref<1x128xf32, #tpu.memory_space<vmem>>, vector<1x128xf32>
    %428 = vector.shape_cast %427 : vector<1x128xf32> to vector<128xf32>
    %429 = vector.shape_cast %428 : vector<128xf32> to vector<1x128xf32>
    %430 = vector.broadcast %429 : vector<1x128xf32> to vector<32x128xf32>
    %431 = arith.addf %426, %430 : vector<32x128xf32>
    %cst_177 = arith.constant 0.000000e+00 : f32
    %432 = vector.broadcast %cst_177 : f32 to vector<32x128xf32>
    %433 = arith.maximumf %431, %432 : vector<32x128xf32>
    %434 = arith.truncf %433 : vector<32x128xf32> to vector<32x128xbf16>
    %c0_178 = arith.constant 0 : index
    %c0_179 = arith.constant 0 : index
    %c0_180 = arith.constant 0 : index
    %435 = vector.load %arg34[%c0_178, %c0_179, %c0_180] : memref<5x128x128xbf16, #tpu.memory_space<vmem>>, vector<1x128x128xbf16>
    %436 = vector.shape_cast %435 : vector<1x128x128xbf16> to vector<128x128xbf16>
    %cst_181 = arith.constant dense<0.000000e+00> : vector<32x128xf32>
    %437 = tpu.matmul %434, %436, %cst_181 {dimension_numbers = #tpu.dot_dimension_numbers<[1], [0], [0], [1], [0, 0, 1, 1], [], []>} : vector<32x128xbf16>, vector<128x128xbf16>, vector<32x128xf32> -> vector<32x128xf32>
    %cst_182 = arith.constant 0.000000e+00 : f32
    %438 = vector.broadcast %cst_182 : f32 to vector<32x128xf32>
    %439 = vector.extract_strided_slice %425 {offsets = [0, 128], sizes = [32, 128], strides = [1, 1]} : vector<32x1408xf32> to vector<32x128xf32>
    %c6_i32 = arith.constant 6 : i32
    %440 = tpu.dynamic_rotate %439 by %c6_i32 dim 0 : vector<32x128xf32>, i32 -> vector<32x128xf32>
    %c6_i32_183 = arith.constant 6 : i32
    %441 = vector.broadcast %c6_i32_183 : i32 to vector<32x128xi32>
    %442 = arith.cmpi sge, %1, %441 : vector<32x128xi32>
    %cst_184 = arith.constant 0.000000e+00 : f32
    %443 = vector.broadcast %cst_184 : f32 to vector<32x128xf32>
    %444 = arith.select %442, %440, %443 : vector<32x128xi1>, vector<32x128xf32>
    %445 = arith.addf %438, %444 : vector<32x128xf32>
    %446 = vector.extract_strided_slice %425 {offsets = [0, 256], sizes = [32, 128], strides = [1, 1]} : vector<32x1408xf32> to vector<32x128xf32>
    %447 = arith.addf %445, %446 : vector<32x128xf32>
    %448 = vector.extract_strided_slice %425 {offsets = [0, 384], sizes = [32, 128], strides = [1, 1]} : vector<32x1408xf32> to vector<32x128xf32>
    %c26_i32 = arith.constant 26 : i32
    %449 = tpu.dynamic_rotate %448 by %c26_i32 dim 0 : vector<32x128xf32>, i32 -> vector<32x128xf32>
    %c10_i32 = arith.constant 10 : i32
    %450 = vector.broadcast %c10_i32 : i32 to vector<32x128xi32>
    %451 = arith.cmpi slt, %1, %450 : vector<32x128xi32>
    %cst_185 = arith.constant 0.000000e+00 : f32
    %452 = vector.broadcast %cst_185 : f32 to vector<32x128xf32>
    %453 = arith.select %451, %449, %452 : vector<32x128xi1>, vector<32x128xf32>
    %454 = arith.addf %447, %453 : vector<32x128xf32>
    %c0_186 = arith.constant 0 : index
    %c0_187 = arith.constant 0 : index
    %c0_188 = arith.constant 0 : index
    %455 = vector.load %arg32[%c0_186, %c0_187, %c0_188] : memref<3x1x128xf32, #tpu.memory_space<vmem>>, vector<1x1x128xf32>
    %456 = vector.shape_cast %455 : vector<1x1x128xf32> to vector<128xf32>
    %457 = vector.shape_cast %456 : vector<128xf32> to vector<1x128xf32>
    %458 = vector.broadcast %457 : vector<1x128xf32> to vector<32x128xf32>
    %459 = arith.addf %454, %458 : vector<32x128xf32>
    %cst_189 = arith.constant 0.000000e+00 : f32
    %460 = vector.broadcast %cst_189 : f32 to vector<32x128xf32>
    %461 = arith.maximumf %459, %460 : vector<32x128xf32>
    %462 = arith.truncf %461 : vector<32x128xf32> to vector<32x128xbf16>
    %c1_190 = arith.constant 1 : index
    %c0_191 = arith.constant 0 : index
    %c0_192 = arith.constant 0 : index
    %463 = vector.load %arg34[%c1_190, %c0_191, %c0_192] : memref<5x128x128xbf16, #tpu.memory_space<vmem>>, vector<1x128x128xbf16>
    %464 = vector.shape_cast %463 : vector<1x128x128xbf16> to vector<128x128xbf16>
    %cst_193 = arith.constant dense<0.000000e+00> : vector<32x128xf32>
    %465 = tpu.matmul %462, %464, %cst_193 {dimension_numbers = #tpu.dot_dimension_numbers<[1], [0], [0], [1], [0, 0, 1, 1], [], []>} : vector<32x128xbf16>, vector<128x128xbf16>, vector<32x128xf32> -> vector<32x128xf32>
    %466 = arith.addf %437, %465 : vector<32x128xf32>
    %cst_194 = arith.constant 0.000000e+00 : f32
    %467 = vector.broadcast %cst_194 : f32 to vector<32x128xf32>
    %468 = vector.extract_strided_slice %425 {offsets = [0, 512], sizes = [32, 128], strides = [1, 1]} : vector<32x1408xf32> to vector<32x128xf32>
    %c12_i32 = arith.constant 12 : i32
    %469 = tpu.dynamic_rotate %468 by %c12_i32 dim 0 : vector<32x128xf32>, i32 -> vector<32x128xf32>
    %c12_i32_195 = arith.constant 12 : i32
    %470 = vector.broadcast %c12_i32_195 : i32 to vector<32x128xi32>
    %471 = arith.cmpi sge, %1, %470 : vector<32x128xi32>
    %cst_196 = arith.constant 0.000000e+00 : f32
    %472 = vector.broadcast %cst_196 : f32 to vector<32x128xf32>
    %473 = arith.select %471, %469, %472 : vector<32x128xi1>, vector<32x128xf32>
    %474 = arith.addf %467, %473 : vector<32x128xf32>
    %475 = vector.extract_strided_slice %425 {offsets = [0, 640], sizes = [32, 128], strides = [1, 1]} : vector<32x1408xf32> to vector<32x128xf32>
    %476 = arith.addf %474, %475 : vector<32x128xf32>
    %477 = vector.extract_strided_slice %425 {offsets = [0, 768], sizes = [32, 128], strides = [1, 1]} : vector<32x1408xf32> to vector<32x128xf32>
    %c20_i32 = arith.constant 20 : i32
    %478 = tpu.dynamic_rotate %477 by %c20_i32 dim 0 : vector<32x128xf32>, i32 -> vector<32x128xf32>
    %c4_i32 = arith.constant 4 : i32
    %479 = vector.broadcast %c4_i32 : i32 to vector<32x128xi32>
    %480 = arith.cmpi slt, %1, %479 : vector<32x128xi32>
    %cst_197 = arith.constant 0.000000e+00 : f32
    %481 = vector.broadcast %cst_197 : f32 to vector<32x128xf32>
    %482 = arith.select %480, %478, %481 : vector<32x128xi1>, vector<32x128xf32>
    %483 = arith.addf %476, %482 : vector<32x128xf32>
    %c1_198 = arith.constant 1 : index
    %c0_199 = arith.constant 0 : index
    %c0_200 = arith.constant 0 : index
    %484 = vector.load %arg32[%c1_198, %c0_199, %c0_200] : memref<3x1x128xf32, #tpu.memory_space<vmem>>, vector<1x1x128xf32>
    %485 = vector.shape_cast %484 : vector<1x1x128xf32> to vector<128xf32>
    %486 = vector.shape_cast %485 : vector<128xf32> to vector<1x128xf32>
    %487 = vector.broadcast %486 : vector<1x128xf32> to vector<32x128xf32>
    %488 = arith.addf %483, %487 : vector<32x128xf32>
    %cst_201 = arith.constant 0.000000e+00 : f32
    %489 = vector.broadcast %cst_201 : f32 to vector<32x128xf32>
    %490 = arith.maximumf %488, %489 : vector<32x128xf32>
    %491 = arith.truncf %490 : vector<32x128xf32> to vector<32x128xbf16>
    %c2_202 = arith.constant 2 : index
    %c0_203 = arith.constant 0 : index
    %c0_204 = arith.constant 0 : index
    %492 = vector.load %arg34[%c2_202, %c0_203, %c0_204] : memref<5x128x128xbf16, #tpu.memory_space<vmem>>, vector<1x128x128xbf16>
    %493 = vector.shape_cast %492 : vector<1x128x128xbf16> to vector<128x128xbf16>
    %cst_205 = arith.constant dense<0.000000e+00> : vector<32x128xf32>
    %494 = tpu.matmul %491, %493, %cst_205 {dimension_numbers = #tpu.dot_dimension_numbers<[1], [0], [0], [1], [0, 0, 1, 1], [], []>} : vector<32x128xbf16>, vector<128x128xbf16>, vector<32x128xf32> -> vector<32x128xf32>
    %495 = arith.addf %466, %494 : vector<32x128xf32>
    %cst_206 = arith.constant 0.000000e+00 : f32
    %496 = vector.broadcast %cst_206 : f32 to vector<32x128xf32>
    %cst_207 = arith.constant 0.000000e+00 : f32
    %497 = vector.broadcast %cst_207 : f32 to vector<32x128xf32>
    %498 = arith.addf %496, %497 : vector<32x128xf32>
    %499 = vector.extract_strided_slice %425 {offsets = [0, 1024], sizes = [32, 128], strides = [1, 1]} : vector<32x1408xf32> to vector<32x128xf32>
    %500 = arith.addf %498, %499 : vector<32x128xf32>
    %cst_208 = arith.constant 0.000000e+00 : f32
    %501 = vector.broadcast %cst_208 : f32 to vector<32x128xf32>
    %502 = arith.addf %500, %501 : vector<32x128xf32>
    %c2_209 = arith.constant 2 : index
    %c0_210 = arith.constant 0 : index
    %c0_211 = arith.constant 0 : index
    %503 = vector.load %arg32[%c2_209, %c0_210, %c0_211] : memref<3x1x128xf32, #tpu.memory_space<vmem>>, vector<1x1x128xf32>
    %504 = vector.shape_cast %503 : vector<1x1x128xf32> to vector<128xf32>
    %505 = vector.shape_cast %504 : vector<128xf32> to vector<1x128xf32>
    %506 = vector.broadcast %505 : vector<1x128xf32> to vector<32x128xf32>
    %507 = arith.addf %502, %506 : vector<32x128xf32>
    %cst_212 = arith.constant 0.000000e+00 : f32
    %508 = vector.broadcast %cst_212 : f32 to vector<32x128xf32>
    %509 = arith.maximumf %507, %508 : vector<32x128xf32>
    %510 = arith.truncf %509 : vector<32x128xf32> to vector<32x128xbf16>
    %c3_213 = arith.constant 3 : index
    %c0_214 = arith.constant 0 : index
    %c0_215 = arith.constant 0 : index
    %511 = vector.load %arg34[%c3_213, %c0_214, %c0_215] : memref<5x128x128xbf16, #tpu.memory_space<vmem>>, vector<1x128x128xbf16>
    %512 = vector.shape_cast %511 : vector<1x128x128xbf16> to vector<128x128xbf16>
    %cst_216 = arith.constant dense<0.000000e+00> : vector<32x128xf32>
    %513 = tpu.matmul %510, %512, %cst_216 {dimension_numbers = #tpu.dot_dimension_numbers<[1], [0], [0], [1], [0, 0, 1, 1], [], []>} : vector<32x128xbf16>, vector<128x128xbf16>, vector<32x128xf32> -> vector<32x128xf32>
    %514 = arith.addf %495, %513 : vector<32x128xf32>
    %515 = vector.extract_strided_slice %425 {offsets = [0, 1280], sizes = [32, 128], strides = [1, 1]} : vector<32x1408xf32> to vector<32x128xf32>
    %516 = vector.shape_cast %515 : vector<32x128xf32> to vector<2x16x128xf32>
    %cst_217 = arith.constant dense<0.000000e+00> : vector<2x128xf32>
    %517 = vector.multi_reduction <add>, %516, %cst_217 [1] : vector<2x16x128xf32> to vector<2x128xf32>
    %cst_218 = arith.constant 1.600000e+01 : f32
    %518 = vector.broadcast %cst_218 : f32 to vector<2x128xf32>
    %519 = arith.divf %517, %518 : vector<2x128xf32>
    %c0_219 = arith.constant 0 : index
    %c0_220 = arith.constant 0 : index
    %520 = vector.load %arg33[%c0_219, %c0_220] : memref<1x128xf32, #tpu.memory_space<vmem>>, vector<1x128xf32>
    %521 = vector.shape_cast %520 : vector<1x128xf32> to vector<128xf32>
    %522 = vector.shape_cast %521 : vector<128xf32> to vector<1x128xf32>
    %523 = vector.broadcast %522 : vector<1x128xf32> to vector<2x128xf32>
    %524 = arith.addf %519, %523 : vector<2x128xf32>
    %cst_221 = arith.constant 0.000000e+00 : f32
    %525 = vector.broadcast %cst_221 : f32 to vector<2x128xf32>
    %526 = arith.maximumf %524, %525 : vector<2x128xf32>
    %527 = arith.truncf %526 : vector<2x128xf32> to vector<2x128xbf16>
    %c4_222 = arith.constant 4 : index
    %c0_223 = arith.constant 0 : index
    %c0_224 = arith.constant 0 : index
    %528 = vector.load %arg34[%c4_222, %c0_223, %c0_224] : memref<5x128x128xbf16, #tpu.memory_space<vmem>>, vector<1x128x128xbf16>
    %529 = vector.shape_cast %528 : vector<1x128x128xbf16> to vector<128x128xbf16>
    %cst_225 = arith.constant dense<0.000000e+00> : vector<2x128xf32>
    %530 = tpu.matmul %527, %529, %cst_225 {dimension_numbers = #tpu.dot_dimension_numbers<[1], [0], [0], [1], [0, 0, 1, 1], [], []>} : vector<2x128xbf16>, vector<128x128xbf16>, vector<2x128xf32> -> vector<2x128xf32>
    %531 = vector.shape_cast %514 : vector<32x128xf32> to vector<2x16x128xf32>
    %532 = vector.shape_cast %530 : vector<2x128xf32> to vector<2x1x128xf32>
    %533 = vector.broadcast %532 : vector<2x1x128xf32> to vector<2x16x128xf32>
    %534 = arith.addf %531, %533 : vector<2x16x128xf32>
    %535 = vector.shape_cast %534 : vector<2x16x128xf32> to vector<32x128xf32>
    %c0_226 = arith.constant 0 : index
    %c0_227 = arith.constant 0 : index
    %536 = vector.load %arg35[%c0_226, %c0_227] : memref<1x128xf32, #tpu.memory_space<vmem>>, vector<1x128xf32>
    %537 = vector.shape_cast %536 : vector<1x128xf32> to vector<128xf32>
    %538 = vector.shape_cast %537 : vector<128xf32> to vector<1x128xf32>
    %539 = vector.broadcast %538 : vector<1x128xf32> to vector<32x128xf32>
    %540 = arith.addf %535, %539 : vector<32x128xf32>
    %cst_228 = arith.constant 0.000000e+00 : f32
    %541 = vector.broadcast %cst_228 : f32 to vector<32x128xf32>
    %542 = arith.maximumf %540, %541 : vector<32x128xf32>
    %543 = arith.addf %422, %542 : vector<32x128xf32>
    %544 = vector.shape_cast %543 : vector<32x128xf32> to vector<2x16x128xf32>
    %c0_229 = arith.constant 0 : index
    %c0_230 = arith.constant 0 : index
    %c0_231 = arith.constant 0 : index
    %545 = vector.load %arg36[%c0_229, %c0_230, %c0_231] : memref<2x16x128xf32, #tpu.memory_space<vmem>>, vector<2x16x128xf32>
    tpu.vector_store %arg36[%c0_229, %c0_230, %c0_231], %544 {strides = array<i32>} : memref<2x16x128xf32, #tpu.memory_space<vmem>>, vector<2x16x128xf32>,
    return
  }
  func.func @transform_0(%arg0: i32) -> (i32, i32, i32) {
    %c0_i32 = arith.constant 0 : i32
    %c0_i32_0 = arith.constant 0 : i32
    %c0_i32_1 = arith.constant 0 : i32
    return %arg0, %c0_i32, %c0_i32_0 : i32, i32, i32
  }
  func.func @transform_1(%arg0: i32) -> (i32, i32, i32) {
    %c0_i32 = arith.constant 0 : i32
    %c0_i32_0 = arith.constant 0 : i32
    %c0_i32_1 = arith.constant 0 : i32
    return %arg0, %c0_i32, %c0_i32_0 : i32, i32, i32
  }
  func.func @transform_2(%arg0: i32) -> (i32, i32, i32) {
    %c0_i32 = arith.constant 0 : i32
    %c0_i32_0 = arith.constant 0 : i32
    %c0_i32_1 = arith.constant 0 : i32
    return %arg0, %c0_i32, %c0_i32_0 : i32, i32, i32
  }
  func.func @transform_3(%arg0: i32) -> (i32, i32, i32) {
    %c0_i32 = arith.constant 0 : i32
    %c0_i32_0 = arith.constant 0 : i32
    %c0_i32_1 = arith.constant 0 : i32
    return %arg0, %c0_i32, %c0_i32_0 : i32, i32, i32
  }
  func.func @transform_4(%arg0: i32) -> (i32, i32) {
    %c0_i32 = arith.constant 0 : i32
    %c0_i32_0 = arith.constant 0 : i32
    %c0_i32_1 = arith.constant 0 : i32
    return %c0_i32, %c0_i32_0 : i32, i32
  }
  func.func @transform_5(%arg0: i32) -> (i32, i32) {
    %c0_i32 = arith.constant 0 : i32
    %c0_i32_0 = arith.constant 0 : i32
    %c0_i32_1 = arith.constant 0 : i32
    return %c0_i32, %c0_i32_0 : i32, i32
  }
  func.func @transform_6(%arg0: i32) -> (i32, i32) {
    %c0_i32 = arith.constant 0 : i32
    %c0_i32_0 = arith.constant 0 : i32
    %c0_i32_1 = arith.constant 0 : i32
    return %c0_i32, %c0_i32_0 : i32, i32
  }
  func.func @transform_7(%arg0: i32) -> (i32, i32) {
    %c0_i32 = arith.constant 0 : i32
    %c0_i32_0 = arith.constant 0 : i32
    %c0_i32_1 = arith.constant 0 : i32
    return %c0_i32, %c0_i32_0 : i32, i32
  }
  func.func @transform_8(%arg0: i32) -> (i32, i32) {
    %c0_i32 = arith.constant 0 : i32
    %c0_i32_0 = arith.constant 0 : i32
    %c0_i32_1 = arith.constant 0 : i32
    return %c0_i32, %c0_i32_0 : i32, i32
  }
  func.func @transform_9(%arg0: i32) -> (i32, i32) {
    %c0_i32 = arith.constant 0 : i32
    %c0_i32_0 = arith.constant 0 : i32
    %c0_i32_1 = arith.constant 0 : i32
    return %c0_i32, %c0_i32_0 : i32, i32
  }
  func.func @transform_10(%arg0: i32) -> (i32, i32) {
    %c0_i32 = arith.constant 0 : i32
    %c0_i32_0 = arith.constant 0 : i32
    %c0_i32_1 = arith.constant 0 : i32
    return %c0_i32, %c0_i32_0 : i32, i32
  }
  func.func @transform_11(%arg0: i32) -> (i32, i32) {
    %c0_i32 = arith.constant 0 : i32
    %c0_i32_0 = arith.constant 0 : i32
    %c0_i32_1 = arith.constant 0 : i32
    return %c0_i32, %c0_i32_0 : i32, i32
  }
  func.func @transform_12(%arg0: i32) -> (i32, i32) {
    %c0_i32 = arith.constant 0 : i32
    %c0_i32_0 = arith.constant 0 : i32
    %c0_i32_1 = arith.constant 0 : i32
    return %c0_i32, %c0_i32_0 : i32, i32
  }
  func.func @transform_13(%arg0: i32) -> (i32, i32) {
    %c0_i32 = arith.constant 0 : i32
    %c0_i32_0 = arith.constant 0 : i32
    %c0_i32_1 = arith.constant 0 : i32
    return %c0_i32, %c0_i32_0 : i32, i32
  }
  func.func @transform_14(%arg0: i32) -> (i32, i32, i32) {
    %c0_i32 = arith.constant 0 : i32
    %c0_i32_0 = arith.constant 0 : i32
    %c0_i32_1 = arith.constant 0 : i32
    %c0_i32_2 = arith.constant 0 : i32
    return %c0_i32, %c0_i32_0, %c0_i32_1 : i32, i32, i32
  }
  func.func @transform_15(%arg0: i32) -> (i32, i32) {
    %c0_i32 = arith.constant 0 : i32
    %c0_i32_0 = arith.constant 0 : i32
    %c0_i32_1 = arith.constant 0 : i32
    return %c0_i32, %c0_i32_0 : i32, i32
  }
  func.func @transform_16(%arg0: i32) -> (i32, i32) {
    %c0_i32 = arith.constant 0 : i32
    %c0_i32_0 = arith.constant 0 : i32
    %c0_i32_1 = arith.constant 0 : i32
    return %c0_i32, %c0_i32_0 : i32, i32
  }
  func.func @transform_17(%arg0: i32) -> (i32, i32) {
    %c0_i32 = arith.constant 0 : i32
    %c0_i32_0 = arith.constant 0 : i32
    %c0_i32_1 = arith.constant 0 : i32
    return %c0_i32, %c0_i32_0 : i32, i32
  }
  func.func @transform_18(%arg0: i32) -> (i32, i32) {
    %c0_i32 = arith.constant 0 : i32
    %c0_i32_0 = arith.constant 0 : i32
    %c0_i32_1 = arith.constant 0 : i32
    return %c0_i32, %c0_i32_0 : i32, i32
  }
  func.func @transform_19(%arg0: i32) -> (i32, i32) {
    %c0_i32 = arith.constant 0 : i32
    %c0_i32_0 = arith.constant 0 : i32
    %c0_i32_1 = arith.constant 0 : i32
    return %c0_i32, %c0_i32_0 : i32, i32
  }
  func.func @transform_20(%arg0: i32) -> (i32, i32) {
    %c0_i32 = arith.constant 0 : i32
    %c0_i32_0 = arith.constant 0 : i32
    %c0_i32_1 = arith.constant 0 : i32
    return %c0_i32, %c0_i32_0 : i32, i32
  }
  func.func @transform_21(%arg0: i32) -> (i32, i32) {
    %c0_i32 = arith.constant 0 : i32
    %c0_i32_0 = arith.constant 0 : i32
    %c0_i32_1 = arith.constant 0 : i32
    return %c0_i32, %c0_i32_0 : i32, i32
  }
  func.func @transform_22(%arg0: i32) -> (i32, i32) {
    %c0_i32 = arith.constant 0 : i32
    %c0_i32_0 = arith.constant 0 : i32
    %c0_i32_1 = arith.constant 0 : i32
    return %c0_i32, %c0_i32_0 : i32, i32
  }
  func.func @transform_23(%arg0: i32) -> (i32, i32) {
    %c0_i32 = arith.constant 0 : i32
    %c0_i32_0 = arith.constant 0 : i32
    %c0_i32_1 = arith.constant 0 : i32
    return %c0_i32, %c0_i32_0 : i32, i32
  }
  func.func @transform_24(%arg0: i32) -> (i32, i32) {
    %c0_i32 = arith.constant 0 : i32
    %c0_i32_0 = arith.constant 0 : i32
    %c0_i32_1 = arith.constant 0 : i32
    return %c0_i32, %c0_i32_0 : i32, i32
  }
  func.func @transform_25(%arg0: i32) -> (i32, i32) {
    %c0_i32 = arith.constant 0 : i32
    %c0_i32_0 = arith.constant 0 : i32
    %c0_i32_1 = arith.constant 0 : i32
    return %c0_i32, %c0_i32_0 : i32, i32
  }
  func.func @transform_26(%arg0: i32) -> (i32, i32) {
    %c0_i32 = arith.constant 0 : i32
    %c0_i32_0 = arith.constant 0 : i32
    %c0_i32_1 = arith.constant 0 : i32
    return %c0_i32, %c0_i32_0 : i32, i32
  }
  func.func @transform_27(%arg0: i32) -> (i32, i32) {
    %c0_i32 = arith.constant 0 : i32
    %c0_i32_0 = arith.constant 0 : i32
    %c0_i32_1 = arith.constant 0 : i32
    return %c0_i32, %c0_i32_0 : i32, i32
  }
  func.func @transform_28(%arg0: i32) -> (i32, i32) {
    %c0_i32 = arith.constant 0 : i32
    %c0_i32_0 = arith.constant 0 : i32
    %c0_i32_1 = arith.constant 0 : i32
    return %c0_i32, %c0_i32_0 : i32, i32
  }
  func.func @transform_29(%arg0: i32) -> (i32, i32) {
    %c0_i32 = arith.constant 0 : i32
    %c0_i32_0 = arith.constant 0 : i32
    %c0_i32_1 = arith.constant 0 : i32
    return %c0_i32, %c0_i32_0 : i32, i32
  }
  func.func @transform_30(%arg0: i32) -> (i32, i32) {
    %c0_i32 = arith.constant 0 : i32
    %c0_i32_0 = arith.constant 0 : i32
    %c0_i32_1 = arith.constant 0 : i32
    return %c0_i32, %c0_i32_0 : i32, i32
  }
  func.func @transform_31(%arg0: i32) -> (i32, i32, i32) {
    %c0_i32 = arith.constant 0 : i32
    %c0_i32_0 = arith.constant 0 : i32
    %c0_i32_1 = arith.constant 0 : i32
    %c0_i32_2 = arith.constant 0 : i32
    return %c0_i32, %c0_i32_0, %c0_i32_1 : i32, i32, i32
  }
  func.func @transform_32(%arg0: i32) -> (i32, i32) {
    %c0_i32 = arith.constant 0 : i32
    %c0_i32_0 = arith.constant 0 : i32
    %c0_i32_1 = arith.constant 0 : i32
    return %c0_i32, %c0_i32_0 : i32, i32
  }
  func.func @transform_33(%arg0: i32) -> (i32, i32, i32) {
    %c0_i32 = arith.constant 0 : i32
    %c0_i32_0 = arith.constant 0 : i32
    %c0_i32_1 = arith.constant 0 : i32
    %c0_i32_2 = arith.constant 0 : i32
    return %c0_i32, %c0_i32_0, %c0_i32_1 : i32, i32, i32
  }
  func.func @transform_34(%arg0: i32) -> (i32, i32) {
    %c0_i32 = arith.constant 0 : i32
    %c0_i32_0 = arith.constant 0 : i32
    %c0_i32_1 = arith.constant 0 : i32
    return %c0_i32, %c0_i32_0 : i32, i32
  }
  func.func @transform_35(%arg0: i32) -> (i32, i32, i32) {
    %c0_i32 = arith.constant 0 : i32
    %c0_i32_0 = arith.constant 0 : i32
    %c0_i32_1 = arith.constant 0 : i32
    return %arg0, %c0_i32, %c0_i32_0 : i32, i32, i32
  }
}

</mosaic_0001>

<llo_original>
// kernel: tpu_custom_call.1
$region0: #{tpu_custom_call.1}
  #allocation0 [shape = 'u32[]', space=smem, size = 0x4, offset = 0x4, fixed_abs, tag = 'smem constant byte address 0x4 - core index']
  #allocation1 [shape = 'u32[144,128]{1,0:T(1,128)}', space=vmem, size = 0x12000, scoped, tag = 'internal scratch']
  %s0 = inlined_call_operand.smem [shape: u32[36], index: -1, kind: input, shape index: {}]
  %s1 = sld [smem:[%s0]]
  %s2 = scalar_lea.smem %s0, 1
  %s3 = sld [smem:[%s2]]
  %s4 = scalar_lea.smem %s0, 2
  %s5 = sld [smem:[%s4]]
  %s6 = scalar_lea.smem %s0, 3
  %s7 = sld [smem:[%s6]]
  %s8 = scalar_lea.smem %s0, 4
  %s9 = sld [smem:[%s8]]
  %s10 = scalar_lea.smem %s0, 5
  %s11 = sld [smem:[%s10]]
  %s12 = scalar_lea.smem %s0, 6
  %s13 = sld [smem:[%s12]]
  %s14 = scalar_lea.smem %s0, 7
  %s15 = sld [smem:[%s14]]
  %s16 = scalar_lea.smem %s0, 8
  %s17 = sld [smem:[%s16]]
  %s18 = scalar_lea.smem %s0, 9
  %s19 = sld [smem:[%s18]]
  %s20 = scalar_lea.smem %s0, 10
  %s21 = sld [smem:[%s20]]
  %s22 = scalar_lea.smem %s0, 11
  %s23 = sld [smem:[%s22]]
  %s24 = scalar_lea.smem %s0, 12
  %s25 = sld [smem:[%s24]]
  %s26 = scalar_lea.smem %s0, 13
  %s27 = sld [smem:[%s26]]
  %s28 = scalar_lea.smem %s0, 14
  %s29 = sld [smem:[%s28]]
  %s30 = scalar_lea.smem %s0, 15
  %s31 = sld [smem:[%s30]]
  %s32 = scalar_lea.smem %s0, 16
  %s33 = sld [smem:[%s32]]
  %s34 = scalar_lea.smem %s0, 17
  %s35 = sld [smem:[%s34]]
  %s36 = scalar_lea.smem %s0, 18
  %s37 = sld [smem:[%s36]]
  %s38 = scalar_lea.smem %s0, 19
  %s39 = sld [smem:[%s38]]
  %s40 = scalar_lea.smem %s0, 20
  %s41 = sld [smem:[%s40]]
  %s42 = scalar_lea.smem %s0, 21
  %s43 = sld [smem:[%s42]]
  %s44 = scalar_lea.smem %s0, 22
  %s45 = sld [smem:[%s44]]
  %s46 = scalar_lea.smem %s0, 23
  %s47 = sld [smem:[%s46]]
  %s48 = scalar_lea.smem %s0, 24
  %s49 = sld [smem:[%s48]]
  %s50 = scalar_lea.smem %s0, 25
  %s51 = sld [smem:[%s50]]
  %s52 = scalar_lea.smem %s0, 26
  %s53 = sld [smem:[%s52]]
  %s54 = scalar_lea.smem %s0, 27
  %s55 = sld [smem:[%s54]]
  %s56 = scalar_lea.smem %s0, 28
  %s57 = sld [smem:[%s56]]
  %s58 = scalar_lea.smem %s0, 29
  %s59 = sld [smem:[%s58]]
  %s60 = scalar_lea.smem %s0, 30
  %s61 = sld [smem:[%s60]]
  %s62 = scalar_lea.smem %s0, 31
  %s63 = sld [smem:[%s62]]
  %s64 = scalar_lea.smem %s0, 32
  %s65 = sld [smem:[%s64]]
  %s66 = scalar_lea.smem %s0, 33
  %s67 = sld [smem:[%s66]]
  %s68 = scalar_lea.smem %s0, 34
  %s69 = sld [smem:[%s68]]
  %s70 = scalar_lea.smem %s0, 35
  %s71 = sld [smem:[%s70]]
  %s72 = sld [smem:[#allocation0]]
  $region198: #{tpu_custom_call.1} parent=0
    _
  %s74 = ssub.s32 1, %s72
  %s75 = scalar_select 0, %s74, %s72
  $region1: #{tpu_custom_call.1} parent=0
    #allocation2 [shape = 'u8[4096]{0}', space=vmem, size = 0x1000, scoped, tag = 'input window, operand 1, single buffered']
    #allocation3 [shape = 's32[1]{0}', space=sflag, size = 0x4, scoped, tag = 'scoped memory for tpu_custom_call.1']
    #allocation4 [shape = 's32[1]{0}', space=sflag, size = 0x4, scoped, tag = 'scoped memory for tpu_custom_call.1']
    #allocation5 [shape = 'u8[16384]{0}', space=vmem, size = 0x4000, scoped, tag = 'input window, operand 2, single buffered']
    #allocation6 [shape = 's32[1]{0}', space=sflag, size = 0x4, scoped, tag = 'scoped memory for tpu_custom_call.1']
    #allocation7 [shape = 'u8[512]{0}', space=vmem, size = 0x400, scoped, tag = 'input window, operand 5, single buffered']
    #allocation8 [shape = 'u8[512]{0}', space=vmem, size = 0x400, scoped, tag = 'input window, operand 6, single buffered']
    #allocation9 [shape = 's32[1]{0}', space=sflag, size = 0x4, scoped, tag = 'scoped memory for tpu_custom_call.1']
    #allocation10 [shape = 'u8[512]{0}', space=vmem, size = 0x400, scoped, tag = 'input window, operand 7, single buffered']
    #allocation11 [shape = 'u8[12288]{0}', space=vmem, size = 0x3000, scoped, tag = 'input window, operand 14, single buffered']
    #allocation12 [shape = 's32[1]{0}', space=sflag, size = 0x4, scoped, tag = 'scoped memory for tpu_custom_call.1']
    #allocation13 [shape = 'u8[32768]{0}', space=vmem, size = 0x8000, scoped, tag = 'input window, operand 15, single buffered']
    #allocation14 [shape = 'u8[32768]{0}', space=vmem, size = 0x8000, scoped, tag = 'input window, operand 17, single buffered']
    #allocation15 [shape = 's32[1]{0}', space=sflag, size = 0x4, scoped, tag = 'scoped memory for tpu_custom_call.1']
    #allocation16 [shape = 'u8[131072]{0}', space=vmem, size = 0x20000, scoped, tag = 'input window, operand 21, single buffered']
    #allocation17 [shape = 'u8[131072]{0}', space=vmem, size = 0x20000, scoped, tag = 'input window, operand 23, single buffered']
    #allocation18 [shape = 's32[1]{0}', space=sflag, size = 0x4, scoped, tag = 'scoped memory for tpu_custom_call.1']
    #allocation19 [shape = 'u8[360448]{0}', space=vmem, size = 0x58000, scoped, tag = 'input window, operand 29, single buffered']
    #allocation20 [shape = 'u8[163840]{0}', space=vmem, size = 0x28000, scoped, tag = 'input window, operand 33, single buffered']
    #allocation21 [shape = 's32[1]{0}', space=sflag, size = 0x4, scoped, tag = 'scoped memory for tpu_custom_call.1']
    #allocation22 [shape = 'u8[16384]{0}', space=vmem, size = 0x4000, scoped, tag = 'output window, operand 0, single buffered']
    %76 = vsyncpa [#allocation3], 0
    %77 = vsyncpa [#allocation6], 0
    %78 = vsyncpa [#allocation9], 0
    %79 = vsyncpa [#allocation12], 0
    %80 = vsyncpa [#allocation15], 0
    %81 = vsyncpa [#allocation18], 0
    %82 = vsyncpa [#allocation21], 0
    %83 = vsyncpa [#allocation4], 0
    // Predicated region
    $region2: #{tpu_custom_call.1} parent=1 // pred_check
      _
    $region3: #{tpu_custom_call.1} parent=1 // pred_check_branch
      %85 = sbr.rel (0) target = $region5
    $region4: #{tpu_custom_call.1} parent=1 // pred_region
      _
    $region5: #{tpu_custom_call.1} parent=1 // pred_fallthru
      _
    // Predicated region
    $region6: #{tpu_custom_call.1} parent=1 // pred_check
      _
    $region7: #{tpu_custom_call.1} parent=1 // pred_check_branch
      %87 = sbr.rel (0) target = $region9
    $region8: #{tpu_custom_call.1} parent=1 // pred_region
      %s89 = ssub.s32 128, 128
      %90 = vsyncadd [#allocation3], %s89
      %s91 = sshll.u32 [#allocation2], 4
      %s92 = int_to_ptr.vmem [resolvable:$true] %s91
      %97 = dma.hbm_to_vmem [thread:$0]  %s3, 128, %s92, [#allocation3], 64, 64, 4
    $region9: #{tpu_custom_call.1} parent=1 // pred_fallthru
      _
    // Predicated region
    $region10: #{tpu_custom_call.1} parent=1 // pred_check
      _
    $region11: #{tpu_custom_call.1} parent=1 // pred_check_branch
      %99 = sbr.rel (0) target = $region13
    $region12: #{tpu_custom_call.1} parent=1 // pred_region
      %s101 = ssub.s32 512, 512
      %102 = vsyncadd [#allocation6], %s101
      %s103 = sshll.u32 [#allocation5], 4
      %s104 = int_to_ptr.vmem [resolvable:$true] %s103
      %109 = dma.hbm_to_vmem [thread:$0]  %s5, 512, %s104, [#allocation6], 128, 128, 8
    $region13: #{tpu_custom_call.1} parent=1 // pred_fallthru
      _
    // Predicated region
    $region14: #{tpu_custom_call.1} parent=1 // pred_check
      _
    $region15: #{tpu_custom_call.1} parent=1 // pred_check_branch
      %111 = sbr.rel (0) target = $region17
    $region16: #{tpu_custom_call.1} parent=1 // pred_region
      _
    $region17: #{tpu_custom_call.1} parent=1 // pred_fallthru
      _
    // Predicated region
    $region18: #{tpu_custom_call.1} parent=1 // pred_check
      _
    $region19: #{tpu_custom_call.1} parent=1 // pred_check_branch
      %113 = sbr.rel (0) target = $region21
    $region20: #{tpu_custom_call.1} parent=1 // pred_region
      _
    $region21: #{tpu_custom_call.1} parent=1 // pred_fallthru
      _
    // Predicated region
    $region22: #{tpu_custom_call.1} parent=1 // pred_check
      _
    $region23: #{tpu_custom_call.1} parent=1 // pred_check_branch
      %115 = sbr.rel (0) target = $region25
    $region24: #{tpu_custom_call.1} parent=1 // pred_region
      %s117 = ssub.s32 16, 16
      %118 = vsyncadd [#allocation6], %s117
      %s120 = sshll.u32 [#allocation7], 4
      %s121 = int_to_ptr.vmem [resolvable:$true] %s120
      %123 = dma.hbm_to_vmem [thread:$0]  %s11, 16, %s121, [#allocation6]
    $region25: #{tpu_custom_call.1} parent=1 // pred_fallthru
      _
    // Predicated region
    $region26: #{tpu_custom_call.1} parent=1 // pred_check
      _
    $region27: #{tpu_custom_call.1} parent=1 // pred_check_branch
      %125 = sbr.rel (0) target = $region29
    $region28: #{tpu_custom_call.1} parent=1 // pred_region
      %s127 = ssub.s32 16, 16
      %128 = vsyncadd [#allocation9], %s127
      %s130 = sshll.u32 [#allocation8], 4
      %s131 = int_to_ptr.vmem [resolvable:$true] %s130
      %133 = dma.hbm_to_vmem [thread:$0]  %s13, 16, %s131, [#allocation9]
    $region29: #{tpu_custom_call.1} parent=1 // pred_fallthru
      _
    // Predicated region
    $region30: #{tpu_custom_call.1} parent=1 // pred_check
      _
    $region31: #{tpu_custom_call.1} parent=1 // pred_check_branch
      %135 = sbr.rel (0) target = $region33
    $region32: #{tpu_custom_call.1} parent=1 // pred_region
      %s137 = ssub.s32 16, 16
      %138 = vsyncadd [#allocation9], %s137
      %s140 = sshll.u32 [#allocation10], 4
      %s141 = int_to_ptr.vmem [resolvable:$true] %s140
      %143 = dma.hbm_to_vmem [thread:$0]  %s15, 16, %s141, [#allocation9]
    $region33: #{tpu_custom_call.1} parent=1 // pred_fallthru
      _
    // Predicated region
    $region34: #{tpu_custom_call.1} parent=1 // pred_check
      _
    $region35: #{tpu_custom_call.1} parent=1 // pred_check_branch
      %145 = sbr.rel (0) target = $region37
    $region36: #{tpu_custom_call.1} parent=1 // pred_region
      _
    $region37: #{tpu_custom_call.1} parent=1 // pred_fallthru
      _
    // Predicated region
    $region38: #{tpu_custom_call.1} parent=1 // pred_check
      _
    $region39: #{tpu_custom_call.1} parent=1 // pred_check_branch
      %147 = sbr.rel (0) target = $region41
    $region40: #{tpu_custom_call.1} parent=1 // pred_region
      _
    $region41: #{tpu_custom_call.1} parent=1 // pred_fallthru
      _
    // Predicated region
    $region42: #{tpu_custom_call.1} parent=1 // pred_check
      _
    $region43: #{tpu_custom_call.1} parent=1 // pred_check_branch
      %149 = sbr.rel (0) target = $region45
    $region44: #{tpu_custom_call.1} parent=1 // pred_region
      _
    $region45: #{tpu_custom_call.1} parent=1 // pred_fallthru
      _
    // Predicated region
    $region46: #{tpu_custom_call.1} parent=1 // pred_check
      _
    $region47: #{tpu_custom_call.1} parent=1 // pred_check_branch
      %151 = sbr.rel (0) target = $region49
    $region48: #{tpu_custom_call.1} parent=1 // pred_region
      _
    $region49: #{tpu_custom_call.1} parent=1 // pred_fallthru
      _
    // Predicated region
    $region50: #{tpu_custom_call.1} parent=1 // pred_check
      _
    $region51: #{tpu_custom_call.1} parent=1 // pred_check_branch
      %153 = sbr.rel (0) target = $region53
    $region52: #{tpu_custom_call.1} parent=1 // pred_region
      _
    $region53: #{tpu_custom_call.1} parent=1 // pred_fallthru
      _
    // Predicated region
    $region54: #{tpu_custom_call.1} parent=1 // pred_check
      _
    $region55: #{tpu_custom_call.1} parent=1 // pred_check_branch
      %155 = sbr.rel (0) target = $region57
    $region56: #{tpu_custom_call.1} parent=1 // pred_region
      _
    $region57: #{tpu_custom_call.1} parent=1 // pred_fallthru
      _
    // Predicated region
    $region58: #{tpu_custom_call.1} parent=1 // pred_check
      _
    $region59: #{tpu_custom_call.1} parent=1 // pred_check_branch
      %157 = sbr.rel (0) target = $region61
    $region60: #{tpu_custom_call.1} parent=1 // pred_region
      %s159 = ssub.s32 384, 384
      %160 = vsyncadd [#allocation12], %s159
      %s161 = sshll.u32 [#allocation11], 4
      %s162 = int_to_ptr.vmem [resolvable:$true] %s161
      %167 = dma.hbm_to_vmem [thread:$0]  %s29, 384, %s162, [#allocation12], 128, 128, 8
    $region61: #{tpu_custom_call.1} parent=1 // pred_fallthru
      _
    // Predicated region
    $region62: #{tpu_custom_call.1} parent=1 // pred_check
      _
    $region63: #{tpu_custom_call.1} parent=1 // pred_check_branch
      %169 = sbr.rel (0) target = $region65
    $region64: #{tpu_custom_call.1} parent=1 // pred_region
      %s171 = ssub.s32 1024, 1024
      %172 = vsyncadd [#allocation12], %s171
      %s173 = sshll.u32 [#allocation13], 4
      %s174 = int_to_ptr.vmem [resolvable:$true] %s173
      %179 = dma.hbm_to_vmem [thread:$0]  %s31, 1024, %s174, [#allocation12], 64, 64, 4
    $region65: #{tpu_custom_call.1} parent=1 // pred_fallthru
      _
    // Predicated region
    $region66: #{tpu_custom_call.1} parent=1 // pred_check
      _
    $region67: #{tpu_custom_call.1} parent=1 // pred_check_branch
      %181 = sbr.rel (0) target = $region69
    $region68: #{tpu_custom_call.1} parent=1 // pred_region
      _
    $region69: #{tpu_custom_call.1} parent=1 // pred_fallthru
      _
    // Predicated region
    $region70: #{tpu_custom_call.1} parent=1 // pred_check
      _
    $region71: #{tpu_custom_call.1} parent=1 // pred_check_branch
      %183 = sbr.rel (0) target = $region73
    $region72: #{tpu_custom_call.1} parent=1 // pred_region
      %s185 = ssub.s32 1024, 1024
      %186 = vsyncadd [#allocation15], %s185
      %s187 = sshll.u32 [#allocation14], 4
      %s188 = int_to_ptr.vmem [resolvable:$true] %s187
      %193 = dma.hbm_to_vmem [thread:$0]  %s35, 1024, %s188, [#allocation15], 64, 64, 4
    $region73: #{tpu_custom_call.1} parent=1 // pred_fallthru
      _
    // Predicated region
    $region74: #{tpu_custom_call.1} parent=1 // pred_check
      _
    $region75: #{tpu_custom_call.1} parent=1 // pred_check_branch
      %195 = sbr.rel (0) target = $region77
    $region76: #{tpu_custom_call.1} parent=1 // pred_region
      _
    $region77: #{tpu_custom_call.1} parent=1 // pred_fallthru
      _
    // Predicated region
    $region78: #{tpu_custom_call.1} parent=1 // pred_check
      _
    $region79: #{tpu_custom_call.1} parent=1 // pred_check_branch
      %197 = sbr.rel (0) target = $region81
    $region80: #{tpu_custom_call.1} parent=1 // pred_region
      _
    $region81: #{tpu_custom_call.1} parent=1 // pred_fallthru
      _
    // Predicated region
    $region82: #{tpu_custom_call.1} parent=1 // pred_check
      _
    $region83: #{tpu_custom_call.1} parent=1 // pred_check_branch
      %199 = sbr.rel (0) target = $region85
    $region84: #{tpu_custom_call.1} parent=1 // pred_region
      _
    $region85: #{tpu_custom_call.1} parent=1 // pred_fallthru
      _
    // Predicated region
    $region86: #{tpu_custom_call.1} parent=1 // pred_check
      _
    $region87: #{tpu_custom_call.1} parent=1 // pred_check_branch
      %201 = sbr.rel (0) target = $region89
    $region88: #{tpu_custom_call.1} parent=1 // pred_region
      %s203 = ssub.s32 4096, 4096
      %204 = vsyncadd [#allocation15], %s203
      %s205 = sshll.u32 [#allocation16], 4
      %s206 = int_to_ptr.vmem [resolvable:$true] %s205
      %211 = dma.hbm_to_vmem [thread:$0]  %s43, 4096, %s206, [#allocation15], 256, 256, 16
    $region89: #{tpu_custom_call.1} parent=1 // pred_fallthru
      _
    // Predicated region
    $region90: #{tpu_custom_call.1} parent=1 // pred_check
      _
    $region91: #{tpu_custom_call.1} parent=1 // pred_check_branch
      %213 = sbr.rel (0) target = $region93
    $region92: #{tpu_custom_call.1} parent=1 // pred_region
      _
    $region93: #{tpu_custom_call.1} parent=1 // pred_fallthru
      _
    // Predicated region
    $region94: #{tpu_custom_call.1} parent=1 // pred_check
      _
    $region95: #{tpu_custom_call.1} parent=1 // pred_check_branch
      %215 = sbr.rel (0) target = $region97
    $region96: #{tpu_custom_call.1} parent=1 // pred_region
      %s217 = ssub.s32 4096, 4096
      %218 = vsyncadd [#allocation18], %s217
      %s219 = sshll.u32 [#allocation17], 4
      %s220 = int_to_ptr.vmem [resolvable:$true] %s219
      %225 = dma.hbm_to_vmem [thread:$0]  %s47, 4096, %s220, [#allocation18], 64, 64, 4
    $region97: #{tpu_custom_call.1} parent=1 // pred_fallthru
      _
    // Predicated region
    $region98: #{tpu_custom_call.1} parent=1 // pred_check
      _
    $region99: #{tpu_custom_call.1} parent=1 // pred_check_branch
      %227 = sbr.rel (0) target = $region101
    $region100: #{tpu_custom_call.1} parent=1 // pred_region
      _
    $region101: #{tpu_custom_call.1} parent=1 // pred_fallthru
      _
    // Predicated region
    $region102: #{tpu_custom_call.1} parent=1 // pred_check
      _
    $region103: #{tpu_custom_call.1} parent=1 // pred_check_branch
      %229 = sbr.rel (0) target = $region105
    $region104: #{tpu_custom_call.1} parent=1 // pred_region
      _
    $region105: #{tpu_custom_call.1} parent=1 // pred_fallthru
      _
    // Predicated region
    $region106: #{tpu_custom_call.1} parent=1 // pred_check
      _
    $region107: #{tpu_custom_call.1} parent=1 // pred_check_branch
      %231 = sbr.rel (0) target = $region109
    $region108: #{tpu_custom_call.1} parent=1 // pred_region
      _
    $region109: #{tpu_custom_call.1} parent=1 // pred_fallthru
      _
    // Predicated region
    $region110: #{tpu_custom_call.1} parent=1 // pred_check
      _
    $region111: #{tpu_custom_call.1} parent=1 // pred_check_branch
      %233 = sbr.rel (0) target = $region113
    $region112: #{tpu_custom_call.1} parent=1 // pred_region
      _
    $region113: #{tpu_custom_call.1} parent=1 // pred_fallthru
      _
    // Predicated region
    $region114: #{tpu_custom_call.1} parent=1 // pred_check
      _
    $region115: #{tpu_custom_call.1} parent=1 // pred_check_branch
      %235 = sbr.rel (0) target = $region117
    $region116: #{tpu_custom_call.1} parent=1 // pred_region
      _
    $region117: #{tpu_custom_call.1} parent=1 // pred_fallthru
      _
    // Predicated region
    $region118: #{tpu_custom_call.1} parent=1 // pred_check
      _
    $region119: #{tpu_custom_call.1} parent=1 // pred_check_branch
      %237 = sbr.rel (0) target = $region121
    $region120: #{tpu_custom_call.1} parent=1 // pred_region
      %s239 = ssub.s32 11264, 11264
      %240 = vsyncadd [#allocation18], %s239
      %s241 = sshll.u32 [#allocation19], 4
      %s242 = int_to_ptr.vmem [resolvable:$true] %s241
      %247 = dma.hbm_to_vmem [thread:$0]  %s59, 11264, %s242, [#allocation18], 704, 704, 44
    $region121: #{tpu_custom_call.1} parent=1 // pred_fallthru
      _
    // Predicated region
    $region122: #{tpu_custom_call.1} parent=1 // pred_check
      _
    $region123: #{tpu_custom_call.1} parent=1 // pred_check_branch
      %249 = sbr.rel (0) target = $region125
    $region124: #{tpu_custom_call.1} parent=1 // pred_region
      _
    $region125: #{tpu_custom_call.1} parent=1 // pred_fallthru
      _
    // Predicated region
    $region126: #{tpu_custom_call.1} parent=1 // pred_check
      _
    $region127: #{tpu_custom_call.1} parent=1 // pred_check_branch
      %251 = sbr.rel (0) target = $region129
    $region128: #{tpu_custom_call.1} parent=1 // pred_region
      _
    $region129: #{tpu_custom_call.1} parent=1 // pred_fallthru
      _
    // Predicated region
    $region130: #{tpu_custom_call.1} parent=1 // pred_check
      _
    $region131: #{tpu_custom_call.1} parent=1 // pred_check_branch
      %253 = sbr.rel (0) target = $region133
    $region132: #{tpu_custom_call.1} parent=1 // pred_region
      _
    $region133: #{tpu_custom_call.1} parent=1 // pred_fallthru
      _
    // Predicated region
    $region134: #{tpu_custom_call.1} parent=1 // pred_check
      _
    $region135: #{tpu_custom_call.1} parent=1 // pred_check_branch
      %255 = sbr.rel (0) target = $region137
    $region136: #{tpu_custom_call.1} parent=1 // pred_region
      %s257 = ssub.s32 5120, 5120
      %258 = vsyncadd [#allocation21], %s257
      %s259 = sshll.u32 [#allocation20], 4
      %s260 = int_to_ptr.vmem [resolvable:$true] %s259
      %265 = dma.hbm_to_vmem [thread:$0]  %s67, 5120, %s260, [#allocation21], 64, 64, 4
    $region137: #{tpu_custom_call.1} parent=1 // pred_fallthru
      _
    // Predicated region
    $region138: #{tpu_custom_call.1} parent=1 // pred_check
      _
    $region139: #{tpu_custom_call.1} parent=1 // pred_check_branch
      %267 = sbr.rel (0) target = $region141
    $region140: #{tpu_custom_call.1} parent=1 // pred_region
      _
    $region141: #{tpu_custom_call.1} parent=1 // pred_fallthru
      _
    // Predicated region
    $region142: #{tpu_custom_call.1} parent=1 // pred_check
      _
    $region143: #{tpu_custom_call.1} parent=1 // pred_check_branch
      %269 = sbr.rel (0) target = $region145
    $region144: #{tpu_custom_call.1} parent=1 // pred_region
      %270 = dma.done [#allocation3], 128
    $region145: #{tpu_custom_call.1} parent=1 // pred_fallthru
      _
    // Predicated region
    $region146: #{tpu_custom_call.1} parent=1 // pred_check
      _
    $region147: #{tpu_custom_call.1} parent=1 // pred_check_branch
      %272 = sbr.rel (0) target = $region149
    $region148: #{tpu_custom_call.1} parent=1 // pred_region
      %273 = dma.done [#allocation6], 512
    $region149: #{tpu_custom_call.1} parent=1 // pred_fallthru
      _
    // Predicated region
    $region150: #{tpu_custom_call.1} parent=1 // pred_check
      _
    $region151: #{tpu_custom_call.1} parent=1 // pred_check_branch
      %275 = sbr.rel (0) target = $region153
    $region152: #{tpu_custom_call.1} parent=1 // pred_region
      %276 = dma.done [#allocation6], 16
    $region153: #{tpu_custom_call.1} parent=1 // pred_fallthru
      _
    // Predicated region
    $region154: #{tpu_custom_call.1} parent=1 // pred_check
      _
    $region155: #{tpu_custom_call.1} parent=1 // pred_check_branch
      %278 = sbr.rel (0) target = $region157
    $region156: #{tpu_custom_call.1} parent=1 // pred_region
      %279 = dma.done [#allocation9], 16
    $region157: #{tpu_custom_call.1} parent=1 // pred_fallthru
      _
    // Predicated region
    $region158: #{tpu_custom_call.1} parent=1 // pred_check
      _
    $region159: #{tpu_custom_call.1} parent=1 // pred_check_branch
      %281 = sbr.rel (0) target = $region161
    $region160: #{tpu_custom_call.1} parent=1 // pred_region
      %282 = dma.done [#allocation9], 16
    $region161: #{tpu_custom_call.1} parent=1 // pred_fallthru
      _
    // Predicated region
    $region162: #{tpu_custom_call.1} parent=1 // pred_check
      _
    $region163: #{tpu_custom_call.1} parent=1 // pred_check_branch
      %284 = sbr.rel (0) target = $region165
    $region164: #{tpu_custom_call.1} parent=1 // pred_region
      %285 = dma.done [#allocation12], 384
    $region165: #{tpu_custom_call.1} parent=1 // pred_fallthru
      _
    // Predicated region
    $region166: #{tpu_custom_call.1} parent=1 // pred_check
      _
    $region167: #{tpu_custom_call.1} parent=1 // pred_check_branch
      %287 = sbr.rel (0) target = $region169
    $region168: #{tpu_custom_call.1} parent=1 // pred_region
      %288 = dma.done [#allocation12], 1024
    $region169: #{tpu_custom_call.1} parent=1 // pred_fallthru
      _
    // Predicated region
    $region170: #{tpu_custom_call.1} parent=1 // pred_check
      _
    $region171: #{tpu_custom_call.1} parent=1 // pred_check_branch
      %290 = sbr.rel (0) target = $region173
    $region172: #{tpu_custom_call.1} parent=1 // pred_region
      %291 = dma.done [#allocation15], 1024
    $region173: #{tpu_custom_call.1} parent=1 // pred_fallthru
      _
    // Predicated region
    $region174: #{tpu_custom_call.1} parent=1 // pred_check
      _
    $region175: #{tpu_custom_call.1} parent=1 // pred_check_branch
      %293 = sbr.rel (0) target = $region177
    $region176: #{tpu_custom_call.1} parent=1 // pred_region
      %294 = dma.done [#allocation15], 4096
    $region177: #{tpu_custom_call.1} parent=1 // pred_fallthru
      _
    // Predicated region
    $region178: #{tpu_custom_call.1} parent=1 // pred_check
      _
    $region179: #{tpu_custom_call.1} parent=1 // pred_check_branch
      %296 = sbr.rel (0) target = $region181
    $region180: #{tpu_custom_call.1} parent=1 // pred_region
      %297 = dma.done [#allocation18], 4096
    $region181: #{tpu_custom_call.1} parent=1 // pred_fallthru
      _
    // Predicated region
    $region182: #{tpu_custom_call.1} parent=1 // pred_check
      _
    $region183: #{tpu_custom_call.1} parent=1 // pred_check_branch
      %299 = sbr.rel (0) target = $region185
    $region184: #{tpu_custom_call.1} parent=1 // pred_region
      %300 = dma.done [#allocation18], 11264
    $region185: #{tpu_custom_call.1} parent=1 // pred_fallthru
      _
    // Predicated region
    $region186: #{tpu_custom_call.1} parent=1 // pred_check
      _
    $region187: #{tpu_custom_call.1} parent=1 // pred_check_branch
      %302 = sbr.rel (0) target = $region189
    $region188: #{tpu_custom_call.1} parent=1 // pred_region
      %303 = dma.done [#allocation21], 5120
    $region189: #{tpu_custom_call.1} parent=1 // pred_fallthru
      _
    %v305 = vlaneseq
    %v306 = vshrl.u32 %v305, 7
    %v307 = vadd.s32 %v306, 8
    %v308 = vld [vmem:[%s1] sm:$0xf]
    %v309 = vld [vmem:[%s1 + $0x4] sm:$0xf]
    %v310 = vld [vmem:[%s1 + $0x8] sm:$0xf]
    %v311 = vld [vmem:[%s1 + $0xc] sm:$0xf]
    %v312 = vld [vmem:[#allocation2] sm:$0xf]
    %v313 = vld [vmem:[#allocation2 + $0x4] sm:$0xf]
    %v316 = vunpack.c.l.b16 %v308
    %v317 = vunpack.c.l.b16 %v309
    %v318 = vpack.c.b16 %v317, %v316
    %vm319 = vcmask 64512
    %v321 = vsel %vm319, %v318, 0
    %vm323 = vcmask 1043456
    %v325 = vsel %vm323, %v312, 0
    %327 = vmatprep.subr.bf16.mxu0 0
    %328 = vmatpush1.bf16.msra.mxu0 0
    %329 = vmatprep.subr.bf16.mxu0 0
    %330 = vmatpush1.bf16.msra.mxu0 0
    %331 = vmatprep.subr.bf16.mxu0 0
    %332 = vmatpush1.bf16.msra.mxu0 0
    %333 = vmatprep.subr.bf16.mxu0 0
    %334 = vmatpush1.bf16.msra.mxu0 0
    %335 = vmatprep.subr.bf16.mxu0 0
    %336 = vmatpush1.bf16.msra.mxu0 0
    %337 = vmatprep.subr.bf16.mxu0 0
    %338 = vmatpush1.bf16.msra.mxu0 0
    %339 = vmatprep.subr.bf16.mxu0 0
    %340 = vmatpush1.bf16.msra.mxu0 0
    %341 = vmatprep.subr.bf16.mxu0 0
    %342 = vmatpush1.bf16.msra.mxu0 %v325
    %343 = vmatprep.subr.bf16.mxu0 0
    %344 = vmatpush2.bf16.msra.mxu0 0
    %345 = vmatprep.subr.bf16.mxu0 0
    %346 = vmatpush2.bf16.msra.mxu0 0
    %347 = vmatprep.subr.bf16.mxu0 0
    %348 = vmatpush2.bf16.msra.mxu0 0
    %349 = vmatprep.subr.bf16.mxu0 0
    %350 = vmatpush2.bf16.msra.mxu0 0
    %351 = vmatprep.subr.bf16.mxu0 0
    %352 = vmatpush2.bf16.msra.mxu0 0
    %353 = vmatprep.subr.bf16.mxu0 0
    %354 = vmatpush2.bf16.msra.mxu0 0
    %355 = vmatprep.subr.bf16.mxu0 0
    %356 = vmatpush2.bf16.msra.mxu0 0
    %357 = vmatprep.subr.bf16.mxu0 0
    %358 = vmatpush2.bf16.msra.mxu0 0
    %359 = vmatprep.mubr.bf16.mxu0 0
    %360 = vmatmul.mubr.bf16.gmra.mxu0 %v321
    %v361 = vpop.f32.mrf.mxu0
    %v362 = vadd.f32 0.0, %v361
    %v363 = vpop.f32.mrf.mxu0
    %v364 = vpop.f32.mrf.mxu0
    %v365 = vadd.f32 0.0, %v364
    %v366 = vpop.f32.mrf.mxu0
    %367 = vdwg.mxu0
    %v370 = vunpack.c.l.b16 %v310
    %v371 = vunpack.c.l.b16 %v311
    %v372 = vpack.c.b16 %v371, %v370
    %v374 = vsel %vm319, %v372, 0
    %v377 = vsel %vm323, %v313, 0
    %379 = vmatprep.subr.bf16.mxu0 0
    %380 = vmatpush1.bf16.msra.mxu0 0
    %381 = vmatprep.subr.bf16.mxu0 0
    %382 = vmatpush1.bf16.msra.mxu0 0
    %383 = vmatprep.subr.bf16.mxu0 0
    %384 = vmatpush1.bf16.msra.mxu0 0
    %385 = vmatprep.subr.bf16.mxu0 0
    %386 = vmatpush1.bf16.msra.mxu0 0
    %387 = vmatprep.subr.bf16.mxu0 0
    %388 = vmatpush1.bf16.msra.mxu0 0
    %389 = vmatprep.subr.bf16.mxu0 0
    %390 = vmatpush1.bf16.msra.mxu0 0
    %391 = vmatprep.subr.bf16.mxu0 0
    %392 = vmatpush1.bf16.msra.mxu0 0
    %393 = vmatprep.subr.bf16.mxu0 0
    %394 = vmatpush1.bf16.msra.mxu0 %v377
    %395 = vmatprep.subr.bf16.mxu0 0
    %396 = vmatpush2.bf16.msra.mxu0 0
    %397 = vmatprep.subr.bf16.mxu0 0
    %398 = vmatpush2.bf16.msra.mxu0 0
    %399 = vmatprep.subr.bf16.mxu0 0
    %400 = vmatpush2.bf16.msra.mxu0 0
    %401 = vmatprep.subr.bf16.mxu0 0
    %402 = vmatpush2.bf16.msra.mxu0 0
    %403 = vmatprep.subr.bf16.mxu0 0
    %404 = vmatpush2.bf16.msra.mxu0 0
    %405 = vmatprep.subr.bf16.mxu0 0
    %406 = vmatpush2.bf16.msra.mxu0 0
    %407 = vmatprep.subr.bf16.mxu0 0
    %408 = vmatpush2.bf16.msra.mxu0 0
    %409 = vmatprep.subr.bf16.mxu0 0
    %410 = vmatpush2.bf16.msra.mxu0 0
    %411 = vmatprep.mubr.bf16.mxu0 0
    %412 = vmatmul.mubr.bf16.gmra.mxu0 %v374
    %v413 = vpop.f32.mrf.mxu0
    %v414 = vadd.f32 0.0, %v413
    %v415 = vpop.f32.mrf.mxu0
    %v416 = vpop.f32.mrf.mxu0
    %v417 = vadd.f32 0.0, %v416
    %v418 = vpop.f32.mrf.mxu0
    %419 = vdwg.mxu0
    %v420 = vld [vmem:[#allocation5] sm:$0xff]
    %v421 = vld [vmem:[#allocation5 + $0x8] sm:$0xff]
    %v422 = vld [vmem:[#allocation5 + $0x10] sm:$0xff]
    %v423 = vld [vmem:[#allocation5 + $0x18] sm:$0xff]
    %v424 = vld [vmem:[%s9] sm:$0x1]
    %v425 = vld [vmem:[#allocation7] sm:$0x1]
    %426 = vadd.xlane.f32.xlu0 %v362
    %v427 = vpop.xlane.xlu0 %426
    %428 = vadd.xlane.f32.xlu0 %v365
    %v429 = vpop.xlane.xlu0 %428
    %430 = vadd.xlane.f32.xlu0 %v414
    %v431 = vpop.xlane.xlu0 %430
    %432 = vadd.xlane.f32.xlu0 %v417
    %v433 = vpop.xlane.xlu0 %432
    %v434 = vrcp.pop 128.0
    %v435 = vmul.f32 %v427, %v434
    %v436 = vmul.f32 %v429, %v434
    %v437 = vmul.f32 %v431, %v434
    %v438 = vmul.f32 %v433, %v434
    %v439 = vsub.f32 %v362, %v435
    %v440 = vsub.f32 %v365, %v436
    %v441 = vsub.f32 %v414, %v437
    %v442 = vsub.f32 %v417, %v438
    %v443 = vmul.f32 %v439, %v439
    %v444 = vmul.f32 %v440, %v440
    %v445 = vmul.f32 %v441, %v441
    %v446 = vmul.f32 %v442, %v442
    %447 = vadd.xlane.f32.xlu0 %v443
    %v448 = vpop.xlane.xlu0 %447
    %449 = vadd.xlane.f32.xlu0 %v444
    %v450 = vpop.xlane.xlu0 %449
    %451 = vadd.xlane.f32.xlu0 %v445
    %v452 = vpop.xlane.xlu0 %451
    %453 = vadd.xlane.f32.xlu0 %v446
    %v454 = vpop.xlane.xlu0 %453
    %v455 = vmul.f32 %v448, %v434
    %v456 = vmul.f32 %v450, %v434
    %v457 = vmul.f32 %v452, %v434
    %v458 = vmul.f32 %v454, %v434
    %v459 = vadd.f32 %v455, 1e-05
    %v460 = vadd.f32 %v456, 1e-05
    %v461 = vadd.f32 %v457, 1e-05
    %v462 = vadd.f32 %v458, 1e-05
    %v463 = vrsqrt.pop %v459
    %v464 = vrsqrt.pop %v460
    %v465 = vrsqrt.pop %v461
    %v466 = vrsqrt.pop %v462
    %v467 = vmul.f32 %v439, %v463
    %v468 = vmul.f32 %v440, %v464
    %v469 = vmul.f32 %v441, %v465
    %v470 = vmul.f32 %v442, %v466
    %v472 = vlaneseq
    %v473 = vshrl.u32 %v472, 7
    %v474 = vsub.s32 0, %v473
    %v475 = vrot.slane %v424, %v474
    %v477 = vmul.f32 %v467, %v475
    %v478 = vmul.f32 %v468, %v475
    %v479 = vmul.f32 %v469, %v475
    %v480 = vmul.f32 %v470, %v475
    %v482 = vlaneseq
    %v483 = vshrl.u32 %v482, 7
    %v484 = vsub.s32 0, %v483
    %v485 = vrot.slane %v425, %v484
    %v487 = vadd.f32 %v477, %v485
    %v488 = vadd.f32 %v478, %v485
    %v489 = vadd.f32 %v479, %v485
    %v490 = vadd.f32 %v480, %v485
    %v491 = vadd.f32 %v420, %v487
    %v492 = vadd.f32 %v421, %v488
    %v493 = vadd.f32 %v422, %v489
    %v494 = vadd.f32 %v423, %v490
    %v495 = vld [vmem:[#allocation8] sm:$0x1]
    %v496 = vld [vmem:[#allocation10] sm:$0x1]
    %497 = vadd.xlane.f32.xlu0 %v491
    %v498 = vpop.xlane.xlu0 %497
    %499 = vadd.xlane.f32.xlu0 %v492
    %v500 = vpop.xlane.xlu0 %499
    %501 = vadd.xlane.f32.xlu0 %v493
    %v502 = vpop.xlane.xlu0 %501
    %503 = vadd.xlane.f32.xlu0 %v494
    %v504 = vpop.xlane.xlu0 %503
    %v505 = vmul.f32 %v498, %v434
    %v506 = vmul.f32 %v500, %v434
    %v507 = vmul.f32 %v502, %v434
    %v508 = vmul.f32 %v504, %v434
    %v509 = vsub.f32 %v491, %v505
    %v510 = vsub.f32 %v492, %v506
    %v511 = vsub.f32 %v493, %v507
    %v512 = vsub.f32 %v494, %v508
    %v513 = vmul.f32 %v509, %v509
    %v514 = vmul.f32 %v510, %v510
    %v515 = vmul.f32 %v511, %v511
    %v516 = vmul.f32 %v512, %v512
    %517 = vadd.xlane.f32.xlu0 %v513
    %v518 = vpop.xlane.xlu0 %517
    %519 = vadd.xlane.f32.xlu0 %v514
    %v520 = vpop.xlane.xlu0 %519
    %521 = vadd.xlane.f32.xlu0 %v515
    %v522 = vpop.xlane.xlu0 %521
    %523 = vadd.xlane.f32.xlu0 %v516
    %v524 = vpop.xlane.xlu0 %523
    %v525 = vmul.f32 %v518, %v434
    %v526 = vmul.f32 %v520, %v434
    %v527 = vmul.f32 %v522, %v434
    %v528 = vmul.f32 %v524, %v434
    %v529 = vadd.f32 %v525, 1e-05
    %v530 = vadd.f32 %v526, 1e-05
    %v531 = vadd.f32 %v527, 1e-05
    %v532 = vadd.f32 %v528, 1e-05
    %v533 = vrsqrt.pop %v529
    %v534 = vrsqrt.pop %v530
    %v535 = vrsqrt.pop %v531
    %v536 = vrsqrt.pop %v532
    %v537 = vmul.f32 %v509, %v533
    %v538 = vmul.f32 %v510, %v534
    %v539 = vmul.f32 %v511, %v535
    %v540 = vmul.f32 %v512, %v536
    %v542 = vlaneseq
    %v543 = vshrl.u32 %v542, 7
    %v544 = vsub.s32 0, %v543
    %v545 = vrot.slane %v495, %v544
    %v547 = vmul.f32 %v537, %v545
    %v548 = vmul.f32 %v538, %v545
    %v549 = vmul.f32 %v539, %v545
    %v550 = vmul.f32 %v540, %v545
    %v552 = vlaneseq
    %v553 = vshrl.u32 %v552, 7
    %v554 = vsub.s32 0, %v553
    %v555 = vrot.slane %v496, %v554
    %v557 = vadd.f32 %v547, %v555
    %v558 = vadd.f32 %v548, %v555
    %v559 = vadd.f32 %v549, %v555
    %v560 = vadd.f32 %v550, %v555
    %v561 = vpack.c.bf16 %v558, %v557
    %v562 = vpack.c.bf16 %v560, %v559
    %v563 = vld [vmem:[%s17] sm:$0xf]
    %v564 = vld [vmem:[%s17 + $0x4] sm:$0xf]
    %v565 = vld [vmem:[%s17 + $0x8] sm:$0xf]
    %v566 = vld [vmem:[%s17 + $0xc] sm:$0xf]
    %v567 = vld [vmem:[%s17 + $0x10] sm:$0xf]
    %v568 = vld [vmem:[%s17 + $0x14] sm:$0xf]
    %v569 = vld [vmem:[%s17 + $0x18] sm:$0xf]
    %v570 = vld [vmem:[%s17 + $0x1c] sm:$0xf]
    %v571 = vld [vmem:[%s17 + $0x20] sm:$0xf]
    %v572 = vld [vmem:[%s17 + $0x24] sm:$0xf]
    %v573 = vld [vmem:[%s17 + $0x28] sm:$0xf]
    %v574 = vld [vmem:[%s17 + $0x2c] sm:$0xf]
    %v575 = vld [vmem:[%s17 + $0x30] sm:$0xf]
    %v576 = vld [vmem:[%s17 + $0x34] sm:$0xf]
    %v577 = vld [vmem:[%s17 + $0x38] sm:$0xf]
    %v578 = vld [vmem:[%s17 + $0x3c] sm:$0xf]
    %v579 = vld [vmem:[%s19] sm:$0x1]
    %v581 = vlaneseq
    %v582 = vshrl.u32 %v581, 7
    %v583 = vsub.s32 0, %v582
    %v584 = vrot.slane %v579, %v583
    %v602 = vunpack.c.l.b16 %v563
    %v603 = vunpack.c.l.b16 %v564
    %v604 = vunpack.c.l.b16 %v565
    %v605 = vunpack.c.l.b16 %v566
    %v606 = vunpack.c.l.b16 %v567
    %v607 = vunpack.c.l.b16 %v568
    %v608 = vunpack.c.l.b16 %v569
    %v609 = vunpack.c.l.b16 %v570
    %v610 = vunpack.c.l.b16 %v571
    %v611 = vunpack.c.l.b16 %v572
    %v612 = vunpack.c.l.b16 %v573
    %v613 = vunpack.c.l.b16 %v574
    %v614 = vunpack.c.l.b16 %v575
    %v615 = vunpack.c.l.b16 %v576
    %v616 = vunpack.c.l.b16 %v577
    %v617 = vunpack.c.l.b16 %v578
    %v618 = vpack.c.b16 %v603, %v602
    %v619 = vpack.c.b16 %v605, %v604
    %v620 = vpack.c.b16 %v607, %v606
    %v621 = vpack.c.b16 %v609, %v608
    %v622 = vpack.c.b16 %v611, %v610
    %v623 = vpack.c.b16 %v613, %v612
    %v624 = vpack.c.b16 %v615, %v614
    %v625 = vpack.c.b16 %v617, %v616
    %634 = vmatprep.subr.bf16.mxu0 0
    %635 = vmatpush1.bf16.msra.mxu0 %v625
    %636 = vmatprep.subr.bf16.mxu0 0
    %637 = vmatpush1.bf16.msra.mxu0 %v624
    %638 = vmatprep.subr.bf16.mxu0 0
    %639 = vmatpush1.bf16.msra.mxu0 %v623
    %640 = vmatprep.subr.bf16.mxu0 0
    %641 = vmatpush1.bf16.msra.mxu0 %v622
    %642 = vmatprep.subr.bf16.mxu0 0
    %643 = vmatpush1.bf16.msra.mxu0 %v621
    %644 = vmatprep.subr.bf16.mxu0 0
    %645 = vmatpush1.bf16.msra.mxu0 %v620
    %646 = vmatprep.subr.bf16.mxu0 0
    %647 = vmatpush1.bf16.msra.mxu0 %v619
    %648 = vmatprep.subr.bf16.mxu0 0
    %649 = vmatpush1.bf16.msra.mxu0 %v618
    %650 = vmatprep.subr.bf16.mxu0 0
    %651 = vmatpush2.bf16.msra.mxu0 0
    %652 = vmatprep.subr.bf16.mxu0 0
    %653 = vmatpush2.bf16.msra.mxu0 0
    %654 = vmatprep.subr.bf16.mxu0 0
    %655 = vmatpush2.bf16.msra.mxu0 0
    %656 = vmatprep.subr.bf16.mxu0 0
    %657 = vmatpush2.bf16.msra.mxu0 0
    %658 = vmatprep.subr.bf16.mxu0 0
    %659 = vmatpush2.bf16.msra.mxu0 0
    %660 = vmatprep.subr.bf16.mxu0 0
    %661 = vmatpush2.bf16.msra.mxu0 0
    %662 = vmatprep.subr.bf16.mxu0 0
    %663 = vmatpush2.bf16.msra.mxu0 0
    %664 = vmatprep.subr.bf16.mxu0 0
    %665 = vmatpush2.bf16.msra.mxu0 0
    %666 = vmatprep.mubr.bf16.mxu0 0
    %667 = vmatmul.mubr.bf16.gmra.mxu0 %v561
    %v668 = vpop.f32.mrf.mxu0
    %v669 = vadd.f32 %v584, %v668
    %v670 = vpop.f32.mrf.mxu0
    %v671 = vpop.f32.mrf.mxu0
    %v672 = vadd.f32 %v584, %v671
    %v673 = vpop.f32.mrf.mxu0
    %674 = vmatprep.mubr.bf16.mxu0 0
    %675 = vmatmul.mubr.bf16.gmra.mxu0 %v562
    %v676 = vpop.f32.mrf.mxu0
    %v677 = vadd.f32 %v584, %v676
    %v678 = vpop.f32.mrf.mxu0
    %v679 = vpop.f32.mrf.mxu0
    %v680 = vadd.f32 %v584, %v679
    %v681 = vpop.f32.mrf.mxu0
    %682 = vdwg.mxu0
    %v683 = vld [vmem:[%s21] sm:$0xf]
    %v684 = vld [vmem:[%s21 + $0x4] sm:$0xf]
    %v685 = vld [vmem:[%s21 + $0x8] sm:$0xf]
    %v686 = vld [vmem:[%s21 + $0xc] sm:$0xf]
    %v687 = vld [vmem:[%s21 + $0x10] sm:$0xf]
    %v688 = vld [vmem:[%s21 + $0x14] sm:$0xf]
    %v689 = vld [vmem:[%s21 + $0x18] sm:$0xf]
    %v690 = vld [vmem:[%s21 + $0x1c] sm:$0xf]
    %v691 = vld [vmem:[%s21 + $0x20] sm:$0xf]
    %v692 = vld [vmem:[%s21 + $0x24] sm:$0xf]
    %v693 = vld [vmem:[%s21 + $0x28] sm:$0xf]
    %v694 = vld [vmem:[%s21 + $0x2c] sm:$0xf]
    %v695 = vld [vmem:[%s21 + $0x30] sm:$0xf]
    %v696 = vld [vmem:[%s21 + $0x34] sm:$0xf]
    %v697 = vld [vmem:[%s21 + $0x38] sm:$0xf]
    %v698 = vld [vmem:[%s21 + $0x3c] sm:$0xf]
    %v699 = vld [vmem:[%s23] sm:$0x1]
    %v701 = vlaneseq
    %v702 = vshrl.u32 %v701, 7
    %v703 = vsub.s32 0, %v702
    %v704 = vrot.slane %v699, %v703
    %v722 = vunpack.c.l.b16 %v683
    %v723 = vunpack.c.l.b16 %v684
    %v724 = vunpack.c.l.b16 %v685
    %v725 = vunpack.c.l.b16 %v686
    %v726 = vunpack.c.l.b16 %v687
    %v727 = vunpack.c.l.b16 %v688
    %v728 = vunpack.c.l.b16 %v689
    %v729 = vunpack.c.l.b16 %v690
    %v730 = vunpack.c.l.b16 %v691
    %v731 = vunpack.c.l.b16 %v692
    %v732 = vunpack.c.l.b16 %v693
    %v733 = vunpack.c.l.b16 %v694
    %v734 = vunpack.c.l.b16 %v695
    %v735 = vunpack.c.l.b16 %v696
    %v736 = vunpack.c.l.b16 %v697
    %v737 = vunpack.c.l.b16 %v698
    %v738 = vpack.c.b16 %v723, %v722
    %v739 = vpack.c.b16 %v725, %v724
    %v740 = vpack.c.b16 %v727, %v726
    %v741 = vpack.c.b16 %v729, %v728
    %v742 = vpack.c.b16 %v731, %v730
    %v743 = vpack.c.b16 %v733, %v732
    %v744 = vpack.c.b16 %v735, %v734
    %v745 = vpack.c.b16 %v737, %v736
    %754 = vmatprep.subr.bf16.mxu0 0
    %755 = vmatpush1.bf16.msra.mxu0 %v745
    %756 = vmatprep.subr.bf16.mxu0 0
    %757 = vmatpush1.bf16.msra.mxu0 %v744
    %758 = vmatprep.subr.bf16.mxu0 0
    %759 = vmatpush1.bf16.msra.mxu0 %v743
    %760 = vmatprep.subr.bf16.mxu0 0
    %761 = vmatpush1.bf16.msra.mxu0 %v742
    %762 = vmatprep.subr.bf16.mxu0 0
    %763 = vmatpush1.bf16.msra.mxu0 %v741
    %764 = vmatprep.subr.bf16.mxu0 0
    %765 = vmatpush1.bf16.msra.mxu0 %v740
    %766 = vmatprep.subr.bf16.mxu0 0
    %767 = vmatpush1.bf16.msra.mxu0 %v739
    %768 = vmatprep.subr.bf16.mxu0 0
    %769 = vmatpush1.bf16.msra.mxu0 %v738
    %770 = vmatprep.subr.bf16.mxu0 0
    %771 = vmatpush2.bf16.msra.mxu0 0
    %772 = vmatprep.subr.bf16.mxu0 0
    %773 = vmatpush2.bf16.msra.mxu0 0
    %774 = vmatprep.subr.bf16.mxu0 0
    %775 = vmatpush2.bf16.msra.mxu0 0
    %776 = vmatprep.subr.bf16.mxu0 0
    %777 = vmatpush2.bf16.msra.mxu0 0
    %778 = vmatprep.subr.bf16.mxu0 0
    %779 = vmatpush2.bf16.msra.mxu0 0
    %780 = vmatprep.subr.bf16.mxu0 0
    %781 = vmatpush2.bf16.msra.mxu0 0
    %782 = vmatprep.subr.bf16.mxu0 0
    %783 = vmatpush2.bf16.msra.mxu0 0
    %784 = vmatprep.subr.bf16.mxu0 0
    %785 = vmatpush2.bf16.msra.mxu0 0
    %786 = vmatprep.mubr.bf16.mxu0 0
    %787 = vmatmul.mubr.bf16.gmra.mxu0 %v561
    %v788 = vpop.f32.mrf.mxu0
    %v789 = vadd.f32 %v704, %v788
    %v790 = vpop.f32.mrf.mxu0
    %v791 = vpop.f32.mrf.mxu0
    %v792 = vadd.f32 %v704, %v791
    %v793 = vpop.f32.mrf.mxu0
    %794 = vmatprep.mubr.bf16.mxu0 0
    %795 = vmatmul.mubr.bf16.gmra.mxu0 %v562
    %v796 = vpop.f32.mrf.mxu0
    %v797 = vadd.f32 %v704, %v796
    %v798 = vpop.f32.mrf.mxu0
    %v799 = vpop.f32.mrf.mxu0
    %v800 = vadd.f32 %v704, %v799
    %v801 = vpop.f32.mrf.mxu0
    %802 = vdwg.mxu0
    %v803 = vld [vmem:[%s25] sm:$0xf]
    %v804 = vld [vmem:[%s25 + $0x4] sm:$0xf]
    %v805 = vld [vmem:[%s25 + $0x8] sm:$0xf]
    %v806 = vld [vmem:[%s25 + $0xc] sm:$0xf]
    %v807 = vld [vmem:[%s25 + $0x10] sm:$0xf]
    %v808 = vld [vmem:[%s25 + $0x14] sm:$0xf]
    %v809 = vld [vmem:[%s25 + $0x18] sm:$0xf]
    %v810 = vld [vmem:[%s25 + $0x1c] sm:$0xf]
    %v811 = vld [vmem:[%s25 + $0x20] sm:$0xf]
    %v812 = vld [vmem:[%s25 + $0x24] sm:$0xf]
    %v813 = vld [vmem:[%s25 + $0x28] sm:$0xf]
    %v814 = vld [vmem:[%s25 + $0x2c] sm:$0xf]
    %v815 = vld [vmem:[%s25 + $0x30] sm:$0xf]
    %v816 = vld [vmem:[%s25 + $0x34] sm:$0xf]
    %v817 = vld [vmem:[%s25 + $0x38] sm:$0xf]
    %v818 = vld [vmem:[%s25 + $0x3c] sm:$0xf]
    %v819 = vld [vmem:[%s27] sm:$0x1]
    %v821 = vlaneseq
    %v822 = vshrl.u32 %v821, 7
    %v823 = vsub.s32 0, %v822
    %v824 = vrot.slane %v819, %v823
    %v842 = vunpack.c.l.b16 %v803
    %v843 = vunpack.c.l.b16 %v804
    %v844 = vunpack.c.l.b16 %v805
    %v845 = vunpack.c.l.b16 %v806
    %v846 = vunpack.c.l.b16 %v807
    %v847 = vunpack.c.l.b16 %v808
    %v848 = vunpack.c.l.b16 %v809
    %v849 = vunpack.c.l.b16 %v810
    %v850 = vunpack.c.l.b16 %v811
    %v851 = vunpack.c.l.b16 %v812
    %v852 = vunpack.c.l.b16 %v813
    %v853 = vunpack.c.l.b16 %v814
    %v854 = vunpack.c.l.b16 %v815
    %v855 = vunpack.c.l.b16 %v816
    %v856 = vunpack.c.l.b16 %v817
    %v857 = vunpack.c.l.b16 %v818
    %v858 = vpack.c.b16 %v843, %v842
    %v859 = vpack.c.b16 %v845, %v844
    %v860 = vpack.c.b16 %v847, %v846
    %v861 = vpack.c.b16 %v849, %v848
    %v862 = vpack.c.b16 %v851, %v850
    %v863 = vpack.c.b16 %v853, %v852
    %v864 = vpack.c.b16 %v855, %v854
    %v865 = vpack.c.b16 %v857, %v856
    %874 = vmatprep.subr.bf16.mxu0 0
    %875 = vmatpush1.bf16.msra.mxu0 %v865
    %876 = vmatprep.subr.bf16.mxu0 0
    %877 = vmatpush1.bf16.msra.mxu0 %v864
    %878 = vmatprep.subr.bf16.mxu0 0
    %879 = vmatpush1.bf16.msra.mxu0 %v863
    %880 = vmatprep.subr.bf16.mxu0 0
    %881 = vmatpush1.bf16.msra.mxu0 %v862
    %882 = vmatprep.subr.bf16.mxu0 0
    %883 = vmatpush1.bf16.msra.mxu0 %v861
    %884 = vmatprep.subr.bf16.mxu0 0
    %885 = vmatpush1.bf16.msra.mxu0 %v860
    %886 = vmatprep.subr.bf16.mxu0 0
    %887 = vmatpush1.bf16.msra.mxu0 %v859
    %888 = vmatprep.subr.bf16.mxu0 0
    %889 = vmatpush1.bf16.msra.mxu0 %v858
    %890 = vmatprep.subr.bf16.mxu0 0
    %891 = vmatpush2.bf16.msra.mxu0 0
    %892 = vmatprep.subr.bf16.mxu0 0
    %893 = vmatpush2.bf16.msra.mxu0 0
    %894 = vmatprep.subr.bf16.mxu0 0
    %895 = vmatpush2.bf16.msra.mxu0 0
    %896 = vmatprep.subr.bf16.mxu0 0
    %897 = vmatpush2.bf16.msra.mxu0 0
    %898 = vmatprep.subr.bf16.mxu0 0
    %899 = vmatpush2.bf16.msra.mxu0 0
    %900 = vmatprep.subr.bf16.mxu0 0
    %901 = vmatpush2.bf16.msra.mxu0 0
    %902 = vmatprep.subr.bf16.mxu0 0
    %903 = vmatpush2.bf16.msra.mxu0 0
    %904 = vmatprep.subr.bf16.mxu0 0
    %905 = vmatpush2.bf16.msra.mxu0 0
    %906 = vmatprep.mubr.bf16.mxu0 0
    %907 = vmatmul.mubr.bf16.gmra.mxu0 %v561
    %v908 = vpop.f32.mrf.mxu0
    %v909 = vadd.f32 %v824, %v908
    %v910 = vpop.f32.mrf.mxu0
    %v911 = vpop.f32.mrf.mxu0
    %v912 = vadd.f32 %v824, %v911
    %v913 = vpop.f32.mrf.mxu0
    %914 = vmatprep.mubr.bf16.mxu0 0
    %915 = vmatmul.mubr.bf16.gmra.mxu0 %v562
    %v916 = vpop.f32.mrf.mxu0
    %v917 = vadd.f32 %v824, %v916
    %v918 = vpop.f32.mrf.mxu0
    %v919 = vpop.f32.mrf.mxu0
    %v920 = vadd.f32 %v824, %v919
    %v921 = vpop.f32.mrf.mxu0
    %922 = vdwg.mxu0
    %v923 = vrot.slane %v789, 7
    %v924 = vrot.slane %v792, 7
    %v925 = vrot.slane %v797, 7
    %v926 = vrot.slane %v800, 7
    %vm927 = vcmp.lt.s32.totalorder %v306, 1
    %v928 = vsel %vm927, %v925, %v926
    %v929 = vsel %vm927, %v924, %v925
    %v930 = vsel %vm927, %v923, %v924
    %v931 = vsel %vm927, %v926, %v923
    %vm932 = vcmp.ge.s32.totalorder %v306, 1
    %vm933 = vcmp.ge.s32.totalorder %v307, 1
    %v934 = vsel %vm932, %v931, 0.0
    %v935 = vsel %vm933, %v930, 0.0
    %v936 = vsel %vm932, %v929, 0.0
    %v937 = vsel %vm933, %v928, 0.0
    %v938 = vld [vmem:[#allocation11] sm:$0x1]
    %v939 = vlaneseq
    %v940 = vshrl.u32 %v939, 7
    %v941 = vsub.s32 0, %v940
    %v942 = vrot.slane %v938, %v941
    %v943 = vmul.f32 %v934, %v942
    %v944 = vmul.f32 %v935, %v942
    %v945 = vmul.f32 %v936, %v942
    %v946 = vmul.f32 %v937, %v942
    %v947 = vadd.f32 %v943, 0.0
    %v948 = vadd.f32 %v944, 0.0
    %v949 = vadd.f32 %v945, 0.0
    %v950 = vadd.f32 %v946, 0.0
    %v951 = vld [vmem:[#allocation11 + $0x1] sm:$0x1]
    %v952 = vlaneseq
    %v953 = vshrl.u32 %v952, 7
    %v954 = vsub.s32 0, %v953
    %v955 = vrot.slane %v951, %v954
    %v956 = vmul.f32 %v789, %v955
    %v957 = vmul.f32 %v792, %v955
    %v958 = vmul.f32 %v797, %v955
    %v959 = vmul.f32 %v800, %v955
    %v960 = vadd.f32 %v947, %v956
    %v961 = vadd.f32 %v948, %v957
    %v962 = vadd.f32 %v949, %v958
    %v963 = vadd.f32 %v950, %v959
    %v964 = vrot.slane %v789, 1
    %v965 = vrot.slane %v792, 1
    %v966 = vrot.slane %v797, 1
    %v967 = vrot.slane %v800, 1
    %vm968 = vcmp.lt.s32.totalorder %v306, 7
    %v969 = vsel %vm968, %v966, %v967
    %v970 = vsel %vm968, %v965, %v966
    %v971 = vsel %vm968, %v964, %v965
    %v972 = vsel %vm968, %v967, %v964
    %vm973 = vcmp.lt.s32.totalorder %v306, 15
    %vm974 = vcmp.lt.s32.totalorder %v307, 15
    %v975 = vsel %vm973, %v971, 0.0
    %v976 = vsel %vm974, %v970, 0.0
    %v977 = vsel %vm973, %v969, 0.0
    %v978 = vsel %vm974, %v972, 0.0
    %v979 = vld [vmem:[#allocation11 + $0x2] sm:$0x1]
    %v980 = vlaneseq
    %v981 = vshrl.u32 %v980, 7
    %v982 = vsub.s32 0, %v981
    %v983 = vrot.slane %v979, %v982
    %v984 = vmul.f32 %v975, %v983
    %v985 = vmul.f32 %v976, %v983
    %v986 = vmul.f32 %v977, %v983
    %v987 = vmul.f32 %v978, %v983
    %v988 = vadd.f32 %v960, %v984
    %v989 = vadd.f32 %v961, %v985
    %v990 = vadd.f32 %v962, %v986
    %v991 = vadd.f32 %v963, %v987
    %v992 = vmul.f32 %v988, 0.5
    %v993 = vmul.f32 %v989, 0.5
    %v994 = vmul.f32 %v990, 0.5
    %v995 = vmul.f32 %v991, 0.5
    %v996 = vmul.f32 %v988, 0.044715
    %v997 = vmul.f32 %v989, 0.044715
    %v998 = vmul.f32 %v990, 0.044715
    %v999 = vmul.f32 %v991, 0.044715
    %v1000 = vmul.f32 %v996, %v988
    %v1001 = vmul.f32 %v997, %v989
    %v1002 = vmul.f32 %v998, %v990
    %v1003 = vmul.f32 %v999, %v991
    %v1004 = vmul.f32 %v1000, %v988
    %v1005 = vmul.f32 %v1001, %v989
    %v1006 = vmul.f32 %v1002, %v990
    %v1007 = vmul.f32 %v1003, %v991
    %v1008 = vadd.f32 %v988, %v1004
    %v1009 = vadd.f32 %v989, %v1005
    %v1010 = vadd.f32 %v990, %v1006
    %v1011 = vadd.f32 %v991, %v1007
    %v1012 = vmul.f32 %v1008, 0.7978846
    %v1013 = vmul.f32 %v1009, 0.7978846
    %v1014 = vmul.f32 %v1010, 0.7978846
    %v1015 = vmul.f32 %v1011, 0.7978846
    %v1016 = vtanh.pop %v1012
    %v1017 = vtanh.pop %v1013
    %v1018 = vtanh.pop %v1014
    %v1019 = vtanh.pop %v1015
    %v1020 = vadd.f32 %v1016, 1.0
    %v1021 = vadd.f32 %v1017, 1.0
    %v1022 = vadd.f32 %v1018, 1.0
    %v1023 = vadd.f32 %v1019, 1.0
    %v1024 = vmul.f32 %v992, %v1020
    %v1025 = vmul.f32 %v993, %v1021
    %v1026 = vmul.f32 %v994, %v1022
    %v1027 = vmul.f32 %v995, %v1023
    %1029 = vset.pattern.permute.xlu0 0
    %1030 = vperm.xlu0 %1029, %v909
    %v1031 = vpop.permute.xlu0 %1030
    %1034 = vset.pattern.permute.xlu0 0
    %1035 = vperm.xlu0 %1034, %v912
    %v1036 = vpop.permute.xlu0 %1035
    %1039 = vset.pattern.permute.xlu0 0
    %1040 = vperm.xlu0 %1039, %v917
    %v1041 = vpop.permute.xlu0 %1040
    %1044 = vset.pattern.permute.xlu0 0
    %1045 = vperm.xlu0 %1044, %v920
    %v1046 = vpop.permute.xlu0 %1045
    %v1048 = vmul.f32 %v1024, %v1031
    %v1049 = vmul.f32 %v1025, %v1036
    %v1050 = vmul.f32 %v1026, %v1041
    %v1051 = vmul.f32 %v1027, %v1046
    %v1052 = vadd.f32 %v1048, 0.0
    %v1053 = vadd.f32 %v1049, 0.0
    %v1054 = vadd.f32 %v1050, 0.0
    %v1055 = vadd.f32 %v1051, 0.0
    %v1056 = vrot.slane %v1024, 6
    %v1057 = vrot.slane %v1025, 6
    %v1058 = vrot.slane %v1026, 6
    %v1059 = vrot.slane %v1027, 6
    %vm1060 = vcmp.lt.s32.totalorder %v306, 2
    %v1061 = vsel %vm1060, %v1058, %v1059
    %v1062 = vsel %vm1060, %v1057, %v1058
    %v1063 = vsel %vm1060, %v1056, %v1057
    %v1064 = vsel %vm1060, %v1059, %v1056
    %vm1065 = vcmp.ge.s32.totalorder %v306, 2
    %vm1066 = vcmp.ge.s32.totalorder %v307, 2
    %v1067 = vsel %vm1065, %v1064, 0.0
    %v1068 = vsel %vm1066, %v1063, 0.0
    %v1069 = vsel %vm1065, %v1062, 0.0
    %v1070 = vsel %vm1066, %v1061, 0.0
    %s1071 = scalar_lea.vmem [#allocation11], 8
    %v1072 = vld [vmem:[%s1071] sm:$0x1]
    %v1073 = vlaneseq
    %v1074 = vshrl.u32 %v1073, 7
    %v1075 = vsub.s32 0, %v1074
    %v1076 = vrot.slane %v1072, %v1075
    %v1077 = vmul.f32 %v1067, %v1076
    %v1078 = vmul.f32 %v1068, %v1076
    %v1079 = vmul.f32 %v1069, %v1076
    %v1080 = vmul.f32 %v1070, %v1076
    %v1081 = vadd.f32 %v1077, 0.0
    %v1082 = vadd.f32 %v1078, 0.0
    %v1083 = vadd.f32 %v1079, 0.0
    %v1084 = vadd.f32 %v1080, 0.0
    %v1085 = vrot.slane %v1024, 7
    %v1086 = vrot.slane %v1025, 7
    %v1087 = vrot.slane %v1026, 7
    %v1088 = vrot.slane %v1027, 7
    %v1089 = vsel %vm927, %v1087, %v1088
    %v1090 = vsel %vm927, %v1086, %v1087
    %v1091 = vsel %vm927, %v1085, %v1086
    %v1092 = vsel %vm927, %v1088, %v1085
    %v1093 = vsel %vm932, %v1092, 0.0
    %v1094 = vsel %vm933, %v1091, 0.0
    %v1095 = vsel %vm932, %v1090, 0.0
    %v1096 = vsel %vm933, %v1089, 0.0
    %v1097 = vld [vmem:[%s1071 + $0x1] sm:$0x1]
    %v1098 = vlaneseq
    %v1099 = vshrl.u32 %v1098, 7
    %v1100 = vsub.s32 0, %v1099
    %v1101 = vrot.slane %v1097, %v1100
    %v1102 = vmul.f32 %v1093, %v1101
    %v1103 = vmul.f32 %v1094, %v1101
    %v1104 = vmul.f32 %v1095, %v1101
    %v1105 = vmul.f32 %v1096, %v1101
    %v1106 = vadd.f32 %v1081, %v1102
    %v1107 = vadd.f32 %v1082, %v1103
    %v1108 = vadd.f32 %v1083, %v1104
    %v1109 = vadd.f32 %v1084, %v1105
    %v1110 = vld [vmem:[%s1071 + $0x2] sm:$0x1]
    %v1111 = vlaneseq
    %v1112 = vshrl.u32 %v1111, 7
    %v1113 = vsub.s32 0, %v1112
    %v1114 = vrot.slane %v1110, %v1113
    %v1115 = vmul.f32 %v1024, %v1114
    %v1116 = vmul.f32 %v1025, %v1114
    %v1117 = vmul.f32 %v1026, %v1114
    %v1118 = vmul.f32 %v1027, %v1114
    %v1119 = vadd.f32 %v1106, %v1115
    %v1120 = vadd.f32 %v1107, %v1116
    %v1121 = vadd.f32 %v1108, %v1117
    %v1122 = vadd.f32 %v1109, %v1118
    %v1123 = vrot.slane %v1024, 1
    %v1124 = vrot.slane %v1025, 1
    %v1125 = vrot.slane %v1026, 1
    %v1126 = vrot.slane %v1027, 1
    %v1127 = vsel %vm968, %v1125, %v1126
    %v1128 = vsel %vm968, %v1124, %v1125
    %v1129 = vsel %vm968, %v1123, %v1124
    %v1130 = vsel %vm968, %v1126, %v1123
    %v1131 = vsel %vm973, %v1129, 0.0
    %v1132 = vsel %vm974, %v1128, 0.0
    %v1133 = vsel %vm973, %v1127, 0.0
    %v1134 = vsel %vm974, %v1130, 0.0
    %v1135 = vld [vmem:[%s1071 + $0x3] sm:$0x1]
    %v1136 = vlaneseq
    %v1137 = vshrl.u32 %v1136, 7
    %v1138 = vsub.s32 0, %v1137
    %v1139 = vrot.slane %v1135, %v1138
    %v1140 = vmul.f32 %v1131, %v1139
    %v1141 = vmul.f32 %v1132, %v1139
    %v1142 = vmul.f32 %v1133, %v1139
    %v1143 = vmul.f32 %v1134, %v1139
    %v1144 = vadd.f32 %v1119, %v1140
    %v1145 = vadd.f32 %v1120, %v1141
    %v1146 = vadd.f32 %v1121, %v1142
    %v1147 = vadd.f32 %v1122, %v1143
    %v1148 = vrot.slane %v1024, 2
    %v1149 = vrot.slane %v1025, 2
    %v1150 = vrot.slane %v1026, 2
    %v1151 = vrot.slane %v1027, 2
    %vm1152 = vcmp.lt.s32.totalorder %v306, 6
    %v1153 = vsel %vm1152, %v1150, %v1151
    %v1154 = vsel %vm1152, %v1149, %v1150
    %v1155 = vsel %vm1152, %v1148, %v1149
    %v1156 = vsel %vm1152, %v1151, %v1148
    %vm1157 = vcmp.lt.s32.totalorder %v306, 14
    %vm1158 = vcmp.lt.s32.totalorder %v307, 14
    %v1159 = vsel %vm1157, %v1155, 0.0
    %v1160 = vsel %vm1158, %v1154, 0.0
    %v1161 = vsel %vm1157, %v1153, 0.0
    %v1162 = vsel %vm1158, %v1156, 0.0
    %v1163 = vld [vmem:[%s1071 + $0x4] sm:$0x1]
    %v1164 = vlaneseq
    %v1165 = vshrl.u32 %v1164, 7
    %v1166 = vsub.s32 0, %v1165
    %v1167 = vrot.slane %v1163, %v1166
    %v1168 = vmul.f32 %v1159, %v1167
    %v1169 = vmul.f32 %v1160, %v1167
    %v1170 = vmul.f32 %v1161, %v1167
    %v1171 = vmul.f32 %v1162, %v1167
    %v1172 = vadd.f32 %v1144, %v1168
    %v1173 = vadd.f32 %v1145, %v1169
    %v1174 = vadd.f32 %v1146, %v1170
    %v1175 = vadd.f32 %v1147, %v1171
    %v1176 = vmul.f32 %v1172, 0.5
    %v1177 = vmul.f32 %v1173, 0.5
    %v1178 = vmul.f32 %v1174, 0.5
    %v1179 = vmul.f32 %v1175, 0.5
    %v1180 = vmul.f32 %v1172, 0.044715
    %v1181 = vmul.f32 %v1173, 0.044715
    %v1182 = vmul.f32 %v1174, 0.044715
    %v1183 = vmul.f32 %v1175, 0.044715
    %v1184 = vmul.f32 %v1180, %v1172
    %v1185 = vmul.f32 %v1181, %v1173
    %v1186 = vmul.f32 %v1182, %v1174
    %v1187 = vmul.f32 %v1183, %v1175
    %v1188 = vmul.f32 %v1184, %v1172
    %v1189 = vmul.f32 %v1185, %v1173
    %v1190 = vmul.f32 %v1186, %v1174
    %v1191 = vmul.f32 %v1187, %v1175
    %v1192 = vadd.f32 %v1172, %v1188
    %v1193 = vadd.f32 %v1173, %v1189
    %v1194 = vadd.f32 %v1174, %v1190
    %v1195 = vadd.f32 %v1175, %v1191
    %v1196 = vmul.f32 %v1192, 0.7978846
    %v1197 = vmul.f32 %v1193, 0.7978846
    %v1198 = vmul.f32 %v1194, 0.7978846
    %v1199 = vmul.f32 %v1195, 0.7978846
    %v1200 = vtanh.pop %v1196
    %v1201 = vtanh.pop %v1197
    %v1202 = vtanh.pop %v1198
    %v1203 = vtanh.pop %v1199
    %v1204 = vadd.f32 %v1200, 1.0
    %v1205 = vadd.f32 %v1201, 1.0
    %v1206 = vadd.f32 %v1202, 1.0
    %v1207 = vadd.f32 %v1203, 1.0
    %v1208 = vmul.f32 %v1176, %v1204
    %v1209 = vmul.f32 %v1177, %v1205
    %v1210 = vmul.f32 %v1178, %v1206
    %v1211 = vmul.f32 %v1179, %v1207
    %1212 = vset.pattern.permute.xlu0 1
    %1213 = vperm.xlu0 %1212, %v909
    %v1214 = vpop.permute.xlu0 %1213
    %1216 = vset.pattern.permute.xlu0 1
    %1217 = vperm.xlu0 %1216, %v912
    %v1218 = vpop.permute.xlu0 %1217
    %1220 = vset.pattern.permute.xlu0 1
    %1221 = vperm.xlu0 %1220, %v917
    %v1222 = vpop.permute.xlu0 %1221
    %1224 = vset.pattern.permute.xlu0 1
    %1225 = vperm.xlu0 %1224, %v920
    %v1226 = vpop.permute.xlu0 %1225
    %v1228 = vmul.f32 %v1208, %v1214
    %v1229 = vmul.f32 %v1209, %v1218
    %v1230 = vmul.f32 %v1210, %v1222
    %v1231 = vmul.f32 %v1211, %v1226
    %v1232 = vadd.f32 %v1052, %v1228
    %v1233 = vadd.f32 %v1053, %v1229
    %v1234 = vadd.f32 %v1054, %v1230
    %v1235 = vadd.f32 %v1055, %v1231
    %v1236 = vrot.slane %v1208, 5
    %v1237 = vrot.slane %v1209, 5
    %v1238 = vrot.slane %v1210, 5
    %v1239 = vrot.slane %v1211, 5
    %vm1240 = vcmp.lt.s32.totalorder %v306, 3
    %v1241 = vsel %vm1240, %v1238, %v1239
    %v1242 = vsel %vm1240, %v1237, %v1238
    %v1243 = vsel %vm1240, %v1236, %v1237
    %v1244 = vsel %vm1240, %v1239, %v1236
    %vm1245 = vcmp.ge.s32.totalorder %v306, 3
    %vm1246 = vcmp.ge.s32.totalorder %v307, 3
    %v1247 = vsel %vm1245, %v1244, 0.0
    %v1248 = vsel %vm1246, %v1243, 0.0
    %v1249 = vsel %vm1245, %v1242, 0.0
    %v1250 = vsel %vm1246, %v1241, 0.0
    %s1251 = scalar_lea.vmem [#allocation11], 16
    %v1252 = vld [vmem:[%s1251] sm:$0x1]
    %v1253 = vlaneseq
    %v1254 = vshrl.u32 %v1253, 7
    %v1255 = vsub.s32 0, %v1254
    %v1256 = vrot.slane %v1252, %v1255
    %v1257 = vmul.f32 %v1247, %v1256
    %v1258 = vmul.f32 %v1248, %v1256
    %v1259 = vmul.f32 %v1249, %v1256
    %v1260 = vmul.f32 %v1250, %v1256
    %v1261 = vadd.f32 %v1257, 0.0
    %v1262 = vadd.f32 %v1258, 0.0
    %v1263 = vadd.f32 %v1259, 0.0
    %v1264 = vadd.f32 %v1260, 0.0
    %v1265 = vrot.slane %v1208, 6
    %v1266 = vrot.slane %v1209, 6
    %v1267 = vrot.slane %v1210, 6
    %v1268 = vrot.slane %v1211, 6
    %v1269 = vsel %vm1060, %v1267, %v1268
    %v1270 = vsel %vm1060, %v1266, %v1267
    %v1271 = vsel %vm1060, %v1265, %v1266
    %v1272 = vsel %vm1060, %v1268, %v1265
    %v1273 = vsel %vm1065, %v1272, 0.0
    %v1274 = vsel %vm1066, %v1271, 0.0
    %v1275 = vsel %vm1065, %v1270, 0.0
    %v1276 = vsel %vm1066, %v1269, 0.0
    %v1277 = vld [vmem:[%s1251 + $0x1] sm:$0x1]
    %v1278 = vlaneseq
    %v1279 = vshrl.u32 %v1278, 7
    %v1280 = vsub.s32 0, %v1279
    %v1281 = vrot.slane %v1277, %v1280
    %v1282 = vmul.f32 %v1273, %v1281
    %v1283 = vmul.f32 %v1274, %v1281
    %v1284 = vmul.f32 %v1275, %v1281
    %v1285 = vmul.f32 %v1276, %v1281
    %v1286 = vadd.f32 %v1261, %v1282
    %v1287 = vadd.f32 %v1262, %v1283
    %v1288 = vadd.f32 %v1263, %v1284
    %v1289 = vadd.f32 %v1264, %v1285
    %v1290 = vrot.slane %v1208, 7
    %v1291 = vrot.slane %v1209, 7
    %v1292 = vrot.slane %v1210, 7
    %v1293 = vrot.slane %v1211, 7
    %v1294 = vsel %vm927, %v1292, %v1293
    %v1295 = vsel %vm927, %v1291, %v1292
    %v1296 = vsel %vm927, %v1290, %v1291
    %v1297 = vsel %vm927, %v1293, %v1290
    %v1298 = vsel %vm932, %v1297, 0.0
    %v1299 = vsel %vm933, %v1296, 0.0
    %v1300 = vsel %vm932, %v1295, 0.0
    %v1301 = vsel %vm933, %v1294, 0.0
    %v1302 = vld [vmem:[%s1251 + $0x2] sm:$0x1]
    %v1303 = vlaneseq
    %v1304 = vshrl.u32 %v1303, 7
    %v1305 = vsub.s32 0, %v1304
    %v1306 = vrot.slane %v1302, %v1305
    %v1307 = vmul.f32 %v1298, %v1306
    %v1308 = vmul.f32 %v1299, %v1306
    %v1309 = vmul.f32 %v1300, %v1306
    %v1310 = vmul.f32 %v1301, %v1306
    %v1311 = vadd.f32 %v1286, %v1307
    %v1312 = vadd.f32 %v1287, %v1308
    %v1313 = vadd.f32 %v1288, %v1309
    %v1314 = vadd.f32 %v1289, %v1310
    %v1315 = vld [vmem:[%s1251 + $0x3] sm:$0x1]
    %v1316 = vlaneseq
    %v1317 = vshrl.u32 %v1316, 7
    %v1318 = vsub.s32 0, %v1317
    %v1319 = vrot.slane %v1315, %v1318
    %v1320 = vmul.f32 %v1208, %v1319
    %v1321 = vmul.f32 %v1209, %v1319
    %v1322 = vmul.f32 %v1210, %v1319
    %v1323 = vmul.f32 %v1211, %v1319
    %v1324 = vadd.f32 %v1311, %v1320
    %v1325 = vadd.f32 %v1312, %v1321
    %v1326 = vadd.f32 %v1313, %v1322
    %v1327 = vadd.f32 %v1314, %v1323
    %v1328 = vrot.slane %v1208, 1
    %v1329 = vrot.slane %v1209, 1
    %v1330 = vrot.slane %v1210, 1
    %v1331 = vrot.slane %v1211, 1
    %v1332 = vsel %vm968, %v1330, %v1331
    %v1333 = vsel %vm968, %v1329, %v1330
    %v1334 = vsel %vm968, %v1328, %v1329
    %v1335 = vsel %vm968, %v1331, %v1328
    %v1336 = vsel %vm973, %v1334, 0.0
    %v1337 = vsel %vm974, %v1333, 0.0
    %v1338 = vsel %vm973, %v1332, 0.0
    %v1339 = vsel %vm974, %v1335, 0.0
    %v1340 = vld [vmem:[%s1251 + $0x4] sm:$0x1]
    %v1341 = vlaneseq
    %v1342 = vshrl.u32 %v1341, 7
    %v1343 = vsub.s32 0, %v1342
    %v1344 = vrot.slane %v1340, %v1343
    %v1345 = vmul.f32 %v1336, %v1344
    %v1346 = vmul.f32 %v1337, %v1344
    %v1347 = vmul.f32 %v1338, %v1344
    %v1348 = vmul.f32 %v1339, %v1344
    %v1349 = vadd.f32 %v1324, %v1345
    %v1350 = vadd.f32 %v1325, %v1346
    %v1351 = vadd.f32 %v1326, %v1347
    %v1352 = vadd.f32 %v1327, %v1348
    %v1353 = vrot.slane %v1208, 2
    %v1354 = vrot.slane %v1209, 2
    %v1355 = vrot.slane %v1210, 2
    %v1356 = vrot.slane %v1211, 2
    %v1357 = vsel %vm1152, %v1355, %v1356
    %v1358 = vsel %vm1152, %v1354, %v1355
    %v1359 = vsel %vm1152, %v1353, %v1354
    %v1360 = vsel %vm1152, %v1356, %v1353
    %v1361 = vsel %vm1157, %v1359, 0.0
    %v1362 = vsel %vm1158, %v1358, 0.0
    %v1363 = vsel %vm1157, %v1357, 0.0
    %v1364 = vsel %vm1158, %v1360, 0.0
    %v1365 = vld [vmem:[%s1251 + $0x5] sm:$0x1]
    %v1366 = vlaneseq
    %v1367 = vshrl.u32 %v1366, 7
    %v1368 = vsub.s32 0, %v1367
    %v1369 = vrot.slane %v1365, %v1368
    %v1370 = vmul.f32 %v1361, %v1369
    %v1371 = vmul.f32 %v1362, %v1369
    %v1372 = vmul.f32 %v1363, %v1369
    %v1373 = vmul.f32 %v1364, %v1369
    %v1374 = vadd.f32 %v1349, %v1370
    %v1375 = vadd.f32 %v1350, %v1371
    %v1376 = vadd.f32 %v1351, %v1372
    %v1377 = vadd.f32 %v1352, %v1373
    %v1378 = vrot.slane %v1208, 3
    %v1379 = vrot.slane %v1209, 3
    %v1380 = vrot.slane %v1210, 3
    %v1381 = vrot.slane %v1211, 3
    %vm1382 = vcmp.lt.s32.totalorder %v306, 5
    %v1383 = vsel %vm1382, %v1380, %v1381
    %v1384 = vsel %vm1382, %v1379, %v1380
    %v1385 = vsel %vm1382, %v1378, %v1379
    %v1386 = vsel %vm1382, %v1381, %v1378
    %vm1387 = vcmp.lt.s32.totalorder %v306, 13
    %vm1388 = vcmp.lt.s32.totalorder %v307, 13
    %v1389 = vsel %vm1387, %v1385, 0.0
    %v1390 = vsel %vm1388, %v1384, 0.0
    %v1391 = vsel %vm1387, %v1383, 0.0
    %v1392 = vsel %vm1388, %v1386, 0.0
    %v1393 = vld [vmem:[%s1251 + $0x6] sm:$0x1]
    %v1394 = vlaneseq
    %v1395 = vshrl.u32 %v1394, 7
    %v1396 = vsub.s32 0, %v1395
    %v1397 = vrot.slane %v1393, %v1396
    %v1398 = vmul.f32 %v1389, %v1397
    %v1399 = vmul.f32 %v1390, %v1397
    %v1400 = vmul.f32 %v1391, %v1397
    %v1401 = vmul.f32 %v1392, %v1397
    %v1402 = vadd.f32 %v1374, %v1398
    %v1403 = vadd.f32 %v1375, %v1399
    %v1404 = vadd.f32 %v1376, %v1400
    %v1405 = vadd.f32 %v1377, %v1401
    %v1406 = vmul.f32 %v1402, 0.5
    %v1407 = vmul.f32 %v1403, 0.5
    %v1408 = vmul.f32 %v1404, 0.5
    %v1409 = vmul.f32 %v1405, 0.5
    %v1410 = vmul.f32 %v1402, 0.044715
    %v1411 = vmul.f32 %v1403, 0.044715
    %v1412 = vmul.f32 %v1404, 0.044715
    %v1413 = vmul.f32 %v1405, 0.044715
    %v1414 = vmul.f32 %v1410, %v1402
    %v1415 = vmul.f32 %v1411, %v1403
    %v1416 = vmul.f32 %v1412, %v1404
    %v1417 = vmul.f32 %v1413, %v1405
    %v1418 = vmul.f32 %v1414, %v1402
    %v1419 = vmul.f32 %v1415, %v1403
    %v1420 = vmul.f32 %v1416, %v1404
    %v1421 = vmul.f32 %v1417, %v1405
    %v1422 = vadd.f32 %v1402, %v1418
    %v1423 = vadd.f32 %v1403, %v1419
    %v1424 = vadd.f32 %v1404, %v1420
    %v1425 = vadd.f32 %v1405, %v1421
    %v1426 = vmul.f32 %v1422, 0.7978846
    %v1427 = vmul.f32 %v1423, 0.7978846
    %v1428 = vmul.f32 %v1424, 0.7978846
    %v1429 = vmul.f32 %v1425, 0.7978846
    %v1430 = vtanh.pop %v1426
    %v1431 = vtanh.pop %v1427
    %v1432 = vtanh.pop %v1428
    %v1433 = vtanh.pop %v1429
    %v1434 = vadd.f32 %v1430, 1.0
    %v1435 = vadd.f32 %v1431, 1.0
    %v1436 = vadd.f32 %v1432, 1.0
    %v1437 = vadd.f32 %v1433, 1.0
    %v1438 = vmul.f32 %v1406, %v1434
    %v1439 = vmul.f32 %v1407, %v1435
    %v1440 = vmul.f32 %v1408, %v1436
    %v1441 = vmul.f32 %v1409, %v1437
    %1442 = vset.pattern.permute.xlu0 2
    %1443 = vperm.xlu0 %1442, %v909
    %v1444 = vpop.permute.xlu0 %1443
    %1446 = vset.pattern.permute.xlu0 2
    %1447 = vperm.xlu0 %1446, %v912
    %v1448 = vpop.permute.xlu0 %1447
    %1450 = vset.pattern.permute.xlu0 2
    %1451 = vperm.xlu0 %1450, %v917
    %v1452 = vpop.permute.xlu0 %1451
    %1454 = vset.pattern.permute.xlu0 2
    %1455 = vperm.xlu0 %1454, %v920
    %v1456 = vpop.permute.xlu0 %1455
    %v1458 = vmul.f32 %v1438, %v1444
    %v1459 = vmul.f32 %v1439, %v1448
    %v1460 = vmul.f32 %v1440, %v1452
    %v1461 = vmul.f32 %v1441, %v1456
    %v1462 = vadd.f32 %v1232, %v1458
    %v1463 = vadd.f32 %v1233, %v1459
    %v1464 = vadd.f32 %v1234, %v1460
    %v1465 = vadd.f32 %v1235, %v1461
    %v1466 = vadd.f32 %v1438, %v1439
    %v1467 = vrot.slane %v1466, 4
    %v1468 = vadd.f32 %v1466, %v1467
    %v1469 = vrot.slane %v1468, 2
    %v1470 = vadd.f32 %v1468, %v1469
    %v1471 = vrot.slane %v1470, 1
    %v1472 = vadd.f32 %v1470, %v1471
    %v1473 = vadd.f32 %v1440, %v1441
    %v1474 = vrot.slane %v1473, 4
    %v1475 = vadd.f32 %v1473, %v1474
    %v1476 = vrot.slane %v1475, 2
    %v1477 = vadd.f32 %v1475, %v1476
    %v1478 = vrot.slane %v1477, 1
    %v1479 = vadd.f32 %v1477, %v1478
    %v1480 = vrcp.pop 16.0
    %v1481 = vmul.f32 %v1472, %v1480
    %v1482 = vmul.f32 %v1479, %v1480
    %v1483 = vmul.f32 %v1481, 0.5
    %v1484 = vmul.f32 %v1482, 0.5
    %v1485 = vmul.f32 %v1481, 0.044715
    %v1486 = vmul.f32 %v1482, 0.044715
    %v1487 = vmul.f32 %v1485, %v1481
    %v1488 = vmul.f32 %v1486, %v1482
    %v1489 = vmul.f32 %v1487, %v1481
    %v1490 = vmul.f32 %v1488, %v1482
    %v1491 = vadd.f32 %v1481, %v1489
    %v1492 = vadd.f32 %v1482, %v1490
    %v1493 = vmul.f32 %v1491, 0.7978846
    %v1494 = vmul.f32 %v1492, 0.7978846
    %v1495 = vtanh.pop %v1493
    %v1496 = vtanh.pop %v1494
    %v1497 = vadd.f32 %v1495, 1.0
    %v1498 = vadd.f32 %v1496, 1.0
    %v1499 = vmul.f32 %v1483, %v1497
    %v1500 = vmul.f32 %v1484, %v1498
    %1501 = vset.pattern.permute.xlu0 3
    %1502 = vperm.xlu0 %1501, %v909
    %v1503 = vpop.permute.xlu0 %1502
    %1505 = vset.pattern.permute.xlu0 3
    %1506 = vperm.xlu0 %1505, %v912
    %v1507 = vpop.permute.xlu0 %1506
    %1509 = vset.pattern.permute.xlu0 3
    %1510 = vperm.xlu0 %1509, %v917
    %v1511 = vpop.permute.xlu0 %1510
    %1513 = vset.pattern.permute.xlu0 3
    %1514 = vperm.xlu0 %1513, %v920
    %v1515 = vpop.permute.xlu0 %1514
    %v1517 = vmul.f32 %v1499, %v1503
    %v1518 = vmul.f32 %v1499, %v1507
    %v1519 = vmul.f32 %v1500, %v1511
    %v1520 = vmul.f32 %v1500, %v1515
    %v1521 = vadd.f32 %v1462, %v1517
    %v1522 = vadd.f32 %v1463, %v1518
    %v1523 = vadd.f32 %v1464, %v1519
    %v1524 = vadd.f32 %v1465, %v1520
    %v1525 = vpack.c.bf16 %v1522, %v1521
    %v1526 = vpack.c.bf16 %v1524, %v1523
    %v1527 = vld [vmem:[#allocation13] sm:$0xf]
    %v1528 = vld [vmem:[#allocation13 + $0x4] sm:$0xf]
    %v1529 = vld [vmem:[#allocation13 + $0x8] sm:$0xf]
    %v1530 = vld [vmem:[#allocation13 + $0xc] sm:$0xf]
    %v1531 = vld [vmem:[#allocation13 + $0x10] sm:$0xf]
    %v1532 = vld [vmem:[#allocation13 + $0x14] sm:$0xf]
    %v1533 = vld [vmem:[#allocation13 + $0x18] sm:$0xf]
    %v1534 = vld [vmem:[#allocation13 + $0x1c] sm:$0xf]
    %v1535 = vld [vmem:[#allocation13 + $0x20] sm:$0xf]
    %v1536 = vld [vmem:[#allocation13 + $0x24] sm:$0xf]
    %v1537 = vld [vmem:[#allocation13 + $0x28] sm:$0xf]
    %v1538 = vld [vmem:[#allocation13 + $0x2c] sm:$0xf]
    %v1539 = vld [vmem:[#allocation13 + $0x30] sm:$0xf]
    %v1540 = vld [vmem:[#allocation13 + $0x34] sm:$0xf]
    %v1541 = vld [vmem:[#allocation13 + $0x38] sm:$0xf]
    %v1542 = vld [vmem:[#allocation13 + $0x3c] sm:$0xf]
    %v1543 = vld [vmem:[%s33] sm:$0x1]
    %v1545 = vlaneseq
    %v1546 = vshrl.u32 %v1545, 7
    %v1547 = vsub.s32 0, %v1546
    %v1548 = vrot.slane %v1543, %v1547
    %v1566 = vunpack.c.l.b16 %v1527
    %v1567 = vunpack.c.l.b16 %v1528
    %v1568 = vunpack.c.l.b16 %v1529
    %v1569 = vunpack.c.l.b16 %v1530
    %v1570 = vunpack.c.l.b16 %v1531
    %v1571 = vunpack.c.l.b16 %v1532
    %v1572 = vunpack.c.l.b16 %v1533
    %v1573 = vunpack.c.l.b16 %v1534
    %v1574 = vunpack.c.l.b16 %v1535
    %v1575 = vunpack.c.l.b16 %v1536
    %v1576 = vunpack.c.l.b16 %v1537
    %v1577 = vunpack.c.l.b16 %v1538
    %v1578 = vunpack.c.l.b16 %v1539
    %v1579 = vunpack.c.l.b16 %v1540
    %v1580 = vunpack.c.l.b16 %v1541
    %v1581 = vunpack.c.l.b16 %v1542
    %v1582 = vpack.c.b16 %v1567, %v1566
    %v1583 = vpack.c.b16 %v1569, %v1568
    %v1584 = vpack.c.b16 %v1571, %v1570
    %v1585 = vpack.c.b16 %v1573, %v1572
    %v1586 = vpack.c.b16 %v1575, %v1574
    %v1587 = vpack.c.b16 %v1577, %v1576
    %v1588 = vpack.c.b16 %v1579, %v1578
    %v1589 = vpack.c.b16 %v1581, %v1580
    %1598 = vmatprep.subr.bf16.mxu0 0
    %1599 = vmatpush1.bf16.msra.mxu0 %v1589
    %1600 = vmatprep.subr.bf16.mxu0 0
    %1601 = vmatpush1.bf16.msra.mxu0 %v1588
    %1602 = vmatprep.subr.bf16.mxu0 0
    %1603 = vmatpush1.bf16.msra.mxu0 %v1587
    %1604 = vmatprep.subr.bf16.mxu0 0
    %1605 = vmatpush1.bf16.msra.mxu0 %v1586
    %1606 = vmatprep.subr.bf16.mxu0 0
    %1607 = vmatpush1.bf16.msra.mxu0 %v1585
    %1608 = vmatprep.subr.bf16.mxu0 0
    %1609 = vmatpush1.bf16.msra.mxu0 %v1584
    %1610 = vmatprep.subr.bf16.mxu0 0
    %1611 = vmatpush1.bf16.msra.mxu0 %v1583
    %1612 = vmatprep.subr.bf16.mxu0 0
    %1613 = vmatpush1.bf16.msra.mxu0 %v1582
    %1614 = vmatprep.subr.bf16.mxu0 0
    %1615 = vmatpush2.bf16.msra.mxu0 0
    %1616 = vmatprep.subr.bf16.mxu0 0
    %1617 = vmatpush2.bf16.msra.mxu0 0
    %1618 = vmatprep.subr.bf16.mxu0 0
    %1619 = vmatpush2.bf16.msra.mxu0 0
    %1620 = vmatprep.subr.bf16.mxu0 0
    %1621 = vmatpush2.bf16.msra.mxu0 0
    %1622 = vmatprep.subr.bf16.mxu0 0
    %1623 = vmatpush2.bf16.msra.mxu0 0
    %1624 = vmatprep.subr.bf16.mxu0 0
    %1625 = vmatpush2.bf16.msra.mxu0 0
    %1626 = vmatprep.subr.bf16.mxu0 0
    %1627 = vmatpush2.bf16.msra.mxu0 0
    %1628 = vmatprep.subr.bf16.mxu0 0
    %1629 = vmatpush2.bf16.msra.mxu0 0
    %1630 = vmatprep.mubr.bf16.mxu0 0
    %1631 = vmatmul.mubr.bf16.gmra.mxu0 %v1525
    %v1632 = vpop.f32.mrf.mxu0
    %v1633 = vadd.f32 %v1548, %v1632
    %v1634 = vpop.f32.mrf.mxu0
    %v1635 = vpop.f32.mrf.mxu0
    %v1636 = vadd.f32 %v1548, %v1635
    %v1637 = vpop.f32.mrf.mxu0
    %1638 = vmatprep.mubr.bf16.mxu0 0
    %1639 = vmatmul.mubr.bf16.gmra.mxu0 %v1526
    %v1640 = vpop.f32.mrf.mxu0
    %v1641 = vadd.f32 %v1548, %v1640
    %v1642 = vpop.f32.mrf.mxu0
    %v1643 = vpop.f32.mrf.mxu0
    %v1644 = vadd.f32 %v1548, %v1643
    %v1645 = vpop.f32.mrf.mxu0
    %1646 = vdwg.mxu0
    %v1647 = vmul.f32 %v669, %v1633
    %v1648 = vmul.f32 %v672, %v1636
    %v1649 = vmul.f32 %v677, %v1641
    %v1650 = vmul.f32 %v680, %v1644
    %v1651 = vpack.c.bf16 %v1648, %v1647
    %v1652 = vpack.c.bf16 %v1650, %v1649
    %v1653 = vld [vmem:[#allocation14] sm:$0xf]
    %v1654 = vld [vmem:[#allocation14 + $0x4] sm:$0xf]
    %v1655 = vld [vmem:[#allocation14 + $0x8] sm:$0xf]
    %v1656 = vld [vmem:[#allocation14 + $0xc] sm:$0xf]
    %v1657 = vld [vmem:[#allocation14 + $0x10] sm:$0xf]
    %v1658 = vld [vmem:[#allocation14 + $0x14] sm:$0xf]
    %v1659 = vld [vmem:[#allocation14 + $0x18] sm:$0xf]
    %v1660 = vld [vmem:[#allocation14 + $0x1c] sm:$0xf]
    %v1661 = vld [vmem:[#allocation14 + $0x20] sm:$0xf]
    %v1662 = vld [vmem:[#allocation14 + $0x24] sm:$0xf]
    %v1663 = vld [vmem:[#allocation14 + $0x28] sm:$0xf]
    %v1664 = vld [vmem:[#allocation14 + $0x2c] sm:$0xf]
    %v1665 = vld [vmem:[#allocation14 + $0x30] sm:$0xf]
    %v1666 = vld [vmem:[#allocation14 + $0x34] sm:$0xf]
    %v1667 = vld [vmem:[#allocation14 + $0x38] sm:$0xf]
    %v1668 = vld [vmem:[#allocation14 + $0x3c] sm:$0xf]
    %v1669 = vld [vmem:[%s37] sm:$0x1]
    %v1671 = vlaneseq
    %v1672 = vshrl.u32 %v1671, 7
    %v1673 = vsub.s32 0, %v1672
    %v1674 = vrot.slane %v1669, %v1673
    %v1692 = vunpack.c.l.b16 %v1653
    %v1693 = vunpack.c.l.b16 %v1654
    %v1694 = vunpack.c.l.b16 %v1655
    %v1695 = vunpack.c.l.b16 %v1656
    %v1696 = vunpack.c.l.b16 %v1657
    %v1697 = vunpack.c.l.b16 %v1658
    %v1698 = vunpack.c.l.b16 %v1659
    %v1699 = vunpack.c.l.b16 %v1660
    %v1700 = vunpack.c.l.b16 %v1661
    %v1701 = vunpack.c.l.b16 %v1662
    %v1702 = vunpack.c.l.b16 %v1663
    %v1703 = vunpack.c.l.b16 %v1664
    %v1704 = vunpack.c.l.b16 %v1665
    %v1705 = vunpack.c.l.b16 %v1666
    %v1706 = vunpack.c.l.b16 %v1667
    %v1707 = vunpack.c.l.b16 %v1668
    %v1708 = vpack.c.b16 %v1693, %v1692
    %v1709 = vpack.c.b16 %v1695, %v1694
    %v1710 = vpack.c.b16 %v1697, %v1696
    %v1711 = vpack.c.b16 %v1699, %v1698
    %v1712 = vpack.c.b16 %v1701, %v1700
    %v1713 = vpack.c.b16 %v1703, %v1702
    %v1714 = vpack.c.b16 %v1705, %v1704
    %v1715 = vpack.c.b16 %v1707, %v1706
    %1724 = vmatprep.subr.bf16.mxu0 0
    %1725 = vmatpush1.bf16.msra.mxu0 %v1715
    %1726 = vmatprep.subr.bf16.mxu0 0
    %1727 = vmatpush1.bf16.msra.mxu0 %v1714
    %1728 = vmatprep.subr.bf16.mxu0 0
    %1729 = vmatpush1.bf16.msra.mxu0 %v1713
    %1730 = vmatprep.subr.bf16.mxu0 0
    %1731 = vmatpush1.bf16.msra.mxu0 %v1712
    %1732 = vmatprep.subr.bf16.mxu0 0
    %1733 = vmatpush1.bf16.msra.mxu0 %v1711
    %1734 = vmatprep.subr.bf16.mxu0 0
    %1735 = vmatpush1.bf16.msra.mxu0 %v1710
    %1736 = vmatprep.subr.bf16.mxu0 0
    %1737 = vmatpush1.bf16.msra.mxu0 %v1709
    %1738 = vmatprep.subr.bf16.mxu0 0
    %1739 = vmatpush1.bf16.msra.mxu0 %v1708
    %1740 = vmatprep.subr.bf16.mxu0 0
    %1741 = vmatpush2.bf16.msra.mxu0 0
    %1742 = vmatprep.subr.bf16.mxu0 0
    %1743 = vmatpush2.bf16.msra.mxu0 0
    %1744 = vmatprep.subr.bf16.mxu0 0
    %1745 = vmatpush2.bf16.msra.mxu0 0
    %1746 = vmatprep.subr.bf16.mxu0 0
    %1747 = vmatpush2.bf16.msra.mxu0 0
    %1748 = vmatprep.subr.bf16.mxu0 0
    %1749 = vmatpush2.bf16.msra.mxu0 0
    %1750 = vmatprep.subr.bf16.mxu0 0
    %1751 = vmatpush2.bf16.msra.mxu0 0
    %1752 = vmatprep.subr.bf16.mxu0 0
    %1753 = vmatpush2.bf16.msra.mxu0 0
    %1754 = vmatprep.subr.bf16.mxu0 0
    %1755 = vmatpush2.bf16.msra.mxu0 0
    %1756 = vmatprep.mubr.bf16.mxu0 0
    %1757 = vmatmul.mubr.bf16.gmra.mxu0 %v1651
    %v1758 = vpop.f32.mrf.mxu0
    %v1759 = vadd.f32 %v1674, %v1758
    %v1760 = vpop.f32.mrf.mxu0
    %v1761 = vpop.f32.mrf.mxu0
    %v1762 = vadd.f32 %v1674, %v1761
    %v1763 = vpop.f32.mrf.mxu0
    %1764 = vmatprep.mubr.bf16.mxu0 0
    %1765 = vmatmul.mubr.bf16.gmra.mxu0 %v1652
    %v1766 = vpop.f32.mrf.mxu0
    %v1767 = vadd.f32 %v1674, %v1766
    %v1768 = vpop.f32.mrf.mxu0
    %v1769 = vpop.f32.mrf.mxu0
    %v1770 = vadd.f32 %v1674, %v1769
    %v1771 = vpop.f32.mrf.mxu0
    %1772 = vdwg.mxu0
    %v1773 = vld [vmem:[%s51] sm:$0x1]
    %v1775 = vlaneseq
    %v1776 = vshrl.u32 %v1775, 7
    %v1777 = vsub.s32 0, %v1776
    %v1778 = vrot.slane %v1773, %v1777
    %v1780 = vmul.f32 %v1778, %v1759
    %v1781 = vmul.f32 %v1778, %v1762
    %v1782 = vmul.f32 %v1778, %v1767
    %v1783 = vmul.f32 %v1778, %v1770
    %v1784 = vadd.f32 %v491, %v1780
    %v1785 = vadd.f32 %v492, %v1781
    %v1786 = vadd.f32 %v493, %v1782
    %v1787 = vadd.f32 %v494, %v1783
    %v1788 = vld [vmem:[%s39] sm:$0x1]
    %v1789 = vld [vmem:[%s41] sm:$0x1]
    %1790 = vadd.xlane.f32.xlu0 %v1784
    %v1791 = vpop.xlane.xlu0 %1790
    %1792 = vadd.xlane.f32.xlu0 %v1785
    %v1793 = vpop.xlane.xlu0 %1792
    %1794 = vadd.xlane.f32.xlu0 %v1786
    %v1795 = vpop.xlane.xlu0 %1794
    %1796 = vadd.xlane.f32.xlu0 %v1787
    %v1797 = vpop.xlane.xlu0 %1796
    %v1798 = vmul.f32 %v1791, %v434
    %v1799 = vmul.f32 %v1793, %v434
    %v1800 = vmul.f32 %v1795, %v434
    %v1801 = vmul.f32 %v1797, %v434
    %v1802 = vsub.f32 %v1784, %v1798
    %v1803 = vsub.f32 %v1785, %v1799
    %v1804 = vsub.f32 %v1786, %v1800
    %v1805 = vsub.f32 %v1787, %v1801
    %v1806 = vmul.f32 %v1802, %v1802
    %v1807 = vmul.f32 %v1803, %v1803
    %v1808 = vmul.f32 %v1804, %v1804
    %v1809 = vmul.f32 %v1805, %v1805
    %1810 = vadd.xlane.f32.xlu0 %v1806
    %v1811 = vpop.xlane.xlu0 %1810
    %1812 = vadd.xlane.f32.xlu0 %v1807
    %v1813 = vpop.xlane.xlu0 %1812
    %1814 = vadd.xlane.f32.xlu0 %v1808
    %v1815 = vpop.xlane.xlu0 %1814
    %1816 = vadd.xlane.f32.xlu0 %v1809
    %v1817 = vpop.xlane.xlu0 %1816
    %v1818 = vmul.f32 %v1811, %v434
    %v1819 = vmul.f32 %v1813, %v434
    %v1820 = vmul.f32 %v1815, %v434
    %v1821 = vmul.f32 %v1817, %v434
    %v1822 = vadd.f32 %v1818, 1e-05
    %v1823 = vadd.f32 %v1819, 1e-05
    %v1824 = vadd.f32 %v1820, 1e-05
    %v1825 = vadd.f32 %v1821, 1e-05
    %v1826 = vrsqrt.pop %v1822
    %v1827 = vrsqrt.pop %v1823
    %v1828 = vrsqrt.pop %v1824
    %v1829 = vrsqrt.pop %v1825
    %v1830 = vmul.f32 %v1802, %v1826
    %v1831 = vmul.f32 %v1803, %v1827
    %v1832 = vmul.f32 %v1804, %v1828
    %v1833 = vmul.f32 %v1805, %v1829
    %v1835 = vlaneseq
    %v1836 = vshrl.u32 %v1835, 7
    %v1837 = vsub.s32 0, %v1836
    %v1838 = vrot.slane %v1788, %v1837
    %v1840 = vmul.f32 %v1830, %v1838
    %v1841 = vmul.f32 %v1831, %v1838
    %v1842 = vmul.f32 %v1832, %v1838
    %v1843 = vmul.f32 %v1833, %v1838
    %v1845 = vlaneseq
    %v1846 = vshrl.u32 %v1845, 7
    %v1847 = vsub.s32 0, %v1846
    %v1848 = vrot.slane %v1789, %v1847
    %v1850 = vadd.f32 %v1840, %v1848
    %v1851 = vadd.f32 %v1841, %v1848
    %v1852 = vadd.f32 %v1842, %v1848
    %v1853 = vadd.f32 %v1843, %v1848
    %v1854 = vpack.c.bf16 %v1851, %v1850
    %v1855 = vpack.c.bf16 %v1853, %v1852
    %v1856 = vld [vmem:[#allocation16] sm:$0xff]
    %v1857 = vld [vmem:[#allocation16 + $0x8] sm:$0xff]
    %v1858 = vld [vmem:[#allocation16 + $0x10] sm:$0xff]
    %v1859 = vld [vmem:[#allocation16 + $0x18] sm:$0xff]
    %v1860 = vld [vmem:[#allocation16 + $0x20] sm:$0xff]
    %v1861 = vld [vmem:[#allocation16 + $0x28] sm:$0xff]
    %v1862 = vld [vmem:[#allocation16 + $0x30] sm:$0xff]
    %v1863 = vld [vmem:[#allocation16 + $0x38] sm:$0xff]
    %v1864 = vld [vmem:[#allocation16 + $0x40] sm:$0xff]
    %v1865 = vld [vmem:[#allocation16 + $0x48] sm:$0xff]
    %v1866 = vld [vmem:[#allocation16 + $0x50] sm:$0xff]
    %v1867 = vld [vmem:[#allocation16 + $0x58] sm:$0xff]
    %v1868 = vld [vmem:[#allocation16 + $0x60] sm:$0xff]
    %v1869 = vld [vmem:[#allocation16 + $0x68] sm:$0xff]
    %v1870 = vld [vmem:[#allocation16 + $0x70] sm:$0xff]
    %v1871 = vld [vmem:[#allocation16 + $0x78] sm:$0xff]
    %v1872 = vld [vmem:[#allocation16 + $0x80] sm:$0xff]
    %v1873 = vld [vmem:[#allocation16 + $0x88] sm:$0xff]
    %v1874 = vld [vmem:[#allocation16 + $0x90] sm:$0xff]
    %v1875 = vld [vmem:[#allocation16 + $0x98] sm:$0xff]
    %v1876 = vld [vmem:[#allocation16 + $0xa0] sm:$0xff]
    %v1877 = vld [vmem:[#allocation16 + $0xa8] sm:$0xff]
    %v1878 = vld [vmem:[#allocation16 + $0xb0] sm:$0xff]
    %v1879 = vld [vmem:[#allocation16 + $0xb8] sm:$0xff]
    %v1880 = vld [vmem:[#allocation16 + $0xc0] sm:$0xff]
    %v1881 = vld [vmem:[#allocation16 + $0xc8] sm:$0xff]
    %v1882 = vld [vmem:[#allocation16 + $0xd0] sm:$0xff]
    %v1883 = vld [vmem:[#allocation16 + $0xd8] sm:$0xff]
    %v1884 = vld [vmem:[#allocation16 + $0xe0] sm:$0xff]
    %v1885 = vld [vmem:[#allocation16 + $0xe8] sm:$0xff]
    %v1886 = vld [vmem:[#allocation16 + $0xf0] sm:$0xff]
    %v1887 = vld [vmem:[#allocation16 + $0xf8] sm:$0xff]
    %v1888 = vld [vmem:[%s45] sm:$0xf]
    %v1890 = vlaneseq
    %v1891 = vshrl.u32 %v1890, 7
    %v1892 = vsub.s32 0, %v1891
    %v1893 = vrot.slane %v1888, %v1892
    %v1894 = vlaneseq
    %v1895 = vshrl.u32 %v1894, 7
    %v1896 = vsub.s32 1, %v1895
    %v1897 = vrot.slane %v1888, %v1896
    %v1898 = vlaneseq
    %v1899 = vshrl.u32 %v1898, 7
    %v1900 = vsub.s32 2, %v1899
    %v1901 = vrot.slane %v1888, %v1900
    %v1902 = vlaneseq
    %v1903 = vshrl.u32 %v1902, 7
    %v1904 = vsub.s32 3, %v1903
    %v1905 = vrot.slane %v1888, %v1904
    %v1942 = vunpack.c.l.b16 %v1856
    %v1943 = vunpack.c.h.b16 %v1856
    %v1944 = vunpack.c.l.b16 %v1857
    %v1945 = vunpack.c.h.b16 %v1857
    %v1946 = vunpack.c.l.b16 %v1858
    %v1947 = vunpack.c.h.b16 %v1858
    %v1948 = vunpack.c.l.b16 %v1859
    %v1949 = vunpack.c.h.b16 %v1859
    %v1950 = vunpack.c.l.b16 %v1860
    %v1951 = vunpack.c.h.b16 %v1860
    %v1952 = vunpack.c.l.b16 %v1861
    %v1953 = vunpack.c.h.b16 %v1861
    %v1954 = vunpack.c.l.b16 %v1862
    %v1955 = vunpack.c.h.b16 %v1862
    %v1956 = vunpack.c.l.b16 %v1863
    %v1957 = vunpack.c.h.b16 %v1863
    %v1958 = vunpack.c.l.b16 %v1864
    %v1959 = vunpack.c.h.b16 %v1864
    %v1960 = vunpack.c.l.b16 %v1865
    %v1961 = vunpack.c.h.b16 %v1865
    %v1962 = vunpack.c.l.b16 %v1866
    %v1963 = vunpack.c.h.b16 %v1866
    %v1964 = vunpack.c.l.b16 %v1867
    %v1965 = vunpack.c.h.b16 %v1867
    %v1966 = vunpack.c.l.b16 %v1868
    %v1967 = vunpack.c.h.b16 %v1868
    %v1968 = vunpack.c.l.b16 %v1869
    %v1969 = vunpack.c.h.b16 %v1869
    %v1970 = vunpack.c.l.b16 %v1870
    %v1971 = vunpack.c.h.b16 %v1870
    %v1972 = vunpack.c.l.b16 %v1871
    %v1973 = vunpack.c.h.b16 %v1871
    %v1974 = vunpack.c.l.b16 %v1872
    %v1975 = vunpack.c.h.b16 %v1872
    %v1976 = vunpack.c.l.b16 %v1873
    %v1977 = vunpack.c.h.b16 %v1873
    %v1978 = vunpack.c.l.b16 %v1874
    %v1979 = vunpack.c.h.b16 %v1874
    %v1980 = vunpack.c.l.b16 %v1875
    %v1981 = vunpack.c.h.b16 %v1875
    %v1982 = vunpack.c.l.b16 %v1876
    %v1983 = vunpack.c.h.b16 %v1876
    %v1984 = vunpack.c.l.b16 %v1877
    %v1985 = vunpack.c.h.b16 %v1877
    %v1986 = vunpack.c.l.b16 %v1878
    %v1987 = vunpack.c.h.b16 %v1878
    %v1988 = vunpack.c.l.b16 %v1879
    %v1989 = vunpack.c.h.b16 %v1879
    %v1990 = vunpack.c.l.b16 %v1880
    %v1991 = vunpack.c.h.b16 %v1880
    %v1992 = vunpack.c.l.b16 %v1881
    %v1993 = vunpack.c.h.b16 %v1881
    %v1994 = vunpack.c.l.b16 %v1882
    %v1995 = vunpack.c.h.b16 %v1882
    %v1996 = vunpack.c.l.b16 %v1883
    %v1997 = vunpack.c.h.b16 %v1883
    %v1998 = vunpack.c.l.b16 %v1884
    %v1999 = vunpack.c.h.b16 %v1884
    %v2000 = vunpack.c.l.b16 %v1885
    %v2001 = vunpack.c.h.b16 %v1885
    %v2002 = vunpack.c.l.b16 %v1886
    %v2003 = vunpack.c.h.b16 %v1886
    %v2004 = vunpack.c.l.b16 %v1887
    %v2005 = vunpack.c.h.b16 %v1887
    %v2006 = vpack.c.b16 %v1946, %v1942
    %v2007 = vpack.c.b16 %v1947, %v1943
    %v2008 = vpack.c.b16 %v1948, %v1944
    %v2009 = vpack.c.b16 %v1949, %v1945
    %v2010 = vpack.c.b16 %v1954, %v1950
    %v2011 = vpack.c.b16 %v1955, %v1951
    %v2012 = vpack.c.b16 %v1956, %v1952
    %v2013 = vpack.c.b16 %v1957, %v1953
    %v2014 = vpack.c.b16 %v1962, %v1958
    %v2015 = vpack.c.b16 %v1963, %v1959
    %v2016 = vpack.c.b16 %v1964, %v1960
    %v2017 = vpack.c.b16 %v1965, %v1961
    %v2018 = vpack.c.b16 %v1970, %v1966
    %v2019 = vpack.c.b16 %v1971, %v1967
    %v2020 = vpack.c.b16 %v1972, %v1968
    %v2021 = vpack.c.b16 %v1973, %v1969
    %v2022 = vpack.c.b16 %v1978, %v1974
    %v2023 = vpack.c.b16 %v1979, %v1975
    %v2024 = vpack.c.b16 %v1980, %v1976
    %v2025 = vpack.c.b16 %v1981, %v1977
    %v2026 = vpack.c.b16 %v1986, %v1982
    %v2027 = vpack.c.b16 %v1987, %v1983
    %v2028 = vpack.c.b16 %v1988, %v1984
    %v2029 = vpack.c.b16 %v1989, %v1985
    %v2030 = vpack.c.b16 %v1994, %v1990
    %v2031 = vpack.c.b16 %v1995, %v1991
    %v2032 = vpack.c.b16 %v1996, %v1992
    %v2033 = vpack.c.b16 %v1997, %v1993
    %v2034 = vpack.c.b16 %v2002, %v1998
    %v2035 = vpack.c.b16 %v2003, %v1999
    %v2036 = vpack.c.b16 %v2004, %v2000
    %v2037 = vpack.c.b16 %v2005, %v2001
    %2070 = vmatprep.subr.bf16.mxu0 %v2035
    %2071 = vmatpush1.bf16.msra.mxu0 %v2034
    %2072 = vmatprep.subr.bf16.mxu0 %v2031
    %2073 = vmatpush1.bf16.msra.mxu0 %v2030
    %2074 = vmatprep.subr.bf16.mxu0 %v2027
    %2075 = vmatpush1.bf16.msra.mxu0 %v2026
    %2076 = vmatprep.subr.bf16.mxu0 %v2023
    %2077 = vmatpush1.bf16.msra.mxu0 %v2022
    %2078 = vmatprep.subr.bf16.mxu0 %v2019
    %2079 = vmatpush1.bf16.msra.mxu0 %v2018
    %2080 = vmatprep.subr.bf16.mxu0 %v2015
    %2081 = vmatpush1.bf16.msra.mxu0 %v2014
    %2082 = vmatprep.subr.bf16.mxu0 %v2011
    %2083 = vmatpush1.bf16.msra.mxu0 %v2010
    %2084 = vmatprep.subr.bf16.mxu0 %v2007
    %2085 = vmatpush1.bf16.msra.mxu0 %v2006
    %2086 = vmatprep.subr.bf16.mxu0 0
    %2087 = vmatpush2.bf16.msra.mxu0 0
    %2088 = vmatprep.subr.bf16.mxu0 0
    %2089 = vmatpush2.bf16.msra.mxu0 0
    %2090 = vmatprep.subr.bf16.mxu0 0
    %2091 = vmatpush2.bf16.msra.mxu0 0
    %2092 = vmatprep.subr.bf16.mxu0 0
    %2093 = vmatpush2.bf16.msra.mxu0 0
    %2094 = vmatprep.subr.bf16.mxu0 0
    %2095 = vmatpush2.bf16.msra.mxu0 0
    %2096 = vmatprep.subr.bf16.mxu0 0
    %2097 = vmatpush2.bf16.msra.mxu0 0
    %2098 = vmatprep.subr.bf16.mxu0 0
    %2099 = vmatpush2.bf16.msra.mxu0 0
    %2100 = vmatprep.subr.bf16.mxu0 0
    %2101 = vmatpush2.bf16.msra.mxu0 0
    %2102 = vmatprep.mubr.bf16.mxu0 0
    %2103 = vmatmul.mubr.bf16.gmra.mxu0 %v1854
    %v2104 = vpop.f32.mrf.mxu0
    %v2105 = vadd.f32 %v1893, %v2104
    %v2106 = vpop.f32.mrf.mxu0
    %v2107 = vadd.f32 %v1897, %v2106
    %v2108 = vpop.f32.mrf.mxu0
    %v2109 = vadd.f32 %v1893, %v2108
    %v2110 = vpop.f32.mrf.mxu0
    %v2111 = vadd.f32 %v1897, %v2110
    %2112 = vmatprep.mubr.bf16.mxu0 0
    %2113 = vmatmul.mubr.bf16.gmra.mxu0 %v1855
    %v2114 = vpop.f32.mrf.mxu0
    %v2115 = vadd.f32 %v1893, %v2114
    %v2116 = vpop.f32.mrf.mxu0
    %v2117 = vadd.f32 %v1897, %v2116
    %v2118 = vpop.f32.mrf.mxu0
    %v2119 = vadd.f32 %v1893, %v2118
    %v2120 = vpop.f32.mrf.mxu0
    %v2121 = vadd.f32 %v1897, %v2120
    %2122 = vdwg.mxu0
    %2123 = vmatprep.subr.bf16.mxu0 %v2037
    %2124 = vmatpush1.bf16.msra.mxu0 %v2036
    %2125 = vmatprep.subr.bf16.mxu0 %v2033
    %2126 = vmatpush1.bf16.msra.mxu0 %v2032
    %2127 = vmatprep.subr.bf16.mxu0 %v2029
    %2128 = vmatpush1.bf16.msra.mxu0 %v2028
    %2129 = vmatprep.subr.bf16.mxu0 %v2025
    %2130 = vmatpush1.bf16.msra.mxu0 %v2024
    %2131 = vmatprep.subr.bf16.mxu0 %v2021
    %2132 = vmatpush1.bf16.msra.mxu0 %v2020
    %2133 = vmatprep.subr.bf16.mxu0 %v2017
    %2134 = vmatpush1.bf16.msra.mxu0 %v2016
    %2135 = vmatprep.subr.bf16.mxu0 %v2013
    %2136 = vmatpush1.bf16.msra.mxu0 %v2012
    %2137 = vmatprep.subr.bf16.mxu0 %v2009
    %2138 = vmatpush1.bf16.msra.mxu0 %v2008
    %2139 = vmatprep.subr.bf16.mxu0 0
    %2140 = vmatpush2.bf16.msra.mxu0 0
    %2141 = vmatprep.subr.bf16.mxu0 0
    %2142 = vmatpush2.bf16.msra.mxu0 0
    %2143 = vmatprep.subr.bf16.mxu0 0
    %2144 = vmatpush2.bf16.msra.mxu0 0
    %2145 = vmatprep.subr.bf16.mxu0 0
    %2146 = vmatpush2.bf16.msra.mxu0 0
    %2147 = vmatprep.subr.bf16.mxu0 0
    %2148 = vmatpush2.bf16.msra.mxu0 0
    %2149 = vmatprep.subr.bf16.mxu0 0
    %2150 = vmatpush2.bf16.msra.mxu0 0
    %2151 = vmatprep.subr.bf16.mxu0 0
    %2152 = vmatpush2.bf16.msra.mxu0 0
    %2153 = vmatprep.subr.bf16.mxu0 0
    %2154 = vmatpush2.bf16.msra.mxu0 0
    %2155 = vmatprep.mubr.bf16.mxu0 0
    %2156 = vmatmul.mubr.bf16.gmra.mxu0 %v1854
    %v2157 = vpop.f32.mrf.mxu0
    %v2158 = vadd.f32 %v1901, %v2157
    %v2159 = vpop.f32.mrf.mxu0
    %v2160 = vadd.f32 %v1905, %v2159
    %v2161 = vpop.f32.mrf.mxu0
    %v2162 = vadd.f32 %v1901, %v2161
    %v2163 = vpop.f32.mrf.mxu0
    %v2164 = vadd.f32 %v1905, %v2163
    %2165 = vmatprep.mubr.bf16.mxu0 0
    %2166 = vmatmul.mubr.bf16.gmra.mxu0 %v1855
    %v2167 = vpop.f32.mrf.mxu0
    %v2168 = vadd.f32 %v1901, %v2167
    %v2169 = vpop.f32.mrf.mxu0
    %v2170 = vadd.f32 %v1905, %v2169
    %v2171 = vpop.f32.mrf.mxu0
    %v2172 = vadd.f32 %v1901, %v2171
    %v2173 = vpop.f32.mrf.mxu0
    %v2174 = vadd.f32 %v1905, %v2173
    %2175 = vdwg.mxu0
    %v2176 = vmul.f32 %v2105, 0.5
    %v2177 = vmul.f32 %v2107, 0.5
    %v2178 = vmul.f32 %v2158, 0.5
    %v2179 = vmul.f32 %v2160, 0.5
    %v2180 = vmul.f32 %v2109, 0.5
    %v2181 = vmul.f32 %v2111, 0.5
    %v2182 = vmul.f32 %v2162, 0.5
    %v2183 = vmul.f32 %v2164, 0.5
    %v2184 = vmul.f32 %v2115, 0.5
    %v2185 = vmul.f32 %v2117, 0.5
    %v2186 = vmul.f32 %v2168, 0.5
    %v2187 = vmul.f32 %v2170, 0.5
    %v2188 = vmul.f32 %v2119, 0.5
    %v2189 = vmul.f32 %v2121, 0.5
    %v2190 = vmul.f32 %v2172, 0.5
    %v2191 = vmul.f32 %v2174, 0.5
    %v2192 = vmul.f32 %v2105, 0.044715
    %v2193 = vmul.f32 %v2107, 0.044715
    %v2194 = vmul.f32 %v2158, 0.044715
    %v2195 = vmul.f32 %v2160, 0.044715
    %v2196 = vmul.f32 %v2109, 0.044715
    %v2197 = vmul.f32 %v2111, 0.044715
    %v2198 = vmul.f32 %v2162, 0.044715
    %v2199 = vmul.f32 %v2164, 0.044715
    %v2200 = vmul.f32 %v2115, 0.044715
    %v2201 = vmul.f32 %v2117, 0.044715
    %v2202 = vmul.f32 %v2168, 0.044715
    %v2203 = vmul.f32 %v2170, 0.044715
    %v2204 = vmul.f32 %v2119, 0.044715
    %v2205 = vmul.f32 %v2121, 0.044715
    %v2206 = vmul.f32 %v2172, 0.044715
    %v2207 = vmul.f32 %v2174, 0.044715
    %v2208 = vmul.f32 %v2192, %v2105
    %v2209 = vmul.f32 %v2193, %v2107
    %v2210 = vmul.f32 %v2194, %v2158
    %v2211 = vmul.f32 %v2195, %v2160
    %v2212 = vmul.f32 %v2196, %v2109
    %v2213 = vmul.f32 %v2197, %v2111
    %v2214 = vmul.f32 %v2198, %v2162
    %v2215 = vmul.f32 %v2199, %v2164
    %v2216 = vmul.f32 %v2200, %v2115
    %v2217 = vmul.f32 %v2201, %v2117
    %v2218 = vmul.f32 %v2202, %v2168
    %v2219 = vmul.f32 %v2203, %v2170
    %v2220 = vmul.f32 %v2204, %v2119
    %v2221 = vmul.f32 %v2205, %v2121
    %v2222 = vmul.f32 %v2206, %v2172
    %v2223 = vmul.f32 %v2207, %v2174
    %v2224 = vmul.f32 %v2208, %v2105
    %v2225 = vmul.f32 %v2209, %v2107
    %v2226 = vmul.f32 %v2210, %v2158
    %v2227 = vmul.f32 %v2211, %v2160
    %v2228 = vmul.f32 %v2212, %v2109
    %v2229 = vmul.f32 %v2213, %v2111
    %v2230 = vmul.f32 %v2214, %v2162
    %v2231 = vmul.f32 %v2215, %v2164
    %v2232 = vmul.f32 %v2216, %v2115
    %v2233 = vmul.f32 %v2217, %v2117
    %v2234 = vmul.f32 %v2218, %v2168
    %v2235 = vmul.f32 %v2219, %v2170
    %v2236 = vmul.f32 %v2220, %v2119
    %v2237 = vmul.f32 %v2221, %v2121
    %v2238 = vmul.f32 %v2222, %v2172
    %v2239 = vmul.f32 %v2223, %v2174
    %v2240 = vadd.f32 %v2105, %v2224
    %v2241 = vadd.f32 %v2107, %v2225
    %v2242 = vadd.f32 %v2158, %v2226
    %v2243 = vadd.f32 %v2160, %v2227
    %v2244 = vadd.f32 %v2109, %v2228
    %v2245 = vadd.f32 %v2111, %v2229
    %v2246 = vadd.f32 %v2162, %v2230
    %v2247 = vadd.f32 %v2164, %v2231
    %v2248 = vadd.f32 %v2115, %v2232
    %v2249 = vadd.f32 %v2117, %v2233
    %v2250 = vadd.f32 %v2168, %v2234
    %v2251 = vadd.f32 %v2170, %v2235
    %v2252 = vadd.f32 %v2119, %v2236
    %v2253 = vadd.f32 %v2121, %v2237
    %v2254 = vadd.f32 %v2172, %v2238
    %v2255 = vadd.f32 %v2174, %v2239
    %v2256 = vmul.f32 %v2240, 0.7978846
    %v2257 = vmul.f32 %v2241, 0.7978846
    %v2258 = vmul.f32 %v2242, 0.7978846
    %v2259 = vmul.f32 %v2243, 0.7978846
    %v2260 = vmul.f32 %v2244, 0.7978846
    %v2261 = vmul.f32 %v2245, 0.7978846
    %v2262 = vmul.f32 %v2246, 0.7978846
    %v2263 = vmul.f32 %v2247, 0.7978846
    %v2264 = vmul.f32 %v2248, 0.7978846
    %v2265 = vmul.f32 %v2249, 0.7978846
    %v2266 = vmul.f32 %v2250, 0.7978846
    %v2267 = vmul.f32 %v2251, 0.7978846
    %v2268 = vmul.f32 %v2252, 0.7978846
    %v2269 = vmul.f32 %v2253, 0.7978846
    %v2270 = vmul.f32 %v2254, 0.7978846
    %v2271 = vmul.f32 %v2255, 0.7978846
    %v2272 = vtanh.pop %v2256
    %v2273 = vtanh.pop %v2257
    %v2274 = vtanh.pop %v2258
    %v2275 = vtanh.pop %v2259
    %v2276 = vtanh.pop %v2260
    %v2277 = vtanh.pop %v2261
    %v2278 = vtanh.pop %v2262
    %v2279 = vtanh.pop %v2263
    %v2280 = vtanh.pop %v2264
    %v2281 = vtanh.pop %v2265
    %v2282 = vtanh.pop %v2266
    %v2283 = vtanh.pop %v2267
    %v2284 = vtanh.pop %v2268
    %v2285 = vtanh.pop %v2269
    %v2286 = vtanh.pop %v2270
    %v2287 = vtanh.pop %v2271
    %v2288 = vadd.f32 %v2272, 1.0
    %v2289 = vadd.f32 %v2273, 1.0
    %v2290 = vadd.f32 %v2274, 1.0
    %v2291 = vadd.f32 %v2275, 1.0
    %v2292 = vadd.f32 %v2276, 1.0
    %v2293 = vadd.f32 %v2277, 1.0
    %v2294 = vadd.f32 %v2278, 1.0
    %v2295 = vadd.f32 %v2279, 1.0
    %v2296 = vadd.f32 %v2280, 1.0
    %v2297 = vadd.f32 %v2281, 1.0
    %v2298 = vadd.f32 %v2282, 1.0
    %v2299 = vadd.f32 %v2283, 1.0
    %v2300 = vadd.f32 %v2284, 1.0
    %v2301 = vadd.f32 %v2285, 1.0
    %v2302 = vadd.f32 %v2286, 1.0
    %v2303 = vadd.f32 %v2287, 1.0
    %v2304 = vmul.f32 %v2176, %v2288
    %v2305 = vmul.f32 %v2177, %v2289
    %v2306 = vmul.f32 %v2178, %v2290
    %v2307 = vmul.f32 %v2179, %v2291
    %v2308 = vmul.f32 %v2180, %v2292
    %v2309 = vmul.f32 %v2181, %v2293
    %v2310 = vmul.f32 %v2182, %v2294
    %v2311 = vmul.f32 %v2183, %v2295
    %v2312 = vmul.f32 %v2184, %v2296
    %v2313 = vmul.f32 %v2185, %v2297
    %v2314 = vmul.f32 %v2186, %v2298
    %v2315 = vmul.f32 %v2187, %v2299
    %v2316 = vmul.f32 %v2188, %v2300
    %v2317 = vmul.f32 %v2189, %v2301
    %v2318 = vmul.f32 %v2190, %v2302
    %v2319 = vmul.f32 %v2191, %v2303
    %v2320 = vpack.c.bf16 %v2308, %v2304
    %v2321 = vpack.c.bf16 %v2309, %v2305
    %v2322 = vpack.c.bf16 %v2310, %v2306
    %v2323 = vpack.c.bf16 %v2311, %v2307
    %v2324 = vpack.c.bf16 %v2316, %v2312
    %v2325 = vpack.c.bf16 %v2317, %v2313
    %v2326 = vpack.c.bf16 %v2318, %v2314
    %v2327 = vpack.c.bf16 %v2319, %v2315
    %v2328 = vld [vmem:[#allocation17] sm:$0xf]
    %v2329 = vld [vmem:[#allocation17 + $0x4] sm:$0xf]
    %v2330 = vld [vmem:[#allocation17 + $0x8] sm:$0xf]
    %v2331 = vld [vmem:[#allocation17 + $0xc] sm:$0xf]
    %v2332 = vld [vmem:[#allocation17 + $0x10] sm:$0xf]
    %v2333 = vld [vmem:[#allocation17 + $0x14] sm:$0xf]
    %v2334 = vld [vmem:[#allocation17 + $0x18] sm:$0xf]
    %v2335 = vld [vmem:[#allocation17 + $0x1c] sm:$0xf]
    %v2336 = vld [vmem:[#allocation17 + $0x20] sm:$0xf]
    %v2337 = vld [vmem:[#allocation17 + $0x24] sm:$0xf]
    %v2338 = vld [vmem:[#allocation17 + $0x28] sm:$0xf]
    %v2339 = vld [vmem:[#allocation17 + $0x2c] sm:$0xf]
    %v2340 = vld [vmem:[#allocation17 + $0x30] sm:$0xf]
    %v2341 = vld [vmem:[#allocation17 + $0x34] sm:$0xf]
    %v2342 = vld [vmem:[#allocation17 + $0x38] sm:$0xf]
    %v2343 = vld [vmem:[#allocation17 + $0x3c] sm:$0xf]
    %v2344 = vld [vmem:[#allocation17 + $0x40] sm:$0xf]
    %v2345 = vld [vmem:[#allocation17 + $0x44] sm:$0xf]
    %v2346 = vld [vmem:[#allocation17 + $0x48] sm:$0xf]
    %v2347 = vld [vmem:[#allocation17 + $0x4c] sm:$0xf]
    %v2348 = vld [vmem:[#allocation17 + $0x50] sm:$0xf]
    %v2349 = vld [vmem:[#allocation17 + $0x54] sm:$0xf]
    %v2350 = vld [vmem:[#allocation17 + $0x58] sm:$0xf]
    %v2351 = vld [vmem:[#allocation17 + $0x5c] sm:$0xf]
    %v2352 = vld [vmem:[#allocation17 + $0x60] sm:$0xf]
    %v2353 = vld [vmem:[#allocation17 + $0x64] sm:$0xf]
    %v2354 = vld [vmem:[#allocation17 + $0x68] sm:$0xf]
    %v2355 = vld [vmem:[#allocation17 + $0x6c] sm:$0xf]
    %v2356 = vld [vmem:[#allocation17 + $0x70] sm:$0xf]
    %v2357 = vld [vmem:[#allocation17 + $0x74] sm:$0xf]
    %v2358 = vld [vmem:[#allocation17 + $0x78] sm:$0xf]
    %v2359 = vld [vmem:[#allocation17 + $0x7c] sm:$0xf]
    %v2360 = vld [vmem:[#allocation17 + $0x80] sm:$0xf]
    %v2361 = vld [vmem:[#allocation17 + $0x84] sm:$0xf]
    %v2362 = vld [vmem:[#allocation17 + $0x88] sm:$0xf]
    %v2363 = vld [vmem:[#allocation17 + $0x8c] sm:$0xf]
    %v2364 = vld [vmem:[#allocation17 + $0x90] sm:$0xf]
    %v2365 = vld [vmem:[#allocation17 + $0x94] sm:$0xf]
    %v2366 = vld [vmem:[#allocation17 + $0x98] sm:$0xf]
    %v2367 = vld [vmem:[#allocation17 + $0x9c] sm:$0xf]
    %v2368 = vld [vmem:[#allocation17 + $0xa0] sm:$0xf]
    %v2369 = vld [vmem:[#allocation17 + $0xa4] sm:$0xf]
    %v2370 = vld [vmem:[#allocation17 + $0xa8] sm:$0xf]
    %v2371 = vld [vmem:[#allocation17 + $0xac] sm:$0xf]
    %v2372 = vld [vmem:[#allocation17 + $0xb0] sm:$0xf]
    %v2373 = vld [vmem:[#allocation17 + $0xb4] sm:$0xf]
    %v2374 = vld [vmem:[#allocation17 + $0xb8] sm:$0xf]
    %v2375 = vld [vmem:[#allocation17 + $0xbc] sm:$0xf]
    %v2376 = vld [vmem:[#allocation17 + $0xc0] sm:$0xf]
    %v2377 = vld [vmem:[#allocation17 + $0xc4] sm:$0xf]
    %v2378 = vld [vmem:[#allocation17 + $0xc8] sm:$0xf]
    %v2379 = vld [vmem:[#allocation17 + $0xcc] sm:$0xf]
    %v2380 = vld [vmem:[#allocation17 + $0xd0] sm:$0xf]
    %v2381 = vld [vmem:[#allocation17 + $0xd4] sm:$0xf]
    %v2382 = vld [vmem:[#allocation17 + $0xd8] sm:$0xf]
    %v2383 = vld [vmem:[#allocation17 + $0xdc] sm:$0xf]
    %v2384 = vld [vmem:[#allocation17 + $0xe0] sm:$0xf]
    %v2385 = vld [vmem:[#allocation17 + $0xe4] sm:$0xf]
    %v2386 = vld [vmem:[#allocation17 + $0xe8] sm:$0xf]
    %v2387 = vld [vmem:[#allocation17 + $0xec] sm:$0xf]
    %v2388 = vld [vmem:[#allocation17 + $0xf0] sm:$0xf]
    %v2389 = vld [vmem:[#allocation17 + $0xf4] sm:$0xf]
    %v2390 = vld [vmem:[#allocation17 + $0xf8] sm:$0xf]
    %v2391 = vld [vmem:[#allocation17 + $0xfc] sm:$0xf]
    %v2392 = vld [vmem:[%s49] sm:$0x1]
    %v2394 = vlaneseq
    %v2395 = vshrl.u32 %v2394, 7
    %v2396 = vsub.s32 0, %v2395
    %v2397 = vrot.slane %v2392, %v2396
    %v2463 = vunpack.c.l.b16 %v2328
    %v2464 = vunpack.c.l.b16 %v2329
    %v2465 = vunpack.c.l.b16 %v2330
    %v2466 = vunpack.c.l.b16 %v2331
    %v2467 = vunpack.c.l.b16 %v2332
    %v2468 = vunpack.c.l.b16 %v2333
    %v2469 = vunpack.c.l.b16 %v2334
    %v2470 = vunpack.c.l.b16 %v2335
    %v2471 = vunpack.c.l.b16 %v2336
    %v2472 = vunpack.c.l.b16 %v2337
    %v2473 = vunpack.c.l.b16 %v2338
    %v2474 = vunpack.c.l.b16 %v2339
    %v2475 = vunpack.c.l.b16 %v2340
    %v2476 = vunpack.c.l.b16 %v2341
    %v2477 = vunpack.c.l.b16 %v2342
    %v2478 = vunpack.c.l.b16 %v2343
    %v2479 = vunpack.c.l.b16 %v2344
    %v2480 = vunpack.c.l.b16 %v2345
    %v2481 = vunpack.c.l.b16 %v2346
    %v2482 = vunpack.c.l.b16 %v2347
    %v2483 = vunpack.c.l.b16 %v2348
    %v2484 = vunpack.c.l.b16 %v2349
    %v2485 = vunpack.c.l.b16 %v2350
    %v2486 = vunpack.c.l.b16 %v2351
    %v2487 = vunpack.c.l.b16 %v2352
    %v2488 = vunpack.c.l.b16 %v2353
    %v2489 = vunpack.c.l.b16 %v2354
    %v2490 = vunpack.c.l.b16 %v2355
    %v2491 = vunpack.c.l.b16 %v2356
    %v2492 = vunpack.c.l.b16 %v2357
    %v2493 = vunpack.c.l.b16 %v2358
    %v2494 = vunpack.c.l.b16 %v2359
    %v2495 = vunpack.c.l.b16 %v2360
    %v2496 = vunpack.c.l.b16 %v2361
    %v2497 = vunpack.c.l.b16 %v2362
    %v2498 = vunpack.c.l.b16 %v2363
    %v2499 = vunpack.c.l.b16 %v2364
    %v2500 = vunpack.c.l.b16 %v2365
    %v2501 = vunpack.c.l.b16 %v2366
    %v2502 = vunpack.c.l.b16 %v2367
    %v2503 = vunpack.c.l.b16 %v2368
    %v2504 = vunpack.c.l.b16 %v2369
    %v2505 = vunpack.c.l.b16 %v2370
    %v2506 = vunpack.c.l.b16 %v2371
    %v2507 = vunpack.c.l.b16 %v2372
    %v2508 = vunpack.c.l.b16 %v2373
    %v2509 = vunpack.c.l.b16 %v2374
    %v2510 = vunpack.c.l.b16 %v2375
    %v2511 = vunpack.c.l.b16 %v2376
    %v2512 = vunpack.c.l.b16 %v2377
    %v2513 = vunpack.c.l.b16 %v2378
    %v2514 = vunpack.c.l.b16 %v2379
    %v2515 = vunpack.c.l.b16 %v2380
    %v2516 = vunpack.c.l.b16 %v2381
    %v2517 = vunpack.c.l.b16 %v2382
    %v2518 = vunpack.c.l.b16 %v2383
    %v2519 = vunpack.c.l.b16 %v2384
    %v2520 = vunpack.c.l.b16 %v2385
    %v2521 = vunpack.c.l.b16 %v2386
    %v2522 = vunpack.c.l.b16 %v2387
    %v2523 = vunpack.c.l.b16 %v2388
    %v2524 = vunpack.c.l.b16 %v2389
    %v2525 = vunpack.c.l.b16 %v2390
    %v2526 = vunpack.c.l.b16 %v2391
    %v2527 = vpack.c.b16 %v2464, %v2463
    %v2528 = vpack.c.b16 %v2466, %v2465
    %v2529 = vpack.c.b16 %v2468, %v2467
    %v2530 = vpack.c.b16 %v2470, %v2469
    %v2531 = vpack.c.b16 %v2472, %v2471
    %v2532 = vpack.c.b16 %v2474, %v2473
    %v2533 = vpack.c.b16 %v2476, %v2475
    %v2534 = vpack.c.b16 %v2478, %v2477
    %v2535 = vpack.c.b16 %v2480, %v2479
    %v2536 = vpack.c.b16 %v2482, %v2481
    %v2537 = vpack.c.b16 %v2484, %v2483
    %v2538 = vpack.c.b16 %v2486, %v2485
    %v2539 = vpack.c.b16 %v2488, %v2487
    %v2540 = vpack.c.b16 %v2490, %v2489
    %v2541 = vpack.c.b16 %v2492, %v2491
    %v2542 = vpack.c.b16 %v2494, %v2493
    %v2543 = vpack.c.b16 %v2496, %v2495
    %v2544 = vpack.c.b16 %v2498, %v2497
    %v2545 = vpack.c.b16 %v2500, %v2499
    %v2546 = vpack.c.b16 %v2502, %v2501
    %v2547 = vpack.c.b16 %v2504, %v2503
    %v2548 = vpack.c.b16 %v2506, %v2505
    %v2549 = vpack.c.b16 %v2508, %v2507
    %v2550 = vpack.c.b16 %v2510, %v2509
    %v2551 = vpack.c.b16 %v2512, %v2511
    %v2552 = vpack.c.b16 %v2514, %v2513
    %v2553 = vpack.c.b16 %v2516, %v2515
    %v2554 = vpack.c.b16 %v2518, %v2517
    %v2555 = vpack.c.b16 %v2520, %v2519
    %v2556 = vpack.c.b16 %v2522, %v2521
    %v2557 = vpack.c.b16 %v2524, %v2523
    %v2558 = vpack.c.b16 %v2526, %v2525
    %2591 = vmatprep.subr.bf16.mxu0 0
    %2592 = vmatpush1.bf16.msra.mxu0 %v2534
    %2593 = vmatprep.subr.bf16.mxu0 0
    %2594 = vmatpush1.bf16.msra.mxu0 %v2533
    %2595 = vmatprep.subr.bf16.mxu0 0
    %2596 = vmatpush1.bf16.msra.mxu0 %v2532
    %2597 = vmatprep.subr.bf16.mxu0 0
    %2598 = vmatpush1.bf16.msra.mxu0 %v2531
    %2599 = vmatprep.subr.bf16.mxu0 0
    %2600 = vmatpush1.bf16.msra.mxu0 %v2530
    %2601 = vmatprep.subr.bf16.mxu0 0
    %2602 = vmatpush1.bf16.msra.mxu0 %v2529
    %2603 = vmatprep.subr.bf16.mxu0 0
    %2604 = vmatpush1.bf16.msra.mxu0 %v2528
    %2605 = vmatprep.subr.bf16.mxu0 0
    %2606 = vmatpush1.bf16.msra.mxu0 %v2527
    %2607 = vmatprep.subr.bf16.mxu0 0
    %2608 = vmatpush2.bf16.msra.mxu0 %v2542
    %2609 = vmatprep.subr.bf16.mxu0 0
    %2610 = vmatpush2.bf16.msra.mxu0 %v2541
    %2611 = vmatprep.subr.bf16.mxu0 0
    %2612 = vmatpush2.bf16.msra.mxu0 %v2540
    %2613 = vmatprep.subr.bf16.mxu0 0
    %2614 = vmatpush2.bf16.msra.mxu0 %v2539
    %2615 = vmatprep.subr.bf16.mxu0 0
    %2616 = vmatpush2.bf16.msra.mxu0 %v2538
    %2617 = vmatprep.subr.bf16.mxu0 0
    %2618 = vmatpush2.bf16.msra.mxu0 %v2537
    %2619 = vmatprep.subr.bf16.mxu0 0
    %2620 = vmatpush2.bf16.msra.mxu0 %v2536
    %2621 = vmatprep.subr.bf16.mxu0 0
    %2622 = vmatpush2.bf16.msra.mxu0 %v2535
    %2623 = vmatprep.mubr.bf16.mxu0 %v2321
    %2624 = vmatmul.mubr.bf16.gmra.mxu0 %v2320
    %v2625 = vpop.f32.mrf.mxu0
    %v2626 = vadd.f32 %v2397, %v2625
    %v2627 = vpop.f32.mrf.mxu0
    %v2628 = vpop.f32.mrf.mxu0
    %v2629 = vadd.f32 %v2397, %v2628
    %v2630 = vpop.f32.mrf.mxu0
    %2631 = vmatprep.mubr.bf16.mxu0 %v2325
    %2632 = vmatmul.mubr.bf16.gmra.mxu0 %v2324
    %v2633 = vpop.f32.mrf.mxu0
    %v2634 = vadd.f32 %v2397, %v2633
    %v2635 = vpop.f32.mrf.mxu0
    %v2636 = vpop.f32.mrf.mxu0
    %v2637 = vadd.f32 %v2397, %v2636
    %v2638 = vpop.f32.mrf.mxu0
    %2639 = vdwg.mxu0
    %2640 = vmatprep.subr.bf16.mxu0 0
    %2641 = vmatpush1.bf16.msra.mxu0 %v2550
    %2642 = vmatprep.subr.bf16.mxu0 0
    %2643 = vmatpush1.bf16.msra.mxu0 %v2549
    %2644 = vmatprep.subr.bf16.mxu0 0
    %2645 = vmatpush1.bf16.msra.mxu0 %v2548
    %2646 = vmatprep.subr.bf16.mxu0 0
    %2647 = vmatpush1.bf16.msra.mxu0 %v2547
    %2648 = vmatprep.subr.bf16.mxu0 0
    %2649 = vmatpush1.bf16.msra.mxu0 %v2546
    %2650 = vmatprep.subr.bf16.mxu0 0
    %2651 = vmatpush1.bf16.msra.mxu0 %v2545
    %2652 = vmatprep.subr.bf16.mxu0 0
    %2653 = vmatpush1.bf16.msra.mxu0 %v2544
    %2654 = vmatprep.subr.bf16.mxu0 0
    %2655 = vmatpush1.bf16.msra.mxu0 %v2543
    %2656 = vmatprep.subr.bf16.mxu0 0
    %2657 = vmatpush2.bf16.msra.mxu0 %v2558
    %2658 = vmatprep.subr.bf16.mxu0 0
    %2659 = vmatpush2.bf16.msra.mxu0 %v2557
    %2660 = vmatprep.subr.bf16.mxu0 0
    %2661 = vmatpush2.bf16.msra.mxu0 %v2556
    %2662 = vmatprep.subr.bf16.mxu0 0
    %2663 = vmatpush2.bf16.msra.mxu0 %v2555
    %2664 = vmatprep.subr.bf16.mxu0 0
    %2665 = vmatpush2.bf16.msra.mxu0 %v2554
    %2666 = vmatprep.subr.bf16.mxu0 0
    %2667 = vmatpush2.bf16.msra.mxu0 %v2553
    %2668 = vmatprep.subr.bf16.mxu0 0
    %2669 = vmatpush2.bf16.msra.mxu0 %v2552
    %2670 = vmatprep.subr.bf16.mxu0 0
    %2671 = vmatpush2.bf16.msra.mxu0 %v2551
    %2672 = vmatprep.mubr.bf16.mxu0 %v2323
    %2673 = vmatmul.mubr.bf16.gmra.mxu0 %v2322
    %v2674 = vpop.f32.mrf.mxu0
    %v2675 = vadd.f32 %v2626, %v2674
    %v2676 = vpop.f32.mrf.mxu0
    %v2677 = vpop.f32.mrf.mxu0
    %v2678 = vadd.f32 %v2629, %v2677
    %v2679 = vpop.f32.mrf.mxu0
    %2680 = vmatprep.mubr.bf16.mxu0 %v2327
    %2681 = vmatmul.mubr.bf16.gmra.mxu0 %v2326
    %v2682 = vpop.f32.mrf.mxu0
    %v2683 = vadd.f32 %v2634, %v2682
    %v2684 = vpop.f32.mrf.mxu0
    %v2685 = vpop.f32.mrf.mxu0
    %v2686 = vadd.f32 %v2637, %v2685
    %v2687 = vpop.f32.mrf.mxu0
    %2688 = vdwg.mxu0
    %v2689 = vld [vmem:[%s53] sm:$0x1]
    %v2691 = vlaneseq
    %v2692 = vshrl.u32 %v2691, 7
    %v2693 = vsub.s32 0, %v2692
    %v2694 = vrot.slane %v2689, %v2693
    %v2696 = vmul.f32 %v2694, %v2675
    %v2697 = vmul.f32 %v2694, %v2678
    %v2698 = vmul.f32 %v2694, %v2683
    %v2699 = vmul.f32 %v2694, %v2686
    %v2700 = vadd.f32 %v1784, %v2696
    %v2701 = vadd.f32 %v1785, %v2697
    %v2702 = vadd.f32 %v1786, %v2698
    %v2703 = vadd.f32 %v1787, %v2699
    %v2704 = vld [vmem:[%s55] sm:$0x1]
    %v2705 = vld [vmem:[%s57] sm:$0x1]
    %2706 = vadd.xlane.f32.xlu0 %v2700
    %v2707 = vpop.xlane.xlu0 %2706
    %2708 = vadd.xlane.f32.xlu0 %v2701
    %v2709 = vpop.xlane.xlu0 %2708
    %2710 = vadd.xlane.f32.xlu0 %v2702
    %v2711 = vpop.xlane.xlu0 %2710
    %2712 = vadd.xlane.f32.xlu0 %v2703
    %v2713 = vpop.xlane.xlu0 %2712
    %v2714 = vmul.f32 %v2707, %v434
    %v2715 = vmul.f32 %v2709, %v434
    %v2716 = vmul.f32 %v2711, %v434
    %v2717 = vmul.f32 %v2713, %v434
    %v2718 = vsub.f32 %v2700, %v2714
    %v2719 = vsub.f32 %v2701, %v2715
    %v2720 = vsub.f32 %v2702, %v2716
    %v2721 = vsub.f32 %v2703, %v2717
    %v2722 = vmul.f32 %v2718, %v2718
    %v2723 = vmul.f32 %v2719, %v2719
    %v2724 = vmul.f32 %v2720, %v2720
    %v2725 = vmul.f32 %v2721, %v2721
    %2726 = vadd.xlane.f32.xlu0 %v2722
    %v2727 = vpop.xlane.xlu0 %2726
    %2728 = vadd.xlane.f32.xlu0 %v2723
    %v2729 = vpop.xlane.xlu0 %2728
    %2730 = vadd.xlane.f32.xlu0 %v2724
    %v2731 = vpop.xlane.xlu0 %2730
    %2732 = vadd.xlane.f32.xlu0 %v2725
    %v2733 = vpop.xlane.xlu0 %2732
    %v2734 = vmul.f32 %v2727, %v434
    %v2735 = vmul.f32 %v2729, %v434
    %v2736 = vmul.f32 %v2731, %v434
    %v2737 = vmul.f32 %v2733, %v434
    %v2738 = vadd.f32 %v2734, 1e-05
    %v2739 = vadd.f32 %v2735, 1e-05
    %v2740 = vadd.f32 %v2736, 1e-05
    %v2741 = vadd.f32 %v2737, 1e-05
    %v2742 = vrsqrt.pop %v2738
    %v2743 = vrsqrt.pop %v2739
    %v2744 = vrsqrt.pop %v2740
    %v2745 = vrsqrt.pop %v2741
    %v2746 = vmul.f32 %v2718, %v2742
    %v2747 = vmul.f32 %v2719, %v2743
    %v2748 = vmul.f32 %v2720, %v2744
    %v2749 = vmul.f32 %v2721, %v2745
    %v2751 = vlaneseq
    %v2752 = vshrl.u32 %v2751, 7
    %v2753 = vsub.s32 0, %v2752
    %v2754 = vrot.slane %v2704, %v2753
    %v2756 = vmul.f32 %v2746, %v2754
    %v2757 = vmul.f32 %v2747, %v2754
    %v2758 = vmul.f32 %v2748, %v2754
    %v2759 = vmul.f32 %v2749, %v2754
    %v2761 = vlaneseq
    %v2762 = vshrl.u32 %v2761, 7
    %v2763 = vsub.s32 0, %v2762
    %v2764 = vrot.slane %v2705, %v2763
    %v2766 = vadd.f32 %v2756, %v2764
    %v2767 = vadd.f32 %v2757, %v2764
    %v2768 = vadd.f32 %v2758, %v2764
    %v2769 = vadd.f32 %v2759, %v2764
    %v2770 = vld [vmem:[%s7] sm:$0xff]
    %v2771 = vld [vmem:[%s7 + $0x8] sm:$0xff]
    %v2772 = vld [vmem:[%s7 + $0x10] sm:$0xff]
    %v2773 = vld [vmem:[%s7 + $0x18] sm:$0xff]
    %2775 = vset.pattern.permute.xlu0 0
    %2776 = vperm.xlu0 %2775, %v2770
    %v2777 = vpop.permute.xlu0 %2776
    %2780 = vset.pattern.permute.xlu0 0
    %2781 = vperm.xlu0 %2780, %v2771
    %v2782 = vpop.permute.xlu0 %2781
    %2785 = vset.pattern.permute.xlu0 0
    %2786 = vperm.xlu0 %2785, %v2772
    %v2787 = vpop.permute.xlu0 %2786
    %2790 = vset.pattern.permute.xlu0 0
    %2791 = vperm.xlu0 %2790, %v2773
    %v2792 = vpop.permute.xlu0 %2791
    %v2794 = vmul.f32 %v2766, %v2777
    %v2795 = vmul.f32 %v2767, %v2782
    %v2796 = vmul.f32 %v2768, %v2787
    %v2797 = vmul.f32 %v2769, %v2792
    %v2798 = vpack.c.bf16 %v2795, %v2794
    %v2799 = vpack.c.bf16 %v2797, %v2796
    %v2800 = vld [vmem:[#allocation19] sm:$0xff]
    %v2801 = vld [vmem:[#allocation19 + $0x8] sm:$0xff]
    %v2802 = vld [vmem:[#allocation19 + $0x10] sm:$0xff]
    %v2803 = vld [vmem:[#allocation19 + $0x18] sm:$0xff]
    %v2804 = vld [vmem:[#allocation19 + $0x20] sm:$0xff]
    %v2805 = vld [vmem:[#allocation19 + $0x28] sm:$0xf]
    %v2806 = vld [vmem:[#allocation19 + $0x2c] sm:$0xff]
    %v2807 = vld [vmem:[#allocation19 + $0x34] sm:$0xff]
    %v2808 = vld [vmem:[#allocation19 + $0x3c] sm:$0xff]
    %v2809 = vld [vmem:[#allocation19 + $0x44] sm:$0xff]
    %v2810 = vld [vmem:[#allocation19 + $0x4c] sm:$0xff]
    %v2811 = vld [vmem:[#allocation19 + $0x54] sm:$0xf]
    %v2812 = vld [vmem:[#allocation19 + $0x58] sm:$0xff]
    %v2813 = vld [vmem:[#allocation19 + $0x60] sm:$0xff]
    %v2814 = vld [vmem:[#allocation19 + $0x68] sm:$0xff]
    %v2815 = vld [vmem:[#allocation19 + $0x70] sm:$0xff]
    %v2816 = vld [vmem:[#allocation19 + $0x78] sm:$0xff]
    %v2817 = vld [vmem:[#allocation19 + $0x80] sm:$0xf]
    %v2818 = vld [vmem:[#allocation19 + $0x84] sm:$0xff]
    %v2819 = vld [vmem:[#allocation19 + $0x8c] sm:$0xff]
    %v2820 = vld [vmem:[#allocation19 + $0x94] sm:$0xff]
    %v2821 = vld [vmem:[#allocation19 + $0x9c] sm:$0xff]
    %v2822 = vld [vmem:[#allocation19 + $0xa4] sm:$0xff]
    %v2823 = vld [vmem:[#allocation19 + $0xac] sm:$0xf]
    %v2824 = vld [vmem:[#allocation19 + $0xb0] sm:$0xff]
    %v2825 = vld [vmem:[#allocation19 + $0xb8] sm:$0xff]
    %v2826 = vld [vmem:[#allocation19 + $0xc0] sm:$0xff]
    %v2827 = vld [vmem:[#allocation19 + $0xc8] sm:$0xff]
    %v2828 = vld [vmem:[#allocation19 + $0xd0] sm:$0xff]
    %v2829 = vld [vmem:[#allocation19 + $0xd8] sm:$0xf]
    %v2830 = vld [vmem:[#allocation19 + $0xdc] sm:$0xff]
    %v2831 = vld [vmem:[#allocation19 + $0xe4] sm:$0xff]
    %v2832 = vld [vmem:[#allocation19 + $0xec] sm:$0xff]
    %v2833 = vld [vmem:[#allocation19 + $0xf4] sm:$0xff]
    %v2834 = vld [vmem:[#allocation19 + $0xfc] sm:$0xff]
    %v2835 = vld [vmem:[#allocation19 + $0x104] sm:$0xf]
    %v2836 = vld [vmem:[#allocation19 + $0x108] sm:$0xff]
    %v2837 = vld [vmem:[#allocation19 + $0x110] sm:$0xff]
    %v2838 = vld [vmem:[#allocation19 + $0x118] sm:$0xff]
    %v2839 = vld [vmem:[#allocation19 + $0x120] sm:$0xff]
    %v2840 = vld [vmem:[#allocation19 + $0x128] sm:$0xff]
    %v2841 = vld [vmem:[#allocation19 + $0x130] sm:$0xf]
    %v2842 = vld [vmem:[#allocation19 + $0x134] sm:$0xff]
    %v2843 = vld [vmem:[#allocation19 + $0x13c] sm:$0xff]
    %v2844 = vld [vmem:[#allocation19 + $0x144] sm:$0xff]
    %v2845 = vld [vmem:[#allocation19 + $0x14c] sm:$0xff]
    %v2846 = vld [vmem:[#allocation19 + $0x154] sm:$0xff]
    %v2847 = vld [vmem:[#allocation19 + $0x15c] sm:$0xf]
    %v2848 = vld [vmem:[#allocation19 + $0x160] sm:$0xff]
    %v2849 = vld [vmem:[#allocation19 + $0x168] sm:$0xff]
    %v2850 = vld [vmem:[#allocation19 + $0x170] sm:$0xff]
    %v2851 = vld [vmem:[#allocation19 + $0x178] sm:$0xff]
    %v2852 = vld [vmem:[#allocation19 + $0x180] sm:$0xff]
    %v2853 = vld [vmem:[#allocation19 + $0x188] sm:$0xf]
    %v2854 = vld [vmem:[#allocation19 + $0x18c] sm:$0xff]
    %v2855 = vld [vmem:[#allocation19 + $0x194] sm:$0xff]
    %v2856 = vld [vmem:[#allocation19 + $0x19c] sm:$0xff]
    %v2857 = vld [vmem:[#allocation19 + $0x1a4] sm:$0xff]
    %v2858 = vld [vmem:[#allocation19 + $0x1ac] sm:$0xff]
    %v2859 = vld [vmem:[#allocation19 + $0x1b4] sm:$0xf]
    %v2860 = vld [vmem:[#allocation19 + $0x1b8] sm:$0xff]
    %v2861 = vld [vmem:[#allocation19 + $0x1c0] sm:$0xff]
    %v2862 = vld [vmem:[#allocation19 + $0x1c8] sm:$0xff]
    %v2863 = vld [vmem:[#allocation19 + $0x1d0] sm:$0xff]
    %v2864 = vld [vmem:[#allocation19 + $0x1d8] sm:$0xff]
    %v2865 = vld [vmem:[#allocation19 + $0x1e0] sm:$0xf]
    %v2866 = vld [vmem:[#allocation19 + $0x1e4] sm:$0xff]
    %v2867 = vld [vmem:[#allocation19 + $0x1ec] sm:$0xff]
    %v2868 = vld [vmem:[#allocation19 + $0x1f4] sm:$0xff]
    %v2869 = vld [vmem:[#allocation19 + $0x1fc] sm:$0xff]
    %v2870 = vld [vmem:[#allocation19 + $0x204] sm:$0xff]
    %v2871 = vld [vmem:[#allocation19 + $0x20c] sm:$0xf]
    %v2872 = vld [vmem:[#allocation19 + $0x210] sm:$0xff]
    %v2873 = vld [vmem:[#allocation19 + $0x218] sm:$0xff]
    %v2874 = vld [vmem:[#allocation19 + $0x220] sm:$0xff]
    %v2875 = vld [vmem:[#allocation19 + $0x228] sm:$0xff]
    %v2876 = vld [vmem:[#allocation19 + $0x230] sm:$0xff]
    %v2877 = vld [vmem:[#allocation19 + $0x238] sm:$0xf]
    %v2878 = vld [vmem:[#allocation19 + $0x23c] sm:$0xff]
    %v2879 = vld [vmem:[#allocation19 + $0x244] sm:$0xff]
    %v2880 = vld [vmem:[#allocation19 + $0x24c] sm:$0xff]
    %v2881 = vld [vmem:[#allocation19 + $0x254] sm:$0xff]
    %v2882 = vld [vmem:[#allocation19 + $0x25c] sm:$0xff]
    %v2883 = vld [vmem:[#allocation19 + $0x264] sm:$0xf]
    %v2884 = vld [vmem:[#allocation19 + $0x268] sm:$0xff]
    %v2885 = vld [vmem:[#allocation19 + $0x270] sm:$0xff]
    %v2886 = vld [vmem:[#allocation19 + $0x278] sm:$0xff]
    %v2887 = vld [vmem:[#allocation19 + $0x280] sm:$0xff]
    %v2888 = vld [vmem:[#allocation19 + $0x288] sm:$0xff]
    %v2889 = vld [vmem:[#allocation19 + $0x290] sm:$0xf]
    %v2890 = vld [vmem:[#allocation19 + $0x294] sm:$0xff]
    %v2891 = vld [vmem:[#allocation19 + $0x29c] sm:$0xff]
    %v2892 = vld [vmem:[#allocation19 + $0x2a4] sm:$0xff]
    %v2893 = vld [vmem:[#allocation19 + $0x2ac] sm:$0xff]
    %v2894 = vld [vmem:[#allocation19 + $0x2b4] sm:$0xff]
    %v2895 = vld [vmem:[#allocation19 + $0x2bc] sm:$0xf]
    %v2992 = vunpack.c.l.b16 %v2800
    %v2993 = vunpack.c.h.b16 %v2800
    %v2994 = vunpack.c.l.b16 %v2801
    %v2995 = vunpack.c.h.b16 %v2801
    %v2996 = vunpack.c.l.b16 %v2802
    %v2997 = vunpack.c.h.b16 %v2802
    %v2998 = vunpack.c.l.b16 %v2803
    %v2999 = vunpack.c.h.b16 %v2803
    %v3000 = vunpack.c.l.b16 %v2804
    %v3001 = vunpack.c.h.b16 %v2804
    %v3002 = vunpack.c.l.b16 %v2805
    %v3003 = vunpack.c.l.b16 %v2806
    %v3004 = vunpack.c.h.b16 %v2806
    %v3005 = vunpack.c.l.b16 %v2807
    %v3006 = vunpack.c.h.b16 %v2807
    %v3007 = vunpack.c.l.b16 %v2808
    %v3008 = vunpack.c.h.b16 %v2808
    %v3009 = vunpack.c.l.b16 %v2809
    %v3010 = vunpack.c.h.b16 %v2809
    %v3011 = vunpack.c.l.b16 %v2810
    %v3012 = vunpack.c.h.b16 %v2810
    %v3013 = vunpack.c.l.b16 %v2811
    %v3014 = vunpack.c.l.b16 %v2812
    %v3015 = vunpack.c.h.b16 %v2812
    %v3016 = vunpack.c.l.b16 %v2813
    %v3017 = vunpack.c.h.b16 %v2813
    %v3018 = vunpack.c.l.b16 %v2814
    %v3019 = vunpack.c.h.b16 %v2814
    %v3020 = vunpack.c.l.b16 %v2815
    %v3021 = vunpack.c.h.b16 %v2815
    %v3022 = vunpack.c.l.b16 %v2816
    %v3023 = vunpack.c.h.b16 %v2816
    %v3024 = vunpack.c.l.b16 %v2817
    %v3025 = vunpack.c.l.b16 %v2818
    %v3026 = vunpack.c.h.b16 %v2818
    %v3027 = vunpack.c.l.b16 %v2819
    %v3028 = vunpack.c.h.b16 %v2819
    %v3029 = vunpack.c.l.b16 %v2820
    %v3030 = vunpack.c.h.b16 %v2820
    %v3031 = vunpack.c.l.b16 %v2821
    %v3032 = vunpack.c.h.b16 %v2821
    %v3033 = vunpack.c.l.b16 %v2822
    %v3034 = vunpack.c.h.b16 %v2822
    %v3035 = vunpack.c.l.b16 %v2823
    %v3036 = vunpack.c.l.b16 %v2824
    %v3037 = vunpack.c.h.b16 %v2824
    %v3038 = vunpack.c.l.b16 %v2825
    %v3039 = vunpack.c.h.b16 %v2825
    %v3040 = vunpack.c.l.b16 %v2826
    %v3041 = vunpack.c.h.b16 %v2826
    %v3042 = vunpack.c.l.b16 %v2827
    %v3043 = vunpack.c.h.b16 %v2827
    %v3044 = vunpack.c.l.b16 %v2828
    %v3045 = vunpack.c.h.b16 %v2828
    %v3046 = vunpack.c.l.b16 %v2829
    %v3047 = vunpack.c.l.b16 %v2830
    %v3048 = vunpack.c.h.b16 %v2830
    %v3049 = vunpack.c.l.b16 %v2831
    %v3050 = vunpack.c.h.b16 %v2831
    %v3051 = vunpack.c.l.b16 %v2832
    %v3052 = vunpack.c.h.b16 %v2832
    %v3053 = vunpack.c.l.b16 %v2833
    %v3054 = vunpack.c.h.b16 %v2833
    %v3055 = vunpack.c.l.b16 %v2834
    %v3056 = vunpack.c.h.b16 %v2834
    %v3057 = vunpack.c.l.b16 %v2835
    %v3058 = vunpack.c.l.b16 %v2836
    %v3059 = vunpack.c.h.b16 %v2836
    %v3060 = vunpack.c.l.b16 %v2837
    %v3061 = vunpack.c.h.b16 %v2837
    %v3062 = vunpack.c.l.b16 %v2838
    %v3063 = vunpack.c.h.b16 %v2838
    %v3064 = vunpack.c.l.b16 %v2839
    %v3065 = vunpack.c.h.b16 %v2839
    %v3066 = vunpack.c.l.b16 %v2840
    %v3067 = vunpack.c.h.b16 %v2840
    %v3068 = vunpack.c.l.b16 %v2841
    %v3069 = vunpack.c.l.b16 %v2842
    %v3070 = vunpack.c.h.b16 %v2842
    %v3071 = vunpack.c.l.b16 %v2843
    %v3072 = vunpack.c.h.b16 %v2843
    %v3073 = vunpack.c.l.b16 %v2844
    %v3074 = vunpack.c.h.b16 %v2844
    %v3075 = vunpack.c.l.b16 %v2845
    %v3076 = vunpack.c.h.b16 %v2845
    %v3077 = vunpack.c.l.b16 %v2846
    %v3078 = vunpack.c.h.b16 %v2846
    %v3079 = vunpack.c.l.b16 %v2847
    %v3080 = vunpack.c.l.b16 %v2848
    %v3081 = vunpack.c.h.b16 %v2848
    %v3082 = vunpack.c.l.b16 %v2849
    %v3083 = vunpack.c.h.b16 %v2849
    %v3084 = vunpack.c.l.b16 %v2850
    %v3085 = vunpack.c.h.b16 %v2850
    %v3086 = vunpack.c.l.b16 %v2851
    %v3087 = vunpack.c.h.b16 %v2851
    %v3088 = vunpack.c.l.b16 %v2852
    %v3089 = vunpack.c.h.b16 %v2852
    %v3090 = vunpack.c.l.b16 %v2853
    %v3091 = vunpack.c.l.b16 %v2854
    %v3092 = vunpack.c.h.b16 %v2854
    %v3093 = vunpack.c.l.b16 %v2855
    %v3094 = vunpack.c.h.b16 %v2855
    %v3095 = vunpack.c.l.b16 %v2856
    %v3096 = vunpack.c.h.b16 %v2856
    %v3097 = vunpack.c.l.b16 %v2857
    %v3098 = vunpack.c.h.b16 %v2857
    %v3099 = vunpack.c.l.b16 %v2858
    %v3100 = vunpack.c.h.b16 %v2858
    %v3101 = vunpack.c.l.b16 %v2859
    %v3102 = vunpack.c.l.b16 %v2860
    %v3103 = vunpack.c.h.b16 %v2860
    %v3104 = vunpack.c.l.b16 %v2861
    %v3105 = vunpack.c.h.b16 %v2861
    %v3106 = vunpack.c.l.b16 %v2862
    %v3107 = vunpack.c.h.b16 %v2862
    %v3108 = vunpack.c.l.b16 %v2863
    %v3109 = vunpack.c.h.b16 %v2863
    %v3110 = vunpack.c.l.b16 %v2864
    %v3111 = vunpack.c.h.b16 %v2864
    %v3112 = vunpack.c.l.b16 %v2865
    %v3113 = vunpack.c.l.b16 %v2866
    %v3114 = vunpack.c.h.b16 %v2866
    %v3115 = vunpack.c.l.b16 %v2867
    %v3116 = vunpack.c.h.b16 %v2867
    %v3117 = vunpack.c.l.b16 %v2868
    %v3118 = vunpack.c.h.b16 %v2868
    %v3119 = vunpack.c.l.b16 %v2869
    %v3120 = vunpack.c.h.b16 %v2869
    %v3121 = vunpack.c.l.b16 %v2870
    %v3122 = vunpack.c.h.b16 %v2870
    %v3123 = vunpack.c.l.b16 %v2871
    %v3124 = vunpack.c.l.b16 %v2872
    %v3125 = vunpack.c.h.b16 %v2872
    %v3126 = vunpack.c.l.b16 %v2873
    %v3127 = vunpack.c.h.b16 %v2873
    %v3128 = vunpack.c.l.b16 %v2874
    %v3129 = vunpack.c.h.b16 %v2874
    %v3130 = vunpack.c.l.b16 %v2875
    %v3131 = vunpack.c.h.b16 %v2875
    %v3132 = vunpack.c.l.b16 %v2876
    %v3133 = vunpack.c.h.b16 %v2876
    %v3134 = vunpack.c.l.b16 %v2877
    %v3135 = vunpack.c.l.b16 %v2878
    %v3136 = vunpack.c.h.b16 %v2878
    %v3137 = vunpack.c.l.b16 %v2879
    %v3138 = vunpack.c.h.b16 %v2879
    %v3139 = vunpack.c.l.b16 %v2880
    %v3140 = vunpack.c.h.b16 %v2880
    %v3141 = vunpack.c.l.b16 %v2881
    %v3142 = vunpack.c.h.b16 %v2881
    %v3143 = vunpack.c.l.b16 %v2882
    %v3144 = vunpack.c.h.b16 %v2882
    %v3145 = vunpack.c.l.b16 %v2883
    %v3146 = vunpack.c.l.b16 %v2884
    %v3147 = vunpack.c.h.b16 %v2884
    %v3148 = vunpack.c.l.b16 %v2885
    %v3149 = vunpack.c.h.b16 %v2885
    %v3150 = vunpack.c.l.b16 %v2886
    %v3151 = vunpack.c.h.b16 %v2886
    %v3152 = vunpack.c.l.b16 %v2887
    %v3153 = vunpack.c.h.b16 %v2887
    %v3154 = vunpack.c.l.b16 %v2888
    %v3155 = vunpack.c.h.b16 %v2888
    %v3156 = vunpack.c.l.b16 %v2889
    %v3157 = vunpack.c.l.b16 %v2890
    %v3158 = vunpack.c.h.b16 %v2890
    %v3159 = vunpack.c.l.b16 %v2891
    %v3160 = vunpack.c.h.b16 %v2891
    %v3161 = vunpack.c.l.b16 %v2892
    %v3162 = vunpack.c.h.b16 %v2892
    %v3163 = vunpack.c.l.b16 %v2893
    %v3164 = vunpack.c.h.b16 %v2893
    %v3165 = vunpack.c.l.b16 %v2894
    %v3166 = vunpack.c.h.b16 %v2894
    %v3167 = vunpack.c.l.b16 %v2895
    %v3168 = vpack.c.b16 %v3003, %v2992
    %v3169 = vpack.c.b16 %v3004, %v2993
    %v3170 = vpack.c.b16 %v3005, %v2994
    %v3171 = vpack.c.b16 %v3006, %v2995
    %v3172 = vpack.c.b16 %v3007, %v2996
    %v3173 = vpack.c.b16 %v3008, %v2997
    %v3174 = vpack.c.b16 %v3009, %v2998
    %v3175 = vpack.c.b16 %v3010, %v2999
    %v3176 = vpack.c.b16 %v3011, %v3000
    %v3177 = vpack.c.b16 %v3012, %v3001
    %v3178 = vpack.c.b16 %v3013, %v3002
    %v3179 = vpack.c.b16 %v3025, %v3014
    %v3180 = vpack.c.b16 %v3026, %v3015
    %v3181 = vpack.c.b16 %v3027, %v3016
    %v3182 = vpack.c.b16 %v3028, %v3017
    %v3183 = vpack.c.b16 %v3029, %v3018
    %v3184 = vpack.c.b16 %v3030, %v3019
    %v3185 = vpack.c.b16 %v3031, %v3020
    %v3186 = vpack.c.b16 %v3032, %v3021
    %v3187 = vpack.c.b16 %v3033, %v3022
    %v3188 = vpack.c.b16 %v3034, %v3023
    %v3189 = vpack.c.b16 %v3035, %v3024
    %v3190 = vpack.c.b16 %v3047, %v3036
    %v3191 = vpack.c.b16 %v3048, %v3037
    %v3192 = vpack.c.b16 %v3049, %v3038
    %v3193 = vpack.c.b16 %v3050, %v3039
    %v3194 = vpack.c.b16 %v3051, %v3040
    %v3195 = vpack.c.b16 %v3052, %v3041
    %v3196 = vpack.c.b16 %v3053, %v3042
    %v3197 = vpack.c.b16 %v3054, %v3043
    %v3198 = vpack.c.b16 %v3055, %v3044
    %v3199 = vpack.c.b16 %v3056, %v3045
    %v3200 = vpack.c.b16 %v3057, %v3046
    %v3201 = vpack.c.b16 %v3069, %v3058
    %v3202 = vpack.c.b16 %v3070, %v3059
    %v3203 = vpack.c.b16 %v3071, %v3060
    %v3204 = vpack.c.b16 %v3072, %v3061
    %v3205 = vpack.c.b16 %v3073, %v3062
    %v3206 = vpack.c.b16 %v3074, %v3063
    %v3207 = vpack.c.b16 %v3075, %v3064
    %v3208 = vpack.c.b16 %v3076, %v3065
    %v3209 = vpack.c.b16 %v3077, %v3066
    %v3210 = vpack.c.b16 %v3078, %v3067
    %v3211 = vpack.c.b16 %v3079, %v3068
    %v3212 = vpack.c.b16 %v3091, %v3080
    %v3213 = vpack.c.b16 %v3092, %v3081
    %v3214 = vpack.c.b16 %v3093, %v3082
    %v3215 = vpack.c.b16 %v3094, %v3083
    %v3216 = vpack.c.b16 %v3095, %v3084
    %v3217 = vpack.c.b16 %v3096, %v3085
    %v3218 = vpack.c.b16 %v3097, %v3086
    %v3219 = vpack.c.b16 %v3098, %v3087
    %v3220 = vpack.c.b16 %v3099, %v3088
    %v3221 = vpack.c.b16 %v3100, %v3089
    %v3222 = vpack.c.b16 %v3101, %v3090
    %v3223 = vpack.c.b16 %v3113, %v3102
    %v3224 = vpack.c.b16 %v3114, %v3103
    %v3225 = vpack.c.b16 %v3115, %v3104
    %v3226 = vpack.c.b16 %v3116, %v3105
    %v3227 = vpack.c.b16 %v3117, %v3106
    %v3228 = vpack.c.b16 %v3118, %v3107
    %v3229 = vpack.c.b16 %v3119, %v3108
    %v3230 = vpack.c.b16 %v3120, %v3109
    %v3231 = vpack.c.b16 %v3121, %v3110
    %v3232 = vpack.c.b16 %v3122, %v3111
    %v3233 = vpack.c.b16 %v3123, %v3112
    %v3234 = vpack.c.b16 %v3135, %v3124
    %v3235 = vpack.c.b16 %v3136, %v3125
    %v3236 = vpack.c.b16 %v3137, %v3126
    %v3237 = vpack.c.b16 %v3138, %v3127
    %v3238 = vpack.c.b16 %v3139, %v3128
    %v3239 = vpack.c.b16 %v3140, %v3129
    %v3240 = vpack.c.b16 %v3141, %v3130
    %v3241 = vpack.c.b16 %v3142, %v3131
    %v3242 = vpack.c.b16 %v3143, %v3132
    %v3243 = vpack.c.b16 %v3144, %v3133
    %v3244 = vpack.c.b16 %v3145, %v3134
    %v3245 = vpack.c.b16 %v3157, %v3146
    %v3246 = vpack.c.b16 %v3158, %v3147
    %v3247 = vpack.c.b16 %v3159, %v3148
    %v3248 = vpack.c.b16 %v3160, %v3149
    %v3249 = vpack.c.b16 %v3161, %v3150
    %v3250 = vpack.c.b16 %v3162, %v3151
    %v3251 = vpack.c.b16 %v3163, %v3152
    %v3252 = vpack.c.b16 %v3164, %v3153
    %v3253 = vpack.c.b16 %v3165, %v3154
    %v3254 = vpack.c.b16 %v3166, %v3155
    %v3255 = vpack.c.b16 %v3167, %v3156
    %3344 = vmatprep.subr.bf16.mxu0 %v3246
    %3345 = vmatpush1.bf16.msra.mxu0 %v3245
    %3346 = vmatprep.subr.bf16.mxu0 %v3235
    %3347 = vmatpush1.bf16.msra.mxu0 %v3234
    %3348 = vmatprep.subr.bf16.mxu0 %v3224
    %3349 = vmatpush1.bf16.msra.mxu0 %v3223
    %3350 = vmatprep.subr.bf16.mxu0 %v3213
    %3351 = vmatpush1.bf16.msra.mxu0 %v3212
    %3352 = vmatprep.subr.bf16.mxu0 %v3202
    %3353 = vmatpush1.bf16.msra.mxu0 %v3201
    %3354 = vmatprep.subr.bf16.mxu0 %v3191
    %3355 = vmatpush1.bf16.msra.mxu0 %v3190
    %3356 = vmatprep.subr.bf16.mxu0 %v3180
    %3357 = vmatpush1.bf16.msra.mxu0 %v3179
    %3358 = vmatprep.subr.bf16.mxu0 %v3169
    %3359 = vmatpush1.bf16.msra.mxu0 %v3168
    %3360 = vmatprep.subr.bf16.mxu0 0
    %3361 = vmatpush2.bf16.msra.mxu0 0
    %3362 = vmatprep.subr.bf16.mxu0 0
    %3363 = vmatpush2.bf16.msra.mxu0 0
    %3364 = vmatprep.subr.bf16.mxu0 0
    %3365 = vmatpush2.bf16.msra.mxu0 0
    %3366 = vmatprep.subr.bf16.mxu0 0
    %3367 = vmatpush2.bf16.msra.mxu0 0
    %3368 = vmatprep.subr.bf16.mxu0 0
    %3369 = vmatpush2.bf16.msra.mxu0 0
    %3370 = vmatprep.subr.bf16.mxu0 0
    %3371 = vmatpush2.bf16.msra.mxu0 0
    %3372 = vmatprep.subr.bf16.mxu0 0
    %3373 = vmatpush2.bf16.msra.mxu0 0
    %3374 = vmatprep.subr.bf16.mxu0 0
    %3375 = vmatpush2.bf16.msra.mxu0 0
    %3376 = vmatprep.mubr.bf16.mxu0 0
    %3377 = vmatmul.mubr.bf16.gmra.mxu0 %v2798
    %v3378 = vpop.f32.mrf.mxu0
    %v3379 = vadd.f32 0.0, %v3378
    %v3380 = vpop.f32.mrf.mxu0
    %v3381 = vadd.f32 0.0, %v3380
    %v3382 = vpop.f32.mrf.mxu0
    %v3383 = vadd.f32 0.0, %v3382
    %v3384 = vpop.f32.mrf.mxu0
    %v3385 = vadd.f32 0.0, %v3384
    %3386 = vmatprep.mubr.bf16.mxu0 0
    %3387 = vmatmul.mubr.bf16.gmra.mxu0 %v2799
    %v3388 = vpop.f32.mrf.mxu0
    %v3389 = vadd.f32 0.0, %v3388
    %v3390 = vpop.f32.mrf.mxu0
    %v3391 = vadd.f32 0.0, %v3390
    %v3392 = vpop.f32.mrf.mxu0
    %v3393 = vadd.f32 0.0, %v3392
    %v3394 = vpop.f32.mrf.mxu0
    %v3395 = vadd.f32 0.0, %v3394
    %3396 = vdwg.mxu0
    %3397 = vmatprep.subr.bf16.mxu0 %v3248
    %3398 = vmatpush1.bf16.msra.mxu0 %v3247
    %3399 = vmatprep.subr.bf16.mxu0 %v3237
    %3400 = vmatpush1.bf16.msra.mxu0 %v3236
    %3401 = vmatprep.subr.bf16.mxu0 %v3226
    %3402 = vmatpush1.bf16.msra.mxu0 %v3225
    %3403 = vmatprep.subr.bf16.mxu0 %v3215
    %3404 = vmatpush1.bf16.msra.mxu0 %v3214
    %3405 = vmatprep.subr.bf16.mxu0 %v3204
    %3406 = vmatpush1.bf16.msra.mxu0 %v3203
    %3407 = vmatprep.subr.bf16.mxu0 %v3193
    %3408 = vmatpush1.bf16.msra.mxu0 %v3192
    %3409 = vmatprep.subr.bf16.mxu0 %v3182
    %3410 = vmatpush1.bf16.msra.mxu0 %v3181
    %3411 = vmatprep.subr.bf16.mxu0 %v3171
    %3412 = vmatpush1.bf16.msra.mxu0 %v3170
    %3413 = vmatprep.subr.bf16.mxu0 0
    %3414 = vmatpush2.bf16.msra.mxu0 0
    %3415 = vmatprep.subr.bf16.mxu0 0
    %3416 = vmatpush2.bf16.msra.mxu0 0
    %3417 = vmatprep.subr.bf16.mxu0 0
    %3418 = vmatpush2.bf16.msra.mxu0 0
    %3419 = vmatprep.subr.bf16.mxu0 0
    %3420 = vmatpush2.bf16.msra.mxu0 0
    %3421 = vmatprep.subr.bf16.mxu0 0
    %3422 = vmatpush2.bf16.msra.mxu0 0
    %3423 = vmatprep.subr.bf16.mxu0 0
    %3424 = vmatpush2.bf16.msra.mxu0 0
    %3425 = vmatprep.subr.bf16.mxu0 0
    %3426 = vmatpush2.bf16.msra.mxu0 0
    %3427 = vmatprep.subr.bf16.mxu0 0
    %3428 = vmatpush2.bf16.msra.mxu0 0
    %3429 = vmatprep.mubr.bf16.mxu0 0
    %3430 = vmatmul.mubr.bf16.gmra.mxu0 %v2798
    %v3431 = vpop.f32.mrf.mxu0
    %v3432 = vadd.f32 0.0, %v3431
    %v3433 = vpop.f32.mrf.mxu0
    %v3434 = vadd.f32 0.0, %v3433
    %v3435 = vpop.f32.mrf.mxu0
    %v3436 = vadd.f32 0.0, %v3435
    %v3437 = vpop.f32.mrf.mxu0
    %v3438 = vadd.f32 0.0, %v3437
    %3439 = vmatprep.mubr.bf16.mxu0 0
    %3440 = vmatmul.mubr.bf16.gmra.mxu0 %v2799
    %v3441 = vpop.f32.mrf.mxu0
    %v3442 = vadd.f32 0.0, %v3441
    %v3443 = vpop.f32.mrf.mxu0
    %v3444 = vadd.f32 0.0, %v3443
    %v3445 = vpop.f32.mrf.mxu0
    %v3446 = vadd.f32 0.0, %v3445
    %v3447 = vpop.f32.mrf.mxu0
    %v3448 = vadd.f32 0.0, %v3447
    %3449 = vdwg.mxu0
    %3450 = vmatprep.subr.bf16.mxu0 %v3250
    %3451 = vmatpush1.bf16.msra.mxu0 %v3249
    %3452 = vmatprep.subr.bf16.mxu0 %v3239
    %3453 = vmatpush1.bf16.msra.mxu0 %v3238
    %3454 = vmatprep.subr.bf16.mxu0 %v3228
    %3455 = vmatpush1.bf16.msra.mxu0 %v3227
    %3456 = vmatprep.subr.bf16.mxu0 %v3217
    %3457 = vmatpush1.bf16.msra.mxu0 %v3216
    %3458 = vmatprep.subr.bf16.mxu0 %v3206
    %3459 = vmatpush1.bf16.msra.mxu0 %v3205
    %3460 = vmatprep.subr.bf16.mxu0 %v3195
    %3461 = vmatpush1.bf16.msra.mxu0 %v3194
    %3462 = vmatprep.subr.bf16.mxu0 %v3184
    %3463 = vmatpush1.bf16.msra.mxu0 %v3183
    %3464 = vmatprep.subr.bf16.mxu0 %v3173
    %3465 = vmatpush1.bf16.msra.mxu0 %v3172
    %3466 = vmatprep.subr.bf16.mxu0 0
    %3467 = vmatpush2.bf16.msra.mxu0 0
    %3468 = vmatprep.subr.bf16.mxu0 0
    %3469 = vmatpush2.bf16.msra.mxu0 0
    %3470 = vmatprep.subr.bf16.mxu0 0
    %3471 = vmatpush2.bf16.msra.mxu0 0
    %3472 = vmatprep.subr.bf16.mxu0 0
    %3473 = vmatpush2.bf16.msra.mxu0 0
    %3474 = vmatprep.subr.bf16.mxu0 0
    %3475 = vmatpush2.bf16.msra.mxu0 0
    %3476 = vmatprep.subr.bf16.mxu0 0
    %3477 = vmatpush2.bf16.msra.mxu0 0
    %3478 = vmatprep.subr.bf16.mxu0 0
    %3479 = vmatpush2.bf16.msra.mxu0 0
    %3480 = vmatprep.subr.bf16.mxu0 0
    %3481 = vmatpush2.bf16.msra.mxu0 0
    %3482 = vmatprep.mubr.bf16.mxu0 0
    %3483 = vmatmul.mubr.bf16.gmra.mxu0 %v2798
    %v3484 = vpop.f32.mrf.mxu0
    %v3485 = vadd.f32 0.0, %v3484
    %v3486 = vpop.f32.mrf.mxu0
    %v3487 = vadd.f32 0.0, %v3486
    %v3488 = vpop.f32.mrf.mxu0
    %v3489 = vadd.f32 0.0, %v3488
    %v3490 = vpop.f32.mrf.mxu0
    %v3491 = vadd.f32 0.0, %v3490
    %3492 = vmatprep.mubr.bf16.mxu0 0
    %3493 = vmatmul.mubr.bf16.gmra.mxu0 %v2799
    %v3494 = vpop.f32.mrf.mxu0
    %v3495 = vadd.f32 0.0, %v3494
    %v3496 = vpop.f32.mrf.mxu0
    %v3497 = vadd.f32 0.0, %v3496
    %v3498 = vpop.f32.mrf.mxu0
    %v3499 = vadd.f32 0.0, %v3498
    %v3500 = vpop.f32.mrf.mxu0
    %v3501 = vadd.f32 0.0, %v3500
    %3502 = vdwg.mxu0
    %3503 = vmatprep.subr.bf16.mxu0 %v3252
    %3504 = vmatpush1.bf16.msra.mxu0 %v3251
    %3505 = vmatprep.subr.bf16.mxu0 %v3241
    %3506 = vmatpush1.bf16.msra.mxu0 %v3240
    %3507 = vmatprep.subr.bf16.mxu0 %v3230
    %3508 = vmatpush1.bf16.msra.mxu0 %v3229
    %3509 = vmatprep.subr.bf16.mxu0 %v3219
    %3510 = vmatpush1.bf16.msra.mxu0 %v3218
    %3511 = vmatprep.subr.bf16.mxu0 %v3208
    %3512 = vmatpush1.bf16.msra.mxu0 %v3207
    %3513 = vmatprep.subr.bf16.mxu0 %v3197
    %3514 = vmatpush1.bf16.msra.mxu0 %v3196
    %3515 = vmatprep.subr.bf16.mxu0 %v3186
    %3516 = vmatpush1.bf16.msra.mxu0 %v3185
    %3517 = vmatprep.subr.bf16.mxu0 %v3175
    %3518 = vmatpush1.bf16.msra.mxu0 %v3174
    %3519 = vmatprep.subr.bf16.mxu0 0
    %3520 = vmatpush2.bf16.msra.mxu0 0
    %3521 = vmatprep.subr.bf16.mxu0 0
    %3522 = vmatpush2.bf16.msra.mxu0 0
    %3523 = vmatprep.subr.bf16.mxu0 0
    %3524 = vmatpush2.bf16.msra.mxu0 0
    %3525 = vmatprep.subr.bf16.mxu0 0
    %3526 = vmatpush2.bf16.msra.mxu0 0
    %3527 = vmatprep.subr.bf16.mxu0 0
    %3528 = vmatpush2.bf16.msra.mxu0 0
    %3529 = vmatprep.subr.bf16.mxu0 0
    %3530 = vmatpush2.bf16.msra.mxu0 0
    %3531 = vmatprep.subr.bf16.mxu0 0
    %3532 = vmatpush2.bf16.msra.mxu0 0
    %3533 = vmatprep.subr.bf16.mxu0 0
    %3534 = vmatpush2.bf16.msra.mxu0 0
    %3535 = vmatprep.mubr.bf16.mxu0 0
    %3536 = vmatmul.mubr.bf16.gmra.mxu0 %v2798
    %v3537 = vpop.f32.mrf.mxu0
    %v3538 = vadd.f32 0.0, %v3537
    %v3539 = vpop.f32.mrf.mxu0
    %v3540 = vpop.f32.mrf.mxu0
    %v3541 = vadd.f32 0.0, %v3540
    %v3542 = vpop.f32.mrf.mxu0
    %3543 = vmatprep.mubr.bf16.mxu0 0
    %3544 = vmatmul.mubr.bf16.gmra.mxu0 %v2799
    %v3545 = vpop.f32.mrf.mxu0
    %v3546 = vadd.f32 0.0, %v3545
    %v3547 = vpop.f32.mrf.mxu0
    %v3548 = vpop.f32.mrf.mxu0
    %v3549 = vadd.f32 0.0, %v3548
    %v3550 = vpop.f32.mrf.mxu0
    %3551 = vdwg.mxu0
    %3552 = vmatprep.subr.bf16.mxu0 %v3254
    %3553 = vmatpush1.bf16.msra.mxu0 %v3253
    %3554 = vmatprep.subr.bf16.mxu0 %v3243
    %3555 = vmatpush1.bf16.msra.mxu0 %v3242
    %3556 = vmatprep.subr.bf16.mxu0 %v3232
    %3557 = vmatpush1.bf16.msra.mxu0 %v3231
    %3558 = vmatprep.subr.bf16.mxu0 %v3221
    %3559 = vmatpush1.bf16.msra.mxu0 %v3220
    %3560 = vmatprep.subr.bf16.mxu0 %v3210
    %3561 = vmatpush1.bf16.msra.mxu0 %v3209
    %3562 = vmatprep.subr.bf16.mxu0 %v3199
    %3563 = vmatpush1.bf16.msra.mxu0 %v3198
    %3564 = vmatprep.subr.bf16.mxu0 %v3188
    %3565 = vmatpush1.bf16.msra.mxu0 %v3187
    %3566 = vmatprep.subr.bf16.mxu0 %v3177
    %3567 = vmatpush1.bf16.msra.mxu0 %v3176
    %3568 = vmatprep.subr.bf16.mxu0 0
    %3569 = vmatpush2.bf16.msra.mxu0 0
    %3570 = vmatprep.subr.bf16.mxu0 0
    %3571 = vmatpush2.bf16.msra.mxu0 0
    %3572 = vmatprep.subr.bf16.mxu0 0
    %3573 = vmatpush2.bf16.msra.mxu0 0
    %3574 = vmatprep.subr.bf16.mxu0 0
    %3575 = vmatpush2.bf16.msra.mxu0 0
    %3576 = vmatprep.subr.bf16.mxu0 0
    %3577 = vmatpush2.bf16.msra.mxu0 0
    %3578 = vmatprep.subr.bf16.mxu0 0
    %3579 = vmatpush2.bf16.msra.mxu0 0
    %3580 = vmatprep.subr.bf16.mxu0 0
    %3581 = vmatpush2.bf16.msra.mxu0 0
    %3582 = vmatprep.subr.bf16.mxu0 0
    %3583 = vmatpush2.bf16.msra.mxu0 0
    %3584 = vmatprep.mubr.bf16.mxu0 0
    %3585 = vmatmul.mubr.bf16.gmra.mxu0 %v2798
    %v3586 = vpop.f32.mrf.mxu0
    %v3587 = vadd.f32 0.0, %v3586
    %v3588 = vpop.f32.mrf.mxu0
    %v3589 = vpop.f32.mrf.mxu0
    %v3590 = vadd.f32 0.0, %v3589
    %v3591 = vpop.f32.mrf.mxu0
    %3592 = vmatprep.mubr.bf16.mxu0 0
    %3593 = vmatmul.mubr.bf16.gmra.mxu0 %v2799
    %v3594 = vpop.f32.mrf.mxu0
    %v3595 = vadd.f32 0.0, %v3594
    %v3596 = vpop.f32.mrf.mxu0
    %v3597 = vpop.f32.mrf.mxu0
    %v3598 = vadd.f32 0.0, %v3597
    %v3599 = vpop.f32.mrf.mxu0
    %3600 = vdwg.mxu0
    %3601 = vmatprep.subr.bf16.mxu0 0
    %3602 = vmatpush1.bf16.msra.mxu0 %v3255
    %3603 = vmatprep.subr.bf16.mxu0 0
    %3604 = vmatpush1.bf16.msra.mxu0 %v3244
    %3605 = vmatprep.subr.bf16.mxu0 0
    %3606 = vmatpush1.bf16.msra.mxu0 %v3233
    %3607 = vmatprep.subr.bf16.mxu0 0
    %3608 = vmatpush1.bf16.msra.mxu0 %v3222
    %3609 = vmatprep.subr.bf16.mxu0 0
    %3610 = vmatpush1.bf16.msra.mxu0 %v3211
    %3611 = vmatprep.subr.bf16.mxu0 0
    %3612 = vmatpush1.bf16.msra.mxu0 %v3200
    %3613 = vmatprep.subr.bf16.mxu0 0
    %3614 = vmatpush1.bf16.msra.mxu0 %v3189
    %3615 = vmatprep.subr.bf16.mxu0 0
    %3616 = vmatpush1.bf16.msra.mxu0 %v3178
    %3617 = vmatprep.subr.bf16.mxu0 0
    %3618 = vmatpush2.bf16.msra.mxu0 0
    %3619 = vmatprep.subr.bf16.mxu0 0
    %3620 = vmatpush2.bf16.msra.mxu0 0
    %3621 = vmatprep.subr.bf16.mxu0 0
    %3622 = vmatpush2.bf16.msra.mxu0 0
    %3623 = vmatprep.subr.bf16.mxu0 0
    %3624 = vmatpush2.bf16.msra.mxu0 0
    %3625 = vmatprep.subr.bf16.mxu0 0
    %3626 = vmatpush2.bf16.msra.mxu0 0
    %3627 = vmatprep.subr.bf16.mxu0 0
    %3628 = vmatpush2.bf16.msra.mxu0 0
    %3629 = vmatprep.subr.bf16.mxu0 0
    %3630 = vmatpush2.bf16.msra.mxu0 0
    %3631 = vmatprep.subr.bf16.mxu0 0
    %3632 = vmatpush2.bf16.msra.mxu0 0
    %3633 = vmatprep.mubr.bf16.mxu0 0
    %3634 = vmatmul.mubr.bf16.gmra.mxu0 %v2798
    %v3635 = vpop.f32.mrf.mxu0
    %v3636 = vadd.f32 0.0, %v3635
    %v3637 = vpop.f32.mrf.mxu0
    %v3638 = vpop.f32.mrf.mxu0
    %v3639 = vadd.f32 0.0, %v3638
    %v3640 = vpop.f32.mrf.mxu0
    %3641 = vmatprep.mubr.bf16.mxu0 0
    %3642 = vmatmul.mubr.bf16.gmra.mxu0 %v2799
    %v3643 = vpop.f32.mrf.mxu0
    %v3644 = vadd.f32 0.0, %v3643
    %v3645 = vpop.f32.mrf.mxu0
    %v3646 = vpop.f32.mrf.mxu0
    %v3647 = vadd.f32 0.0, %v3646
    %v3648 = vpop.f32.mrf.mxu0
    %3649 = vdwg.mxu0
    %v3650 = vld [vmem:[%s61] sm:$0x1]
    %v3652 = vlaneseq
    %v3653 = vshrl.u32 %v3652, 7
    %v3654 = vsub.s32 0, %v3653
    %v3655 = vrot.slane %v3650, %v3654
    %v3657 = vadd.f32 %v3379, %v3655
    %v3658 = vadd.f32 %v3383, %v3655
    %v3659 = vadd.f32 %v3389, %v3655
    %v3660 = vadd.f32 %v3393, %v3655
    %v3661 = vmax.f32 %v3657, 0.0
    %v3662 = vmax.f32 %v3658, 0.0
    %v3663 = vmax.f32 %v3659, 0.0
    %v3664 = vmax.f32 %v3660, 0.0
    %v3665 = vpack.c.bf16 %v3662, %v3661
    %v3666 = vpack.c.bf16 %v3664, %v3663
    %v3667 = vld [vmem:[#allocation20] sm:$0xf]
    %v3668 = vld [vmem:[#allocation20 + $0x4] sm:$0xf]
    %v3669 = vld [vmem:[#allocation20 + $0x8] sm:$0xf]
    %v3670 = vld [vmem:[#allocation20 + $0xc] sm:$0xf]
    %v3671 = vld [vmem:[#allocation20 + $0x10] sm:$0xf]
    %v3672 = vld [vmem:[#allocation20 + $0x14] sm:$0xf]
    %v3673 = vld [vmem:[#allocation20 + $0x18] sm:$0xf]
    %v3674 = vld [vmem:[#allocation20 + $0x1c] sm:$0xf]
    %v3675 = vld [vmem:[#allocation20 + $0x20] sm:$0xf]
    %v3676 = vld [vmem:[#allocation20 + $0x24] sm:$0xf]
    %v3677 = vld [vmem:[#allocation20 + $0x28] sm:$0xf]
    %v3678 = vld [vmem:[#allocation20 + $0x2c] sm:$0xf]
    %v3679 = vld [vmem:[#allocation20 + $0x30] sm:$0xf]
    %v3680 = vld [vmem:[#allocation20 + $0x34] sm:$0xf]
    %v3681 = vld [vmem:[#allocation20 + $0x38] sm:$0xf]
    %v3682 = vld [vmem:[#allocation20 + $0x3c] sm:$0xf]
    %v3683 = vrot.slane %v3381, 2
    %v3684 = vrot.slane %v3385, 2
    %v3685 = vrot.slane %v3391, 2
    %v3686 = vrot.slane %v3395, 2
    %v3687 = vsel %vm1152, %v3685, %v3686
    %v3688 = vsel %vm1152, %v3684, %v3685
    %v3689 = vsel %vm1152, %v3683, %v3684
    %v3690 = vsel %vm1152, %v3686, %v3683
    %vm3691 = vcmp.ge.s32.totalorder %v306, 6
    %vm3692 = vcmp.ge.s32.totalorder %v307, 6
    %v3693 = vsel %vm3691, %v3690, 0.0
    %v3694 = vsel %vm3692, %v3689, 0.0
    %v3695 = vsel %vm3691, %v3688, 0.0
    %v3696 = vsel %vm3692, %v3687, 0.0
    %v3697 = vadd.f32 %v3693, 0.0
    %v3698 = vadd.f32 %v3694, 0.0
    %v3699 = vadd.f32 %v3695, 0.0
    %v3700 = vadd.f32 %v3696, 0.0
    %v3701 = vadd.f32 %v3697, %v3432
    %v3702 = vadd.f32 %v3698, %v3436
    %v3703 = vadd.f32 %v3699, %v3442
    %v3704 = vadd.f32 %v3700, %v3446
    %v3705 = vrot.slane %v3434, 6
    %v3706 = vrot.slane %v3438, 6
    %v3707 = vrot.slane %v3444, 6
    %v3708 = vrot.slane %v3448, 6
    %v3709 = vsel %vm1060, %v3707, %v3708
    %v3710 = vsel %vm1060, %v3706, %v3707
    %v3711 = vsel %vm1060, %v3705, %v3706
    %v3712 = vsel %vm1060, %v3708, %v3705
    %vm3713 = vcmp.lt.s32.totalorder %v306, 10
    %vm3714 = vcmp.lt.s32.totalorder %v307, 10
    %v3715 = vsel %vm3713, %v3711, 0.0
    %v3716 = vsel %vm3714, %v3710, 0.0
    %v3717 = vsel %vm3713, %v3709, 0.0
    %v3718 = vsel %vm3714, %v3712, 0.0
    %v3719 = vadd.f32 %v3701, %v3715
    %v3720 = vadd.f32 %v3702, %v3716
    %v3721 = vadd.f32 %v3703, %v3717
    %v3722 = vadd.f32 %v3704, %v3718
    %v3723 = vld [vmem:[%s63] sm:$0x1]
    %v3725 = vlaneseq
    %v3726 = vshrl.u32 %v3725, 7
    %v3727 = vsub.s32 0, %v3726
    %v3728 = vrot.slane %v3723, %v3727
    %v3730 = vadd.f32 %v3719, %v3728
    %v3731 = vadd.f32 %v3720, %v3728
    %v3732 = vadd.f32 %v3721, %v3728
    %v3733 = vadd.f32 %v3722, %v3728
    %v3734 = vmax.f32 %v3730, 0.0
    %v3735 = vmax.f32 %v3731, 0.0
    %v3736 = vmax.f32 %v3732, 0.0
    %v3737 = vmax.f32 %v3733, 0.0
    %v3738 = vpack.c.bf16 %v3735, %v3734
    %v3739 = vpack.c.bf16 %v3737, %v3736
    %s3740 = scalar_lea.vmem [#allocation20], 64
    %v3741 = vld [vmem:[%s3740] sm:$0xf]
    %v3742 = vld [vmem:[%s3740 + $0x4] sm:$0xf]
    %v3743 = vld [vmem:[%s3740 + $0x8] sm:$0xf]
    %v3744 = vld [vmem:[%s3740 + $0xc] sm:$0xf]
    %v3745 = vld [vmem:[%s3740 + $0x10] sm:$0xf]
    %v3746 = vld [vmem:[%s3740 + $0x14] sm:$0xf]
    %v3747 = vld [vmem:[%s3740 + $0x18] sm:$0xf]
    %v3748 = vld [vmem:[%s3740 + $0x1c] sm:$0xf]
    %v3749 = vld [vmem:[%s3740 + $0x20] sm:$0xf]
    %v3750 = vld [vmem:[%s3740 + $0x24] sm:$0xf]
    %v3751 = vld [vmem:[%s3740 + $0x28] sm:$0xf]
    %v3752 = vld [vmem:[%s3740 + $0x2c] sm:$0xf]
    %v3753 = vld [vmem:[%s3740 + $0x30] sm:$0xf]
    %v3754 = vld [vmem:[%s3740 + $0x34] sm:$0xf]
    %v3755 = vld [vmem:[%s3740 + $0x38] sm:$0xf]
    %v3756 = vld [vmem:[%s3740 + $0x3c] sm:$0xf]
    %v3773 = vunpack.c.l.b16 %v3741
    %v3774 = vunpack.c.l.b16 %v3742
    %v3775 = vunpack.c.l.b16 %v3743
    %v3776 = vunpack.c.l.b16 %v3744
    %v3777 = vunpack.c.l.b16 %v3745
    %v3778 = vunpack.c.l.b16 %v3746
    %v3779 = vunpack.c.l.b16 %v3747
    %v3780 = vunpack.c.l.b16 %v3748
    %v3781 = vunpack.c.l.b16 %v3749
    %v3782 = vunpack.c.l.b16 %v3750
    %v3783 = vunpack.c.l.b16 %v3751
    %v3784 = vunpack.c.l.b16 %v3752
    %v3785 = vunpack.c.l.b16 %v3753
    %v3786 = vunpack.c.l.b16 %v3754
    %v3787 = vunpack.c.l.b16 %v3755
    %v3788 = vunpack.c.l.b16 %v3756
    %v3789 = vpack.c.b16 %v3774, %v3773
    %v3790 = vpack.c.b16 %v3776, %v3775
    %v3791 = vpack.c.b16 %v3778, %v3777
    %v3792 = vpack.c.b16 %v3780, %v3779
    %v3793 = vpack.c.b16 %v3782, %v3781
    %v3794 = vpack.c.b16 %v3784, %v3783
    %v3795 = vpack.c.b16 %v3786, %v3785
    %v3796 = vpack.c.b16 %v3788, %v3787
    %3805 = vmatprep.subr.bf16.mxu0 0
    %3806 = vmatpush1.bf16.msra.mxu0 %v3796
    %3807 = vmatprep.subr.bf16.mxu0 0
    %3808 = vmatpush1.bf16.msra.mxu0 %v3795
    %3809 = vmatprep.subr.bf16.mxu0 0
    %3810 = vmatpush1.bf16.msra.mxu0 %v3794
    %3811 = vmatprep.subr.bf16.mxu0 0
    %3812 = vmatpush1.bf16.msra.mxu0 %v3793
    %3813 = vmatprep.subr.bf16.mxu0 0
    %3814 = vmatpush1.bf16.msra.mxu0 %v3792
    %3815 = vmatprep.subr.bf16.mxu0 0
    %3816 = vmatpush1.bf16.msra.mxu0 %v3791
    %3817 = vmatprep.subr.bf16.mxu0 0
    %3818 = vmatpush1.bf16.msra.mxu0 %v3790
    %3819 = vmatprep.subr.bf16.mxu0 0
    %3820 = vmatpush1.bf16.msra.mxu0 %v3789
    %3821 = vmatprep.subr.bf16.mxu0 0
    %3822 = vmatpush2.bf16.msra.mxu0 0
    %3823 = vmatprep.subr.bf16.mxu0 0
    %3824 = vmatpush2.bf16.msra.mxu0 0
    %3825 = vmatprep.subr.bf16.mxu0 0
    %3826 = vmatpush2.bf16.msra.mxu0 0
    %3827 = vmatprep.subr.bf16.mxu0 0
    %3828 = vmatpush2.bf16.msra.mxu0 0
    %3829 = vmatprep.subr.bf16.mxu0 0
    %3830 = vmatpush2.bf16.msra.mxu0 0
    %3831 = vmatprep.subr.bf16.mxu0 0
    %3832 = vmatpush2.bf16.msra.mxu0 0
    %3833 = vmatprep.subr.bf16.mxu0 0
    %3834 = vmatpush2.bf16.msra.mxu0 0
    %3835 = vmatprep.subr.bf16.mxu0 0
    %3836 = vmatpush2.bf16.msra.mxu0 0
    %3837 = vmatprep.mubr.bf16.mxu0 0
    %3838 = vmatmul.mubr.bf16.gmra.mxu0 %v3738
    %v3839 = vpop.f32.mrf.mxu0
    %v3840 = vadd.f32 0.0, %v3839
    %v3841 = vpop.f32.mrf.mxu0
    %v3842 = vpop.f32.mrf.mxu0
    %v3843 = vadd.f32 0.0, %v3842
    %v3844 = vpop.f32.mrf.mxu0
    %3845 = vmatprep.mubr.bf16.mxu0 0
    %3846 = vmatmul.mubr.bf16.gmra.mxu0 %v3739
    %v3847 = vpop.f32.mrf.mxu0
    %v3848 = vadd.f32 0.0, %v3847
    %v3849 = vpop.f32.mrf.mxu0
    %v3850 = vpop.f32.mrf.mxu0
    %v3851 = vadd.f32 0.0, %v3850
    %v3852 = vpop.f32.mrf.mxu0
    %3853 = vdwg.mxu0
    %v3870 = vunpack.c.l.b16 %v3667
    %v3871 = vunpack.c.l.b16 %v3668
    %v3872 = vunpack.c.l.b16 %v3669
    %v3873 = vunpack.c.l.b16 %v3670
    %v3874 = vunpack.c.l.b16 %v3671
    %v3875 = vunpack.c.l.b16 %v3672
    %v3876 = vunpack.c.l.b16 %v3673
    %v3877 = vunpack.c.l.b16 %v3674
    %v3878 = vunpack.c.l.b16 %v3675
    %v3879 = vunpack.c.l.b16 %v3676
    %v3880 = vunpack.c.l.b16 %v3677
    %v3881 = vunpack.c.l.b16 %v3678
    %v3882 = vunpack.c.l.b16 %v3679
    %v3883 = vunpack.c.l.b16 %v3680
    %v3884 = vunpack.c.l.b16 %v3681
    %v3885 = vunpack.c.l.b16 %v3682
    %v3886 = vpack.c.b16 %v3871, %v3870
    %v3887 = vpack.c.b16 %v3873, %v3872
    %v3888 = vpack.c.b16 %v3875, %v3874
    %v3889 = vpack.c.b16 %v3877, %v3876
    %v3890 = vpack.c.b16 %v3879, %v3878
    %v3891 = vpack.c.b16 %v3881, %v3880
    %v3892 = vpack.c.b16 %v3883, %v3882
    %v3893 = vpack.c.b16 %v3885, %v3884
    %3902 = vmatprep.subr.bf16.mxu0 0
    %3903 = vmatpush1.bf16.msra.mxu0 %v3893
    %3904 = vmatprep.subr.bf16.mxu0 0
    %3905 = vmatpush1.bf16.msra.mxu0 %v3892
    %3906 = vmatprep.subr.bf16.mxu0 0
    %3907 = vmatpush1.bf16.msra.mxu0 %v3891
    %3908 = vmatprep.subr.bf16.mxu0 0
    %3909 = vmatpush1.bf16.msra.mxu0 %v3890
    %3910 = vmatprep.subr.bf16.mxu0 0
    %3911 = vmatpush1.bf16.msra.mxu0 %v3889
    %3912 = vmatprep.subr.bf16.mxu0 0
    %3913 = vmatpush1.bf16.msra.mxu0 %v3888
    %3914 = vmatprep.subr.bf16.mxu0 0
    %3915 = vmatpush1.bf16.msra.mxu0 %v3887
    %3916 = vmatprep.subr.bf16.mxu0 0
    %3917 = vmatpush1.bf16.msra.mxu0 %v3886
    %3918 = vmatprep.subr.bf16.mxu0 0
    %3919 = vmatpush2.bf16.msra.mxu0 0
    %3920 = vmatprep.subr.bf16.mxu0 0
    %3921 = vmatpush2.bf16.msra.mxu0 0
    %3922 = vmatprep.subr.bf16.mxu0 0
    %3923 = vmatpush2.bf16.msra.mxu0 0
    %3924 = vmatprep.subr.bf16.mxu0 0
    %3925 = vmatpush2.bf16.msra.mxu0 0
    %3926 = vmatprep.subr.bf16.mxu0 0
    %3927 = vmatpush2.bf16.msra.mxu0 0
    %3928 = vmatprep.subr.bf16.mxu0 0
    %3929 = vmatpush2.bf16.msra.mxu0 0
    %3930 = vmatprep.subr.bf16.mxu0 0
    %3931 = vmatpush2.bf16.msra.mxu0 0
    %3932 = vmatprep.subr.bf16.mxu0 0
    %3933 = vmatpush2.bf16.msra.mxu0 0
    %3934 = vmatprep.mubr.bf16.mxu0 0
    %3935 = vmatmul.mubr.bf16.gmra.mxu0 %v3665
    %v3936 = vpop.f32.mrf.mxu0
    %v3937 = vadd.f32 %v3840, %v3936
    %v3938 = vpop.f32.mrf.mxu0
    %v3939 = vpop.f32.mrf.mxu0
    %v3940 = vadd.f32 %v3843, %v3939
    %v3941 = vpop.f32.mrf.mxu0
    %3942 = vmatprep.mubr.bf16.mxu0 0
    %3943 = vmatmul.mubr.bf16.gmra.mxu0 %v3666
    %v3944 = vpop.f32.mrf.mxu0
    %v3945 = vadd.f32 %v3848, %v3944
    %v3946 = vpop.f32.mrf.mxu0
    %v3947 = vpop.f32.mrf.mxu0
    %v3948 = vadd.f32 %v3851, %v3947
    %v3949 = vpop.f32.mrf.mxu0
    %3950 = vdwg.mxu0
    %v3951 = vrot.slane %v3485, 4
    %v3952 = vrot.slane %v3489, 4
    %v3953 = vrot.slane %v3495, 4
    %v3954 = vrot.slane %v3499, 4
    %vm3955 = vcmp.lt.s32.totalorder %v306, 4
    %v3956 = vsel %vm3955, %v3953, %v3954
    %v3957 = vsel %vm3955, %v3952, %v3953
    %v3958 = vsel %vm3955, %v3951, %v3952
    %v3959 = vsel %vm3955, %v3954, %v3951
    %vm3960 = vcmp.ge.s32.totalorder %v306, 12
    %vm3961 = vcmp.ge.s32.totalorder %v307, 12
    %v3962 = vsel %vm3960, %v3956, 0.0
    %v3963 = vsel %vm3961, %v3959, 0.0
    %v3964 = vsel %vm3960, %v3958, 0.0
    %v3965 = vsel %vm3961, %v3957, 0.0
    %v3966 = vadd.f32 %v3962, 0.0
    %v3967 = vadd.f32 %v3963, 0.0
    %v3968 = vadd.f32 %v3964, 0.0
    %v3969 = vadd.f32 %v3965, 0.0
    %v3970 = vadd.f32 %v3966, %v3487
    %v3971 = vadd.f32 %v3967, %v3491
    %v3972 = vadd.f32 %v3968, %v3497
    %v3973 = vadd.f32 %v3969, %v3501
    %v3974 = vrot.slane %v3538, 4
    %v3975 = vrot.slane %v3541, 4
    %v3976 = vrot.slane %v3546, 4
    %v3977 = vrot.slane %v3549, 4
    %v3978 = vsel %vm3955, %v3976, %v3977
    %v3979 = vsel %vm3955, %v3975, %v3976
    %v3980 = vsel %vm3955, %v3974, %v3975
    %v3981 = vsel %vm3955, %v3977, %v3974
    %vm3982 = vcmp.lt.s32.totalorder %v307, 4
    %v3983 = vsel %vm3955, %v3979, 0.0
    %v3984 = vsel %vm3982, %v3978, 0.0
    %v3985 = vsel %vm3955, %v3981, 0.0
    %v3986 = vsel %vm3982, %v3980, 0.0
    %v3987 = vadd.f32 %v3970, %v3983
    %v3988 = vadd.f32 %v3971, %v3984
    %v3989 = vadd.f32 %v3972, %v3985
    %v3990 = vadd.f32 %v3973, %v3986
    %s3991 = scalar_lea.vmem %s63, 1
    %v3992 = vld [vmem:[%s3991] sm:$0x1]
    %v3994 = vlaneseq
    %v3995 = vshrl.u32 %v3994, 7
    %v3996 = vsub.s32 0, %v3995
    %v3997 = vrot.slane %v3992, %v3996
    %v3999 = vadd.f32 %v3987, %v3997
    %v4000 = vadd.f32 %v3988, %v3997
    %v4001 = vadd.f32 %v3989, %v3997
    %v4002 = vadd.f32 %v3990, %v3997
    %v4003 = vmax.f32 %v3999, 0.0
    %v4004 = vmax.f32 %v4000, 0.0
    %v4005 = vmax.f32 %v4001, 0.0
    %v4006 = vmax.f32 %v4002, 0.0
    %v4007 = vpack.c.bf16 %v4004, %v4003
    %v4008 = vpack.c.bf16 %v4006, %v4005
    %s4009 = scalar_lea.vmem [#allocation20], 128
    %v4010 = vld [vmem:[%s4009] sm:$0xf]
    %v4011 = vld [vmem:[%s4009 + $0x4] sm:$0xf]
    %v4012 = vld [vmem:[%s4009 + $0x8] sm:$0xf]
    %v4013 = vld [vmem:[%s4009 + $0xc] sm:$0xf]
    %v4014 = vld [vmem:[%s4009 + $0x10] sm:$0xf]
    %v4015 = vld [vmem:[%s4009 + $0x14] sm:$0xf]
    %v4016 = vld [vmem:[%s4009 + $0x18] sm:$0xf]
    %v4017 = vld [vmem:[%s4009 + $0x1c] sm:$0xf]
    %v4018 = vld [vmem:[%s4009 + $0x20] sm:$0xf]
    %v4019 = vld [vmem:[%s4009 + $0x24] sm:$0xf]
    %v4020 = vld [vmem:[%s4009 + $0x28] sm:$0xf]
    %v4021 = vld [vmem:[%s4009 + $0x2c] sm:$0xf]
    %v4022 = vld [vmem:[%s4009 + $0x30] sm:$0xf]
    %v4023 = vld [vmem:[%s4009 + $0x34] sm:$0xf]
    %v4024 = vld [vmem:[%s4009 + $0x38] sm:$0xf]
    %v4025 = vld [vmem:[%s4009 + $0x3c] sm:$0xf]
    %v4042 = vunpack.c.l.b16 %v4010
    %v4043 = vunpack.c.l.b16 %v4011
    %v4044 = vunpack.c.l.b16 %v4012
    %v4045 = vunpack.c.l.b16 %v4013
    %v4046 = vunpack.c.l.b16 %v4014
    %v4047 = vunpack.c.l.b16 %v4015
    %v4048 = vunpack.c.l.b16 %v4016
    %v4049 = vunpack.c.l.b16 %v4017
    %v4050 = vunpack.c.l.b16 %v4018
    %v4051 = vunpack.c.l.b16 %v4019
    %v4052 = vunpack.c.l.b16 %v4020
    %v4053 = vunpack.c.l.b16 %v4021
    %v4054 = vunpack.c.l.b16 %v4022
    %v4055 = vunpack.c.l.b16 %v4023
    %v4056 = vunpack.c.l.b16 %v4024
    %v4057 = vunpack.c.l.b16 %v4025
    %v4058 = vpack.c.b16 %v4043, %v4042
    %v4059 = vpack.c.b16 %v4045, %v4044
    %v4060 = vpack.c.b16 %v4047, %v4046
    %v4061 = vpack.c.b16 %v4049, %v4048
    %v4062 = vpack.c.b16 %v4051, %v4050
    %v4063 = vpack.c.b16 %v4053, %v4052
    %v4064 = vpack.c.b16 %v4055, %v4054
    %v4065 = vpack.c.b16 %v4057, %v4056
    %4074 = vmatprep.subr.bf16.mxu0 0
    %4075 = vmatpush1.bf16.msra.mxu0 %v4065
    %4076 = vmatprep.subr.bf16.mxu0 0
    %4077 = vmatpush1.bf16.msra.mxu0 %v4064
    %4078 = vmatprep.subr.bf16.mxu0 0
    %4079 = vmatpush1.bf16.msra.mxu0 %v4063
    %4080 = vmatprep.subr.bf16.mxu0 0
    %4081 = vmatpush1.bf16.msra.mxu0 %v4062
    %4082 = vmatprep.subr.bf16.mxu0 0
    %4083 = vmatpush1.bf16.msra.mxu0 %v4061
    %4084 = vmatprep.subr.bf16.mxu0 0
    %4085 = vmatpush1.bf16.msra.mxu0 %v4060
    %4086 = vmatprep.subr.bf16.mxu0 0
    %4087 = vmatpush1.bf16.msra.mxu0 %v4059
    %4088 = vmatprep.subr.bf16.mxu0 0
    %4089 = vmatpush1.bf16.msra.mxu0 %v4058
    %4090 = vmatprep.subr.bf16.mxu0 0
    %4091 = vmatpush2.bf16.msra.mxu0 0
    %4092 = vmatprep.subr.bf16.mxu0 0
    %4093 = vmatpush2.bf16.msra.mxu0 0
    %4094 = vmatprep.subr.bf16.mxu0 0
    %4095 = vmatpush2.bf16.msra.mxu0 0
    %4096 = vmatprep.subr.bf16.mxu0 0
    %4097 = vmatpush2.bf16.msra.mxu0 0
    %4098 = vmatprep.subr.bf16.mxu0 0
    %4099 = vmatpush2.bf16.msra.mxu0 0
    %4100 = vmatprep.subr.bf16.mxu0 0
    %4101 = vmatpush2.bf16.msra.mxu0 0
    %4102 = vmatprep.subr.bf16.mxu0 0
    %4103 = vmatpush2.bf16.msra.mxu0 0
    %4104 = vmatprep.subr.bf16.mxu0 0
    %4105 = vmatpush2.bf16.msra.mxu0 0
    %4106 = vmatprep.mubr.bf16.mxu0 0
    %4107 = vmatmul.mubr.bf16.gmra.mxu0 %v4007
    %v4108 = vpop.f32.mrf.mxu0
    %v4109 = vadd.f32 0.0, %v4108
    %v4110 = vpop.f32.mrf.mxu0
    %v4111 = vpop.f32.mrf.mxu0
    %v4112 = vadd.f32 0.0, %v4111
    %v4113 = vpop.f32.mrf.mxu0
    %4114 = vmatprep.mubr.bf16.mxu0 0
    %4115 = vmatmul.mubr.bf16.gmra.mxu0 %v4008
    %v4116 = vpop.f32.mrf.mxu0
    %v4117 = vadd.f32 0.0, %v4116
    %v4118 = vpop.f32.mrf.mxu0
    %v4119 = vpop.f32.mrf.mxu0
    %v4120 = vadd.f32 0.0, %v4119
    %v4121 = vpop.f32.mrf.mxu0
    %4122 = vdwg.mxu0
    %v4123 = vadd.f32 %v3937, %v4109
    %v4124 = vadd.f32 %v3940, %v4112
    %v4125 = vadd.f32 %v3945, %v4117
    %v4126 = vadd.f32 %v3948, %v4120
    %v4127 = vadd.f32 %v3587, 0.0
    %v4128 = vadd.f32 %v3590, 0.0
    %v4129 = vadd.f32 %v3595, 0.0
    %v4130 = vadd.f32 %v3598, 0.0
    %v4131 = vadd.f32 %v4127, 0.0
    %v4132 = vadd.f32 %v4128, 0.0
    %v4133 = vadd.f32 %v4129, 0.0
    %v4134 = vadd.f32 %v4130, 0.0
    %s4135 = scalar_lea.vmem %s63, 2
    %v4136 = vld [vmem:[%s4135] sm:$0x1]
    %v4138 = vlaneseq
    %v4139 = vshrl.u32 %v4138, 7
    %v4140 = vsub.s32 0, %v4139
    %v4141 = vrot.slane %v4136, %v4140
    %v4143 = vadd.f32 %v4131, %v4141
    %v4144 = vadd.f32 %v4132, %v4141
    %v4145 = vadd.f32 %v4133, %v4141
    %v4146 = vadd.f32 %v4134, %v4141
    %v4147 = vmax.f32 %v4143, 0.0
    %v4148 = vmax.f32 %v4144, 0.0
    %v4149 = vmax.f32 %v4145, 0.0
    %v4150 = vmax.f32 %v4146, 0.0
    %v4151 = vpack.c.bf16 %v4148, %v4147
    %v4152 = vpack.c.bf16 %v4150, %v4149
    %s4153 = scalar_lea.vmem [#allocation20], 192
    %v4154 = vld [vmem:[%s4153] sm:$0xf]
    %v4155 = vld [vmem:[%s4153 + $0x4] sm:$0xf]
    %v4156 = vld [vmem:[%s4153 + $0x8] sm:$0xf]
    %v4157 = vld [vmem:[%s4153 + $0xc] sm:$0xf]
    %v4158 = vld [vmem:[%s4153 + $0x10] sm:$0xf]
    %v4159 = vld [vmem:[%s4153 + $0x14] sm:$0xf]
    %v4160 = vld [vmem:[%s4153 + $0x18] sm:$0xf]
    %v4161 = vld [vmem:[%s4153 + $0x1c] sm:$0xf]
    %v4162 = vld [vmem:[%s4153 + $0x20] sm:$0xf]
    %v4163 = vld [vmem:[%s4153 + $0x24] sm:$0xf]
    %v4164 = vld [vmem:[%s4153 + $0x28] sm:$0xf]
    %v4165 = vld [vmem:[%s4153 + $0x2c] sm:$0xf]
    %v4166 = vld [vmem:[%s4153 + $0x30] sm:$0xf]
    %v4167 = vld [vmem:[%s4153 + $0x34] sm:$0xf]
    %v4168 = vld [vmem:[%s4153 + $0x38] sm:$0xf]
    %v4169 = vld [vmem:[%s4153 + $0x3c] sm:$0xf]
    %v4186 = vunpack.c.l.b16 %v4154
    %v4187 = vunpack.c.l.b16 %v4155
    %v4188 = vunpack.c.l.b16 %v4156
    %v4189 = vunpack.c.l.b16 %v4157
    %v4190 = vunpack.c.l.b16 %v4158
    %v4191 = vunpack.c.l.b16 %v4159
    %v4192 = vunpack.c.l.b16 %v4160
    %v4193 = vunpack.c.l.b16 %v4161
    %v4194 = vunpack.c.l.b16 %v4162
    %v4195 = vunpack.c.l.b16 %v4163
    %v4196 = vunpack.c.l.b16 %v4164
    %v4197 = vunpack.c.l.b16 %v4165
    %v4198 = vunpack.c.l.b16 %v4166
    %v4199 = vunpack.c.l.b16 %v4167
    %v4200 = vunpack.c.l.b16 %v4168
    %v4201 = vunpack.c.l.b16 %v4169
    %v4202 = vpack.c.b16 %v4187, %v4186
    %v4203 = vpack.c.b16 %v4189, %v4188
    %v4204 = vpack.c.b16 %v4191, %v4190
    %v4205 = vpack.c.b16 %v4193, %v4192
    %v4206 = vpack.c.b16 %v4195, %v4194
    %v4207 = vpack.c.b16 %v4197, %v4196
    %v4208 = vpack.c.b16 %v4199, %v4198
    %v4209 = vpack.c.b16 %v4201, %v4200
    %4218 = vmatprep.subr.bf16.mxu0 0
    %4219 = vmatpush1.bf16.msra.mxu0 %v4209
    %4220 = vmatprep.subr.bf16.mxu0 0
    %4221 = vmatpush1.bf16.msra.mxu0 %v4208
    %4222 = vmatprep.subr.bf16.mxu0 0
    %4223 = vmatpush1.bf16.msra.mxu0 %v4207
    %4224 = vmatprep.subr.bf16.mxu0 0
    %4225 = vmatpush1.bf16.msra.mxu0 %v4206
    %4226 = vmatprep.subr.bf16.mxu0 0
    %4227 = vmatpush1.bf16.msra.mxu0 %v4205
    %4228 = vmatprep.subr.bf16.mxu0 0
    %4229 = vmatpush1.bf16.msra.mxu0 %v4204
    %4230 = vmatprep.subr.bf16.mxu0 0
    %4231 = vmatpush1.bf16.msra.mxu0 %v4203
    %4232 = vmatprep.subr.bf16.mxu0 0
    %4233 = vmatpush1.bf16.msra.mxu0 %v4202
    %4234 = vmatprep.subr.bf16.mxu0 0
    %4235 = vmatpush2.bf16.msra.mxu0 0
    %4236 = vmatprep.subr.bf16.mxu0 0
    %4237 = vmatpush2.bf16.msra.mxu0 0
    %4238 = vmatprep.subr.bf16.mxu0 0
    %4239 = vmatpush2.bf16.msra.mxu0 0
    %4240 = vmatprep.subr.bf16.mxu0 0
    %4241 = vmatpush2.bf16.msra.mxu0 0
    %4242 = vmatprep.subr.bf16.mxu0 0
    %4243 = vmatpush2.bf16.msra.mxu0 0
    %4244 = vmatprep.subr.bf16.mxu0 0
    %4245 = vmatpush2.bf16.msra.mxu0 0
    %4246 = vmatprep.subr.bf16.mxu0 0
    %4247 = vmatpush2.bf16.msra.mxu0 0
    %4248 = vmatprep.subr.bf16.mxu0 0
    %4249 = vmatpush2.bf16.msra.mxu0 0
    %4250 = vmatprep.mubr.bf16.mxu0 0
    %4251 = vmatmul.mubr.bf16.gmra.mxu0 %v4151
    %v4252 = vpop.f32.mrf.mxu0
    %v4253 = vadd.f32 0.0, %v4252
    %v4254 = vpop.f32.mrf.mxu0
    %v4255 = vpop.f32.mrf.mxu0
    %v4256 = vadd.f32 0.0, %v4255
    %v4257 = vpop.f32.mrf.mxu0
    %4258 = vmatprep.mubr.bf16.mxu0 0
    %4259 = vmatmul.mubr.bf16.gmra.mxu0 %v4152
    %v4260 = vpop.f32.mrf.mxu0
    %v4261 = vadd.f32 0.0, %v4260
    %v4262 = vpop.f32.mrf.mxu0
    %v4263 = vpop.f32.mrf.mxu0
    %v4264 = vadd.f32 0.0, %v4263
    %v4265 = vpop.f32.mrf.mxu0
    %4266 = vdwg.mxu0
    %v4267 = vadd.f32 %v4123, %v4253
    %v4268 = vadd.f32 %v4124, %v4256
    %v4269 = vadd.f32 %v4125, %v4261
    %v4270 = vadd.f32 %v4126, %v4264
    %v4271 = vadd.f32 %v3636, %v3639
    %v4272 = vrot.slane %v4271, 4
    %v4273 = vadd.f32 %v4271, %v4272
    %v4274 = vrot.slane %v4273, 2
    %v4275 = vadd.f32 %v4273, %v4274
    %v4276 = vrot.slane %v4275, 1
    %v4277 = vadd.f32 %v4275, %v4276
    %v4278 = vadd.f32 %v3644, %v3647
    %v4279 = vrot.slane %v4278, 4
    %v4280 = vadd.f32 %v4278, %v4279
    %v4281 = vrot.slane %v4280, 2
    %v4282 = vadd.f32 %v4280, %v4281
    %v4283 = vrot.slane %v4282, 1
    %v4284 = vadd.f32 %v4282, %v4283
    %v4285 = vmul.f32 %v4277, %v1480
    %v4286 = vmul.f32 %v4284, %v1480
    %v4287 = vld [vmem:[%s65] sm:$0x1]
    %v4289 = vlaneseq
    %v4290 = vshrl.u32 %v4289, 7
    %v4291 = vsub.s32 0, %v4290
    %v4292 = vrot.slane %v4287, %v4291
    %v4294 = vadd.f32 %v4285, %v4292
    %v4295 = vadd.f32 %v4286, %v4292
    %v4296 = vmax.f32 %v4294, 0.0
    %v4297 = vmax.f32 %v4295, 0.0
    %v4298 = vpack.c.bf16 %v4296, %v4296
    %v4299 = vpack.c.bf16 %v4297, %v4297
    %s4300 = scalar_lea.vmem [#allocation20], 256
    %v4301 = vld [vmem:[%s4300] sm:$0xf]
    %v4302 = vld [vmem:[%s4300 + $0x4] sm:$0xf]
    %v4303 = vld [vmem:[%s4300 + $0x8] sm:$0xf]
    %v4304 = vld [vmem:[%s4300 + $0xc] sm:$0xf]
    %v4305 = vld [vmem:[%s4300 + $0x10] sm:$0xf]
    %v4306 = vld [vmem:[%s4300 + $0x14] sm:$0xf]
    %v4307 = vld [vmem:[%s4300 + $0x18] sm:$0xf]
    %v4308 = vld [vmem:[%s4300 + $0x1c] sm:$0xf]
    %v4309 = vld [vmem:[%s4300 + $0x20] sm:$0xf]
    %v4310 = vld [vmem:[%s4300 + $0x24] sm:$0xf]
    %v4311 = vld [vmem:[%s4300 + $0x28] sm:$0xf]
    %v4312 = vld [vmem:[%s4300 + $0x2c] sm:$0xf]
    %v4313 = vld [vmem:[%s4300 + $0x30] sm:$0xf]
    %v4314 = vld [vmem:[%s4300 + $0x34] sm:$0xf]
    %v4315 = vld [vmem:[%s4300 + $0x38] sm:$0xf]
    %v4316 = vld [vmem:[%s4300 + $0x3c] sm:$0xf]
    %v4319 = vunpack.c.l.b16 %v4298
    %v4320 = vunpack.c.l.b16 %v4299
    %v4321 = vrot.slane %v4320, 7
    %vm4322 = vcmask 1041409
    %v4323 = vsel %vm4322, %v4321, %v4319
    %v4324 = vpack.c.b16 %v4323, %v4323
    %v4342 = vunpack.c.l.b16 %v4301
    %v4343 = vunpack.c.l.b16 %v4302
    %v4344 = vunpack.c.l.b16 %v4303
    %v4345 = vunpack.c.l.b16 %v4304
    %v4346 = vunpack.c.l.b16 %v4305
    %v4347 = vunpack.c.l.b16 %v4306
    %v4348 = vunpack.c.l.b16 %v4307
    %v4349 = vunpack.c.l.b16 %v4308
    %v4350 = vunpack.c.l.b16 %v4309
    %v4351 = vunpack.c.l.b16 %v4310
    %v4352 = vunpack.c.l.b16 %v4311
    %v4353 = vunpack.c.l.b16 %v4312
    %v4354 = vunpack.c.l.b16 %v4313
    %v4355 = vunpack.c.l.b16 %v4314
    %v4356 = vunpack.c.l.b16 %v4315
    %v4357 = vunpack.c.l.b16 %v4316
    %v4358 = vpack.c.b16 %v4343, %v4342
    %v4359 = vpack.c.b16 %v4345, %v4344
    %v4360 = vpack.c.b16 %v4347, %v4346
    %v4361 = vpack.c.b16 %v4349, %v4348
    %v4362 = vpack.c.b16 %v4351, %v4350
    %v4363 = vpack.c.b16 %v4353, %v4352
    %v4364 = vpack.c.b16 %v4355, %v4354
    %v4365 = vpack.c.b16 %v4357, %v4356
    %4374 = vmatprep.subr.bf16.mxu0 0
    %4375 = vmatpush1.bf16.msra.mxu0 %v4365
    %4376 = vmatprep.subr.bf16.mxu0 0
    %4377 = vmatpush1.bf16.msra.mxu0 %v4364
    %4378 = vmatprep.subr.bf16.mxu0 0
    %4379 = vmatpush1.bf16.msra.mxu0 %v4363
    %4380 = vmatprep.subr.bf16.mxu0 0
    %4381 = vmatpush1.bf16.msra.mxu0 %v4362
    %4382 = vmatprep.subr.bf16.mxu0 0
    %4383 = vmatpush1.bf16.msra.mxu0 %v4361
    %4384 = vmatprep.subr.bf16.mxu0 0
    %4385 = vmatpush1.bf16.msra.mxu0 %v4360
    %4386 = vmatprep.subr.bf16.mxu0 0
    %4387 = vmatpush1.bf16.msra.mxu0 %v4359
    %4388 = vmatprep.subr.bf16.mxu0 0
    %4389 = vmatpush1.bf16.msra.mxu0 %v4358
    %4390 = vmatprep.subr.bf16.mxu0 0
    %4391 = vmatpush2.bf16.msra.mxu0 0
    %4392 = vmatprep.subr.bf16.mxu0 0
    %4393 = vmatpush2.bf16.msra.mxu0 0
    %4394 = vmatprep.subr.bf16.mxu0 0
    %4395 = vmatpush2.bf16.msra.mxu0 0
    %4396 = vmatprep.subr.bf16.mxu0 0
    %4397 = vmatpush2.bf16.msra.mxu0 0
    %4398 = vmatprep.subr.bf16.mxu0 0
    %4399 = vmatpush2.bf16.msra.mxu0 0
    %4400 = vmatprep.subr.bf16.mxu0 0
    %4401 = vmatpush2.bf16.msra.mxu0 0
    %4402 = vmatprep.subr.bf16.mxu0 0
    %4403 = vmatpush2.bf16.msra.mxu0 0
    %4404 = vmatprep.subr.bf16.mxu0 0
    %4405 = vmatpush2.bf16.msra.mxu0 0
    %4406 = vmatprep.mubr.bf16.mxu0 0
    %4407 = vmatmul.mubr.bf16.gmra.mxu0 %v4324
    %v4408 = vpop.f32.mrf.mxu0
    %v4409 = vadd.f32 0.0, %v4408
    %v4410 = vpop.f32.mrf.mxu0
    %v4411 = vpop.f32.mrf.mxu0
    %v4412 = vpop.f32.mrf.mxu0
    %4413 = vdwg.mxu0
    %v4416 = vunpack.c.l.s4 1966171168
    %v4417 = vunpack.c.0.s8 %v4416
    %v4418 = vlaneseq
    %v4419 = vshrl.u32 %v4418, 7
    %v4420 = vsub.s32 %v4417, %v4419
    %v4421 = vrot.slane %v4409, %v4420
    %v4422 = vcombine.high %v4421, %v4421
    %v4424 = vunpack.c.l.s4 1966171168
    %v4425 = vunpack.c.0.s8 %v4424
    %v4426 = vlaneseq
    %v4427 = vshrl.u32 %v4426, 7
    %v4428 = vsub.s32 %v4425, %v4427
    %v4429 = vrot.slane %v4421, %v4428
    %v4431 = vunpack.c.l.s4 1966171168
    %v4432 = vunpack.c.0.s8 %v4431
    %v4433 = vlaneseq
    %v4434 = vshrl.u32 %v4433, 7
    %v4435 = vsub.s32 %v4432, %v4434
    %v4436 = vrot.slane %v4422, %v4435
    %v4437 = vlaneseq
    %v4438 = vshrl.u32 %v4437, 7
    %v4439 = vsub.s32 0, %v4438
    %v4440 = vrot.slane %v4429, %v4439
    %v4441 = vlaneseq
    %v4442 = vshrl.u32 %v4441, 7
    %v4443 = vsub.s32 0, %v4442
    %v4444 = vrot.slane %v4436, %v4443
    %v4447 = vadd.f32 %v4267, %v4440
    %v4448 = vadd.f32 %v4268, %v4440
    %v4449 = vadd.f32 %v4269, %v4444
    %v4450 = vadd.f32 %v4270, %v4444
    %v4451 = vld [vmem:[%s69] sm:$0x1]
    %v4453 = vlaneseq
    %v4454 = vshrl.u32 %v4453, 7
    %v4455 = vsub.s32 0, %v4454
    %v4456 = vrot.slane %v4451, %v4455
    %v4458 = vadd.f32 %v4447, %v4456
    %v4459 = vadd.f32 %v4448, %v4456
    %v4460 = vadd.f32 %v4449, %v4456
    %v4461 = vadd.f32 %v4450, %v4456
    %v4462 = vmax.f32 %v4458, 0.0
    %v4463 = vmax.f32 %v4459, 0.0
    %v4464 = vmax.f32 %v4460, 0.0
    %v4465 = vmax.f32 %v4461, 0.0
    %v4466 = vadd.f32 %v2794, %v4462
    %v4467 = vadd.f32 %v2795, %v4463
    %v4468 = vadd.f32 %v2796, %v4464
    %v4469 = vadd.f32 %v2797, %v4465
    %4470 = vst [vmem:[#allocation22] sm:$0xff] %v4466
    %4471 = vst [vmem:[#allocation22 + $0x8] sm:$0xff] %v4467
    %4472 = vst [vmem:[#allocation22 + $0x10] sm:$0xff] %v4468
    %4473 = vst [vmem:[#allocation22 + $0x18] sm:$0xff] %v4469
    // Predicated region
    $region190: #{tpu_custom_call.1} parent=1 // pred_check
      _
    $region191: #{tpu_custom_call.1} parent=1 // pred_check_branch
      %4475 = sbr.rel (0) target = $region193
    $region192: #{tpu_custom_call.1} parent=1 // pred_region
      %s4477 = ssub.s32 512, 512
      %4478 = vsyncadd [#allocation4], %s4477
      %s4479 = sshll.u32 [#allocation22], 4
      %s4480 = int_to_ptr.vmem [resolvable:$true] %s4479
      %4485 = dma.vmem_to_hbm [thread:$0]  %s4480, 512, %s71, [#allocation4], 128, 128, 8
    $region193: #{tpu_custom_call.1} parent=1 // pred_fallthru
      _
    // Predicated region
    $region194: #{tpu_custom_call.1} parent=1 // pred_check
      _
    $region195: #{tpu_custom_call.1} parent=1 // pred_check_branch
      %4487 = sbr.rel (0) target = $region197
    $region196: #{tpu_custom_call.1} parent=1 // pred_region
      %4488 = dma.done [#allocation4], 512
    $region197: #{tpu_custom_call.1} parent=1 // pred_fallthru
      _
    %4489 = vsyncpa [#allocation3], 1
    %4490 = vsyncpa [#allocation6], 1
    %4491 = vsyncpa [#allocation9], 1
    %4492 = vsyncpa [#allocation12], 1
    %4493 = vsyncpa [#allocation15], 1
    %4494 = vsyncpa [#allocation18], 1
    %4495 = vsyncpa [#allocation21], 1
    %4496 = vsyncpa [#allocation4], 1

// kernel: tpu_custom_call.1
$region0: #{tpu_custom_call.1}
  #allocation0 [shape = 'u32[]', space=smem, size = 0x4, offset = 0x4, fixed_abs, tag = 'smem constant byte address 0x4 - core index']
  #allocation1 [shape = 'u32[144,128]{1,0:T(1,128)}', space=vmem, size = 0x12000, scoped, tag = 'internal scratch']
  %s0 = inlined_call_operand.smem [shape: u32[36], index: -1, kind: input, shape index: {}]
  %s1 = sld [smem:[%s0]]
  %s2 = scalar_lea.smem %s0, 1
  %s3 = sld [smem:[%s2]]
  %s4 = scalar_lea.smem %s0, 2
  %s5 = sld [smem:[%s4]]
  %s6 = scalar_lea.smem %s0, 3
  %s7 = sld [smem:[%s6]]
  %s8 = scalar_lea.smem %s0, 4
  %s9 = sld [smem:[%s8]]
  %s10 = scalar_lea.smem %s0, 5
  %s11 = sld [smem:[%s10]]
  %s12 = scalar_lea.smem %s0, 6
  %s13 = sld [smem:[%s12]]
  %s14 = scalar_lea.smem %s0, 7
  %s15 = sld [smem:[%s14]]
  %s16 = scalar_lea.smem %s0, 8
  %s17 = sld [smem:[%s16]]
  %s18 = scalar_lea.smem %s0, 9
  %s19 = sld [smem:[%s18]]
  %s20 = scalar_lea.smem %s0, 10
  %s21 = sld [smem:[%s20]]
  %s22 = scalar_lea.smem %s0, 11
  %s23 = sld [smem:[%s22]]
  %s24 = scalar_lea.smem %s0, 12
  %s25 = sld [smem:[%s24]]
  %s26 = scalar_lea.smem %s0, 13
  %s27 = sld [smem:[%s26]]
  %s28 = scalar_lea.smem %s0, 14
  %s29 = sld [smem:[%s28]]
  %s30 = scalar_lea.smem %s0, 15
  %s31 = sld [smem:[%s30]]
  %s32 = scalar_lea.smem %s0, 16
  %s33 = sld [smem:[%s32]]
  %s34 = scalar_lea.smem %s0, 17
  %s35 = sld [smem:[%s34]]
  %s36 = scalar_lea.smem %s0, 18
  %s37 = sld [smem:[%s36]]
  %s38 = scalar_lea.smem %s0, 19
  %s39 = sld [smem:[%s38]]
  %s40 = scalar_lea.smem %s0, 20
  %s41 = sld [smem:[%s40]]
  %s42 = scalar_lea.smem %s0, 21
  %s43 = sld [smem:[%s42]]
  %s44 = scalar_lea.smem %s0, 22
  %s45 = sld [smem:[%s44]]
  %s46 = scalar_lea.smem %s0, 23
  %s47 = sld [smem:[%s46]]
  %s48 = scalar_lea.smem %s0, 24
  %s49 = sld [smem:[%s48]]
  %s50 = scalar_lea.smem %s0, 25
  %s51 = sld [smem:[%s50]]
  %s52 = scalar_lea.smem %s0, 26
  %s53 = sld [smem:[%s52]]
  %s54 = scalar_lea.smem %s0, 27
  %s55 = sld [smem:[%s54]]
  %s56 = scalar_lea.smem %s0, 28
  %s57 = sld [smem:[%s56]]
  %s58 = scalar_lea.smem %s0, 29
  %s59 = sld [smem:[%s58]]
  %s60 = scalar_lea.smem %s0, 30
  %s61 = sld [smem:[%s60]]
  %s62 = scalar_lea.smem %s0, 31
  %s63 = sld [smem:[%s62]]
  %s64 = scalar_lea.smem %s0, 32
  %s65 = sld [smem:[%s64]]
  %s66 = scalar_lea.smem %s0, 33
  %s67 = sld [smem:[%s66]]
  %s68 = scalar_lea.smem %s0, 34
  %s69 = sld [smem:[%s68]]
  %s70 = scalar_lea.smem %s0, 35
  %s71 = sld [smem:[%s70]]
  %s72 = sld [smem:[#allocation0]]
  $region198: #{tpu_custom_call.1} parent=0
    _
  %s74 = ssub.s32 1, %s72
  %s75 = scalar_select 0, %s74, %s72
  $region1: #{tpu_custom_call.1} parent=0
    #allocation2 [shape = 'u8[4096]{0}', space=vmem, size = 0x1000, scoped, tag = 'input window, operand 1, single buffered']
    #allocation3 [shape = 's32[1]{0}', space=sflag, size = 0x4, scoped, tag = 'scoped memory for tpu_custom_call.1']
    #allocation4 [shape = 's32[1]{0}', space=sflag, size = 0x4, scoped, tag = 'scoped memory for tpu_custom_call.1']
    #allocation5 [shape = 'u8[16384]{0}', space=vmem, size = 0x4000, scoped, tag = 'input window, operand 2, single buffered']
    #allocation6 [shape = 's32[1]{0}', space=sflag, size = 0x4, scoped, tag = 'scoped memory for tpu_custom_call.1']
    #allocation7 [shape = 'u8[512]{0}', space=vmem, size = 0x400, scoped, tag = 'input window, operand 5, single buffered']
    #allocation8 [shape = 'u8[512]{0}', space=vmem, size = 0x400, scoped, tag = 'input window, operand 6, single buffered']
    #allocation9 [shape = 's32[1]{0}', space=sflag, size = 0x4, scoped, tag = 'scoped memory for tpu_custom_call.1']
    #allocation10 [shape = 'u8[512]{0}', space=vmem, size = 0x400, scoped, tag = 'input window, operand 7, single buffered']
    #allocation11 [shape = 'u8[12288]{0}', space=vmem, size = 0x3000, scoped, tag = 'input window, operand 14, single buffered']
    #allocation12 [shape = 's32[1]{0}', space=sflag, size = 0x4, scoped, tag = 'scoped memory for tpu_custom_call.1']
    #allocation13 [shape = 'u8[32768]{0}', space=vmem, size = 0x8000, scoped, tag = 'input window, operand 15, single buffered']
    #allocation14 [shape = 'u8[32768]{0}', space=vmem, size = 0x8000, scoped, tag = 'input window, operand 17, single buffered']
    #allocation15 [shape = 's32[1]{0}', space=sflag, size = 0x4, scoped, tag = 'scoped memory for tpu_custom_call.1']
    #allocation16 [shape = 'u8[131072]{0}', space=vmem, size = 0x20000, scoped, tag = 'input window, operand 21, single buffered']
    #allocation17 [shape = 'u8[131072]{0}', space=vmem, size = 0x20000, scoped, tag = 'input window, operand 23, single buffered']
    #allocation18 [shape = 's32[1]{0}', space=sflag, size = 0x4, scoped, tag = 'scoped memory for tpu_custom_call.1']
    #allocation19 [shape = 'u8[360448]{0}', space=vmem, size = 0x58000, scoped, tag = 'input window, operand 29, single buffered']
    #allocation20 [shape = 'u8[163840]{0}', space=vmem, size = 0x28000, scoped, tag = 'input window, operand 33, single buffered']
    #allocation21 [shape = 's32[1]{0}', space=sflag, size = 0x4, scoped, tag = 'scoped memory for tpu_custom_call.1']
    #allocation22 [shape = 'u8[16384]{0}', space=vmem, size = 0x4000, scoped, tag = 'output window, operand 0, single buffered']
    %76 = vsyncpa [#allocation3], 0
    %77 = vsyncpa [#allocation6], 0
    %78 = vsyncpa [#allocation9], 0
    %79 = vsyncpa [#allocation12], 0
    %80 = vsyncpa [#allocation15], 0
    %81 = vsyncpa [#allocation18], 0
    %82 = vsyncpa [#allocation21], 0
    %83 = vsyncpa [#allocation4], 0
    // Predicated region
    $region2: #{tpu_custom_call.1} parent=1 // pred_check
      _
    $region3: #{tpu_custom_call.1} parent=1 // pred_check_branch
      %85 = sbr.rel (0) target = $region5
    $region4: #{tpu_custom_call.1} parent=1 // pred_region
      _
    $region5: #{tpu_custom_call.1} parent=1 // pred_fallthru
      _
    // Predicated region
    $region6: #{tpu_custom_call.1} parent=1 // pred_check
      _
    $region7: #{tpu_custom_call.1} parent=1 // pred_check_branch
      %87 = sbr.rel (0) target = $region9
    $region8: #{tpu_custom_call.1} parent=1 // pred_region
      %s89 = ssub.s32 128, 128
      %90 = vsyncadd [#allocation3], %s89
      %s91 = sshll.u32 [#allocation2], 4
      %s92 = int_to_ptr.vmem [resolvable:$true] %s91
      %97 = dma.hbm_to_vmem [thread:$0]  %s3, 128, %s92, [#allocation3], 64, 64, 4
    $region9: #{tpu_custom_call.1} parent=1 // pred_fallthru
      _
    // Predicated region
    $region10: #{tpu_custom_call.1} parent=1 // pred_check
      _
    $region11: #{tpu_custom_call.1} parent=1 // pred_check_branch
      %99 = sbr.rel (0) target = $region13
    $region12: #{tpu_custom_call.1} parent=1 // pred_region
      %s101 = ssub.s32 512, 512
      %102 = vsyncadd [#allocation6], %s101
      %s103 = sshll.u32 [#allocation5], 4
      %s104 = int_to_ptr.vmem [resolvable:$true] %s103
      %109 = dma.hbm_to_vmem [thread:$0]  %s5, 512, %s104, [#allocation6], 128, 128, 8
    $region13: #{tpu_custom_call.1} parent=1 // pred_fallthru
      _
    // Predicated region
    $region14: #{tpu_custom_call.1} parent=1 // pred_check
      _
    $region15: #{tpu_custom_call.1} parent=1 // pred_check_branch
      %111 = sbr.rel (0) target = $region17
    $region16: #{tpu_custom_call.1} parent=1 // pred_region
      _
    $region17: #{tpu_custom_call.1} parent=1 // pred_fallthru
      _
    // Predicated region
    $region18: #{tpu_custom_call.1} parent=1 // pred_check
      _
    $region19: #{tpu_custom_call.1} parent=1 // pred_check_branch
      %113 = sbr.rel (0) target = $region21
    $region20: #{tpu_custom_call.1} parent=1 // pred_region
      _
    $region21: #{tpu_custom_call.1} parent=1 // pred_fallthru
      _
    // Predicated region
    $region22: #{tpu_custom_call.1} parent=1 // pred_check
      _
    $region23: #{tpu_custom_call.1} parent=1 // pred_check_branch
      %115 = sbr.rel (0) target = $region25
    $region24: #{tpu_custom_call.1} parent=1 // pred_region
      %s117 = ssub.s32 16, 16
      %118 = vsyncadd [#allocation6], %s117
      %s120 = sshll.u32 [#allocation7], 4
      %s121 = int_to_ptr.vmem [resolvable:$true] %s120
      %123 = dma.hbm_to_vmem [thread:$0]  %s11, 16, %s121, [#allocation6]
    $region25: #{tpu_custom_call.1} parent=1 // pred_fallthru
      _
    // Predicated region
    $region26: #{tpu_custom_call.1} parent=1 // pred_check
      _
    $region27: #{tpu_custom_call.1} parent=1 // pred_check_branch
      %125 = sbr.rel (0) target = $region29
    $region28: #{tpu_custom_call.1} parent=1 // pred_region
      %s127 = ssub.s32 16, 16
      %128 = vsyncadd [#allocation9], %s127
      %s130 = sshll.u32 [#allocation8], 4
      %s131 = int_to_ptr.vmem [resolvable:$true] %s130
      %133 = dma.hbm_to_vmem [thread:$0]  %s13, 16, %s131, [#allocation9]
    $region29: #{tpu_custom_call.1} parent=1 // pred_fallthru
      _
    // Predicated region
    $region30: #{tpu_custom_call.1} parent=1 // pred_check
      _
    $region31: #{tpu_custom_call.1} parent=1 // pred_check_branch
      %135 = sbr.rel (0) target = $region33
    $region32: #{tpu_custom_call.1} parent=1 // pred_region
      %s137 = ssub.s32 16, 16
      %138 = vsyncadd [#allocation9], %s137
      %s140 = sshll.u32 [#allocation10], 4
      %s141 = int_to_ptr.vmem [resolvable:$true] %s140
      %143 = dma.hbm_to_vmem [thread:$0]  %s15, 16, %s141, [#allocation9]
    $region33: #{tpu_custom_call.1} parent=1 // pred_fallthru
      _
    // Predicated region
    $region34: #{tpu_custom_call.1} parent=1 // pred_check
      _
    $region35: #{tpu_custom_call.1} parent=1 // pred_check_branch
      %145 = sbr.rel (0) target = $region37
    $region36: #{tpu_custom_call.1} parent=1 // pred_region
      _
    $region37: #{tpu_custom_call.1} parent=1 // pred_fallthru
      _
    // Predicated region
    $region38: #{tpu_custom_call.1} parent=1 // pred_check
      _
    $region39: #{tpu_custom_call.1} parent=1 // pred_check_branch
      %147 = sbr.rel (0) target = $region41
    $region40: #{tpu_custom_call.1} parent=1 // pred_region
      _
    $region41: #{tpu_custom_call.1} parent=1 // pred_fallthru
      _
    // Predicated region
    $region42: #{tpu_custom_call.1} parent=1 // pred_check
      _
    $region43: #{tpu_custom_call.1} parent=1 // pred_check_branch
      %149 = sbr.rel (0) target = $region45
    $region44: #{tpu_custom_call.1} parent=1 // pred_region
      _
    $region45: #{tpu_custom_call.1} parent=1 // pred_fallthru
      _
    // Predicated region
    $region46: #{tpu_custom_call.1} parent=1 // pred_check
      _
    $region47: #{tpu_custom_call.1} parent=1 // pred_check_branch
      %151 = sbr.rel (0) target = $region49
    $region48: #{tpu_custom_call.1} parent=1 // pred_region
      _
    $region49: #{tpu_custom_call.1} parent=1 // pred_fallthru
      _
    // Predicated region
    $region50: #{tpu_custom_call.1} parent=1 // pred_check
      _
    $region51: #{tpu_custom_call.1} parent=1 // pred_check_branch
      %153 = sbr.rel (0) target = $region53
    $region52: #{tpu_custom_call.1} parent=1 // pred_region
      _
    $region53: #{tpu_custom_call.1} parent=1 // pred_fallthru
      _
    // Predicated region
    $region54: #{tpu_custom_call.1} parent=1 // pred_check
      _
    $region55: #{tpu_custom_call.1} parent=1 // pred_check_branch
      %155 = sbr.rel (0) target = $region57
    $region56: #{tpu_custom_call.1} parent=1 // pred_region
      _
    $region57: #{tpu_custom_call.1} parent=1 // pred_fallthru
      _
    // Predicated region
    $region58: #{tpu_custom_call.1} parent=1 // pred_check
      _
    $region59: #{tpu_custom_call.1} parent=1 // pred_check_branch
      %157 = sbr.rel (0) target = $region61
    $region60: #{tpu_custom_call.1} parent=1 // pred_region
      %s159 = ssub.s32 384, 384
      %160 = vsyncadd [#allocation12], %s159
      %s161 = sshll.u32 [#allocation11], 4
      %s162 = int_to_ptr.vmem [resolvable:$true] %s161
      %167 = dma.hbm_to_vmem [thread:$0]  %s29, 384, %s162, [#allocation12], 128, 128, 8
    $region61: #{tpu_custom_call.1} parent=1 // pred_fallthru
      _
    // Predicated region
    $region62: #{tpu_custom_call.1} parent=1 // pred_check
      _
    $region63: #{tpu_custom_call.1} parent=1 // pred_check_branch
      %169 = sbr.rel (0) target = $region65
    $region64: #{tpu_custom_call.1} parent=1 // pred_region
      %s171 = ssub.s32 1024, 1024
      %172 = vsyncadd [#allocation12], %s171
      %s173 = sshll.u32 [#allocation13], 4
      %s174 = int_to_ptr.vmem [resolvable:$true] %s173
      %179 = dma.hbm_to_vmem [thread:$0]  %s31, 1024, %s174, [#allocation12], 64, 64, 4
    $region65: #{tpu_custom_call.1} parent=1 // pred_fallthru
      _
    // Predicated region
    $region66: #{tpu_custom_call.1} parent=1 // pred_check
      _
    $region67: #{tpu_custom_call.1} parent=1 // pred_check_branch
      %181 = sbr.rel (0) target = $region69
    $region68: #{tpu_custom_call.1} parent=1 // pred_region
      _
    $region69: #{tpu_custom_call.1} parent=1 // pred_fallthru
      _
    // Predicated region
    $region70: #{tpu_custom_call.1} parent=1 // pred_check
      _
    $region71: #{tpu_custom_call.1} parent=1 // pred_check_branch
      %183 = sbr.rel (0) target = $region73
    $region72: #{tpu_custom_call.1} parent=1 // pred_region
      %s185 = ssub.s32 1024, 1024
      %186 = vsyncadd [#allocation15], %s185
      %s187 = sshll.u32 [#allocation14], 4
      %s188 = int_to_ptr.vmem [resolvable:$true] %s187
      %193 = dma.hbm_to_vmem [thread:$0]  %s35, 1024, %s188, [#allocation15], 64, 64, 4
    $region73: #{tpu_custom_call.1} parent=1 // pred_fallthru
      _
    // Predicated region
    $region74: #{tpu_custom_call.1} parent=1 // pred_check
      _
    $region75: #{tpu_custom_call.1} parent=1 // pred_check_branch
      %195 = sbr.rel (0) target = $region77
    $region76: #{tpu_custom_call.1} parent=1 // pred_region
      _
    $region77: #{tpu_custom_call.1} parent=1 // pred_fallthru
      _
    // Predicated region
    $region78: #{tpu_custom_call.1} parent=1 // pred_check
      _
    $region79: #{tpu_custom_call.1} parent=1 // pred_check_branch
      %197 = sbr.rel (0) target = $region81
    $region80: #{tpu_custom_call.1} parent=1 // pred_region
      _
    $region81: #{tpu_custom_call.1} parent=1 // pred_fallthru
      _
    // Predicated region
    $region82: #{tpu_custom_call.1} parent=1 // pred_check
      _
    $region83: #{tpu_custom_call.1} parent=1 // pred_check_branch
      %199 = sbr.rel (0) target = $region85
    $region84: #{tpu_custom_call.1} parent=1 // pred_region
      _
    $region85: #{tpu_custom_call.1} parent=1 // pred_fallthru
      _
    // Predicated region
    $region86: #{tpu_custom_call.1} parent=1 // pred_check
      _
    $region87: #{tpu_custom_call.1} parent=1 // pred_check_branch
      %201 = sbr.rel (0) target = $region89
    $region88: #{tpu_custom_call.1} parent=1 // pred_region
      %s203 = ssub.s32 4096, 4096
      %204 = vsyncadd [#allocation15], %s203
      %s205 = sshll.u32 [#allocation16], 4
      %s206 = int_to_ptr.vmem [resolvable:$true] %s205
      %211 = dma.hbm_to_vmem [thread:$0]  %s43, 4096, %s206, [#allocation15], 256, 256, 16
    $region89: #{tpu_custom_call.1} parent=1 // pred_fallthru
      _
    // Predicated region
    $region90: #{tpu_custom_call.1} parent=1 // pred_check
      _
    $region91: #{tpu_custom_call.1} parent=1 // pred_check_branch
      %213 = sbr.rel (0) target = $region93
    $region92: #{tpu_custom_call.1} parent=1 // pred_region
      _
    $region93: #{tpu_custom_call.1} parent=1 // pred_fallthru
      _
    // Predicated region
    $region94: #{tpu_custom_call.1} parent=1 // pred_check
      _
    $region95: #{tpu_custom_call.1} parent=1 // pred_check_branch
      %215 = sbr.rel (0) target = $region97
    $region96: #{tpu_custom_call.1} parent=1 // pred_region
      %s217 = ssub.s32 4096, 4096
      %218 = vsyncadd [#allocation18], %s217
      %s219 = sshll.u32 [#allocation17], 4
      %s220 = int_to_ptr.vmem [resolvable:$true] %s219
      %225 = dma.hbm_to_vmem [thread:$0]  %s47, 4096, %s220, [#allocation18], 64, 64, 4
    $region97: #{tpu_custom_call.1} parent=1 // pred_fallthru
      _
    // Predicated region
    $region98: #{tpu_custom_call.1} parent=1 // pred_check
      _
    $region99: #{tpu_custom_call.1} parent=1 // pred_check_branch
      %227 = sbr.rel (0) target = $region101
    $region100: #{tpu_custom_call.1} parent=1 // pred_region
      _
    $region101: #{tpu_custom_call.1} parent=1 // pred_fallthru
      _
    // Predicated region
    $region102: #{tpu_custom_call.1} parent=1 // pred_check
      _
    $region103: #{tpu_custom_call.1} parent=1 // pred_check_branch
      %229 = sbr.rel (0) target = $region105
    $region104: #{tpu_custom_call.1} parent=1 // pred_region
      _
    $region105: #{tpu_custom_call.1} parent=1 // pred_fallthru
      _
    // Predicated region
    $region106: #{tpu_custom_call.1} parent=1 // pred_check
      _
    $region107: #{tpu_custom_call.1} parent=1 // pred_check_branch
      %231 = sbr.rel (0) target = $region109
    $region108: #{tpu_custom_call.1} parent=1 // pred_region
      _
    $region109: #{tpu_custom_call.1} parent=1 // pred_fallthru
      _
    // Predicated region
    $region110: #{tpu_custom_call.1} parent=1 // pred_check
      _
    $region111: #{tpu_custom_call.1} parent=1 // pred_check_branch
      %233 = sbr.rel (0) target = $region113
    $region112: #{tpu_custom_call.1} parent=1 // pred_region
      _
    $region113: #{tpu_custom_call.1} parent=1 // pred_fallthru
      _
    // Predicated region
    $region114: #{tpu_custom_call.1} parent=1 // pred_check
      _
    $region115: #{tpu_custom_call.1} parent=1 // pred_check_branch
      %235 = sbr.rel (0) target = $region117
    $region116: #{tpu_custom_call.1} parent=1 // pred_region
      _
    $region117: #{tpu_custom_call.1} parent=1 // pred_fallthru
      _
    // Predicated region
    $region118: #{tpu_custom_call.1} parent=1 // pred_check
      _
    $region119: #{tpu_custom_call.1} parent=1 // pred_check_branch
      %237 = sbr.rel (0) target = $region121
    $region120: #{tpu_custom_call.1} parent=1 // pred_region
      %s239 = ssub.s32 11264, 11264
      %240 = vsyncadd [#allocation18], %s239
      %s241 = sshll.u32 [#allocation19], 4
      %s242 = int_to_ptr.vmem [resolvable:$true] %s241
      %247 = dma.hbm_to_vmem [thread:$0]  %s59, 11264, %s242, [#allocation18], 704, 704, 44
    $region121: #{tpu_custom_call.1} parent=1 // pred_fallthru
      _
    // Predicated region
    $region122: #{tpu_custom_call.1} parent=1 // pred_check
      _
    $region123: #{tpu_custom_call.1} parent=1 // pred_check_branch
      %249 = sbr.rel (0) target = $region125
    $region124: #{tpu_custom_call.1} parent=1 // pred_region
      _
    $region125: #{tpu_custom_call.1} parent=1 // pred_fallthru
      _
    // Predicated region
    $region126: #{tpu_custom_call.1} parent=1 // pred_check
      _
    $region127: #{tpu_custom_call.1} parent=1 // pred_check_branch
      %251 = sbr.rel (0) target = $region129
    $region128: #{tpu_custom_call.1} parent=1 // pred_region
      _
    $region129: #{tpu_custom_call.1} parent=1 // pred_fallthru
      _
    // Predicated region
    $region130: #{tpu_custom_call.1} parent=1 // pred_check
      _
    $region131: #{tpu_custom_call.1} parent=1 // pred_check_branch
      %253 = sbr.rel (0) target = $region133
    $region132: #{tpu_custom_call.1} parent=1 // pred_region
      _
    $region133: #{tpu_custom_call.1} parent=1 // pred_fallthru
      _
    // Predicated region
    $region134: #{tpu_custom_call.1} parent=1 // pred_check
      _
    $region135: #{tpu_custom_call.1} parent=1 // pred_check_branch
      %255 = sbr.rel (0) target = $region137
    $region136: #{tpu_custom_call.1} parent=1 // pred_region
      %s257 = ssub.s32 5120, 5120
      %258 = vsyncadd [#allocation21], %s257
      %s259 = sshll.u32 [#allocation20], 4
      %s260 = int_to_ptr.vmem [resolvable:$true] %s259
      %265 = dma.hbm_to_vmem [thread:$0]  %s67, 5120, %s260, [#allocation21], 64, 64, 4
    $region137: #{tpu_custom_call.1} parent=1 // pred_fallthru
      _
    // Predicated region
    $region138: #{tpu_custom_call.1} parent=1 // pred_check
      _
    $region139: #{tpu_custom_call.1} parent=1 // pred_check_branch
      %267 = sbr.rel (0) target = $region141
    $region140: #{tpu_custom_call.1} parent=1 // pred_region
      _
    $region141: #{tpu_custom_call.1} parent=1 // pred_fallthru
      _
    // Predicated region
    $region142: #{tpu_custom_call.1} parent=1 // pred_check
      _
    $region143: #{tpu_custom_call.1} parent=1 // pred_check_branch
      %269 = sbr.rel (0) target = $region145
    $region144: #{tpu_custom_call.1} parent=1 // pred_region
      %270 = dma.done [#allocation3], 128
    $region145: #{tpu_custom_call.1} parent=1 // pred_fallthru
      _
    // Predicated region
    $region146: #{tpu_custom_call.1} parent=1 // pred_check
      _
    $region147: #{tpu_custom_call.1} parent=1 // pred_check_branch
      %272 = sbr.rel (0) target = $region149
    $region148: #{tpu_custom_call.1} parent=1 // pred_region
      %273 = dma.done [#allocation6], 512
    $region149: #{tpu_custom_call.1} parent=1 // pred_fallthru
      _
    // Predicated region
    $region150: #{tpu_custom_call.1} parent=1 // pred_check
      _
    $region151: #{tpu_custom_call.1} parent=1 // pred_check_branch
      %275 = sbr.rel (0) target = $region153
    $region152: #{tpu_custom_call.1} parent=1 // pred_region
      %276 = dma.done [#allocation6], 16
    $region153: #{tpu_custom_call.1} parent=1 // pred_fallthru
      _
    // Predicated region
    $region154: #{tpu_custom_call.1} parent=1 // pred_check
      _
    $region155: #{tpu_custom_call.1} parent=1 // pred_check_branch
      %278 = sbr.rel (0) target = $region157
    $region156: #{tpu_custom_call.1} parent=1 // pred_region
      %279 = dma.done [#allocation9], 16
    $region157: #{tpu_custom_call.1} parent=1 // pred_fallthru
      _
    // Predicated region
    $region158: #{tpu_custom_call.1} parent=1 // pred_check
      _
    $region159: #{tpu_custom_call.1} parent=1 // pred_check_branch
      %281 = sbr.rel (0) target = $region161
    $region160: #{tpu_custom_call.1} parent=1 // pred_region
      %282 = dma.done [#allocation9], 16
    $region161: #{tpu_custom_call.1} parent=1 // pred_fallthru
      _
    // Predicated region
    $region162: #{tpu_custom_call.1} parent=1 // pred_check
      _
    $region163: #{tpu_custom_call.1} parent=1 // pred_check_branch
      %284 = sbr.rel (0) target = $region165
    $region164: #{tpu_custom_call.1} parent=1 // pred_region
      %285 = dma.done [#allocation12], 384
    $region165: #{tpu_custom_call.1} parent=1 // pred_fallthru
      _
    // Predicated region
    $region166: #{tpu_custom_call.1} parent=1 // pred_check
      _
    $region167: #{tpu_custom_call.1} parent=1 // pred_check_branch
      %287 = sbr.rel (0) target = $region169
    $region168: #{tpu_custom_call.1} parent=1 // pred_region
      %288 = dma.done [#allocation12], 1024
    $region169: #{tpu_custom_call.1} parent=1 // pred_fallthru
      _
    // Predicated region
    $region170: #{tpu_custom_call.1} parent=1 // pred_check
      _
    $region171: #{tpu_custom_call.1} parent=1 // pred_check_branch
      %290 = sbr.rel (0) target = $region173
    $region172: #{tpu_custom_call.1} parent=1 // pred_region
      %291 = dma.done [#allocation15], 1024
    $region173: #{tpu_custom_call.1} parent=1 // pred_fallthru
      _
    // Predicated region
    $region174: #{tpu_custom_call.1} parent=1 // pred_check
      _
    $region175: #{tpu_custom_call.1} parent=1 // pred_check_branch
      %293 = sbr.rel (0) target = $region177
    $region176: #{tpu_custom_call.1} parent=1 // pred_region
      %294 = dma.done [#allocation15], 4096
    $region177: #{tpu_custom_call.1} parent=1 // pred_fallthru
      _
    // Predicated region
    $region178: #{tpu_custom_call.1} parent=1 // pred_check
      _
    $region179: #{tpu_custom_call.1} parent=1 // pred_check_branch
      %296 = sbr.rel (0) target = $region181
    $region180: #{tpu_custom_call.1} parent=1 // pred_region
      %297 = dma.done [#allocation18], 4096
    $region181: #{tpu_custom_call.1} parent=1 // pred_fallthru
      _
    // Predicated region
    $region182: #{tpu_custom_call.1} parent=1 // pred_check
      _
    $region183: #{tpu_custom_call.1} parent=1 // pred_check_branch
      %299 = sbr.rel (0) target = $region185
    $region184: #{tpu_custom_call.1} parent=1 // pred_region
      %300 = dma.done [#allocation18], 11264
    $region185: #{tpu_custom_call.1} parent=1 // pred_fallthru
      _
    // Predicated region
    $region186: #{tpu_custom_call.1} parent=1 // pred_check
      _
    $region187: #{tpu_custom_call.1} parent=1 // pred_check_branch
      %302 = sbr.rel (0) target = $region189
    $region188: #{tpu_custom_call.1} parent=1 // pred_region
      %303 = dma.done [#allocation21], 5120
    $region189: #{tpu_custom_call.1} parent=1 // pred_fallthru
      _
    %v305 = vlaneseq
    %v306 = vshrl.u32 %v305, 7
    %v307 = vadd.s32 %v306, 8
    %v308 = vld [vmem:[%s1] sm:$0xf]
    %v309 = vld [vmem:[%s1 + $0x4] sm:$0xf]
    %v310 = vld [vmem:[%s1 + $0x8] sm:$0xf]
    %v311 = vld [vmem:[%s1 + $0xc] sm:$0xf]
    %v312 = vld [vmem:[#allocation2] sm:$0xf]
    %v313 = vld [vmem:[#allocation2 + $0x4] sm:$0xf]
    %v316 = vunpack.c.l.b16 %v308
    %v317 = vunpack.c.l.b16 %v309
    %v318 = vpack.c.b16 %v317, %v316
    %vm319 = vcmask 64512
    %v321 = vsel %vm319, %v318, 0
    %vm323 = vcmask 1043456
    %v325 = vsel %vm323, %v312, 0
    %327 = vmatprep.subr.bf16.mxu0 0
    %328 = vmatpush1.bf16.msra.mxu0 0
    %329 = vmatprep.subr.bf16.mxu0 0
    %330 = vmatpush1.bf16.msra.mxu0 0
    %331 = vmatprep.subr.bf16.mxu0 0
    %332 = vmatpush1.bf16.msra.mxu0 0
    %333 = vmatprep.subr.bf16.mxu0 0
    %334 = vmatpush1.bf16.msra.mxu0 0
    %335 = vmatprep.subr.bf16.mxu0 0
    %336 = vmatpush1.bf16.msra.mxu0 0
    %337 = vmatprep.subr.bf16.mxu0 0
    %338 = vmatpush1.bf16.msra.mxu0 0
    %339 = vmatprep.subr.bf16.mxu0 0
    %340 = vmatpush1.bf16.msra.mxu0 0
    %341 = vmatprep.subr.bf16.mxu0 0
    %342 = vmatpush1.bf16.msra.mxu0 %v325
    %343 = vmatprep.subr.bf16.mxu0 0
    %344 = vmatpush2.bf16.msra.mxu0 0
    %345 = vmatprep.subr.bf16.mxu0 0
    %346 = vmatpush2.bf16.msra.mxu0 0
    %347 = vmatprep.subr.bf16.mxu0 0
    %348 = vmatpush2.bf16.msra.mxu0 0
    %349 = vmatprep.subr.bf16.mxu0 0
    %350 = vmatpush2.bf16.msra.mxu0 0
    %351 = vmatprep.subr.bf16.mxu0 0
    %352 = vmatpush2.bf16.msra.mxu0 0
    %353 = vmatprep.subr.bf16.mxu0 0
    %354 = vmatpush2.bf16.msra.mxu0 0
    %355 = vmatprep.subr.bf16.mxu0 0
    %356 = vmatpush2.bf16.msra.mxu0 0
    %357 = vmatprep.subr.bf16.mxu0 0
    %358 = vmatpush2.bf16.msra.mxu0 0
    %359 = vmatprep.mubr.bf16.mxu0 0
    %360 = vmatmul.mubr.bf16.gmra.mxu0 %v321
    %v361 = vpop.f32.mrf.mxu0
    %v362 = vadd.f32 0.0, %v361
    %v363 = vpop.f32.mrf.mxu0
    %v364 = vpop.f32.mrf.mxu0
    %v365 = vadd.f32 0.0, %v364
    %v366 = vpop.f32.mrf.mxu0
    %367 = vdwg.mxu0
    %v370 = vunpack.c.l.b16 %v310
    %v371 = vunpack.c.l.b16 %v311
    %v372 = vpack.c.b16 %v371, %v370
    %v374 = vsel %vm319, %v372, 0
    %v377 = vsel %vm323, %v313, 0
    %379 = vmatprep.subr.bf16.mxu0 0
    %380 = vmatpush1.bf16.msra.mxu0 0
    %381 = vmatprep.subr.bf16.mxu0 0
    %382 = vmatpush1.bf16.msra.mxu0 0
    %383 = vmatprep.subr.bf16.mxu0 0
    %384 = vmatpush1.bf16.msra.mxu0 0
    %385 = vmatprep.subr.bf16.mxu0 0
    %386 = vmatpush1.bf16.msra.mxu0 0
    %387 = vmatprep.subr.bf16.mxu0 0
    %388 = vmatpush1.bf16.msra.mxu0 0
    %389 = vmatprep.subr.bf16.mxu0 0
    %390 = vmatpush1.bf16.msra.mxu0 0
    %391 = vmatprep.subr.bf16.mxu0 0
    %392 = vmatpush1.bf16.msra.mxu0 0
    %393 = vmatprep.subr.bf16.mxu0 0
    %394 = vmatpush1.bf16.msra.mxu0 %v377
    %395 = vmatprep.subr.bf16.mxu0 0
    %396 = vmatpush2.bf16.msra.mxu0 0
    %397 = vmatprep.subr.bf16.mxu0 0
    %398 = vmatpush2.bf16.msra.mxu0 0
    %399 = vmatprep.subr.bf16.mxu0 0
    %400 = vmatpush2.bf16.msra.mxu0 0
    %401 = vmatprep.subr.bf16.mxu0 0
    %402 = vmatpush2.bf16.msra.mxu0 0
    %403 = vmatprep.subr.bf16.mxu0 0
    %404 = vmatpush2.bf16.msra.mxu0 0
    %405 = vmatprep.subr.bf16.mxu0 0
    %406 = vmatpush2.bf16.msra.mxu0 0
    %407 = vmatprep.subr.bf16.mxu0 0
    %408 = vmatpush2.bf16.msra.mxu0 0
    %409 = vmatprep.subr.bf16.mxu0 0
    %410 = vmatpush2.bf16.msra.mxu0 0
    %411 = vmatprep.mubr.bf16.mxu0 0
    %412 = vmatmul.mubr.bf16.gmra.mxu0 %v374
    %v413 = vpop.f32.mrf.mxu0
    %v414 = vadd.f32 0.0, %v413
    %v415 = vpop.f32.mrf.mxu0
    %v416 = vpop.f32.mrf.mxu0
    %v417 = vadd.f32 0.0, %v416
    %v418 = vpop.f32.mrf.mxu0
    %419 = vdwg.mxu0
    %v420 = vld [vmem:[#allocation5] sm:$0xff]
    %v421 = vld [vmem:[#allocation5 + $0x8] sm:$0xff]
    %v422 = vld [vmem:[#allocation5 + $0x10] sm:$0xff]
    %v423 = vld [vmem:[#allocation5 + $0x18] sm:$0xff]
    %v424 = vld [vmem:[%s9] sm:$0x1]
    %v425 = vld [vmem:[#allocation7] sm:$0x1]
    %426 = vadd.xlane.f32.xlu0 %v362
    %v427 = vpop.xlane.xlu0 %426
    %428 = vadd.xlane.f32.xlu0 %v365
    %v429 = vpop.xlane.xlu0 %428
    %430 = vadd.xlane.f32.xlu0 %v414
    %v431 = vpop.xlane.xlu0 %430
    %432 = vadd.xlane.f32.xlu0 %v417
    %v433 = vpop.xlane.xlu0 %432
    %v434 = vrcp.pop 128.0
    %v435 = vmul.f32 %v427, %v434
    %v436 = vmul.f32 %v429, %v434
    %v437 = vmul.f32 %v431, %v434
    %v438 = vmul.f32 %v433, %v434
    %v439 = vsub.f32 %v362, %v435
    %v440 = vsub.f32 %v365, %v436
    %v441 = vsub.f32 %v414, %v437
    %v442 = vsub.f32 %v417, %v438
    %v443 = vmul.f32 %v439, %v439
    %v444 = vmul.f32 %v440, %v440
    %v445 = vmul.f32 %v441, %v441
    %v446 = vmul.f32 %v442, %v442
    %447 = vadd.xlane.f32.xlu0 %v443
    %v448 = vpop.xlane.xlu0 %447
    %449 = vadd.xlane.f32.xlu0 %v444
    %v450 = vpop.xlane.xlu0 %449
    %451 = vadd.xlane.f32.xlu0 %v445
    %v452 = vpop.xlane.xlu0 %451
    %453 = vadd.xlane.f32.xlu0 %v446
    %v454 = vpop.xlane.xlu0 %453
    %v455 = vmul.f32 %v448, %v434
    %v456 = vmul.f32 %v450, %v434
    %v457 = vmul.f32 %v452, %v434
    %v458 = vmul.f32 %v454, %v434
    %v459 = vadd.f32 %v455, 1e-05
    %v460 = vadd.f32 %v456, 1e-05
    %v461 = vadd.f32 %v457, 1e-05
    %v462 = vadd.f32 %v458, 1e-05
    %v463 = vrsqrt.pop %v459
    %v464 = vrsqrt.pop %v460
    %v465 = vrsqrt.pop %v461
    %v466 = vrsqrt.pop %v462
    %v467 = vmul.f32 %v439, %v463
    %v468 = vmul.f32 %v440, %v464
    %v469 = vmul.f32 %v441, %v465
    %v470 = vmul.f32 %v442, %v466
    %v472 = vlaneseq
    %v473 = vshrl.u32 %v472, 7
    %v474 = vsub.s32 0, %v473
    %v475 = vrot.slane %v424, %v474
    %v477 = vmul.f32 %v467, %v475
    %v478 = vmul.f32 %v468, %v475
    %v479 = vmul.f32 %v469, %v475
    %v480 = vmul.f32 %v470, %v475
    %v482 = vlaneseq
    %v483 = vshrl.u32 %v482, 7
    %v484 = vsub.s32 0, %v483
    %v485 = vrot.slane %v425, %v484
    %v487 = vadd.f32 %v477, %v485
    %v488 = vadd.f32 %v478, %v485
    %v489 = vadd.f32 %v479, %v485
    %v490 = vadd.f32 %v480, %v485
    %v491 = vadd.f32 %v420, %v487
    %v492 = vadd.f32 %v421, %v488
    %v493 = vadd.f32 %v422, %v489
    %v494 = vadd.f32 %v423, %v490
    %v495 = vld [vmem:[#allocation8] sm:$0x1]
    %v496 = vld [vmem:[#allocation10] sm:$0x1]
    %497 = vadd.xlane.f32.xlu0 %v491
    %v498 = vpop.xlane.xlu0 %497
    %499 = vadd.xlane.f32.xlu0 %v492
    %v500 = vpop.xlane.xlu0 %499
    %501 = vadd.xlane.f32.xlu0 %v493
    %v502 = vpop.xlane.xlu0 %501
    %503 = vadd.xlane.f32.xlu0 %v494
    %v504 = vpop.xlane.xlu0 %503
    %v505 = vmul.f32 %v498, %v434
    %v506 = vmul.f32 %v500, %v434
    %v507 = vmul.f32 %v502, %v434
    %v508 = vmul.f32 %v504, %v434
    %v509 = vsub.f32 %v491, %v505
    %v510 = vsub.f32 %v492, %v506
    %v511 = vsub.f32 %v493, %v507
    %v512 = vsub.f32 %v494, %v508
    %v513 = vmul.f32 %v509, %v509
    %v514 = vmul.f32 %v510, %v510
    %v515 = vmul.f32 %v511, %v511
    %v516 = vmul.f32 %v512, %v512
    %517 = vadd.xlane.f32.xlu0 %v513
    %v518 = vpop.xlane.xlu0 %517
    %519 = vadd.xlane.f32.xlu0 %v514
    %v520 = vpop.xlane.xlu0 %519
    %521 = vadd.xlane.f32.xlu0 %v515
    %v522 = vpop.xlane.xlu0 %521
    %523 = vadd.xlane.f32.xlu0 %v516
    %v524 = vpop.xlane.xlu0 %523
    %v525 = vmul.f32 %v518, %v434
    %v526 = vmul.f32 %v520, %v434
    %v527 = vmul.f32 %v522, %v434
    %v528 = vmul.f32 %v524, %v434
    %v529 = vadd.f32 %v525, 1e-05
    %v530 = vadd.f32 %v526, 1e-05
    %v531 = vadd.f32 %v527, 1e-05
    %v532 = vadd.f32 %v528, 1e-05
    %v533 = vrsqrt.pop %v529
    %v534 = vrsqrt.pop %v530
    %v535 = vrsqrt.pop %v531
    %v536 = vrsqrt.pop %v532
    %v537 = vmul.f32 %v509, %v533
    %v538 = vmul.f32 %v510, %v534
    %v539 = vmul.f32 %v511, %v535
    %v540 = vmul.f32 %v512, %v536
    %v542 = vlaneseq
    %v543 = vshrl.u32 %v542, 7
    %v544 = vsub.s32 0, %v543
    %v545 = vrot.slane %v495, %v544
    %v547 = vmul.f32 %v537, %v545
    %v548 = vmul.f32 %v538, %v545
    %v549 = vmul.f32 %v539, %v545
    %v550 = vmul.f32 %v540, %v545
    %v552 = vlaneseq
    %v553 = vshrl.u32 %v552, 7
    %v554 = vsub.s32 0, %v553
    %v555 = vrot.slane %v496, %v554
    %v557 = vadd.f32 %v547, %v555
    %v558 = vadd.f32 %v548, %v555
    %v559 = vadd.f32 %v549, %v555
    %v560 = vadd.f32 %v550, %v555
    %v561 = vpack.c.bf16 %v558, %v557
    %v562 = vpack.c.bf16 %v560, %v559
    %v563 = vld [vmem:[%s17] sm:$0xf]
    %v564 = vld [vmem:[%s17 + $0x4] sm:$0xf]
    %v565 = vld [vmem:[%s17 + $0x8] sm:$0xf]
    %v566 = vld [vmem:[%s17 + $0xc] sm:$0xf]
    %v567 = vld [vmem:[%s17 + $0x10] sm:$0xf]
    %v568 = vld [vmem:[%s17 + $0x14] sm:$0xf]
    %v569 = vld [vmem:[%s17 + $0x18] sm:$0xf]
    %v570 = vld [vmem:[%s17 + $0x1c] sm:$0xf]
    %v571 = vld [vmem:[%s17 + $0x20] sm:$0xf]
    %v572 = vld [vmem:[%s17 + $0x24] sm:$0xf]
    %v573 = vld [vmem:[%s17 + $0x28] sm:$0xf]
    %v574 = vld [vmem:[%s17 + $0x2c] sm:$0xf]
    %v575 = vld [vmem:[%s17 + $0x30] sm:$0xf]
    %v576 = vld [vmem:[%s17 + $0x34] sm:$0xf]
    %v577 = vld [vmem:[%s17 + $0x38] sm:$0xf]
    %v578 = vld [vmem:[%s17 + $0x3c] sm:$0xf]
    %v579 = vld [vmem:[%s19] sm:$0x1]
    %v581 = vlaneseq
    %v582 = vshrl.u32 %v581, 7
    %v583 = vsub.s32 0, %v582
    %v584 = vrot.slane %v579, %v583
    %v602 = vunpack.c.l.b16 %v563
    %v603 = vunpack.c.l.b16 %v564
    %v604 = vunpack.c.l.b16 %v565
    %v605 = vunpack.c.l.b16 %v566
    %v606 = vunpack.c.l.b16 %v567
    %v607 = vunpack.c.l.b16 %v568
    %v608 = vunpack.c.l.b16 %v569
    %v609 = vunpack.c.l.b16 %v570
    %v610 = vunpack.c.l.b16 %v571
    %v611 = vunpack.c.l.b16 %v572
    %v612 = vunpack.c.l.b16 %v573
    %v613 = vunpack.c.l.b16 %v574
    %v614 = vunpack.c.l.b16 %v575
    %v615 = vunpack.c.l.b16 %v576
    %v616 = vunpack.c.l.b16 %v577
    %v617 = vunpack.c.l.b16 %v578
    %v618 = vpack.c.b16 %v603, %v602
    %v619 = vpack.c.b16 %v605, %v604
    %v620 = vpack.c.b16 %v607, %v606
    %v621 = vpack.c.b16 %v609, %v608
    %v622 = vpack.c.b16 %v611, %v610
    %v623 = vpack.c.b16 %v613, %v612
    %v624 = vpack.c.b16 %v615, %v614
    %v625 = vpack.c.b16 %v617, %v616
    %634 = vmatprep.subr.bf16.mxu0 0
    %635 = vmatpush1.bf16.msra.mxu0 %v625
    %636 = vmatprep.subr.bf16.mxu0 0
    %637 = vmatpush1.bf16.msra.mxu0 %v624
    %638 = vmatprep.subr.bf16.mxu0 0
    %639 = vmatpush1.bf16.msra.mxu0 %v623
    %640 = vmatprep.subr.bf16.mxu0 0
    %641 = vmatpush1.bf16.msra.mxu0 %v622
    %642 = vmatprep.subr.bf16.mxu0 0
    %643 = vmatpush1.bf16.msra.mxu0 %v621
    %644 = vmatprep.subr.bf16.mxu0 0
    %645 = vmatpush1.bf16.msra.mxu0 %v620
    %646 = vmatprep.subr.bf16.mxu0 0
    %647 = vmatpush1.bf16.msra.mxu0 %v619
    %648 = vmatprep.subr.bf16.mxu0 0
    %649 = vmatpush1.bf16.msra.mxu0 %v618
    %650 = vmatprep.subr.bf16.mxu0 0
    %651 = vmatpush2.bf16.msra.mxu0 0
    %652 = vmatprep.subr.bf16.mxu0 0
    %653 = vmatpush2.bf16.msra.mxu0 0
    %654 = vmatprep.subr.bf16.mxu0 0
    %655 = vmatpush2.bf16.msra.mxu0 0
    %656 = vmatprep.subr.bf16.mxu0 0
    %657 = vmatpush2.bf16.msra.mxu0 0
    %658 = vmatprep.subr.bf16.mxu0 0
    %659 = vmatpush2.bf16.msra.mxu0 0
    %660 = vmatprep.subr.bf16.mxu0 0
    %661 = vmatpush2.bf16.msra.mxu0 0
    %662 = vmatprep.subr.bf16.mxu0 0
    %663 = vmatpush2.bf16.msra.mxu0 0
    %664 = vmatprep.subr.bf16.mxu0 0
    %665 = vmatpush2.bf16.msra.mxu0 0
    %666 = vmatprep.mubr.bf16.mxu0 0
    %667 = vmatmul.mubr.bf16.gmra.mxu0 %v561
    %v668 = vpop.f32.mrf.mxu0
    %v669 = vadd.f32 %v584, %v668
    %v670 = vpop.f32.mrf.mxu0
    %v671 = vpop.f32.mrf.mxu0
    %v672 = vadd.f32 %v584, %v671
    %v673 = vpop.f32.mrf.mxu0
    %674 = vmatprep.mubr.bf16.mxu0 0
    %675 = vmatmul.mubr.bf16.gmra.mxu0 %v562
    %v676 = vpop.f32.mrf.mxu0
    %v677 = vadd.f32 %v584, %v676
    %v678 = vpop.f32.mrf.mxu0
    %v679 = vpop.f32.mrf.mxu0
    %v680 = vadd.f32 %v584, %v679
    %v681 = vpop.f32.mrf.mxu0
    %682 = vdwg.mxu0
    %v683 = vld [vmem:[%s21] sm:$0xf]
    %v684 = vld [vmem:[%s21 + $0x4] sm:$0xf]
    %v685 = vld [vmem:[%s21 + $0x8] sm:$0xf]
    %v686 = vld [vmem:[%s21 + $0xc] sm:$0xf]
    %v687 = vld [vmem:[%s21 + $0x10] sm:$0xf]
    %v688 = vld [vmem:[%s21 + $0x14] sm:$0xf]
    %v689 = vld [vmem:[%s21 + $0x18] sm:$0xf]
    %v690 = vld [vmem:[%s21 + $0x1c] sm:$0xf]
    %v691 = vld [vmem:[%s21 + $0x20] sm:$0xf]
    %v692 = vld [vmem:[%s21 + $0x24] sm:$0xf]
    %v693 = vld [vmem:[%s21 + $0x28] sm:$0xf]
    %v694 = vld [vmem:[%s21 + $0x2c] sm:$0xf]
    %v695 = vld [vmem:[%s21 + $0x30] sm:$0xf]
    %v696 = vld [vmem:[%s21 + $0x34] sm:$0xf]
    %v697 = vld [vmem:[%s21 + $0x38] sm:$0xf]
    %v698 = vld [vmem:[%s21 + $0x3c] sm:$0xf]
    %v699 = vld [vmem:[%s23] sm:$0x1]
    %v701 = vlaneseq
    %v702 = vshrl.u32 %v701, 7
    %v703 = vsub.s32 0, %v702
    %v704 = vrot.slane %v699, %v703
    %v722 = vunpack.c.l.b16 %v683
    %v723 = vunpack.c.l.b16 %v684
    %v724 = vunpack.c.l.b16 %v685
    %v725 = vunpack.c.l.b16 %v686
    %v726 = vunpack.c.l.b16 %v687
    %v727 = vunpack.c.l.b16 %v688
    %v728 = vunpack.c.l.b16 %v689
    %v729 = vunpack.c.l.b16 %v690
    %v730 = vunpack.c.l.b16 %v691
    %v731 = vunpack.c.l.b16 %v692
    %v732 = vunpack.c.l.b16 %v693
    %v733 = vunpack.c.l.b16 %v694
    %v734 = vunpack.c.l.b16 %v695
    %v735 = vunpack.c.l.b16 %v696
    %v736 = vunpack.c.l.b16 %v697
    %v737 = vunpack.c.l.b16 %v698
    %v738 = vpack.c.b16 %v723, %v722
    %v739 = vpack.c.b16 %v725, %v724
    %v740 = vpack.c.b16 %v727, %v726
    %v741 = vpack.c.b16 %v729, %v728
    %v742 = vpack.c.b16 %v731, %v730
    %v743 = vpack.c.b16 %v733, %v732
    %v744 = vpack.c.b16 %v735, %v734
    %v745 = vpack.c.b16 %v737, %v736
    %754 = vmatprep.subr.bf16.mxu0 0
    %755 = vmatpush1.bf16.msra.mxu0 %v745
    %756 = vmatprep.subr.bf16.mxu0 0
    %757 = vmatpush1.bf16.msra.mxu0 %v744
    %758 = vmatprep.subr.bf16.mxu0 0
    %759 = vmatpush1.bf16.msra.mxu0 %v743
    %760 = vmatprep.subr.bf16.mxu0 0
    %761 = vmatpush1.bf16.msra.mxu0 %v742
    %762 = vmatprep.subr.bf16.mxu0 0
    %763 = vmatpush1.bf16.msra.mxu0 %v741
    %764 = vmatprep.subr.bf16.mxu0 0
    %765 = vmatpush1.bf16.msra.mxu0 %v740
    %766 = vmatprep.subr.bf16.mxu0 0
    %767 = vmatpush1.bf16.msra.mxu0 %v739
    %768 = vmatprep.subr.bf16.mxu0 0
    %769 = vmatpush1.bf16.msra.mxu0 %v738
    %770 = vmatprep.subr.bf16.mxu0 0
    %771 = vmatpush2.bf16.msra.mxu0 0
    %772 = vmatprep.subr.bf16.mxu0 0
    %773 = vmatpush2.bf16.msra.mxu0 0
    %774 = vmatprep.subr.bf16.mxu0 0
    %775 = vmatpush2.bf16.msra.mxu0 0
    %776 = vmatprep.subr.bf16.mxu0 0
    %777 = vmatpush2.bf16.msra.mxu0 0
    %778 = vmatprep.subr.bf16.mxu0 0
    %779 = vmatpush2.bf16.msra.mxu0 0
    %780 = vmatprep.subr.bf16.mxu0 0
    %781 = vmatpush2.bf16.msra.mxu0 0
    %782 = vmatprep.subr.bf16.mxu0 0
    %783 = vmatpush2.bf16.msra.mxu0 0
    %784 = vmatprep.subr.bf16.mxu0 0
    %785 = vmatpush2.bf16.msra.mxu0 0
    %786 = vmatprep.mubr.bf16.mxu0 0
    %787 = vmatmul.mubr.bf16.gmra.mxu0 %v561
    %v788 = vpop.f32.mrf.mxu0
    %v789 = vadd.f32 %v704, %v788
    %v790 = vpop.f32.mrf.mxu0
    %v791 = vpop.f32.mrf.mxu0
    %v792 = vadd.f32 %v704, %v791
    %v793 = vpop.f32.mrf.mxu0
    %794 = vmatprep.mubr.bf16.mxu0 0
    %795 = vmatmul.mubr.bf16.gmra.mxu0 %v562
    %v796 = vpop.f32.mrf.mxu0
    %v797 = vadd.f32 %v704, %v796
    %v798 = vpop.f32.mrf.mxu0
    %v799 = vpop.f32.mrf.mxu0
    %v800 = vadd.f32 %v704, %v799
    %v801 = vpop.f32.mrf.mxu0
    %802 = vdwg.mxu0
    %v803 = vld [vmem:[%s25] sm:$0xf]
    %v804 = vld [vmem:[%s25 + $0x4] sm:$0xf]
    %v805 = vld [vmem:[%s25 + $0x8] sm:$0xf]
    %v806 = vld [vmem:[%s25 + $0xc] sm:$0xf]
    %v807 = vld [vmem:[%s25 + $0x10] sm:$0xf]
    %v808 = vld [vmem:[%s25 + $0x14] sm:$0xf]
    %v809 = vld [vmem:[%s25 + $0x18] sm:$0xf]
    %v810 = vld [vmem:[%s25 + $0x1c] sm:$0xf]
    %v811 = vld [vmem:[%s25 + $0x20] sm:$0xf]
    %v812 = vld [vmem:[%s25 + $0x24] sm:$0xf]
    %v813 = vld [vmem:[%s25 + $0x28] sm:$0xf]
    %v814 = vld [vmem:[%s25 + $0x2c] sm:$0xf]
    %v815 = vld [vmem:[%s25 + $0x30] sm:$0xf]
    %v816 = vld [vmem:[%s25 + $0x34] sm:$0xf]
    %v817 = vld [vmem:[%s25 + $0x38] sm:$0xf]
    %v818 = vld [vmem:[%s25 + $0x3c] sm:$0xf]
    %v819 = vld [vmem:[%s27] sm:$0x1]
    %v821 = vlaneseq
    %v822 = vshrl.u32 %v821, 7
    %v823 = vsub.s32 0, %v822
    %v824 = vrot.slane %v819, %v823
    %v842 = vunpack.c.l.b16 %v803
    %v843 = vunpack.c.l.b16 %v804
    %v844 = vunpack.c.l.b16 %v805
    %v845 = vunpack.c.l.b16 %v806
    %v846 = vunpack.c.l.b16 %v807
    %v847 = vunpack.c.l.b16 %v808
    %v848 = vunpack.c.l.b16 %v809
    %v849 = vunpack.c.l.b16 %v810
    %v850 = vunpack.c.l.b16 %v811
    %v851 = vunpack.c.l.b16 %v812
    %v852 = vunpack.c.l.b16 %v813
    %v853 = vunpack.c.l.b16 %v814
    %v854 = vunpack.c.l.b16 %v815
    %v855 = vunpack.c.l.b16 %v816
    %v856 = vunpack.c.l.b16 %v817
    %v857 = vunpack.c.l.b16 %v818
    %v858 = vpack.c.b16 %v843, %v842
    %v859 = vpack.c.b16 %v845, %v844
    %v860 = vpack.c.b16 %v847, %v846
    %v861 = vpack.c.b16 %v849, %v848
    %v862 = vpack.c.b16 %v851, %v850
    %v863 = vpack.c.b16 %v853, %v852
    %v864 = vpack.c.b16 %v855, %v854
    %v865 = vpack.c.b16 %v857, %v856
    %874 = vmatprep.subr.bf16.mxu0 0
    %875 = vmatpush1.bf16.msra.mxu0 %v865
    %876 = vmatprep.subr.bf16.mxu0 0
    %877 = vmatpush1.bf16.msra.mxu0 %v864
    %878 = vmatprep.subr.bf16.mxu0 0
    %879 = vmatpush1.bf16.msra.mxu0 %v863
    %880 = vmatprep.subr.bf16.mxu0 0
    %881 = vmatpush1.bf16.msra.mxu0 %v862
    %882 = vmatprep.subr.bf16.mxu0 0
    %883 = vmatpush1.bf16.msra.mxu0 %v861
    %884 = vmatprep.subr.bf16.mxu0 0
    %885 = vmatpush1.bf16.msra.mxu0 %v860
    %886 = vmatprep.subr.bf16.mxu0 0
    %887 = vmatpush1.bf16.msra.mxu0 %v859
    %888 = vmatprep.subr.bf16.mxu0 0
    %889 = vmatpush1.bf16.msra.mxu0 %v858
    %890 = vmatprep.subr.bf16.mxu0 0
    %891 = vmatpush2.bf16.msra.mxu0 0
    %892 = vmatprep.subr.bf16.mxu0 0
    %893 = vmatpush2.bf16.msra.mxu0 0
    %894 = vmatprep.subr.bf16.mxu0 0
    %895 = vmatpush2.bf16.msra.mxu0 0
    %896 = vmatprep.subr.bf16.mxu0 0
    %897 = vmatpush2.bf16.msra.mxu0 0
    %898 = vmatprep.subr.bf16.mxu0 0
    %899 = vmatpush2.bf16.msra.mxu0 0
    %900 = vmatprep.subr.bf16.mxu0 0
    %901 = vmatpush2.bf16.msra.mxu0 0
    %902 = vmatprep.subr.bf16.mxu0 0
    %903 = vmatpush2.bf16.msra.mxu0 0
    %904 = vmatprep.subr.bf16.mxu0 0
    %905 = vmatpush2.bf16.msra.mxu0 0
    %906 = vmatprep.mubr.bf16.mxu0 0
    %907 = vmatmul.mubr.bf16.gmra.mxu0 %v561
    %v908 = vpop.f32.mrf.mxu0
    %v909 = vadd.f32 %v824, %v908
    %v910 = vpop.f32.mrf.mxu0
    %v911 = vpop.f32.mrf.mxu0
    %v912 = vadd.f32 %v824, %v911
    %v913 = vpop.f32.mrf.mxu0
    %914 = vmatprep.mubr.bf16.mxu0 0
    %915 = vmatmul.mubr.bf16.gmra.mxu0 %v562
    %v916 = vpop.f32.mrf.mxu0
    %v917 = vadd.f32 %v824, %v916
    %v918 = vpop.f32.mrf.mxu0
    %v919 = vpop.f32.mrf.mxu0
    %v920 = vadd.f32 %v824, %v919
    %v921 = vpop.f32.mrf.mxu0
    %922 = vdwg.mxu0
    %v923 = vrot.slane %v789, 7
    %v924 = vrot.slane %v792, 7
    %v925 = vrot.slane %v797, 7
    %v926 = vrot.slane %v800, 7
    %vm927 = vcmp.lt.s32.totalorder %v306, 1
    %v928 = vsel %vm927, %v925, %v926
    %v929 = vsel %vm927, %v924, %v925
    %v930 = vsel %vm927, %v923, %v924
    %v931 = vsel %vm927, %v926, %v923
    %vm932 = vcmp.ge.s32.totalorder %v306, 1
    %vm933 = vcmp.ge.s32.totalorder %v307, 1
    %v934 = vsel %vm932, %v931, 0.0
    %v935 = vsel %vm933, %v930, 0.0
    %v936 = vsel %vm932, %v929, 0.0
    %v937 = vsel %vm933, %v928, 0.0
    %v938 = vld [vmem:[#allocation11] sm:$0x1]
    %v939 = vlaneseq
    %v940 = vshrl.u32 %v939, 7
    %v941 = vsub.s32 0, %v940
    %v942 = vrot.slane %v938, %v941
    %v943 = vmul.f32 %v934, %v942
    %v944 = vmul.f32 %v935, %v942
    %v945 = vmul.f32 %v936, %v942
    %v946 = vmul.f32 %v937, %v942
    %v947 = vadd.f32 %v943, 0.0
    %v948 = vadd.f32 %v944, 0.0
    %v949 = vadd.f32 %v945, 0.0
    %v950 = vadd.f32 %v946, 0.0
    %v951 = vld [vmem:[#allocation11 + $0x1] sm:$0x1]
    %v952 = vlaneseq
    %v953 = vshrl.u32 %v952, 7
    %v954 = vsub.s32 0, %v953
    %v955 = vrot.slane %v951, %v954
    %v956 = vmul.f32 %v789, %v955
    %v957 = vmul.f32 %v792, %v955
    %v958 = vmul.f32 %v797, %v955
    %v959 = vmul.f32 %v800, %v955
    %v960 = vadd.f32 %v947, %v956
    %v961 = vadd.f32 %v948, %v957
    %v962 = vadd.f32 %v949, %v958
    %v963 = vadd.f32 %v950, %v959
    %v964 = vrot.slane %v789, 1
    %v965 = vrot.slane %v792, 1
    %v966 = vrot.slane %v797, 1
    %v967 = vrot.slane %v800, 1
    %vm968 = vcmp.lt.s32.totalorder %v306, 7
    %v969 = vsel %vm968, %v966, %v967
    %v970 = vsel %vm968, %v965, %v966
    %v971 = vsel %vm968, %v964, %v965
    %v972 = vsel %vm968, %v967, %v964
    %vm973 = vcmp.lt.s32.totalorder %v306, 15
    %vm974 = vcmp.lt.s32.totalorder %v307, 15
    %v975 = vsel %vm973, %v971, 0.0
    %v976 = vsel %vm974, %v970, 0.0
    %v977 = vsel %vm973, %v969, 0.0
    %v978 = vsel %vm974, %v972, 0.0
    %v979 = vld [vmem:[#allocation11 + $0x2] sm:$0x1]
    %v980 = vlaneseq
    %v981 = vshrl.u32 %v980, 7
    %v982 = vsub.s32 0, %v981
    %v983 = vrot.slane %v979, %v982
    %v984 = vmul.f32 %v975, %v983
    %v985 = vmul.f32 %v976, %v983
    %v986 = vmul.f32 %v977, %v983
    %v987 = vmul.f32 %v978, %v983
    %v988 = vadd.f32 %v960, %v984
    %v989 = vadd.f32 %v961, %v985
    %v990 = vadd.f32 %v962, %v986
    %v991 = vadd.f32 %v963, %v987
    %v992 = vmul.f32 %v988, 0.5
    %v993 = vmul.f32 %v989, 0.5
    %v994 = vmul.f32 %v990, 0.5
    %v995 = vmul.f32 %v991, 0.5
    %v996 = vmul.f32 %v988, 0.044715
    %v997 = vmul.f32 %v989, 0.044715
    %v998 = vmul.f32 %v990, 0.044715
    %v999 = vmul.f32 %v991, 0.044715
    %v1000 = vmul.f32 %v996, %v988
    %v1001 = vmul.f32 %v997, %v989
    %v1002 = vmul.f32 %v998, %v990
    %v1003 = vmul.f32 %v999, %v991
    %v1004 = vmul.f32 %v1000, %v988
    %v1005 = vmul.f32 %v1001, %v989
    %v1006 = vmul.f32 %v1002, %v990
    %v1007 = vmul.f32 %v1003, %v991
    %v1008 = vadd.f32 %v988, %v1004
    %v1009 = vadd.f32 %v989, %v1005
    %v1010 = vadd.f32 %v990, %v1006
    %v1011 = vadd.f32 %v991, %v1007
    %v1012 = vmul.f32 %v1008, 0.7978846
    %v1013 = vmul.f32 %v1009, 0.7978846
    %v1014 = vmul.f32 %v1010, 0.7978846
    %v1015 = vmul.f32 %v1011, 0.7978846
    %v1016 = vtanh.pop %v1012
    %v1017 = vtanh.pop %v1013
    %v1018 = vtanh.pop %v1014
    %v1019 = vtanh.pop %v1015
    %v1020 = vadd.f32 %v1016, 1.0
    %v1021 = vadd.f32 %v1017, 1.0
    %v1022 = vadd.f32 %v1018, 1.0
    %v1023 = vadd.f32 %v1019, 1.0
    %v1024 = vmul.f32 %v992, %v1020
    %v1025 = vmul.f32 %v993, %v1021
    %v1026 = vmul.f32 %v994, %v1022
    %v1027 = vmul.f32 %v995, %v1023
    %1029 = vset.pattern.permute.xlu0 0
    %1030 = vperm.xlu0 %1029, %v909
    %v1031 = vpop.permute.xlu0 %1030
    %1034 = vset.pattern.permute.xlu0 0
    %1035 = vperm.xlu0 %1034, %v912
    %v1036 = vpop.permute.xlu0 %1035
    %1039 = vset.pattern.permute.xlu0 0
    %1040 = vperm.xlu0 %1039, %v917
    %v1041 = vpop.permute.xlu0 %1040
    %1044 = vset.pattern.permute.xlu0 0
    %1045 = vperm.xlu0 %1044, %v920
    %v1046 = vpop.permute.xlu0 %1045
    %v1048 = vmul.f32 %v1024, %v1031
    %v1049 = vmul.f32 %v1025, %v1036
    %v1050 = vmul.f32 %v1026, %v1041
    %v1051 = vmul.f32 %v1027, %v1046
    %v1052 = vadd.f32 %v1048, 0.0
    %v1053 = vadd.f32 %v1049, 0.0
    %v1054 = vadd.f32 %v1050, 0.0
    %v1055 = vadd.f32 %v1051, 0.0
    %v1056 = vrot.slane %v1024, 6
    %v1057 = vrot.slane %v1025, 6
    %v1058 = vrot.slane %v1026, 6
    %v1059 = vrot.slane %v1027, 6
    %vm1060 = vcmp.lt.s32.totalorder %v306, 2
    %v1061 = vsel %vm1060, %v1058, %v1059
    %v1062 = vsel %vm1060, %v1057, %v1058
    %v1063 = vsel %vm1060, %v1056, %v1057
    %v1064 = vsel %vm1060, %v1059, %v1056
    %vm1065 = vcmp.ge.s32.totalorder %v306, 2
    %vm1066 = vcmp.ge.s32.totalorder %v307, 2
    %v1067 = vsel %vm1065, %v1064, 0.0
    %v1068 = vsel %vm1066, %v1063, 0.0
    %v1069 = vsel %vm1065, %v1062, 0.0
    %v1070 = vsel %vm1066, %v1061, 0.0
    %s1071 = scalar_lea.vmem [#allocation11], 8
    %v1072 = vld [vmem:[%s1071] sm:$0x1]
    %v1073 = vlaneseq
    %v1074 = vshrl.u32 %v1073, 7
    %v1075 = vsub.s32 0, %v1074
    %v1076 = vrot.slane %v1072, %v1075
    %v1077 = vmul.f32 %v1067, %v1076
    %v1078 = vmul.f32 %v1068, %v1076
    %v1079 = vmul.f32 %v1069, %v1076
    %v1080 = vmul.f32 %v1070, %v1076
    %v1081 = vadd.f32 %v1077, 0.0
    %v1082 = vadd.f32 %v1078, 0.0
    %v1083 = vadd.f32 %v1079, 0.0
    %v1084 = vadd.f32 %v1080, 0.0
    %v1085 = vrot.slane %v1024, 7
    %v1086 = vrot.slane %v1025, 7
    %v1087 = vrot.slane %v1026, 7
    %v1088 = vrot.slane %v1027, 7
    %v1089 = vsel %vm927, %v1087, %v1088
    %v1090 = vsel %vm927, %v1086, %v1087
    %v1091 = vsel %vm927, %v1085, %v1086
    %v1092 = vsel %vm927, %v1088, %v1085
    %v1093 = vsel %vm932, %v1092, 0.0
    %v1094 = vsel %vm933, %v1091, 0.0
    %v1095 = vsel %vm932, %v1090, 0.0
    %v1096 = vsel %vm933, %v1089, 0.0
    %v1097 = vld [vmem:[%s1071 + $0x1] sm:$0x1]
    %v1098 = vlaneseq
    %v1099 = vshrl.u32 %v1098, 7
    %v1100 = vsub.s32 0, %v1099
    %v1101 = vrot.slane %v1097, %v1100
    %v1102 = vmul.f32 %v1093, %v1101
    %v1103 = vmul.f32 %v1094, %v1101
    %v1104 = vmul.f32 %v1095, %v1101
    %v1105 = vmul.f32 %v1096, %v1101
    %v1106 = vadd.f32 %v1081, %v1102
    %v1107 = vadd.f32 %v1082, %v1103
    %v1108 = vadd.f32 %v1083, %v1104
    %v1109 = vadd.f32 %v1084, %v1105
    %v1110 = vld [vmem:[%s1071 + $0x2] sm:$0x1]
    %v1111 = vlaneseq
    %v1112 = vshrl.u32 %v1111, 7
    %v1113 = vsub.s32 0, %v1112
    %v1114 = vrot.slane %v1110, %v1113
    %v1115 = vmul.f32 %v1024, %v1114
    %v1116 = vmul.f32 %v1025, %v1114
    %v1117 = vmul.f32 %v1026, %v1114
    %v1118 = vmul.f32 %v1027, %v1114
    %v1119 = vadd.f32 %v1106, %v1115
    %v1120 = vadd.f32 %v1107, %v1116
    %v1121 = vadd.f32 %v1108, %v1117
    %v1122 = vadd.f32 %v1109, %v1118
    %v1123 = vrot.slane %v1024, 1
    %v1124 = vrot.slane %v1025, 1
    %v1125 = vrot.slane %v1026, 1
    %v1126 = vrot.slane %v1027, 1
    %v1127 = vsel %vm968, %v1125, %v1126
    %v1128 = vsel %vm968, %v1124, %v1125
    %v1129 = vsel %vm968, %v1123, %v1124
    %v1130 = vsel %vm968, %v1126, %v1123
    %v1131 = vsel %vm973, %v1129, 0.0
    %v1132 = vsel %vm974, %v1128, 0.0
    %v1133 = vsel %vm973, %v1127, 0.0
    %v1134 = vsel %vm974, %v1130, 0.0
    %v1135 = vld [vmem:[%s1071 + $0x3] sm:$0x1]
    %v1136 = vlaneseq
    %v1137 = vshrl.u32 %v1136, 7
    %v1138 = vsub.s32 0, %v1137
    %v1139 = vrot.slane %v1135, %v1138
    %v1140 = vmul.f32 %v1131, %v1139
    %v1141 = vmul.f32 %v1132, %v1139
    %v1142 = vmul.f32 %v1133, %v1139
    %v1143 = vmul.f32 %v1134, %v1139
    %v1144 = vadd.f32 %v1119, %v1140
    %v1145 = vadd.f32 %v1120, %v1141
    %v1146 = vadd.f32 %v1121, %v1142
    %v1147 = vadd.f32 %v1122, %v1143
    %v1148 = vrot.slane %v1024, 2
    %v1149 = vrot.slane %v1025, 2
    %v1150 = vrot.slane %v1026, 2
    %v1151 = vrot.slane %v1027, 2
    %vm1152 = vcmp.lt.s32.totalorder %v306, 6
    %v1153 = vsel %vm1152, %v1150, %v1151
    %v1154 = vsel %vm1152, %v1149, %v1150
    %v1155 = vsel %vm1152, %v1148, %v1149
    %v1156 = vsel %vm1152, %v1151, %v1148
    %vm1157 = vcmp.lt.s32.totalorder %v306, 14
    %vm1158 = vcmp.lt.s32.totalorder %v307, 14
    %v1159 = vsel %vm1157, %v1155, 0.0
    %v1160 = vsel %vm1158, %v1154, 0.0
    %v1161 = vsel %vm1157, %v1153, 0.0
    %v1162 = vsel %vm1158, %v1156, 0.0
    %v1163 = vld [vmem:[%s1071 + $0x4] sm:$0x1]
    %v1164 = vlaneseq
    %v1165 = vshrl.u32 %v1164, 7
    %v1166 = vsub.s32 0, %v1165
    %v1167 = vrot.slane %v1163, %v1166
    %v1168 = vmul.f32 %v1159, %v1167
    %v1169 = vmul.f32 %v1160, %v1167
    %v1170 = vmul.f32 %v1161, %v1167
    %v1171 = vmul.f32 %v1162, %v1167
    %v1172 = vadd.f32 %v1144, %v1168
    %v1173 = vadd.f32 %v1145, %v1169
    %v1174 = vadd.f32 %v1146, %v1170
    %v1175 = vadd.f32 %v1147, %v1171
    %v1176 = vmul.f32 %v1172, 0.5
    %v1177 = vmul.f32 %v1173, 0.5
    %v1178 = vmul.f32 %v1174, 0.5
    %v1179 = vmul.f32 %v1175, 0.5
    %v1180 = vmul.f32 %v1172, 0.044715
    %v1181 = vmul.f32 %v1173, 0.044715
    %v1182 = vmul.f32 %v1174, 0.044715
    %v1183 = vmul.f32 %v1175, 0.044715
    %v1184 = vmul.f32 %v1180, %v1172
    %v1185 = vmul.f32 %v1181, %v1173
    %v1186 = vmul.f32 %v1182, %v1174
    %v1187 = vmul.f32 %v1183, %v1175
    %v1188 = vmul.f32 %v1184, %v1172
    %v1189 = vmul.f32 %v1185, %v1173
    %v1190 = vmul.f32 %v1186, %v1174
    %v1191 = vmul.f32 %v1187, %v1175
    %v1192 = vadd.f32 %v1172, %v1188
    %v1193 = vadd.f32 %v1173, %v1189
    %v1194 = vadd.f32 %v1174, %v1190
    %v1195 = vadd.f32 %v1175, %v1191
    %v1196 = vmul.f32 %v1192, 0.7978846
    %v1197 = vmul.f32 %v1193, 0.7978846
    %v1198 = vmul.f32 %v1194, 0.7978846
    %v1199 = vmul.f32 %v1195, 0.7978846
    %v1200 = vtanh.pop %v1196
    %v1201 = vtanh.pop %v1197
    %v1202 = vtanh.pop %v1198
    %v1203 = vtanh.pop %v1199
    %v1204 = vadd.f32 %v1200, 1.0
    %v1205 = vadd.f32 %v1201, 1.0
    %v1206 = vadd.f32 %v1202, 1.0
    %v1207 = vadd.f32 %v1203, 1.0
    %v1208 = vmul.f32 %v1176, %v1204
    %v1209 = vmul.f32 %v1177, %v1205
    %v1210 = vmul.f32 %v1178, %v1206
    %v1211 = vmul.f32 %v1179, %v1207
    %1212 = vset.pattern.permute.xlu0 1
    %1213 = vperm.xlu0 %1212, %v909
    %v1214 = vpop.permute.xlu0 %1213
    %1216 = vset.pattern.permute.xlu0 1
    %1217 = vperm.xlu0 %1216, %v912
    %v1218 = vpop.permute.xlu0 %1217
    %1220 = vset.pattern.permute.xlu0 1
    %1221 = vperm.xlu0 %1220, %v917
    %v1222 = vpop.permute.xlu0 %1221
    %1224 = vset.pattern.permute.xlu0 1
    %1225 = vperm.xlu0 %1224, %v920
    %v1226 = vpop.permute.xlu0 %1225
    %v1228 = vmul.f32 %v1208, %v1214
    %v1229 = vmul.f32 %v1209, %v1218
    %v1230 = vmul.f32 %v1210, %v1222
    %v1231 = vmul.f32 %v1211, %v1226
    %v1232 = vadd.f32 %v1052, %v1228
    %v1233 = vadd.f32 %v1053, %v1229
    %v1234 = vadd.f32 %v1054, %v1230
    %v1235 = vadd.f32 %v1055, %v1231
    %v1236 = vrot.slane %v1208, 5
    %v1237 = vrot.slane %v1209, 5
    %v1238 = vrot.slane %v1210, 5
    %v1239 = vrot.slane %v1211, 5
    %vm1240 = vcmp.lt.s32.totalorder %v306, 3
    %v1241 = vsel %vm1240, %v1238, %v1239
    %v1242 = vsel %vm1240, %v1237, %v1238
    %v1243 = vsel %vm1240, %v1236, %v1237
    %v1244 = vsel %vm1240, %v1239, %v1236
    %vm1245 = vcmp.ge.s32.totalorder %v306, 3
    %vm1246 = vcmp.ge.s32.totalorder %v307, 3
    %v1247 = vsel %vm1245, %v1244, 0.0
    %v1248 = vsel %vm1246, %v1243, 0.0
    %v1249 = vsel %vm1245, %v1242, 0.0
    %v1250 = vsel %vm1246, %v1241, 0.0
    %s1251 = scalar_lea.vmem [#allocation11], 16
    %v1252 = vld [vmem:[%s1251] sm:$0x1]
    %v1253 = vlaneseq
    %v1254 = vshrl.u32 %v1253, 7
    %v1255 = vsub.s32 0, %v1254
    %v1256 = vrot.slane %v1252, %v1255
    %v1257 = vmul.f32 %v1247, %v1256
    %v1258 = vmul.f32 %v1248, %v1256
    %v1259 = vmul.f32 %v1249, %v1256
    %v1260 = vmul.f32 %v1250, %v1256
    %v1261 = vadd.f32 %v1257, 0.0
    %v1262 = vadd.f32 %v1258, 0.0
    %v1263 = vadd.f32 %v1259, 0.0
    %v1264 = vadd.f32 %v1260, 0.0
    %v1265 = vrot.slane %v1208, 6
    %v1266 = vrot.slane %v1209, 6
    %v1267 = vrot.slane %v1210, 6
    %v1268 = vrot.slane %v1211, 6
    %v1269 = vsel %vm1060, %v1267, %v1268
    %v1270 = vsel %vm1060, %v1266, %v1267
    %v1271 = vsel %vm1060, %v1265, %v1266
    %v1272 = vsel %vm1060, %v1268, %v1265
    %v1273 = vsel %vm1065, %v1272, 0.0
    %v1274 = vsel %vm1066, %v1271, 0.0
    %v1275 = vsel %vm1065, %v1270, 0.0
    %v1276 = vsel %vm1066, %v1269, 0.0
    %v1277 = vld [vmem:[%s1251 + $0x1] sm:$0x1]
    %v1278 = vlaneseq
    %v1279 = vshrl.u32 %v1278, 7
    %v1280 = vsub.s32 0, %v1279
    %v1281 = vrot.slane %v1277, %v1280
    %v1282 = vmul.f32 %v1273, %v1281
    %v1283 = vmul.f32 %v1274, %v1281
    %v1284 = vmul.f32 %v1275, %v1281
    %v1285 = vmul.f32 %v1276, %v1281
    %v1286 = vadd.f32 %v1261, %v1282
    %v1287 = vadd.f32 %v1262, %v1283
    %v1288 = vadd.f32 %v1263, %v1284
    %v1289 = vadd.f32 %v1264, %v1285
    %v1290 = vrot.slane %v1208, 7
    %v1291 = vrot.slane %v1209, 7
    %v1292 = vrot.slane %v1210, 7
    %v1293 = vrot.slane %v1211, 7
    %v1294 = vsel %vm927, %v1292, %v1293
    %v1295 = vsel %vm927, %v1291, %v1292
    %v1296 = vsel %vm927, %v1290, %v1291
    %v1297 = vsel %vm927, %v1293, %v1290
    %v1298 = vsel %vm932, %v1297, 0.0
    %v1299 = vsel %vm933, %v1296, 0.0
    %v1300 = vsel %vm932, %v1295, 0.0
    %v1301 = vsel %vm933, %v1294, 0.0
    %v1302 = vld [vmem:[%s1251 + $0x2] sm:$0x1]
    %v1303 = vlaneseq
    %v1304 = vshrl.u32 %v1303, 7
    %v1305 = vsub.s32 0, %v1304
    %v1306 = vrot.slane %v1302, %v1305
    %v1307 = vmul.f32 %v1298, %v1306
    %v1308 = vmul.f32 %v1299, %v1306
    %v1309 = vmul.f32 %v1300, %v1306
    %v1310 = vmul.f32 %v1301, %v1306
    %v1311 = vadd.f32 %v1286, %v1307
    %v1312 = vadd.f32 %v1287, %v1308
    %v1313 = vadd.f32 %v1288, %v1309
    %v1314 = vadd.f32 %v1289, %v1310
    %v1315 = vld [vmem:[%s1251 + $0x3] sm:$0x1]
    %v1316 = vlaneseq
    %v1317 = vshrl.u32 %v1316, 7
    %v1318 = vsub.s32 0, %v1317
    %v1319 = vrot.slane %v1315, %v1318
    %v1320 = vmul.f32 %v1208, %v1319
    %v1321 = vmul.f32 %v1209, %v1319
    %v1322 = vmul.f32 %v1210, %v1319
    %v1323 = vmul.f32 %v1211, %v1319
    %v1324 = vadd.f32 %v1311, %v1320
    %v1325 = vadd.f32 %v1312, %v1321
    %v1326 = vadd.f32 %v1313, %v1322
    %v1327 = vadd.f32 %v1314, %v1323
    %v1328 = vrot.slane %v1208, 1
    %v1329 = vrot.slane %v1209, 1
    %v1330 = vrot.slane %v1210, 1
    %v1331 = vrot.slane %v1211, 1
    %v1332 = vsel %vm968, %v1330, %v1331
    %v1333 = vsel %vm968, %v1329, %v1330
    %v1334 = vsel %vm968, %v1328, %v1329
    %v1335 = vsel %vm968, %v1331, %v1328
    %v1336 = vsel %vm973, %v1334, 0.0
    %v1337 = vsel %vm974, %v1333, 0.0
    %v1338 = vsel %vm973, %v1332, 0.0
    %v1339 = vsel %vm974, %v1335, 0.0
    %v1340 = vld [vmem:[%s1251 + $0x4] sm:$0x1]
    %v1341 = vlaneseq
    %v1342 = vshrl.u32 %v1341, 7
    %v1343 = vsub.s32 0, %v1342
    %v1344 = vrot.slane %v1340, %v1343
    %v1345 = vmul.f32 %v1336, %v1344
    %v1346 = vmul.f32 %v1337, %v1344
    %v1347 = vmul.f32 %v1338, %v1344
    %v1348 = vmul.f32 %v1339, %v1344
    %v1349 = vadd.f32 %v1324, %v1345
    %v1350 = vadd.f32 %v1325, %v1346
    %v1351 = vadd.f32 %v1326, %v1347
    %v1352 = vadd.f32 %v1327, %v1348
    %v1353 = vrot.slane %v1208, 2
    %v1354 = vrot.slane %v1209, 2
    %v1355 = vrot.slane %v1210, 2
    %v1356 = vrot.slane %v1211, 2
    %v1357 = vsel %vm1152, %v1355, %v1356
    %v1358 = vsel %vm1152, %v1354, %v1355
    %v1359 = vsel %vm1152, %v1353, %v1354
    %v1360 = vsel %vm1152, %v1356, %v1353
    %v1361 = vsel %vm1157, %v1359, 0.0
    %v1362 = vsel %vm1158, %v1358, 0.0
    %v1363 = vsel %vm1157, %v1357, 0.0
    %v1364 = vsel %vm1158, %v1360, 0.0
    %v1365 = vld [vmem:[%s1251 + $0x5] sm:$0x1]
    %v1366 = vlaneseq
    %v1367 = vshrl.u32 %v1366, 7
    %v1368 = vsub.s32 0, %v1367
    %v1369 = vrot.slane %v1365, %v1368
    %v1370 = vmul.f32 %v1361, %v1369
    %v1371 = vmul.f32 %v1362, %v1369
    %v1372 = vmul.f32 %v1363, %v1369
    %v1373 = vmul.f32 %v1364, %v1369
    %v1374 = vadd.f32 %v1349, %v1370
    %v1375 = vadd.f32 %v1350, %v1371
    %v1376 = vadd.f32 %v1351, %v1372
    %v1377 = vadd.f32 %v1352, %v1373
    %v1378 = vrot.slane %v1208, 3
    %v1379 = vrot.slane %v1209, 3
    %v1380 = vrot.slane %v1210, 3
    %v1381 = vrot.slane %v1211, 3
    %vm1382 = vcmp.lt.s32.totalorder %v306, 5
    %v1383 = vsel %vm1382, %v1380, %v1381
    %v1384 = vsel %vm1382, %v1379, %v1380
    %v1385 = vsel %vm1382, %v1378, %v1379
    %v1386 = vsel %vm1382, %v1381, %v1378
    %vm1387 = vcmp.lt.s32.totalorder %v306, 13
    %vm1388 = vcmp.lt.s32.totalorder %v307, 13
    %v1389 = vsel %vm1387, %v1385, 0.0
    %v1390 = vsel %vm1388, %v1384, 0.0
    %v1391 = vsel %vm1387, %v1383, 0.0
    %v1392 = vsel %vm1388, %v1386, 0.0
    %v1393 = vld [vmem:[%s1251 + $0x6] sm:$0x1]
    %v1394 = vlaneseq
    %v1395 = vshrl.u32 %v1394, 7
    %v1396 = vsub.s32 0, %v1395
    %v1397 = vrot.slane %v1393, %v1396
    %v1398 = vmul.f32 %v1389, %v1397
    %v1399 = vmul.f32 %v1390, %v1397
    %v1400 = vmul.f32 %v1391, %v1397
    %v1401 = vmul.f32 %v1392, %v1397
    %v1402 = vadd.f32 %v1374, %v1398
    %v1403 = vadd.f32 %v1375, %v1399
    %v1404 = vadd.f32 %v1376, %v1400
    %v1405 = vadd.f32 %v1377, %v1401
    %v1406 = vmul.f32 %v1402, 0.5
    %v1407 = vmul.f32 %v1403, 0.5
    %v1408 = vmul.f32 %v1404, 0.5
    %v1409 = vmul.f32 %v1405, 0.5
    %v1410 = vmul.f32 %v1402, 0.044715
    %v1411 = vmul.f32 %v1403, 0.044715
    %v1412 = vmul.f32 %v1404, 0.044715
    %v1413 = vmul.f32 %v1405, 0.044715
    %v1414 = vmul.f32 %v1410, %v1402
    %v1415 = vmul.f32 %v1411, %v1403
    %v1416 = vmul.f32 %v1412, %v1404
    %v1417 = vmul.f32 %v1413, %v1405
    %v1418 = vmul.f32 %v1414, %v1402
    %v1419 = vmul.f32 %v1415, %v1403
    %v1420 = vmul.f32 %v1416, %v1404
    %v1421 = vmul.f32 %v1417, %v1405
    %v1422 = vadd.f32 %v1402, %v1418
    %v1423 = vadd.f32 %v1403, %v1419
    %v1424 = vadd.f32 %v1404, %v1420
    %v1425 = vadd.f32 %v1405, %v1421
    %v1426 = vmul.f32 %v1422, 0.7978846
    %v1427 = vmul.f32 %v1423, 0.7978846
    %v1428 = vmul.f32 %v1424, 0.7978846
    %v1429 = vmul.f32 %v1425, 0.7978846
    %v1430 = vtanh.pop %v1426
    %v1431 = vtanh.pop %v1427
    %v1432 = vtanh.pop %v1428
    %v1433 = vtanh.pop %v1429
    %v1434 = vadd.f32 %v1430, 1.0
    %v1435 = vadd.f32 %v1431, 1.0
    %v1436 = vadd.f32 %v1432, 1.0
    %v1437 = vadd.f32 %v1433, 1.0
    %v1438 = vmul.f32 %v1406, %v1434
    %v1439 = vmul.f32 %v1407, %v1435
    %v1440 = vmul.f32 %v1408, %v1436
    %v1441 = vmul.f32 %v1409, %v1437
    %1442 = vset.pattern.permute.xlu0 2
    %1443 = vperm.xlu0 %1442, %v909
    %v1444 = vpop.permute.xlu0 %1443
    %1446 = vset.pattern.permute.xlu0 2
    %1447 = vperm.xlu0 %1446, %v912
    %v1448 = vpop.permute.xlu0 %1447
    %1450 = vset.pattern.permute.xlu0 2
    %1451 = vperm.xlu0 %1450, %v917
    %v1452 = vpop.permute.xlu0 %1451
    %1454 = vset.pattern.permute.xlu0 2
    %1455 = vperm.xlu0 %1454, %v920
    %v1456 = vpop.permute.xlu0 %1455
    %v1458 = vmul.f32 %v1438, %v1444
    %v1459 = vmul.f32 %v1439, %v1448
    %v1460 = vmul.f32 %v1440, %v1452
    %v1461 = vmul.f32 %v1441, %v1456
    %v1462 = vadd.f32 %v1232, %v1458
    %v1463 = vadd.f32 %v1233, %v1459
    %v1464 = vadd.f32 %v1234, %v1460
    %v1465 = vadd.f32 %v1235, %v1461
    %v1466 = vadd.f32 %v1438, %v1439
    %v1467 = vrot.slane %v1466, 4
    %v1468 = vadd.f32 %v1466, %v1467
    %v1469 = vrot.slane %v1468, 2
    %v1470 = vadd.f32 %v1468, %v1469
    %v1471 = vrot.slane %v1470, 1
    %v1472 = vadd.f32 %v1470, %v1471
    %v1473 = vadd.f32 %v1440, %v1441
    %v1474 = vrot.slane %v1473, 4
    %v1475 = vadd.f32 %v1473, %v1474
    %v1476 = vrot.slane %v1475, 2
    %v1477 = vadd.f32 %v1475, %v1476
    %v1478 = vrot.slane %v1477, 1
    %v1479 = vadd.f32 %v1477, %v1478
    %v1480 = vrcp.pop 16.0
    %v1481 = vmul.f32 %v1472, %v1480
    %v1482 = vmul.f32 %v1479, %v1480
    %v1483 = vmul.f32 %v1481, 0.5
    %v1484 = vmul.f32 %v1482, 0.5
    %v1485 = vmul.f32 %v1481, 0.044715
    %v1486 = vmul.f32 %v1482, 0.044715
    %v1487 = vmul.f32 %v1485, %v1481
    %v1488 = vmul.f32 %v1486, %v1482
    %v1489 = vmul.f32 %v1487, %v1481
    %v1490 = vmul.f32 %v1488, %v1482
    %v1491 = vadd.f32 %v1481, %v1489
    %v1492 = vadd.f32 %v1482, %v1490
    %v1493 = vmul.f32 %v1491, 0.7978846
    %v1494 = vmul.f32 %v1492, 0.7978846
    %v1495 = vtanh.pop %v1493
    %v1496 = vtanh.pop %v1494
    %v1497 = vadd.f32 %v1495, 1.0
    %v1498 = vadd.f32 %v1496, 1.0
    %v1499 = vmul.f32 %v1483, %v1497
    %v1500 = vmul.f32 %v1484, %v1498
    %1501 = vset.pattern.permute.xlu0 3
    %1502 = vperm.xlu0 %1501, %v909
    %v1503 = vpop.permute.xlu0 %1502
    %1505 = vset.pattern.permute.xlu0 3
    %1506 = vperm.xlu0 %1505, %v912
    %v1507 = vpop.permute.xlu0 %1506
    %1509 = vset.pattern.permute.xlu0 3
    %1510 = vperm.xlu0 %1509, %v917
    %v1511 = vpop.permute.xlu0 %1510
    %1513 = vset.pattern.permute.xlu0 3
    %1514 = vperm.xlu0 %1513, %v920
    %v1515 = vpop.permute.xlu0 %1514
    %v1517 = vmul.f32 %v1499, %v1503
    %v1518 = vmul.f32 %v1499, %v1507
    %v1519 = vmul.f32 %v1500, %v1511
    %v1520 = vmul.f32 %v1500, %v1515
    %v1521 = vadd.f32 %v1462, %v1517
    %v1522 = vadd.f32 %v1463, %v1518
    %v1523 = vadd.f32 %v1464, %v1519
    %v1524 = vadd.f32 %v1465, %v1520
    %v1525 = vpack.c.bf16 %v1522, %v1521
    %v1526 = vpack.c.bf16 %v1524, %v1523
    %v1527 = vld [vmem:[#allocation13] sm:$0xf]
    %v1528 = vld [vmem:[#allocation13 + $0x4] sm:$0xf]
    %v1529 = vld [vmem:[#allocation13 + $0x8] sm:$0xf]
    %v1530 = vld [vmem:[#allocation13 + $0xc] sm:$0xf]
    %v1531 = vld [vmem:[#allocation13 + $0x10] sm:$0xf]
    %v1532 = vld [vmem:[#allocation13 + $0x14] sm:$0xf]
    %v1533 = vld [vmem:[#allocation13 + $0x18] sm:$0xf]
    %v1534 = vld [vmem:[#allocation13 + $0x1c] sm:$0xf]
    %v1535 = vld [vmem:[#allocation13 + $0x20] sm:$0xf]
    %v1536 = vld [vmem:[#allocation13 + $0x24] sm:$0xf]
    %v1537 = vld [vmem:[#allocation13 + $0x28] sm:$0xf]
    %v1538 = vld [vmem:[#allocation13 + $0x2c] sm:$0xf]
    %v1539 = vld [vmem:[#allocation13 + $0x30] sm:$0xf]
    %v1540 = vld [vmem:[#allocation13 + $0x34] sm:$0xf]
    %v1541 = vld [vmem:[#allocation13 + $0x38] sm:$0xf]
    %v1542 = vld [vmem:[#allocation13 + $0x3c] sm:$0xf]
    %v1543 = vld [vmem:[%s33] sm:$0x1]
    %v1545 = vlaneseq
    %v1546 = vshrl.u32 %v1545, 7
    %v1547 = vsub.s32 0, %v1546
    %v1548 = vrot.slane %v1543, %v1547
    %v1566 = vunpack.c.l.b16 %v1527
    %v1567 = vunpack.c.l.b16 %v1528
    %v1568 = vunpack.c.l.b16 %v1529
    %v1569 = vunpack.c.l.b16 %v1530
    %v1570 = vunpack.c.l.b16 %v1531
    %v1571 = vunpack.c.l.b16 %v1532
    %v1572 = vunpack.c.l.b16 %v1533
    %v1573 = vunpack.c.l.b16 %v1534
    %v1574 = vunpack.c.l.b16 %v1535
    %v1575 = vunpack.c.l.b16 %v1536
    %v1576 = vunpack.c.l.b16 %v1537
    %v1577 = vunpack.c.l.b16 %v1538
    %v1578 = vunpack.c.l.b16 %v1539
    %v1579 = vunpack.c.l.b16 %v1540
    %v1580 = vunpack.c.l.b16 %v1541
    %v1581 = vunpack.c.l.b16 %v1542
    %v1582 = vpack.c.b16 %v1567, %v1566
    %v1583 = vpack.c.b16 %v1569, %v1568
    %v1584 = vpack.c.b16 %v1571, %v1570
    %v1585 = vpack.c.b16 %v1573, %v1572
    %v1586 = vpack.c.b16 %v1575, %v1574
    %v1587 = vpack.c.b16 %v1577, %v1576
    %v1588 = vpack.c.b16 %v1579, %v1578
    %v1589 = vpack.c.b16 %v1581, %v1580
    %1598 = vmatprep.subr.bf16.mxu0 0
    %1599 = vmatpush1.bf16.msra.mxu0 %v1589
    %1600 = vmatprep.subr.bf16.mxu0 0
    %1601 = vmatpush1.bf16.msra.mxu0 %v1588
    %1602 = vmatprep.subr.bf16.mxu0 0
    %1603 = vmatpush1.bf16.msra.mxu0 %v1587
    %1604 = vmatprep.subr.bf16.mxu0 0
    %1605 = vmatpush1.bf16.msra.mxu0 %v1586
    %1606 = vmatprep.subr.bf16.mxu0 0
    %1607 = vmatpush1.bf16.msra.mxu0 %v1585
    %1608 = vmatprep.subr.bf16.mxu0 0
    %1609 = vmatpush1.bf16.msra.mxu0 %v1584
    %1610 = vmatprep.subr.bf16.mxu0 0
    %1611 = vmatpush1.bf16.msra.mxu0 %v1583
    %1612 = vmatprep.subr.bf16.mxu0 0
    %1613 = vmatpush1.bf16.msra.mxu0 %v1582
    %1614 = vmatprep.subr.bf16.mxu0 0
    %1615 = vmatpush2.bf16.msra.mxu0 0
    %1616 = vmatprep.subr.bf16.mxu0 0
    %1617 = vmatpush2.bf16.msra.mxu0 0
    %1618 = vmatprep.subr.bf16.mxu0 0
    %1619 = vmatpush2.bf16.msra.mxu0 0
    %1620 = vmatprep.subr.bf16.mxu0 0
    %1621 = vmatpush2.bf16.msra.mxu0 0
    %1622 = vmatprep.subr.bf16.mxu0 0
    %1623 = vmatpush2.bf16.msra.mxu0 0
    %1624 = vmatprep.subr.bf16.mxu0 0
    %1625 = vmatpush2.bf16.msra.mxu0 0
    %1626 = vmatprep.subr.bf16.mxu0 0
    %1627 = vmatpush2.bf16.msra.mxu0 0
    %1628 = vmatprep.subr.bf16.mxu0 0
    %1629 = vmatpush2.bf16.msra.mxu0 0
    %1630 = vmatprep.mubr.bf16.mxu0 0
    %1631 = vmatmul.mubr.bf16.gmra.mxu0 %v1525
    %v1632 = vpop.f32.mrf.mxu0
    %v1633 = vadd.f32 %v1548, %v1632
    %v1634 = vpop.f32.mrf.mxu0
    %v1635 = vpop.f32.mrf.mxu0
    %v1636 = vadd.f32 %v1548, %v1635
    %v1637 = vpop.f32.mrf.mxu0
    %1638 = vmatprep.mubr.bf16.mxu0 0
    %1639 = vmatmul.mubr.bf16.gmra.mxu0 %v1526
    %v1640 = vpop.f32.mrf.mxu0
    %v1641 = vadd.f32 %v1548, %v1640
    %v1642 = vpop.f32.mrf.mxu0
    %v1643 = vpop.f32.mrf.mxu0
    %v1644 = vadd.f32 %v1548, %v1643
    %v1645 = vpop.f32.mrf.mxu0
    %1646 = vdwg.mxu0
    %v1647 = vmul.f32 %v669, %v1633
    %v1648 = vmul.f32 %v672, %v1636
    %v1649 = vmul.f32 %v677, %v1641
    %v1650 = vmul.f32 %v680, %v1644
    %v1651 = vpack.c.bf16 %v1648, %v1647
    %v1652 = vpack.c.bf16 %v1650, %v1649
    %v1653 = vld [vmem:[#allocation14] sm:$0xf]
    %v1654 = vld [vmem:[#allocation14 + $0x4] sm:$0xf]
    %v1655 = vld [vmem:[#allocation14 + $0x8] sm:$0xf]
    %v1656 = vld [vmem:[#allocation14 + $0xc] sm:$0xf]
    %v1657 = vld [vmem:[#allocation14 + $0x10] sm:$0xf]
    %v1658 = vld [vmem:[#allocation14 + $0x14] sm:$0xf]
    %v1659 = vld [vmem:[#allocation14 + $0x18] sm:$0xf]
    %v1660 = vld [vmem:[#allocation14 + $0x1c] sm:$0xf]
    %v1661 = vld [vmem:[#allocation14 + $0x20] sm:$0xf]
    %v1662 = vld [vmem:[#allocation14 + $0x24] sm:$0xf]
    %v1663 = vld [vmem:[#allocation14 + $0x28] sm:$0xf]
    %v1664 = vld [vmem:[#allocation14 + $0x2c] sm:$0xf]
    %v1665 = vld [vmem:[#allocation14 + $0x30] sm:$0xf]
    %v1666 = vld [vmem:[#allocation14 + $0x34] sm:$0xf]
    %v1667 = vld [vmem:[#allocation14 + $0x38] sm:$0xf]
    %v1668 = vld [vmem:[#allocation14 + $0x3c] sm:$0xf]
    %v1669 = vld [vmem:[%s37] sm:$0x1]
    %v1671 = vlaneseq
    %v1672 = vshrl.u32 %v1671, 7
    %v1673 = vsub.s32 0, %v1672
    %v1674 = vrot.slane %v1669, %v1673
    %v1692 = vunpack.c.l.b16 %v1653
    %v1693 = vunpack.c.l.b16 %v1654
    %v1694 = vunpack.c.l.b16 %v1655
    %v1695 = vunpack.c.l.b16 %v1656
    %v1696 = vunpack.c.l.b16 %v1657
    %v1697 = vunpack.c.l.b16 %v1658
    %v1698 = vunpack.c.l.b16 %v1659
    %v1699 = vunpack.c.l.b16 %v1660
    %v1700 = vunpack.c.l.b16 %v1661
    %v1701 = vunpack.c.l.b16 %v1662
    %v1702 = vunpack.c.l.b16 %v1663
    %v1703 = vunpack.c.l.b16 %v1664
    %v1704 = vunpack.c.l.b16 %v1665
    %v1705 = vunpack.c.l.b16 %v1666
    %v1706 = vunpack.c.l.b16 %v1667
    %v1707 = vunpack.c.l.b16 %v1668
    %v1708 = vpack.c.b16 %v1693, %v1692
    %v1709 = vpack.c.b16 %v1695, %v1694
    %v1710 = vpack.c.b16 %v1697, %v1696
    %v1711 = vpack.c.b16 %v1699, %v1698
    %v1712 = vpack.c.b16 %v1701, %v1700
    %v1713 = vpack.c.b16 %v1703, %v1702
    %v1714 = vpack.c.b16 %v1705, %v1704
    %v1715 = vpack.c.b16 %v1707, %v1706
    %1724 = vmatprep.subr.bf16.mxu0 0
    %1725 = vmatpush1.bf16.msra.mxu0 %v1715
    %1726 = vmatprep.subr.bf16.mxu0 0
    %1727 = vmatpush1.bf16.msra.mxu0 %v1714
    %1728 = vmatprep.subr.bf16.mxu0 0
    %1729 = vmatpush1.bf16.msra.mxu0 %v1713
    %1730 = vmatprep.subr.bf16.mxu0 0
    %1731 = vmatpush1.bf16.msra.mxu0 %v1712
    %1732 = vmatprep.subr.bf16.mxu0 0
    %1733 = vmatpush1.bf16.msra.mxu0 %v1711
    %1734 = vmatprep.subr.bf16.mxu0 0
    %1735 = vmatpush1.bf16.msra.mxu0 %v1710
    %1736 = vmatprep.subr.bf16.mxu0 0
    %1737 = vmatpush1.bf16.msra.mxu0 %v1709
    %1738 = vmatprep.subr.bf16.mxu0 0
    %1739 = vmatpush1.bf16.msra.mxu0 %v1708
    %1740 = vmatprep.subr.bf16.mxu0 0
    %1741 = vmatpush2.bf16.msra.mxu0 0
    %1742 = vmatprep.subr.bf16.mxu0 0
    %1743 = vmatpush2.bf16.msra.mxu0 0
    %1744 = vmatprep.subr.bf16.mxu0 0
    %1745 = vmatpush2.bf16.msra.mxu0 0
    %1746 = vmatprep.subr.bf16.mxu0 0
    %1747 = vmatpush2.bf16.msra.mxu0 0
    %1748 = vmatprep.subr.bf16.mxu0 0
    %1749 = vmatpush2.bf16.msra.mxu0 0
    %1750 = vmatprep.subr.bf16.mxu0 0
    %1751 = vmatpush2.bf16.msra.mxu0 0
    %1752 = vmatprep.subr.bf16.mxu0 0
    %1753 = vmatpush2.bf16.msra.mxu0 0
    %1754 = vmatprep.subr.bf16.mxu0 0
    %1755 = vmatpush2.bf16.msra.mxu0 0
    %1756 = vmatprep.mubr.bf16.mxu0 0
    %1757 = vmatmul.mubr.bf16.gmra.mxu0 %v1651
    %v1758 = vpop.f32.mrf.mxu0
    %v1759 = vadd.f32 %v1674, %v1758
    %v1760 = vpop.f32.mrf.mxu0
    %v1761 = vpop.f32.mrf.mxu0
    %v1762 = vadd.f32 %v1674, %v1761
    %v1763 = vpop.f32.mrf.mxu0
    %1764 = vmatprep.mubr.bf16.mxu0 0
    %1765 = vmatmul.mubr.bf16.gmra.mxu0 %v1652
    %v1766 = vpop.f32.mrf.mxu0
    %v1767 = vadd.f32 %v1674, %v1766
    %v1768 = vpop.f32.mrf.mxu0
    %v1769 = vpop.f32.mrf.mxu0
    %v1770 = vadd.f32 %v1674, %v1769
    %v1771 = vpop.f32.mrf.mxu0
    %1772 = vdwg.mxu0
    %v1773 = vld [vmem:[%s51] sm:$0x1]
    %v1775 = vlaneseq
    %v1776 = vshrl.u32 %v1775, 7
    %v1777 = vsub.s32 0, %v1776
    %v1778 = vrot.slane %v1773, %v1777
    %v1780 = vmul.f32 %v1778, %v1759
    %v1781 = vmul.f32 %v1778, %v1762
    %v1782 = vmul.f32 %v1778, %v1767
    %v1783 = vmul.f32 %v1778, %v1770
    %v1784 = vadd.f32 %v491, %v1780
    %v1785 = vadd.f32 %v492, %v1781
    %v1786 = vadd.f32 %v493, %v1782
    %v1787 = vadd.f32 %v494, %v1783
    %v1788 = vld [vmem:[%s39] sm:$0x1]
    %v1789 = vld [vmem:[%s41] sm:$0x1]
    %1790 = vadd.xlane.f32.xlu0 %v1784
    %v1791 = vpop.xlane.xlu0 %1790
    %1792 = vadd.xlane.f32.xlu0 %v1785
    %v1793 = vpop.xlane.xlu0 %1792
    %1794 = vadd.xlane.f32.xlu0 %v1786
    %v1795 = vpop.xlane.xlu0 %1794
    %1796 = vadd.xlane.f32.xlu0 %v1787
    %v1797 = vpop.xlane.xlu0 %1796
    %v1798 = vmul.f32 %v1791, %v434
    %v1799 = vmul.f32 %v1793, %v434
    %v1800 = vmul.f32 %v1795, %v434
    %v1801 = vmul.f32 %v1797, %v434
    %v1802 = vsub.f32 %v1784, %v1798
    %v1803 = vsub.f32 %v1785, %v1799
    %v1804 = vsub.f32 %v1786, %v1800
    %v1805 = vsub.f32 %v1787, %v1801
    %v1806 = vmul.f32 %v1802, %v1802
    %v1807 = vmul.f32 %v1803, %v1803
    %v1808 = vmul.f32 %v1804, %v1804
    %v1809 = vmul.f32 %v1805, %v1805
    %1810 = vadd.xlane.f32.xlu0 %v1806
    %v1811 = vpop.xlane.xlu0 %1810
    %1812 = vadd.xlane.f32.xlu0 %v1807
    %v1813 = vpop.xlane.xlu0 %1812
    %1814 = vadd.xlane.f32.xlu0 %v1808
    %v1815 = vpop.xlane.xlu0 %1814
    %1816 = vadd.xlane.f32.xlu0 %v1809
    %v1817 = vpop.xlane.xlu0 %1816
    %v1818 = vmul.f32 %v1811, %v434
    %v1819 = vmul.f32 %v1813, %v434
    %v1820 = vmul.f32 %v1815, %v434
    %v1821 = vmul.f32 %v1817, %v434
    %v1822 = vadd.f32 %v1818, 1e-05
    %v1823 = vadd.f32 %v1819, 1e-05
    %v1824 = vadd.f32 %v1820, 1e-05
    %v1825 = vadd.f32 %v1821, 1e-05
    %v1826 = vrsqrt.pop %v1822
    %v1827 = vrsqrt.pop %v1823
    %v1828 = vrsqrt.pop %v1824
    %v1829 = vrsqrt.pop %v1825
    %v1830 = vmul.f32 %v1802, %v1826
    %v1831 = vmul.f32 %v1803, %v1827
    %v1832 = vmul.f32 %v1804, %v1828
    %v1833 = vmul.f32 %v1805, %v1829
    %v1835 = vlaneseq
    %v1836 = vshrl.u32 %v1835, 7
    %v1837 = vsub.s32 0, %v1836
    %v1838 = vrot.slane %v1788, %v1837
    %v1840 = vmul.f32 %v1830, %v1838
    %v1841 = vmul.f32 %v1831, %v1838
    %v1842 = vmul.f32 %v1832, %v1838
    %v1843 = vmul.f32 %v1833, %v1838
    %v1845 = vlaneseq
    %v1846 = vshrl.u32 %v1845, 7
    %v1847 = vsub.s32 0, %v1846
    %v1848 = vrot.slane %v1789, %v1847
    %v1850 = vadd.f32 %v1840, %v1848
    %v1851 = vadd.f32 %v1841, %v1848
    %v1852 = vadd.f32 %v1842, %v1848
    %v1853 = vadd.f32 %v1843, %v1848
    %v1854 = vpack.c.bf16 %v1851, %v1850
    %v1855 = vpack.c.bf16 %v1853, %v1852
    %v1856 = vld [vmem:[#allocation16] sm:$0xff]
    %v1857 = vld [vmem:[#allocation16 + $0x8] sm:$0xff]
    %v1858 = vld [vmem:[#allocation16 + $0x10] sm:$0xff]
    %v1859 = vld [vmem:[#allocation16 + $0x18] sm:$0xff]
    %v1860 = vld [vmem:[#allocation16 + $0x20] sm:$0xff]
    %v1861 = vld [vmem:[#allocation16 + $0x28] sm:$0xff]
    %v1862 = vld [vmem:[#allocation16 + $0x30] sm:$0xff]
    %v1863 = vld [vmem:[#allocation16 + $0x38] sm:$0xff]
    %v1864 = vld [vmem:[#allocation16 + $0x40] sm:$0xff]
    %v1865 = vld [vmem:[#allocation16 + $0x48] sm:$0xff]
    %v1866 = vld [vmem:[#allocation16 + $0x50] sm:$0xff]
    %v1867 = vld [vmem:[#allocation16 + $0x58] sm:$0xff]
    %v1868 = vld [vmem:[#allocation16 + $0x60] sm:$0xff]
    %v1869 = vld [vmem:[#allocation16 + $0x68] sm:$0xff]
    %v1870 = vld [vmem:[#allocation16 + $0x70] sm:$0xff]
    %v1871 = vld [vmem:[#allocation16 + $0x78] sm:$0xff]
    %v1872 = vld [vmem:[#allocation16 + $0x80] sm:$0xff]
    %v1873 = vld [vmem:[#allocation16 + $0x88] sm:$0xff]
    %v1874 = vld [vmem:[#allocation16 + $0x90] sm:$0xff]
    %v1875 = vld [vmem:[#allocation16 + $0x98] sm:$0xff]
    %v1876 = vld [vmem:[#allocation16 + $0xa0] sm:$0xff]
    %v1877 = vld [vmem:[#allocation16 + $0xa8] sm:$0xff]
    %v1878 = vld [vmem:[#allocation16 + $0xb0] sm:$0xff]
    %v1879 = vld [vmem:[#allocation16 + $0xb8] sm:$0xff]
    %v1880 = vld [vmem:[#allocation16 + $0xc0] sm:$0xff]
    %v1881 = vld [vmem:[#allocation16 + $0xc8] sm:$0xff]
    %v1882 = vld [vmem:[#allocation16 + $0xd0] sm:$0xff]
    %v1883 = vld [vmem:[#allocation16 + $0xd8] sm:$0xff]
    %v1884 = vld [vmem:[#allocation16 + $0xe0] sm:$0xff]
    %v1885 = vld [vmem:[#allocation16 + $0xe8] sm:$0xff]
    %v1886 = vld [vmem:[#allocation16 + $0xf0] sm:$0xff]
    %v1887 = vld [vmem:[#allocation16 + $0xf8] sm:$0xff]
    %v1888 = vld [vmem:[%s45] sm:$0xf]
    %v1890 = vlaneseq
    %v1891 = vshrl.u32 %v1890, 7
    %v1892 = vsub.s32 0, %v1891
    %v1893 = vrot.slane %v1888, %v1892
    %v1894 = vlaneseq
    %v1895 = vshrl.u32 %v1894, 7
    %v1896 = vsub.s32 1, %v1895
    %v1897 = vrot.slane %v1888, %v1896
    %v1898 = vlaneseq
    %v1899 = vshrl.u32 %v1898, 7
    %v1900 = vsub.s32 2, %v1899
    %v1901 = vrot.slane %v1888, %v1900
    %v1902 = vlaneseq
    %v1903 = vshrl.u32 %v1902, 7
    %v1904 = vsub.s32 3, %v1903
    %v1905 = vrot.slane %v1888, %v1904
    %v1942 = vunpack.c.l.b16 %v1856
    %v1943 = vunpack.c.h.b16 %v1856
    %v1944 = vunpack.c.l.b16 %v1857
    %v1945 = vunpack.c.h.b16 %v1857
    %v1946 = vunpack.c.l.b16 %v1858
    %v1947 = vunpack.c.h.b16 %v1858
    %v1948 = vunpack.c.l.b16 %v1859
    %v1949 = vunpack.c.h.b16 %v1859
    %v1950 = vunpack.c.l.b16 %v1860
    %v1951 = vunpack.c.h.b16 %v1860
    %v1952 = vunpack.c.l.b16 %v1861
    %v1953 = vunpack.c.h.b16 %v1861
    %v1954 = vunpack.c.l.b16 %v1862
    %v1955 = vunpack.c.h.b16 %v1862
    %v1956 = vunpack.c.l.b16 %v1863
    %v1957 = vunpack.c.h.b16 %v1863
    %v1958 = vunpack.c.l.b16 %v1864
    %v1959 = vunpack.c.h.b16 %v1864
    %v1960 = vunpack.c.l.b16 %v1865
    %v1961 = vunpack.c.h.b16 %v1865
    %v1962 = vunpack.c.l.b16 %v1866
    %v1963 = vunpack.c.h.b16 %v1866
    %v1964 = vunpack.c.l.b16 %v1867
    %v1965 = vunpack.c.h.b16 %v1867
    %v1966 = vunpack.c.l.b16 %v1868
    %v1967 = vunpack.c.h.b16 %v1868
    %v1968 = vunpack.c.l.b16 %v1869
    %v1969 = vunpack.c.h.b16 %v1869
    %v1970 = vunpack.c.l.b16 %v1870
    %v1971 = vunpack.c.h.b16 %v1870
    %v1972 = vunpack.c.l.b16 %v1871
    %v1973 = vunpack.c.h.b16 %v1871
    %v1974 = vunpack.c.l.b16 %v1872
    %v1975 = vunpack.c.h.b16 %v1872
    %v1976 = vunpack.c.l.b16 %v1873
    %v1977 = vunpack.c.h.b16 %v1873
    %v1978 = vunpack.c.l.b16 %v1874
    %v1979 = vunpack.c.h.b16 %v1874
    %v1980 = vunpack.c.l.b16 %v1875
    %v1981 = vunpack.c.h.b16 %v1875
    %v1982 = vunpack.c.l.b16 %v1876
    %v1983 = vunpack.c.h.b16 %v1876
    %v1984 = vunpack.c.l.b16 %v1877
    %v1985 = vunpack.c.h.b16 %v1877
    %v1986 = vunpack.c.l.b16 %v1878
    %v1987 = vunpack.c.h.b16 %v1878
    %v1988 = vunpack.c.l.b16 %v1879
    %v1989 = vunpack.c.h.b16 %v1879
    %v1990 = vunpack.c.l.b16 %v1880
    %v1991 = vunpack.c.h.b16 %v1880
    %v1992 = vunpack.c.l.b16 %v1881
    %v1993 = vunpack.c.h.b16 %v1881
    %v1994 = vunpack.c.l.b16 %v1882
    %v1995 = vunpack.c.h.b16 %v1882
    %v1996 = vunpack.c.l.b16 %v1883
    %v1997 = vunpack.c.h.b16 %v1883
    %v1998 = vunpack.c.l.b16 %v1884
    %v1999 = vunpack.c.h.b16 %v1884
    %v2000 = vunpack.c.l.b16 %v1885
    %v2001 = vunpack.c.h.b16 %v1885
    %v2002 = vunpack.c.l.b16 %v1886
    %v2003 = vunpack.c.h.b16 %v1886
    %v2004 = vunpack.c.l.b16 %v1887
    %v2005 = vunpack.c.h.b16 %v1887
    %v2006 = vpack.c.b16 %v1946, %v1942
    %v2007 = vpack.c.b16 %v1947, %v1943
    %v2008 = vpack.c.b16 %v1948, %v1944
    %v2009 = vpack.c.b16 %v1949, %v1945
    %v2010 = vpack.c.b16 %v1954, %v1950
    %v2011 = vpack.c.b16 %v1955, %v1951
    %v2012 = vpack.c.b16 %v1956, %v1952
    %v2013 = vpack.c.b16 %v1957, %v1953
    %v2014 = vpack.c.b16 %v1962, %v1958
    %v2015 = vpack.c.b16 %v1963, %v1959
    %v2016 = vpack.c.b16 %v1964, %v1960
    %v2017 = vpack.c.b16 %v1965, %v1961
    %v2018 = vpack.c.b16 %v1970, %v1966
    %v2019 = vpack.c.b16 %v1971, %v1967
    %v2020 = vpack.c.b16 %v1972, %v1968
    %v2021 = vpack.c.b16 %v1973, %v1969
    %v2022 = vpack.c.b16 %v1978, %v1974
    %v2023 = vpack.c.b16 %v1979, %v1975
    %v2024 = vpack.c.b16 %v1980, %v1976
    %v2025 = vpack.c.b16 %v1981, %v1977
    %v2026 = vpack.c.b16 %v1986, %v1982
    %v2027 = vpack.c.b16 %v1987, %v1983
    %v2028 = vpack.c.b16 %v1988, %v1984
    %v2029 = vpack.c.b16 %v1989, %v1985
    %v2030 = vpack.c.b16 %v1994, %v1990
    %v2031 = vpack.c.b16 %v1995, %v1991
    %v2032 = vpack.c.b16 %v1996, %v1992
    %v2033 = vpack.c.b16 %v1997, %v1993
    %v2034 = vpack.c.b16 %v2002, %v1998
    %v2035 = vpack.c.b16 %v2003, %v1999
    %v2036 = vpack.c.b16 %v2004, %v2000
    %v2037 = vpack.c.b16 %v2005, %v2001
    %2070 = vmatprep.subr.bf16.mxu0 %v2035
    %2071 = vmatpush1.bf16.msra.mxu0 %v2034
    %2072 = vmatprep.subr.bf16.mxu0 %v2031
    %2073 = vmatpush1.bf16.msra.mxu0 %v2030
    %2074 = vmatprep.subr.bf16.mxu0 %v2027
    %2075 = vmatpush1.bf16.msra.mxu0 %v2026
    %2076 = vmatprep.subr.bf16.mxu0 %v2023
    %2077 = vmatpush1.bf16.msra.mxu0 %v2022
    %2078 = vmatprep.subr.bf16.mxu0 %v2019
    %2079 = vmatpush1.bf16.msra.mxu0 %v2018
    %2080 = vmatprep.subr.bf16.mxu0 %v2015
    %2081 = vmatpush1.bf16.msra.mxu0 %v2014
    %2082 = vmatprep.subr.bf16.mxu0 %v2011
    %2083 = vmatpush1.bf16.msra.mxu0 %v2010
    %2084 = vmatprep.subr.bf16.mxu0 %v2007
    %2085 = vmatpush1.bf16.msra.mxu0 %v2006
    %2086 = vmatprep.subr.bf16.mxu0 0
    %2087 = vmatpush2.bf16.msra.mxu0 0
    %2088 = vmatprep.subr.bf16.mxu0 0
    %2089 = vmatpush2.bf16.msra.mxu0 0
    %2090 = vmatprep.subr.bf16.mxu0 0
    %2091 = vmatpush2.bf16.msra.mxu0 0
    %2092 = vmatprep.subr.bf16.mxu0 0
    %2093 = vmatpush2.bf16.msra.mxu0 0
    %2094 = vmatprep.subr.bf16.mxu0 0
    %2095 = vmatpush2.bf16.msra.mxu0 0
    %2096 = vmatprep.subr.bf16.mxu0 0
    %2097 = vmatpush2.bf16.msra.mxu0 0
    %2098 = vmatprep.subr.bf16.mxu0 0
    %2099 = vmatpush2.bf16.msra.mxu0 0
    %2100 = vmatprep.subr.bf16.mxu0 0
    %2101 = vmatpush2.bf16.msra.mxu0 0
    %2102 = vmatprep.mubr.bf16.mxu0 0
    %2103 = vmatmul.mubr.bf16.gmra.mxu0 %v1854
    %v2104 = vpop.f32.mrf.mxu0
    %v2105 = vadd.f32 %v1893, %v2104
    %v2106 = vpop.f32.mrf.mxu0
    %v2107 = vadd.f32 %v1897, %v2106
    %v2108 = vpop.f32.mrf.mxu0
    %v2109 = vadd.f32 %v1893, %v2108
    %v2110 = vpop.f32.mrf.mxu0
    %v2111 = vadd.f32 %v1897, %v2110
    %2112 = vmatprep.mubr.bf16.mxu0 0
    %2113 = vmatmul.mubr.bf16.gmra.mxu0 %v1855
    %v2114 = vpop.f32.mrf.mxu0
    %v2115 = vadd.f32 %v1893, %v2114
    %v2116 = vpop.f32.mrf.mxu0
    %v2117 = vadd.f32 %v1897, %v2116
    %v2118 = vpop.f32.mrf.mxu0
    %v2119 = vadd.f32 %v1893, %v2118
    %v2120 = vpop.f32.mrf.mxu0
    %v2121 = vadd.f32 %v1897, %v2120
    %2122 = vdwg.mxu0
    %2123 = vmatprep.subr.bf16.mxu0 %v2037
    %2124 = vmatpush1.bf16.msra.mxu0 %v2036
    %2125 = vmatprep.subr.bf16.mxu0 %v2033
    %2126 = vmatpush1.bf16.msra.mxu0 %v2032
    %2127 = vmatprep.subr.bf16.mxu0 %v2029
    %2128 = vmatpush1.bf16.msra.mxu0 %v2028
    %2129 = vmatprep.subr.bf16.mxu0 %v2025
    %2130 = vmatpush1.bf16.msra.mxu0 %v2024
    %2131 = vmatprep.subr.bf16.mxu0 %v2021
    %2132 = vmatpush1.bf16.msra.mxu0 %v2020
    %2133 = vmatprep.subr.bf16.mxu0 %v2017
    %2134 = vmatpush1.bf16.msra.mxu0 %v2016
    %2135 = vmatprep.subr.bf16.mxu0 %v2013
    %2136 = vmatpush1.bf16.msra.mxu0 %v2012
    %2137 = vmatprep.subr.bf16.mxu0 %v2009
    %2138 = vmatpush1.bf16.msra.mxu0 %v2008
    %2139 = vmatprep.subr.bf16.mxu0 0
    %2140 = vmatpush2.bf16.msra.mxu0 0
    %2141 = vmatprep.subr.bf16.mxu0 0
    %2142 = vmatpush2.bf16.msra.mxu0 0
    %2143 = vmatprep.subr.bf16.mxu0 0
    %2144 = vmatpush2.bf16.msra.mxu0 0
    %2145 = vmatprep.subr.bf16.mxu0 0
    %2146 = vmatpush2.bf16.msra.mxu0 0
    %2147 = vmatprep.subr.bf16.mxu0 0
    %2148 = vmatpush2.bf16.msra.mxu0 0
    %2149 = vmatprep.subr.bf16.mxu0 0
    %2150 = vmatpush2.bf16.msra.mxu0 0
    %2151 = vmatprep.subr.bf16.mxu0 0
    %2152 = vmatpush2.bf16.msra.mxu0 0
    %2153 = vmatprep.subr.bf16.mxu0 0
    %2154 = vmatpush2.bf16.msra.mxu0 0
    %2155 = vmatprep.mubr.bf16.mxu0 0
    %2156 = vmatmul.mubr.bf16.gmra.mxu0 %v1854
    %v2157 = vpop.f32.mrf.mxu0
    %v2158 = vadd.f32 %v1901, %v2157
    %v2159 = vpop.f32.mrf.mxu0
    %v2160 = vadd.f32 %v1905, %v2159
    %v2161 = vpop.f32.mrf.mxu0
    %v2162 = vadd.f32 %v1901, %v2161
    %v2163 = vpop.f32.mrf.mxu0
    %v2164 = vadd.f32 %v1905, %v2163
    %2165 = vmatprep.mubr.bf16.mxu0 0
    %2166 = vmatmul.mubr.bf16.gmra.mxu0 %v1855
    %v2167 = vpop.f32.mrf.mxu0
    %v2168 = vadd.f32 %v1901, %v2167
    %v2169 = vpop.f32.mrf.mxu0
    %v2170 = vadd.f32 %v1905, %v2169
    %v2171 = vpop.f32.mrf.mxu0
    %v2172 = vadd.f32 %v1901, %v2171
    %v2173 = vpop.f32.mrf.mxu0
    %v2174 = vadd.f32 %v1905, %v2173
    %2175 = vdwg.mxu0
    %v2176 = vmul.f32 %v2105, 0.5
    %v2177 = vmul.f32 %v2107, 0.5
    %v2178 = vmul.f32 %v2158, 0.5
    %v2179 = vmul.f32 %v2160, 0.5
    %v2180 = vmul.f32 %v2109, 0.5
    %v2181 = vmul.f32 %v2111, 0.5
    %v2182 = vmul.f32 %v2162, 0.5
    %v2183 = vmul.f32 %v2164, 0.5
    %v2184 = vmul.f32 %v2115, 0.5
    %v2185 = vmul.f32 %v2117, 0.5
    %v2186 = vmul.f32 %v2168, 0.5
    %v2187 = vmul.f32 %v2170, 0.5
    %v2188 = vmul.f32 %v2119, 0.5
    %v2189 = vmul.f32 %v2121, 0.5
    %v2190 = vmul.f32 %v2172, 0.5
    %v2191 = vmul.f32 %v2174, 0.5
    %v2192 = vmul.f32 %v2105, 0.044715
    %v2193 = vmul.f32 %v2107, 0.044715
    %v2194 = vmul.f32 %v2158, 0.044715
    %v2195 = vmul.f32 %v2160, 0.044715
    %v2196 = vmul.f32 %v2109, 0.044715
    %v2197 = vmul.f32 %v2111, 0.044715
    %v2198 = vmul.f32 %v2162, 0.044715
    %v2199 = vmul.f32 %v2164, 0.044715
    %v2200 = vmul.f32 %v2115, 0.044715
    %v2201 = vmul.f32 %v2117, 0.044715
    %v2202 = vmul.f32 %v2168, 0.044715
    %v2203 = vmul.f32 %v2170, 0.044715
    %v2204 = vmul.f32 %v2119, 0.044715
    %v2205 = vmul.f32 %v2121, 0.044715
    %v2206 = vmul.f32 %v2172, 0.044715
    %v2207 = vmul.f32 %v2174, 0.044715
    %v2208 = vmul.f32 %v2192, %v2105
    %v2209 = vmul.f32 %v2193, %v2107
    %v2210 = vmul.f32 %v2194, %v2158
    %v2211 = vmul.f32 %v2195, %v2160
    %v2212 = vmul.f32 %v2196, %v2109
    %v2213 = vmul.f32 %v2197, %v2111
    %v2214 = vmul.f32 %v2198, %v2162
    %v2215 = vmul.f32 %v2199, %v2164
    %v2216 = vmul.f32 %v2200, %v2115
    %v2217 = vmul.f32 %v2201, %v2117
    %v2218 = vmul.f32 %v2202, %v2168
    %v2219 = vmul.f32 %v2203, %v2170
    %v2220 = vmul.f32 %v2204, %v2119
    %v2221 = vmul.f32 %v2205, %v2121
    %v2222 = vmul.f32 %v2206, %v2172
    %v2223 = vmul.f32 %v2207, %v2174
    %v2224 = vmul.f32 %v2208, %v2105
    %v2225 = vmul.f32 %v2209, %v2107
    %v2226 = vmul.f32 %v2210, %v2158
    %v2227 = vmul.f32 %v2211, %v2160
    %v2228 = vmul.f32 %v2212, %v2109
    %v2229 = vmul.f32 %v2213, %v2111
    %v2230 = vmul.f32 %v2214, %v2162
    %v2231 = vmul.f32 %v2215, %v2164
    %v2232 = vmul.f32 %v2216, %v2115
    %v2233 = vmul.f32 %v2217, %v2117
    %v2234 = vmul.f32 %v2218, %v2168
    %v2235 = vmul.f32 %v2219, %v2170
    %v2236 = vmul.f32 %v2220, %v2119
    %v2237 = vmul.f32 %v2221, %v2121
    %v2238 = vmul.f32 %v2222, %v2172
    %v2239 = vmul.f32 %v2223, %v2174
    %v2240 = vadd.f32 %v2105, %v2224
    %v2241 = vadd.f32 %v2107, %v2225
    %v2242 = vadd.f32 %v2158, %v2226
    %v2243 = vadd.f32 %v2160, %v2227
    %v2244 = vadd.f32 %v2109, %v2228
    %v2245 = vadd.f32 %v2111, %v2229
    %v2246 = vadd.f32 %v2162, %v2230
    %v2247 = vadd.f32 %v2164, %v2231
    %v2248 = vadd.f32 %v2115, %v2232
    %v2249 = vadd.f32 %v2117, %v2233
    %v2250 = vadd.f32 %v2168, %v2234
    %v2251 = vadd.f32 %v2170, %v2235
    %v2252 = vadd.f32 %v2119, %v2236
    %v2253 = vadd.f32 %v2121, %v2237
    %v2254 = vadd.f32 %v2172, %v2238
    %v2255 = vadd.f32 %v2174, %v2239
    %v2256 = vmul.f32 %v2240, 0.7978846
    %v2257 = vmul.f32 %v2241, 0.7978846
    %v2258 = vmul.f32 %v2242, 0.7978846
    %v2259 = vmul.f32 %v2243, 0.7978846
    %v2260 = vmul.f32 %v2244, 0.7978846
    %v2261 = vmul.f32 %v2245, 0.7978846
    %v2262 = vmul.f32 %v2246, 0.7978846
    %v2263 = vmul.f32 %v2247, 0.7978846
    %v2264 = vmul.f32 %v2248, 0.7978846
    %v2265 = vmul.f32 %v2249, 0.7978846
    %v2266 = vmul.f32 %v2250, 0.7978846
    %v2267 = vmul.f32 %v2251, 0.7978846
    %v2268 = vmul.f32 %v2252, 0.7978846
    %v2269 = vmul.f32 %v2253, 0.7978846
    %v2270 = vmul.f32 %v2254, 0.7978846
    %v2271 = vmul.f32 %v2255, 0.7978846
    %v2272 = vtanh.pop %v2256
    %v2273 = vtanh.pop %v2257
    %v2274 = vtanh.pop %v2258
    %v2275 = vtanh.pop %v2259
    %v2276 = vtanh.pop %v2260
    %v2277 = vtanh.pop %v2261
    %v2278 = vtanh.pop %v2262
    %v2279 = vtanh.pop %v2263
    %v2280 = vtanh.pop %v2264
    %v2281 = vtanh.pop %v2265
    %v2282 = vtanh.pop %v2266
    %v2283 = vtanh.pop %v2267
    %v2284 = vtanh.pop %v2268
    %v2285 = vtanh.pop %v2269
    %v2286 = vtanh.pop %v2270
    %v2287 = vtanh.pop %v2271
    %v2288 = vadd.f32 %v2272, 1.0
    %v2289 = vadd.f32 %v2273, 1.0
    %v2290 = vadd.f32 %v2274, 1.0
    %v2291 = vadd.f32 %v2275, 1.0
    %v2292 = vadd.f32 %v2276, 1.0
    %v2293 = vadd.f32 %v2277, 1.0
    %v2294 = vadd.f32 %v2278, 1.0
    %v2295 = vadd.f32 %v2279, 1.0
    %v2296 = vadd.f32 %v2280, 1.0
    %v2297 = vadd.f32 %v2281, 1.0
    %v2298 = vadd.f32 %v2282, 1.0
    %v2299 = vadd.f32 %v2283, 1.0
    %v2300 = vadd.f32 %v2284, 1.0
    %v2301 = vadd.f32 %v2285, 1.0
    %v2302 = vadd.f32 %v2286, 1.0
    %v2303 = vadd.f32 %v2287, 1.0
    %v2304 = vmul.f32 %v2176, %v2288
    %v2305 = vmul.f32 %v2177, %v2289
    %v2306 = vmul.f32 %v2178, %v2290
    %v2307 = vmul.f32 %v2179, %v2291
    %v2308 = vmul.f32 %v2180, %v2292
    %v2309 = vmul.f32 %v2181, %v2293
    %v2310 = vmul.f32 %v2182, %v2294
    %v2311 = vmul.f32 %v2183, %v2295
    %v2312 = vmul.f32 %v2184, %v2296
    %v2313 = vmul.f32 %v2185, %v2297
    %v2314 = vmul.f32 %v2186, %v2298
    %v2315 = vmul.f32 %v2187, %v2299
    %v2316 = vmul.f32 %v2188, %v2300
    %v2317 = vmul.f32 %v2189, %v2301
    %v2318 = vmul.f32 %v2190, %v2302
    %v2319 = vmul.f32 %v2191, %v2303
    %v2320 = vpack.c.bf16 %v2308, %v2304
    %v2321 = vpack.c.bf16 %v2309, %v2305
    %v2322 = vpack.c.bf16 %v2310, %v2306
    %v2323 = vpack.c.bf16 %v2311, %v2307
    %v2324 = vpack.c.bf16 %v2316, %v2312
    %v2325 = vpack.c.bf16 %v2317, %v2313
    %v2326 = vpack.c.bf16 %v2318, %v2314
    %v2327 = vpack.c.bf16 %v2319, %v2315
    %v2328 = vld [vmem:[#allocation17] sm:$0xf]
    %v2329 = vld [vmem:[#allocation17 + $0x4] sm:$0xf]
    %v2330 = vld [vmem:[#allocation17 + $0x8] sm:$0xf]
    %v2331 = vld [vmem:[#allocation17 + $0xc] sm:$0xf]
    %v2332 = vld [vmem:[#allocation17 + $0x10] sm:$0xf]
    %v2333 = vld [vmem:[#allocation17 + $0x14] sm:$0xf]
    %v2334 = vld [vmem:[#allocation17 + $0x18] sm:$0xf]
    %v2335 = vld [vmem:[#allocation17 + $0x1c] sm:$0xf]
    %v2336 = vld [vmem:[#allocation17 + $0x20] sm:$0xf]
    %v2337 = vld [vmem:[#allocation17 + $0x24] sm:$0xf]
    %v2338 = vld [vmem:[#allocation17 + $0x28] sm:$0xf]
    %v2339 = vld [vmem:[#allocation17 + $0x2c] sm:$0xf]
    %v2340 = vld [vmem:[#allocation17 + $0x30] sm:$0xf]
    %v2341 = vld [vmem:[#allocation17 + $0x34] sm:$0xf]
    %v2342 = vld [vmem:[#allocation17 + $0x38] sm:$0xf]
    %v2343 = vld [vmem:[#allocation17 + $0x3c] sm:$0xf]
    %v2344 = vld [vmem:[#allocation17 + $0x40] sm:$0xf]
    %v2345 = vld [vmem:[#allocation17 + $0x44] sm:$0xf]
    %v2346 = vld [vmem:[#allocation17 + $0x48] sm:$0xf]
    %v2347 = vld [vmem:[#allocation17 + $0x4c] sm:$0xf]
    %v2348 = vld [vmem:[#allocation17 + $0x50] sm:$0xf]
    %v2349 = vld [vmem:[#allocation17 + $0x54] sm:$0xf]
    %v2350 = vld [vmem:[#allocation17 + $0x58] sm:$0xf]
    %v2351 = vld [vmem:[#allocation17 + $0x5c] sm:$0xf]
    %v2352 = vld [vmem:[#allocation17 + $0x60] sm:$0xf]
    %v2353 = vld [vmem:[#allocation17 + $0x64] sm:$0xf]
    %v2354 = vld [vmem:[#allocation17 + $0x68] sm:$0xf]
    %v2355 = vld [vmem:[#allocation17 + $0x6c] sm:$0xf]
    %v2356 = vld [vmem:[#allocation17 + $0x70] sm:$0xf]
    %v2357 = vld [vmem:[#allocation17 + $0x74] sm:$0xf]
    %v2358 = vld [vmem:[#allocation17 + $0x78] sm:$0xf]
    %v2359 = vld [vmem:[#allocation17 + $0x7c] sm:$0xf]
    %v2360 = vld [vmem:[#allocation17 + $0x80] sm:$0xf]
    %v2361 = vld [vmem:[#allocation17 + $0x84] sm:$0xf]
    %v2362 = vld [vmem:[#allocation17 + $0x88] sm:$0xf]
    %v2363 = vld [vmem:[#allocation17 + $0x8c] sm:$0xf]
    %v2364 = vld [vmem:[#allocation17 + $0x90] sm:$0xf]
    %v2365 = vld [vmem:[#allocation17 + $0x94] sm:$0xf]
    %v2366 = vld [vmem:[#allocation17 + $0x98] sm:$0xf]
    %v2367 = vld [vmem:[#allocation17 + $0x9c] sm:$0xf]
    %v2368 = vld [vmem:[#allocation17 + $0xa0] sm:$0xf]
    %v2369 = vld [vmem:[#allocation17 + $0xa4] sm:$0xf]
    %v2370 = vld [vmem:[#allocation17 + $0xa8] sm:$0xf]
    %v2371 = vld [vmem:[#allocation17 + $0xac] sm:$0xf]
    %v2372 = vld [vmem:[#allocation17 + $0xb0] sm:$0xf]
    %v2373 = vld [vmem:[#allocation17 + $0xb4] sm:$0xf]
    %v2374 = vld [vmem:[#allocation17 + $0xb8] sm:$0xf]
    %v2375 = vld [vmem:[#allocation17 + $0xbc] sm:$0xf]
    %v2376 = vld [vmem:[#allocation17 + $0xc0] sm:$0xf]
    %v2377 = vld [vmem:[#allocation17 + $0xc4] sm:$0xf]
    %v2378 = vld [vmem:[#allocation17 + $0xc8] sm:$0xf]
    %v2379 = vld [vmem:[#allocation17 + $0xcc] sm:$0xf]
    %v2380 = vld [vmem:[#allocation17 + $0xd0] sm:$0xf]
    %v2381 = vld [vmem:[#allocation17 + $0xd4] sm:$0xf]
    %v2382 = vld [vmem:[#allocation17 + $0xd8] sm:$0xf]
    %v2383 = vld [vmem:[#allocation17 + $0xdc] sm:$0xf]
    %v2384 = vld [vmem:[#allocation17 + $0xe0] sm:$0xf]
    %v2385 = vld [vmem:[#allocation17 + $0xe4] sm:$0xf]
    %v2386 = vld [vmem:[#allocation17 + $0xe8] sm:$0xf]
    %v2387 = vld [vmem:[#allocation17 + $0xec] sm:$0xf]
    %v2388 = vld [vmem:[#allocation17 + $0xf0] sm:$0xf]
    %v2389 = vld [vmem:[#allocation17 + $0xf4] sm:$0xf]
    %v2390 = vld [vmem:[#allocation17 + $0xf8] sm:$0xf]
    %v2391 = vld [vmem:[#allocation17 + $0xfc] sm:$0xf]
    %v2392 = vld [vmem:[%s49] sm:$0x1]
    %v2394 = vlaneseq
    %v2395 = vshrl.u32 %v2394, 7
    %v2396 = vsub.s32 0, %v2395
    %v2397 = vrot.slane %v2392, %v2396
    %v2463 = vunpack.c.l.b16 %v2328
    %v2464 = vunpack.c.l.b16 %v2329
    %v2465 = vunpack.c.l.b16 %v2330
    %v2466 = vunpack.c.l.b16 %v2331
    %v2467 = vunpack.c.l.b16 %v2332
    %v2468 = vunpack.c.l.b16 %v2333
    %v2469 = vunpack.c.l.b16 %v2334
    %v2470 = vunpack.c.l.b16 %v2335
    %v2471 = vunpack.c.l.b16 %v2336
    %v2472 = vunpack.c.l.b16 %v2337
    %v2473 = vunpack.c.l.b16 %v2338
    %v2474 = vunpack.c.l.b16 %v2339
    %v2475 = vunpack.c.l.b16 %v2340
    %v2476 = vunpack.c.l.b16 %v2341
    %v2477 = vunpack.c.l.b16 %v2342
    %v2478 = vunpack.c.l.b16 %v2343
    %v2479 = vunpack.c.l.b16 %v2344
    %v2480 = vunpack.c.l.b16 %v2345
    %v2481 = vunpack.c.l.b16 %v2346
    %v2482 = vunpack.c.l.b16 %v2347
    %v2483 = vunpack.c.l.b16 %v2348
    %v2484 = vunpack.c.l.b16 %v2349
    %v2485 = vunpack.c.l.b16 %v2350
    %v2486 = vunpack.c.l.b16 %v2351
    %v2487 = vunpack.c.l.b16 %v2352
    %v2488 = vunpack.c.l.b16 %v2353
    %v2489 = vunpack.c.l.b16 %v2354
    %v2490 = vunpack.c.l.b16 %v2355
    %v2491 = vunpack.c.l.b16 %v2356
    %v2492 = vunpack.c.l.b16 %v2357
    %v2493 = vunpack.c.l.b16 %v2358
    %v2494 = vunpack.c.l.b16 %v2359
    %v2495 = vunpack.c.l.b16 %v2360
    %v2496 = vunpack.c.l.b16 %v2361
    %v2497 = vunpack.c.l.b16 %v2362
    %v2498 = vunpack.c.l.b16 %v2363
    %v2499 = vunpack.c.l.b16 %v2364
    %v2500 = vunpack.c.l.b16 %v2365
    %v2501 = vunpack.c.l.b16 %v2366
    %v2502 = vunpack.c.l.b16 %v2367
    %v2503 = vunpack.c.l.b16 %v2368
    %v2504 = vunpack.c.l.b16 %v2369
    %v2505 = vunpack.c.l.b16 %v2370
    %v2506 = vunpack.c.l.b16 %v2371
    %v2507 = vunpack.c.l.b16 %v2372
    %v2508 = vunpack.c.l.b16 %v2373
    %v2509 = vunpack.c.l.b16 %v2374
    %v2510 = vunpack.c.l.b16 %v2375
    %v2511 = vunpack.c.l.b16 %v2376
    %v2512 = vunpack.c.l.b16 %v2377
    %v2513 = vunpack.c.l.b16 %v2378
    %v2514 = vunpack.c.l.b16 %v2379
    %v2515 = vunpack.c.l.b16 %v2380
    %v2516 = vunpack.c.l.b16 %v2381
    %v2517 = vunpack.c.l.b16 %v2382
    %v2518 = vunpack.c.l.b16 %v2383
    %v2519 = vunpack.c.l.b16 %v2384
    %v2520 = vunpack.c.l.b16 %v2385
    %v2521 = vunpack.c.l.b16 %v2386
    %v2522 = vunpack.c.l.b16 %v2387
    %v2523 = vunpack.c.l.b16 %v2388
    %v2524 = vunpack.c.l.b16 %v2389
    %v2525 = vunpack.c.l.b16 %v2390
    %v2526 = vunpack.c.l.b16 %v2391
    %v2527 = vpack.c.b16 %v2464, %v2463
    %v2528 = vpack.c.b16 %v2466, %v2465
    %v2529 = vpack.c.b16 %v2468, %v2467
    %v2530 = vpack.c.b16 %v2470, %v2469
    %v2531 = vpack.c.b16 %v2472, %v2471
    %v2532 = vpack.c.b16 %v2474, %v2473
    %v2533 = vpack.c.b16 %v2476, %v2475
    %v2534 = vpack.c.b16 %v2478, %v2477
    %v2535 = vpack.c.b16 %v2480, %v2479
    %v2536 = vpack.c.b16 %v2482, %v2481
    %v2537 = vpack.c.b16 %v2484, %v2483
    %v2538 = vpack.c.b16 %v2486, %v2485
    %v2539 = vpack.c.b16 %v2488, %v2487
    %v2540 = vpack.c.b16 %v2490, %v2489
    %v2541 = vpack.c.b16 %v2492, %v2491
    %v2542 = vpack.c.b16 %v2494, %v2493
    %v2543 = vpack.c.b16 %v2496, %v2495
    %v2544 = vpack.c.b16 %v2498, %v2497
    %v2545 = vpack.c.b16 %v2500, %v2499
    %v2546 = vpack.c.b16 %v2502, %v2501
    %v2547 = vpack.c.b16 %v2504, %v2503
    %v2548 = vpack.c.b16 %v2506, %v2505
    %v2549 = vpack.c.b16 %v2508, %v2507
    %v2550 = vpack.c.b16 %v2510, %v2509
    %v2551 = vpack.c.b16 %v2512, %v2511
    %v2552 = vpack.c.b16 %v2514, %v2513
    %v2553 = vpack.c.b16 %v2516, %v2515
    %v2554 = vpack.c.b16 %v2518, %v2517
    %v2555 = vpack.c.b16 %v2520, %v2519
    %v2556 = vpack.c.b16 %v2522, %v2521
    %v2557 = vpack.c.b16 %v2524, %v2523
    %v2558 = vpack.c.b16 %v2526, %v2525
    %2591 = vmatprep.subr.bf16.mxu0 0
    %2592 = vmatpush1.bf16.msra.mxu0 %v2534
    %2593 = vmatprep.subr.bf16.mxu0 0
    %2594 = vmatpush1.bf16.msra.mxu0 %v2533
    %2595 = vmatprep.subr.bf16.mxu0 0
    %2596 = vmatpush1.bf16.msra.mxu0 %v2532
    %2597 = vmatprep.subr.bf16.mxu0 0
    %2598 = vmatpush1.bf16.msra.mxu0 %v2531
    %2599 = vmatprep.subr.bf16.mxu0 0
    %2600 = vmatpush1.bf16.msra.mxu0 %v2530
    %2601 = vmatprep.subr.bf16.mxu0 0
    %2602 = vmatpush1.bf16.msra.mxu0 %v2529
    %2603 = vmatprep.subr.bf16.mxu0 0
    %2604 = vmatpush1.bf16.msra.mxu0 %v2528
    %2605 = vmatprep.subr.bf16.mxu0 0
    %2606 = vmatpush1.bf16.msra.mxu0 %v2527
    %2607 = vmatprep.subr.bf16.mxu0 0
    %2608 = vmatpush2.bf16.msra.mxu0 %v2542
    %2609 = vmatprep.subr.bf16.mxu0 0
    %2610 = vmatpush2.bf16.msra.mxu0 %v2541
    %2611 = vmatprep.subr.bf16.mxu0 0
    %2612 = vmatpush2.bf16.msra.mxu0 %v2540
    %2613 = vmatprep.subr.bf16.mxu0 0
    %2614 = vmatpush2.bf16.msra.mxu0 %v2539
    %2615 = vmatprep.subr.bf16.mxu0 0
    %2616 = vmatpush2.bf16.msra.mxu0 %v2538
    %2617 = vmatprep.subr.bf16.mxu0 0
    %2618 = vmatpush2.bf16.msra.mxu0 %v2537
    %2619 = vmatprep.subr.bf16.mxu0 0
    %2620 = vmatpush2.bf16.msra.mxu0 %v2536
    %2621 = vmatprep.subr.bf16.mxu0 0
    %2622 = vmatpush2.bf16.msra.mxu0 %v2535
    %2623 = vmatprep.mubr.bf16.mxu0 %v2321
    %2624 = vmatmul.mubr.bf16.gmra.mxu0 %v2320
    %v2625 = vpop.f32.mrf.mxu0
    %v2626 = vadd.f32 %v2397, %v2625
    %v2627 = vpop.f32.mrf.mxu0
    %v2628 = vpop.f32.mrf.mxu0
    %v2629 = vadd.f32 %v2397, %v2628
    %v2630 = vpop.f32.mrf.mxu0
    %2631 = vmatprep.mubr.bf16.mxu0 %v2325
    %2632 = vmatmul.mubr.bf16.gmra.mxu0 %v2324
    %v2633 = vpop.f32.mrf.mxu0
    %v2634 = vadd.f32 %v2397, %v2633
    %v2635 = vpop.f32.mrf.mxu0
    %v2636 = vpop.f32.mrf.mxu0
    %v2637 = vadd.f32 %v2397, %v2636
    %v2638 = vpop.f32.mrf.mxu0
    %2639 = vdwg.mxu0
    %2640 = vmatprep.subr.bf16.mxu0 0
    %2641 = vmatpush1.bf16.msra.mxu0 %v2550
    %2642 = vmatprep.subr.bf16.mxu0 0
    %2643 = vmatpush1.bf16.msra.mxu0 %v2549
    %2644 = vmatprep.subr.bf16.mxu0 0
    %2645 = vmatpush1.bf16.msra.mxu0 %v2548
    %2646 = vmatprep.subr.bf16.mxu0 0
    %2647 = vmatpush1.bf16.msra.mxu0 %v2547
    %2648 = vmatprep.subr.bf16.mxu0 0
    %2649 = vmatpush1.bf16.msra.mxu0 %v2546
    %2650 = vmatprep.subr.bf16.mxu0 0
    %2651 = vmatpush1.bf16.msra.mxu0 %v2545
    %2652 = vmatprep.subr.bf16.mxu0 0
    %2653 = vmatpush1.bf16.msra.mxu0 %v2544
    %2654 = vmatprep.subr.bf16.mxu0 0
    %2655 = vmatpush1.bf16.msra.mxu0 %v2543
    %2656 = vmatprep.subr.bf16.mxu0 0
    %2657 = vmatpush2.bf16.msra.mxu0 %v2558
    %2658 = vmatprep.subr.bf16.mxu0 0
    %2659 = vmatpush2.bf16.msra.mxu0 %v2557
    %2660 = vmatprep.subr.bf16.mxu0 0
    %2661 = vmatpush2.bf16.msra.mxu0 %v2556
    %2662 = vmatprep.subr.bf16.mxu0 0
    %2663 = vmatpush2.bf16.msra.mxu0 %v2555
    %2664 = vmatprep.subr.bf16.mxu0 0
    %2665 = vmatpush2.bf16.msra.mxu0 %v2554
    %2666 = vmatprep.subr.bf16.mxu0 0
    %2667 = vmatpush2.bf16.msra.mxu0 %v2553
    %2668 = vmatprep.subr.bf16.mxu0 0
    %2669 = vmatpush2.bf16.msra.mxu0 %v2552
    %2670 = vmatprep.subr.bf16.mxu0 0
    %2671 = vmatpush2.bf16.msra.mxu0 %v2551
    %2672 = vmatprep.mubr.bf16.mxu0 %v2323
    %2673 = vmatmul.mubr.bf16.gmra.mxu0 %v2322
    %v2674 = vpop.f32.mrf.mxu0
    %v2675 = vadd.f32 %v2626, %v2674
    %v2676 = vpop.f32.mrf.mxu0
    %v2677 = vpop.f32.mrf.mxu0
    %v2678 = vadd.f32 %v2629, %v2677
    %v2679 = vpop.f32.mrf.mxu0
    %2680 = vmatprep.mubr.bf16.mxu0 %v2327
    %2681 = vmatmul.mubr.bf16.gmra.mxu0 %v2326
    %v2682 = vpop.f32.mrf.mxu0
    %v2683 = vadd.f32 %v2634, %v2682
    %v2684 = vpop.f32.mrf.mxu0
    %v2685 = vpop.f32.mrf.mxu0
    %v2686 = vadd.f32 %v2637, %v2685
    %v2687 = vpop.f32.mrf.mxu0
    %2688 = vdwg.mxu0
    %v2689 = vld [vmem:[%s53] sm:$0x1]
    %v2691 = vlaneseq
    %v2692 = vshrl.u32 %v2691, 7
    %v2693 = vsub.s32 0, %v2692
    %v2694 = vrot.slane %v2689, %v2693
    %v2696 = vmul.f32 %v2694, %v2675
    %v2697 = vmul.f32 %v2694, %v2678
    %v2698 = vmul.f32 %v2694, %v2683
    %v2699 = vmul.f32 %v2694, %v2686
    %v2700 = vadd.f32 %v1784, %v2696
    %v2701 = vadd.f32 %v1785, %v2697
    %v2702 = vadd.f32 %v1786, %v2698
    %v2703 = vadd.f32 %v1787, %v2699
    %v2704 = vld [vmem:[%s55] sm:$0x1]
    %v2705 = vld [vmem:[%s57] sm:$0x1]
    %2706 = vadd.xlane.f32.xlu0 %v2700
    %v2707 = vpop.xlane.xlu0 %2706
    %2708 = vadd.xlane.f32.xlu0 %v2701
    %v2709 = vpop.xlane.xlu0 %2708
    %2710 = vadd.xlane.f32.xlu0 %v2702
    %v2711 = vpop.xlane.xlu0 %2710
    %2712 = vadd.xlane.f32.xlu0 %v2703
    %v2713 = vpop.xlane.xlu0 %2712
    %v2714 = vmul.f32 %v2707, %v434
    %v2715 = vmul.f32 %v2709, %v434
    %v2716 = vmul.f32 %v2711, %v434
    %v2717 = vmul.f32 %v2713, %v434
    %v2718 = vsub.f32 %v2700, %v2714
    %v2719 = vsub.f32 %v2701, %v2715
    %v2720 = vsub.f32 %v2702, %v2716
    %v2721 = vsub.f32 %v2703, %v2717
    %v2722 = vmul.f32 %v2718, %v2718
    %v2723 = vmul.f32 %v2719, %v2719
    %v2724 = vmul.f32 %v2720, %v2720
    %v2725 = vmul.f32 %v2721, %v2721
    %2726 = vadd.xlane.f32.xlu0 %v2722
    %v2727 = vpop.xlane.xlu0 %2726
    %2728 = vadd.xlane.f32.xlu0 %v2723
    %v2729 = vpop.xlane.xlu0 %2728
    %2730 = vadd.xlane.f32.xlu0 %v2724
    %v2731 = vpop.xlane.xlu0 %2730
    %2732 = vadd.xlane.f32.xlu0 %v2725
    %v2733 = vpop.xlane.xlu0 %2732
    %v2734 = vmul.f32 %v2727, %v434
    %v2735 = vmul.f32 %v2729, %v434
    %v2736 = vmul.f32 %v2731, %v434
    %v2737 = vmul.f32 %v2733, %v434
    %v2738 = vadd.f32 %v2734, 1e-05
    %v2739 = vadd.f32 %v2735, 1e-05
    %v2740 = vadd.f32 %v2736, 1e-05
    %v2741 = vadd.f32 %v2737, 1e-05
    %v2742 = vrsqrt.pop %v2738
    %v2743 = vrsqrt.pop %v2739
    %v2744 = vrsqrt.pop %v2740
    %v2745 = vrsqrt.pop %v2741
    %v2746 = vmul.f32 %v2718, %v2742
    %v2747 = vmul.f32 %v2719, %v2743
    %v2748 = vmul.f32 %v2720, %v2744
    %v2749 = vmul.f32 %v2721, %v2745
    %v2751 = vlaneseq
    %v2752 = vshrl.u32 %v2751, 7
    %v2753 = vsub.s32 0, %v2752
    %v2754 = vrot.slane %v2704, %v2753
    %v2756 = vmul.f32 %v2746, %v2754
    %v2757 = vmul.f32 %v2747, %v2754
    %v2758 = vmul.f32 %v2748, %v2754
    %v2759 = vmul.f32 %v2749, %v2754
    %v2761 = vlaneseq
    %v2762 = vshrl.u32 %v2761, 7
    %v2763 = vsub.s32 0, %v2762
    %v2764 = vrot.slane %v2705, %v2763
    %v2766 = vadd.f32 %v2756, %v2764
    %v2767 = vadd.f32 %v2757, %v2764
    %v2768 = vadd.f32 %v2758, %v2764
    %v2769 = vadd.f32 %v2759, %v2764
    %v2770 = vld [vmem:[%s7] sm:$0xff]
    %v2771 = vld [vmem:[%s7 + $0x8] sm:$0xff]
    %v2772 = vld [vmem:[%s7 + $0x10] sm:$0xff]
    %v2773 = vld [vmem:[%s7 + $0x18] sm:$0xff]
    %2775 = vset.pattern.permute.xlu0 0
    %2776 = vperm.xlu0 %2775, %v2770
    %v2777 = vpop.permute.xlu0 %2776
    %2780 = vset.pattern.permute.xlu0 0
    %2781 = vperm.xlu0 %2780, %v2771
    %v2782 = vpop.permute.xlu0 %2781
    %2785 = vset.pattern.permute.xlu0 0
    %2786 = vperm.xlu0 %2785, %v2772
    %v2787 = vpop.permute.xlu0 %2786
    %2790 = vset.pattern.permute.xlu0 0
    %2791 = vperm.xlu0 %2790, %v2773
    %v2792 = vpop.permute.xlu0 %2791
    %v2794 = vmul.f32 %v2766, %v2777
    %v2795 = vmul.f32 %v2767, %v2782
    %v2796 = vmul.f32 %v2768, %v2787
    %v2797 = vmul.f32 %v2769, %v2792
    %v2798 = vpack.c.bf16 %v2795, %v2794
    %v2799 = vpack.c.bf16 %v2797, %v2796
    %v2800 = vld [vmem:[#allocation19] sm:$0xff]
    %v2801 = vld [vmem:[#allocation19 + $0x8] sm:$0xff]
    %v2802 = vld [vmem:[#allocation19 + $0x10] sm:$0xff]
    %v2803 = vld [vmem:[#allocation19 + $0x18] sm:$0xff]
    %v2804 = vld [vmem:[#allocation19 + $0x20] sm:$0xff]
    %v2805 = vld [vmem:[#allocation19 + $0x28] sm:$0xf]
    %v2806 = vld [vmem:[#allocation19 + $0x2c] sm:$0xff]
    %v2807 = vld [vmem:[#allocation19 + $0x34] sm:$0xff]
    %v2808 = vld [vmem:[#allocation19 + $0x3c] sm:$0xff]
    %v2809 = vld [vmem:[#allocation19 + $0x44] sm:$0xff]
    %v2810 = vld [vmem:[#allocation19 + $0x4c] sm:$0xff]
    %v2811 = vld [vmem:[#allocation19 + $0x54] sm:$0xf]
    %v2812 = vld [vmem:[#allocation19 + $0x58] sm:$0xff]
    %v2813 = vld [vmem:[#allocation19 + $0x60] sm:$0xff]
    %v2814 = vld [vmem:[#allocation19 + $0x68] sm:$0xff]
    %v2815 = vld [vmem:[#allocation19 + $0x70] sm:$0xff]
    %v2816 = vld [vmem:[#allocation19 + $0x78] sm:$0xff]
    %v2817 = vld [vmem:[#allocation19 + $0x80] sm:$0xf]
    %v2818 = vld [vmem:[#allocation19 + $0x84] sm:$0xff]
    %v2819 = vld [vmem:[#allocation19 + $0x8c] sm:$0xff]
    %v2820 = vld [vmem:[#allocation19 + $0x94] sm:$0xff]
    %v2821 = vld [vmem:[#allocation19 + $0x9c] sm:$0xff]
    %v2822 = vld [vmem:[#allocation19 + $0xa4] sm:$0xff]
    %v2823 = vld [vmem:[#allocation19 + $0xac] sm:$0xf]
    %v2824 = vld [vmem:[#allocation19 + $0xb0] sm:$0xff]
    %v2825 = vld [vmem:[#allocation19 + $0xb8] sm:$0xff]
    %v2826 = vld [vmem:[#allocation19 + $0xc0] sm:$0xff]
    %v2827 = vld [vmem:[#allocation19 + $0xc8] sm:$0xff]
    %v2828 = vld [vmem:[#allocation19 + $0xd0] sm:$0xff]
    %v2829 = vld [vmem:[#allocation19 + $0xd8] sm:$0xf]
    %v2830 = vld [vmem:[#allocation19 + $0xdc] sm:$0xff]
    %v2831 = vld [vmem:[#allocation19 + $0xe4] sm:$0xff]
    %v2832 = vld [vmem:[#allocation19 + $0xec] sm:$0xff]
    %v2833 = vld [vmem:[#allocation19 + $0xf4] sm:$0xff]
    %v2834 = vld [vmem:[#allocation19 + $0xfc] sm:$0xff]
    %v2835 = vld [vmem:[#allocation19 + $0x104] sm:$0xf]
    %v2836 = vld [vmem:[#allocation19 + $0x108] sm:$0xff]
    %v2837 = vld [vmem:[#allocation19 + $0x110] sm:$0xff]
    %v2838 = vld [vmem:[#allocation19 + $0x118] sm:$0xff]
    %v2839 = vld [vmem:[#allocation19 + $0x120] sm:$0xff]
    %v2840 = vld [vmem:[#allocation19 + $0x128] sm:$0xff]
    %v2841 = vld [vmem:[#allocation19 + $0x130] sm:$0xf]
    %v2842 = vld [vmem:[#allocation19 + $0x134] sm:$0xff]
    %v2843 = vld [vmem:[#allocation19 + $0x13c] sm:$0xff]
    %v2844 = vld [vmem:[#allocation19 + $0x144] sm:$0xff]
    %v2845 = vld [vmem:[#allocation19 + $0x14c] sm:$0xff]
    %v2846 = vld [vmem:[#allocation19 + $0x154] sm:$0xff]
    %v2847 = vld [vmem:[#allocation19 + $0x15c] sm:$0xf]
    %v2848 = vld [vmem:[#allocation19 + $0x160] sm:$0xff]
    %v2849 = vld [vmem:[#allocation19 + $0x168] sm:$0xff]
    %v2850 = vld [vmem:[#allocation19 + $0x170] sm:$0xff]
    %v2851 = vld [vmem:[#allocation19 + $0x178] sm:$0xff]
    %v2852 = vld [vmem:[#allocation19 + $0x180] sm:$0xff]
    %v2853 = vld [vmem:[#allocation19 + $0x188] sm:$0xf]
    %v2854 = vld [vmem:[#allocation19 + $0x18c] sm:$0xff]
    %v2855 = vld [vmem:[#allocation19 + $0x194] sm:$0xff]
    %v2856 = vld [vmem:[#allocation19 + $0x19c] sm:$0xff]
    %v2857 = vld [vmem:[#allocation19 + $0x1a4] sm:$0xff]
    %v2858 = vld [vmem:[#allocation19 + $0x1ac] sm:$0xff]
    %v2859 = vld [vmem:[#allocation19 + $0x1b4] sm:$0xf]
    %v2860 = vld [vmem:[#allocation19 + $0x1b8] sm:$0xff]
    %v2861 = vld [vmem:[#allocation19 + $0x1c0] sm:$0xff]
    %v2862 = vld [vmem:[#allocation19 + $0x1c8] sm:$0xff]
    %v2863 = vld [vmem:[#allocation19 + $0x1d0] sm:$0xff]
    %v2864 = vld [vmem:[#allocation19 + $0x1d8] sm:$0xff]
    %v2865 = vld [vmem:[#allocation19 + $0x1e0] sm:$0xf]
    %v2866 = vld [vmem:[#allocation19 + $0x1e4] sm:$0xff]
    %v2867 = vld [vmem:[#allocation19 + $0x1ec] sm:$0xff]
    %v2868 = vld [vmem:[#allocation19 + $0x1f4] sm:$0xff]
    %v2869 = vld [vmem:[#allocation19 + $0x1fc] sm:$0xff]
    %v2870 = vld [vmem:[#allocation19 + $0x204] sm:$0xff]
    %v2871 = vld [vmem:[#allocation19 + $0x20c] sm:$0xf]
    %v2872 = vld [vmem:[#allocation19 + $0x210] sm:$0xff]
    %v2873 = vld [vmem:[#allocation19 + $0x218] sm:$0xff]
    %v2874 = vld [vmem:[#allocation19 + $0x220] sm:$0xff]
    %v2875 = vld [vmem:[#allocation19 + $0x228] sm:$0xff]
    %v2876 = vld [vmem:[#allocation19 + $0x230] sm:$0xff]
    %v2877 = vld [vmem:[#allocation19 + $0x238] sm:$0xf]
    %v2878 = vld [vmem:[#allocation19 + $0x23c] sm:$0xff]
    %v2879 = vld [vmem:[#allocation19 + $0x244] sm:$0xff]
    %v2880 = vld [vmem:[#allocation19 + $0x24c] sm:$0xff]
    %v2881 = vld [vmem:[#allocation19 + $0x254] sm:$0xff]
    %v2882 = vld [vmem:[#allocation19 + $0x25c] sm:$0xff]
    %v2883 = vld [vmem:[#allocation19 + $0x264] sm:$0xf]
    %v2884 = vld [vmem:[#allocation19 + $0x268] sm:$0xff]
    %v2885 = vld [vmem:[#allocation19 + $0x270] sm:$0xff]
    %v2886 = vld [vmem:[#allocation19 + $0x278] sm:$0xff]
    %v2887 = vld [vmem:[#allocation19 + $0x280] sm:$0xff]
    %v2888 = vld [vmem:[#allocation19 + $0x288] sm:$0xff]
    %v2889 = vld [vmem:[#allocation19 + $0x290] sm:$0xf]
    %v2890 = vld [vmem:[#allocation19 + $0x294] sm:$0xff]
    %v2891 = vld [vmem:[#allocation19 + $0x29c] sm:$0xff]
    %v2892 = vld [vmem:[#allocation19 + $0x2a4] sm:$0xff]
    %v2893 = vld [vmem:[#allocation19 + $0x2ac] sm:$0xff]
    %v2894 = vld [vmem:[#allocation19 + $0x2b4] sm:$0xff]
    %v2895 = vld [vmem:[#allocation19 + $0x2bc] sm:$0xf]
    %v2992 = vunpack.c.l.b16 %v2800
    %v2993 = vunpack.c.h.b16 %v2800
    %v2994 = vunpack.c.l.b16 %v2801
    %v2995 = vunpack.c.h.b16 %v2801
    %v2996 = vunpack.c.l.b16 %v2802
    %v2997 = vunpack.c.h.b16 %v2802
    %v2998 = vunpack.c.l.b16 %v2803
    %v2999 = vunpack.c.h.b16 %v2803
    %v3000 = vunpack.c.l.b16 %v2804
    %v3001 = vunpack.c.h.b16 %v2804
    %v3002 = vunpack.c.l.b16 %v2805
    %v3003 = vunpack.c.l.b16 %v2806
    %v3004 = vunpack.c.h.b16 %v2806
    %v3005 = vunpack.c.l.b16 %v2807
    %v3006 = vunpack.c.h.b16 %v2807
    %v3007 = vunpack.c.l.b16 %v2808
    %v3008 = vunpack.c.h.b16 %v2808
    %v3009 = vunpack.c.l.b16 %v2809
    %v3010 = vunpack.c.h.b16 %v2809
    %v3011 = vunpack.c.l.b16 %v2810
    %v3012 = vunpack.c.h.b16 %v2810
    %v3013 = vunpack.c.l.b16 %v2811
    %v3014 = vunpack.c.l.b16 %v2812
    %v3015 = vunpack.c.h.b16 %v2812
    %v3016 = vunpack.c.l.b16 %v2813
    %v3017 = vunpack.c.h.b16 %v2813
    %v3018 = vunpack.c.l.b16 %v2814
    %v3019 = vunpack.c.h.b16 %v2814
    %v3020 = vunpack.c.l.b16 %v2815
    %v3021 = vunpack.c.h.b16 %v2815
    %v3022 = vunpack.c.l.b16 %v2816
    %v3023 = vunpack.c.h.b16 %v2816
    %v3024 = vunpack.c.l.b16 %v2817
    %v3025 = vunpack.c.l.b16 %v2818
    %v3026 = vunpack.c.h.b16 %v2818
    %v3027 = vunpack.c.l.b16 %v2819
    %v3028 = vunpack.c.h.b16 %v2819
    %v3029 = vunpack.c.l.b16 %v2820
    %v3030 = vunpack.c.h.b16 %v2820
    %v3031 = vunpack.c.l.b16 %v2821
    %v3032 = vunpack.c.h.b16 %v2821
    %v3033 = vunpack.c.l.b16 %v2822
    %v3034 = vunpack.c.h.b16 %v2822
    %v3035 = vunpack.c.l.b16 %v2823
    %v3036 = vunpack.c.l.b16 %v2824
    %v3037 = vunpack.c.h.b16 %v2824
    %v3038 = vunpack.c.l.b16 %v2825
    %v3039 = vunpack.c.h.b16 %v2825
    %v3040 = vunpack.c.l.b16 %v2826
    %v3041 = vunpack.c.h.b16 %v2826
    %v3042 = vunpack.c.l.b16 %v2827
    %v3043 = vunpack.c.h.b16 %v2827
    %v3044 = vunpack.c.l.b16 %v2828
    %v3045 = vunpack.c.h.b16 %v2828
    %v3046 = vunpack.c.l.b16 %v2829
    %v3047 = vunpack.c.l.b16 %v2830
    %v3048 = vunpack.c.h.b16 %v2830
    %v3049 = vunpack.c.l.b16 %v2831
    %v3050 = vunpack.c.h.b16 %v2831
    %v3051 = vunpack.c.l.b16 %v2832
    %v3052 = vunpack.c.h.b16 %v2832
    %v3053 = vunpack.c.l.b16 %v2833
    %v3054 = vunpack.c.h.b16 %v2833
    %v3055 = vunpack.c.l.b16 %v2834
    %v3056 = vunpack.c.h.b16 %v2834
    %v3057 = vunpack.c.l.b16 %v2835
    %v3058 = vunpack.c.l.b16 %v2836
    %v3059 = vunpack.c.h.b16 %v2836
    %v3060 = vunpack.c.l.b16 %v2837
    %v3061 = vunpack.c.h.b16 %v2837
    %v3062 = vunpack.c.l.b16 %v2838
    %v3063 = vunpack.c.h.b16 %v2838
    %v3064 = vunpack.c.l.b16 %v2839
    %v3065 = vunpack.c.h.b16 %v2839
    %v3066 = vunpack.c.l.b16 %v2840
    %v3067 = vunpack.c.h.b16 %v2840
    %v3068 = vunpack.c.l.b16 %v2841
    %v3069 = vunpack.c.l.b16 %v2842
    %v3070 = vunpack.c.h.b16 %v2842
    %v3071 = vunpack.c.l.b16 %v2843
    %v3072 = vunpack.c.h.b16 %v2843
    %v3073 = vunpack.c.l.b16 %v2844
    %v3074 = vunpack.c.h.b16 %v2844
    %v3075 = vunpack.c.l.b16 %v2845
    %v3076 = vunpack.c.h.b16 %v2845
    %v3077 = vunpack.c.l.b16 %v2846
    %v3078 = vunpack.c.h.b16 %v2846
    %v3079 = vunpack.c.l.b16 %v2847
    %v3080 = vunpack.c.l.b16 %v2848
    %v3081 = vunpack.c.h.b16 %v2848
    %v3082 = vunpack.c.l.b16 %v2849
    %v3083 = vunpack.c.h.b16 %v2849
    %v3084 = vunpack.c.l.b16 %v2850
    %v3085 = vunpack.c.h.b16 %v2850
    %v3086 = vunpack.c.l.b16 %v2851
    %v3087 = vunpack.c.h.b16 %v2851
    %v3088 = vunpack.c.l.b16 %v2852
    %v3089 = vunpack.c.h.b16 %v2852
    %v3090 = vunpack.c.l.b16 %v2853
    %v3091 = vunpack.c.l.b16 %v2854
    %v3092 = vunpack.c.h.b16 %v2854
    %v3093 = vunpack.c.l.b16 %v2855
    %v3094 = vunpack.c.h.b16 %v2855
    %v3095 = vunpack.c.l.b16 %v2856
    %v3096 = vunpack.c.h.b16 %v2856
    %v3097 = vunpack.c.l.b16 %v2857
    %v3098 = vunpack.c.h.b16 %v2857
    %v3099 = vunpack.c.l.b16 %v2858
    %v3100 = vunpack.c.h.b16 %v2858
    %v3101 = vunpack.c.l.b16 %v2859
    %v3102 = vunpack.c.l.b16 %v2860
    %v3103 = vunpack.c.h.b16 %v2860
    %v3104 = vunpack.c.l.b16 %v2861
    %v3105 = vunpack.c.h.b16 %v2861
    %v3106 = vunpack.c.l.b16 %v2862
    %v3107 = vunpack.c.h.b16 %v2862
    %v3108 = vunpack.c.l.b16 %v2863
    %v3109 = vunpack.c.h.b16 %v2863
    %v3110 = vunpack.c.l.b16 %v2864
    %v3111 = vunpack.c.h.b16 %v2864
    %v3112 = vunpack.c.l.b16 %v2865
    %v3113 = vunpack.c.l.b16 %v2866
    %v3114 = vunpack.c.h.b16 %v2866
    %v3115 = vunpack.c.l.b16 %v2867
    %v3116 = vunpack.c.h.b16 %v2867
    %v3117 = vunpack.c.l.b16 %v2868
    %v3118 = vunpack.c.h.b16 %v2868
    %v3119 = vunpack.c.l.b16 %v2869
    %v3120 = vunpack.c.h.b16 %v2869
    %v3121 = vunpack.c.l.b16 %v2870
    %v3122 = vunpack.c.h.b16 %v2870
    %v3123 = vunpack.c.l.b16 %v2871
    %v3124 = vunpack.c.l.b16 %v2872
    %v3125 = vunpack.c.h.b16 %v2872
    %v3126 = vunpack.c.l.b16 %v2873
    %v3127 = vunpack.c.h.b16 %v2873
    %v3128 = vunpack.c.l.b16 %v2874
    %v3129 = vunpack.c.h.b16 %v2874
    %v3130 = vunpack.c.l.b16 %v2875
    %v3131 = vunpack.c.h.b16 %v2875
    %v3132 = vunpack.c.l.b16 %v2876
    %v3133 = vunpack.c.h.b16 %v2876
    %v3134 = vunpack.c.l.b16 %v2877
    %v3135 = vunpack.c.l.b16 %v2878
    %v3136 = vunpack.c.h.b16 %v2878
    %v3137 = vunpack.c.l.b16 %v2879
    %v3138 = vunpack.c.h.b16 %v2879
    %v3139 = vunpack.c.l.b16 %v2880
    %v3140 = vunpack.c.h.b16 %v2880
    %v3141 = vunpack.c.l.b16 %v2881
    %v3142 = vunpack.c.h.b16 %v2881
    %v3143 = vunpack.c.l.b16 %v2882
    %v3144 = vunpack.c.h.b16 %v2882
    %v3145 = vunpack.c.l.b16 %v2883
    %v3146 = vunpack.c.l.b16 %v2884
    %v3147 = vunpack.c.h.b16 %v2884
    %v3148 = vunpack.c.l.b16 %v2885
    %v3149 = vunpack.c.h.b16 %v2885
    %v3150 = vunpack.c.l.b16 %v2886
    %v3151 = vunpack.c.h.b16 %v2886
    %v3152 = vunpack.c.l.b16 %v2887
    %v3153 = vunpack.c.h.b16 %v2887
    %v3154 = vunpack.c.l.b16 %v2888
    %v3155 = vunpack.c.h.b16 %v2888
    %v3156 = vunpack.c.l.b16 %v2889
    %v3157 = vunpack.c.l.b16 %v2890
    %v3158 = vunpack.c.h.b16 %v2890
    %v3159 = vunpack.c.l.b16 %v2891
    %v3160 = vunpack.c.h.b16 %v2891
    %v3161 = vunpack.c.l.b16 %v2892
    %v3162 = vunpack.c.h.b16 %v2892
    %v3163 = vunpack.c.l.b16 %v2893
    %v3164 = vunpack.c.h.b16 %v2893
    %v3165 = vunpack.c.l.b16 %v2894
    %v3166 = vunpack.c.h.b16 %v2894
    %v3167 = vunpack.c.l.b16 %v2895
    %v3168 = vpack.c.b16 %v3003, %v2992
    %v3169 = vpack.c.b16 %v3004, %v2993
    %v3170 = vpack.c.b16 %v3005, %v2994
    %v3171 = vpack.c.b16 %v3006, %v2995
    %v3172 = vpack.c.b16 %v3007, %v2996
    %v3173 = vpack.c.b16 %v3008, %v2997
    %v3174 = vpack.c.b16 %v3009, %v2998
    %v3175 = vpack.c.b16 %v3010, %v2999
    %v3176 = vpack.c.b16 %v3011, %v3000
    %v3177 = vpack.c.b16 %v3012, %v3001
    %v3178 = vpack.c.b16 %v3013, %v3002
    %v3179 = vpack.c.b16 %v3025, %v3014
    %v3180 = vpack.c.b16 %v3026, %v3015
    %v3181 = vpack.c.b16 %v3027, %v3016
    %v3182 = vpack.c.b16 %v3028, %v3017
    %v3183 = vpack.c.b16 %v3029, %v3018
    %v3184 = vpack.c.b16 %v3030, %v3019
    %v3185 = vpack.c.b16 %v3031, %v3020
    %v3186 = vpack.c.b16 %v3032, %v3021
    %v3187 = vpack.c.b16 %v3033, %v3022
    %v3188 = vpack.c.b16 %v3034, %v3023
    %v3189 = vpack.c.b16 %v3035, %v3024
    %v3190 = vpack.c.b16 %v3047, %v3036
    %v3191 = vpack.c.b16 %v3048, %v3037
    %v3192 = vpack.c.b16 %v3049, %v3038
    %v3193 = vpack.c.b16 %v3050, %v3039
    %v3194 = vpack.c.b16 %v3051, %v3040
    %v3195 = vpack.c.b16 %v3052, %v3041
    %v3196 = vpack.c.b16 %v3053, %v3042
    %v3197 = vpack.c.b16 %v3054, %v3043
    %v3198 = vpack.c.b16 %v3055, %v3044
    %v3199 = vpack.c.b16 %v3056, %v3045
    %v3200 = vpack.c.b16 %v3057, %v3046
    %v3201 = vpack.c.b16 %v3069, %v3058
    %v3202 = vpack.c.b16 %v3070, %v3059
    %v3203 = vpack.c.b16 %v3071, %v3060
    %v3204 = vpack.c.b16 %v3072, %v3061
    %v3205 = vpack.c.b16 %v3073, %v3062
    %v3206 = vpack.c.b16 %v3074, %v3063
    %v3207 = vpack.c.b16 %v3075, %v3064
    %v3208 = vpack.c.b16 %v3076, %v3065
    %v3209 = vpack.c.b16 %v3077, %v3066
    %v3210 = vpack.c.b16 %v3078, %v3067
    %v3211 = vpack.c.b16 %v3079, %v3068
    %v3212 = vpack.c.b16 %v3091, %v3080
    %v3213 = vpack.c.b16 %v3092, %v3081
    %v3214 = vpack.c.b16 %v3093, %v3082
    %v3215 = vpack.c.b16 %v3094, %v3083
    %v3216 = vpack.c.b16 %v3095, %v3084
    %v3217 = vpack.c.b16 %v3096, %v3085
    %v3218 = vpack.c.b16 %v3097, %v3086
    %v3219 = vpack.c.b16 %v3098, %v3087
    %v3220 = vpack.c.b16 %v3099, %v3088
    %v3221 = vpack.c.b16 %v3100, %v3089
    %v3222 = vpack.c.b16 %v3101, %v3090
    %v3223 = vpack.c.b16 %v3113, %v3102
    %v3224 = vpack.c.b16 %v3114, %v3103
    %v3225 = vpack.c.b16 %v3115, %v3104
    %v3226 = vpack.c.b16 %v3116, %v3105
    %v3227 = vpack.c.b16 %v3117, %v3106
    %v3228 = vpack.c.b16 %v3118, %v3107
    %v3229 = vpack.c.b16 %v3119, %v3108
    %v3230 = vpack.c.b16 %v3120, %v3109
    %v3231 = vpack.c.b16 %v3121, %v3110
    %v3232 = vpack.c.b16 %v3122, %v3111
    %v3233 = vpack.c.b16 %v3123, %v3112
    %v3234 = vpack.c.b16 %v3135, %v3124
    %v3235 = vpack.c.b16 %v3136, %v3125
    %v3236 = vpack.c.b16 %v3137, %v3126
    %v3237 = vpack.c.b16 %v3138, %v3127
    %v3238 = vpack.c.b16 %v3139, %v3128
    %v3239 = vpack.c.b16 %v3140, %v3129
    %v3240 = vpack.c.b16 %v3141, %v3130
    %v3241 = vpack.c.b16 %v3142, %v3131
    %v3242 = vpack.c.b16 %v3143, %v3132
    %v3243 = vpack.c.b16 %v3144, %v3133
    %v3244 = vpack.c.b16 %v3145, %v3134
    %v3245 = vpack.c.b16 %v3157, %v3146
    %v3246 = vpack.c.b16 %v3158, %v3147
    %v3247 = vpack.c.b16 %v3159, %v3148
    %v3248 = vpack.c.b16 %v3160, %v3149
    %v3249 = vpack.c.b16 %v3161, %v3150
    %v3250 = vpack.c.b16 %v3162, %v3151
    %v3251 = vpack.c.b16 %v3163, %v3152
    %v3252 = vpack.c.b16 %v3164, %v3153
    %v3253 = vpack.c.b16 %v3165, %v3154
    %v3254 = vpack.c.b16 %v3166, %v3155
    %v3255 = vpack.c.b16 %v3167, %v3156
    %3344 = vmatprep.subr.bf16.mxu0 %v3246
    %3345 = vmatpush1.bf16.msra.mxu0 %v3245
    %3346 = vmatprep.subr.bf16.mxu0 %v3235
    %3347 = vmatpush1.bf16.msra.mxu0 %v3234
    %3348 = vmatprep.subr.bf16.mxu0 %v3224
    %3349 = vmatpush1.bf16.msra.mxu0 %v3223
    %3350 = vmatprep.subr.bf16.mxu0 %v3213
    %3351 = vmatpush1.bf16.msra.mxu0 %v3212
    %3352 = vmatprep.subr.bf16.mxu0 %v3202
    %3353 = vmatpush1.bf16.msra.mxu0 %v3201
    %3354 = vmatprep.subr.bf16.mxu0 %v3191
    %3355 = vmatpush1.bf16.msra.mxu0 %v3190
    %3356 = vmatprep.subr.bf16.mxu0 %v3180
    %3357 = vmatpush1.bf16.msra.mxu0 %v3179
    %3358 = vmatprep.subr.bf16.mxu0 %v3169
    %3359 = vmatpush1.bf16.msra.mxu0 %v3168
    %3360 = vmatprep.subr.bf16.mxu0 0
    %3361 = vmatpush2.bf16.msra.mxu0 0
    %3362 = vmatprep.subr.bf16.mxu0 0
    %3363 = vmatpush2.bf16.msra.mxu0 0
    %3364 = vmatprep.subr.bf16.mxu0 0
    %3365 = vmatpush2.bf16.msra.mxu0 0
    %3366 = vmatprep.subr.bf16.mxu0 0
    %3367 = vmatpush2.bf16.msra.mxu0 0
    %3368 = vmatprep.subr.bf16.mxu0 0
    %3369 = vmatpush2.bf16.msra.mxu0 0
    %3370 = vmatprep.subr.bf16.mxu0 0
    %3371 = vmatpush2.bf16.msra.mxu0 0
    %3372 = vmatprep.subr.bf16.mxu0 0
    %3373 = vmatpush2.bf16.msra.mxu0 0
    %3374 = vmatprep.subr.bf16.mxu0 0
    %3375 = vmatpush2.bf16.msra.mxu0 0
    %3376 = vmatprep.mubr.bf16.mxu0 0
    %3377 = vmatmul.mubr.bf16.gmra.mxu0 %v2798
    %v3378 = vpop.f32.mrf.mxu0
    %v3379 = vadd.f32 0.0, %v3378
    %v3380 = vpop.f32.mrf.mxu0
    %v3381 = vadd.f32 0.0, %v3380
    %v3382 = vpop.f32.mrf.mxu0
    %v3383 = vadd.f32 0.0, %v3382
    %v3384 = vpop.f32.mrf.mxu0
    %v3385 = vadd.f32 0.0, %v3384
    %3386 = vmatprep.mubr.bf16.mxu0 0
    %3387 = vmatmul.mubr.bf16.gmra.mxu0 %v2799
    %v3388 = vpop.f32.mrf.mxu0
    %v3389 = vadd.f32 0.0, %v3388
    %v3390 = vpop.f32.mrf.mxu0
    %v3391 = vadd.f32 0.0, %v3390
    %v3392 = vpop.f32.mrf.mxu0
    %v3393 = vadd.f32 0.0, %v3392
    %v3394 = vpop.f32.mrf.mxu0
    %v3395 = vadd.f32 0.0, %v3394
    %3396 = vdwg.mxu0
    %3397 = vmatprep.subr.bf16.mxu0 %v3248
    %3398 = vmatpush1.bf16.msra.mxu0 %v3247
    %3399 = vmatprep.subr.bf16.mxu0 %v3237
    %3400 = vmatpush1.bf16.msra.mxu0 %v3236
    %3401 = vmatprep.subr.bf16.mxu0 %v3226
    %3402 = vmatpush1.bf16.msra.mxu0 %v3225
    %3403 = vmatprep.subr.bf16.mxu0 %v3215
    %3404 = vmatpush1.bf16.msra.mxu0 %v3214
    %3405 = vmatprep.subr.bf16.mxu0 %v3204
    %3406 = vmatpush1.bf16.msra.mxu0 %v3203
    %3407 = vmatprep.subr.bf16.mxu0 %v3193
    %3408 = vmatpush1.bf16.msra.mxu0 %v3192
    %3409 = vmatprep.subr.bf16.mxu0 %v3182
    %3410 = vmatpush1.bf16.msra.mxu0 %v3181
    %3411 = vmatprep.subr.bf16.mxu0 %v3171
    %3412 = vmatpush1.bf16.msra.mxu0 %v3170
    %3413 = vmatprep.subr.bf16.mxu0 0
    %3414 = vmatpush2.bf16.msra.mxu0 0
    %3415 = vmatprep.subr.bf16.mxu0 0
    %3416 = vmatpush2.bf16.msra.mxu0 0
    %3417 = vmatprep.subr.bf16.mxu0 0
    %3418 = vmatpush2.bf16.msra.mxu0 0
    %3419 = vmatprep.subr.bf16.mxu0 0
    %3420 = vmatpush2.bf16.msra.mxu0 0
    %3421 = vmatprep.subr.bf16.mxu0 0
    %3422 = vmatpush2.bf16.msra.mxu0 0
    %3423 = vmatprep.subr.bf16.mxu0 0
    %3424 = vmatpush2.bf16.msra.mxu0 0
    %3425 = vmatprep.subr.bf16.mxu0 0
    %3426 = vmatpush2.bf16.msra.mxu0 0
    %3427 = vmatprep.subr.bf16.mxu0 0
    %3428 = vmatpush2.bf16.msra.mxu0 0
    %3429 = vmatprep.mubr.bf16.mxu0 0
    %3430 = vmatmul.mubr.bf16.gmra.mxu0 %v2798
    %v3431 = vpop.f32.mrf.mxu0
    %v3432 = vadd.f32 0.0, %v3431
    %v3433 = vpop.f32.mrf.mxu0
    %v3434 = vadd.f32 0.0, %v3433
    %v3435 = vpop.f32.mrf.mxu0
    %v3436 = vadd.f32 0.0, %v3435
    %v3437 = vpop.f32.mrf.mxu0
    %v3438 = vadd.f32 0.0, %v3437
    %3439 = vmatprep.mubr.bf16.mxu0 0
    %3440 = vmatmul.mubr.bf16.gmra.mxu0 %v2799
    %v3441 = vpop.f32.mrf.mxu0
    %v3442 = vadd.f32 0.0, %v3441
    %v3443 = vpop.f32.mrf.mxu0
    %v3444 = vadd.f32 0.0, %v3443
    %v3445 = vpop.f32.mrf.mxu0
    %v3446 = vadd.f32 0.0, %v3445
    %v3447 = vpop.f32.mrf.mxu0
    %v3448 = vadd.f32 0.0, %v3447
    %3449 = vdwg.mxu0
    %3450 = vmatprep.subr.bf16.mxu0 %v3250
    %3451 = vmatpush1.bf16.msra.mxu0 %v3249
    %3452 = vmatprep.subr.bf16.mxu0 %v3239
    %3453 = vmatpush1.bf16.msra.mxu0 %v3238
    %3454 = vmatprep.subr.bf16.mxu0 %v3228
    %3455 = vmatpush1.bf16.msra.mxu0 %v3227
    %3456 = vmatprep.subr.bf16.mxu0 %v3217
    %3457 = vmatpush1.bf16.msra.mxu0 %v3216
    %3458 = vmatprep.subr.bf16.mxu0 %v3206
    %3459 = vmatpush1.bf16.msra.mxu0 %v3205
    %3460 = vmatprep.subr.bf16.mxu0 %v3195
    %3461 = vmatpush1.bf16.msra.mxu0 %v3194
    %3462 = vmatprep.subr.bf16.mxu0 %v3184
    %3463 = vmatpush1.bf16.msra.mxu0 %v3183
    %3464 = vmatprep.subr.bf16.mxu0 %v3173
    %3465 = vmatpush1.bf16.msra.mxu0 %v3172
    %3466 = vmatprep.subr.bf16.mxu0 0
    %3467 = vmatpush2.bf16.msra.mxu0 0
    %3468 = vmatprep.subr.bf16.mxu0 0
    %3469 = vmatpush2.bf16.msra.mxu0 0
    %3470 = vmatprep.subr.bf16.mxu0 0
    %3471 = vmatpush2.bf16.msra.mxu0 0
    %3472 = vmatprep.subr.bf16.mxu0 0
    %3473 = vmatpush2.bf16.msra.mxu0 0
    %3474 = vmatprep.subr.bf16.mxu0 0
    %3475 = vmatpush2.bf16.msra.mxu0 0
    %3476 = vmatprep.subr.bf16.mxu0 0
    %3477 = vmatpush2.bf16.msra.mxu0 0
    %3478 = vmatprep.subr.bf16.mxu0 0
    %3479 = vmatpush2.bf16.msra.mxu0 0
    %3480 = vmatprep.subr.bf16.mxu0 0
    %3481 = vmatpush2.bf16.msra.mxu0 0
    %3482 = vmatprep.mubr.bf16.mxu0 0
    %3483 = vmatmul.mubr.bf16.gmra.mxu0 %v2798
    %v3484 = vpop.f32.mrf.mxu0
    %v3485 = vadd.f32 0.0, %v3484
    %v3486 = vpop.f32.mrf.mxu0
    %v3487 = vadd.f32 0.0, %v3486
    %v3488 = vpop.f32.mrf.mxu0
    %v3489 = vadd.f32 0.0, %v3488
    %v3490 = vpop.f32.mrf.mxu0
    %v3491 = vadd.f32 0.0, %v3490
    %3492 = vmatprep.mubr.bf16.mxu0 0
    %3493 = vmatmul.mubr.bf16.gmra.mxu0 %v2799
    %v3494 = vpop.f32.mrf.mxu0
    %v3495 = vadd.f32 0.0, %v3494
    %v3496 = vpop.f32.mrf.mxu0
    %v3497 = vadd.f32 0.0, %v3496
    %v3498 = vpop.f32.mrf.mxu0
    %v3499 = vadd.f32 0.0, %v3498
    %v3500 = vpop.f32.mrf.mxu0
    %v3501 = vadd.f32 0.0, %v3500
    %3502 = vdwg.mxu0
    %3503 = vmatprep.subr.bf16.mxu0 %v3252
    %3504 = vmatpush1.bf16.msra.mxu0 %v3251
    %3505 = vmatprep.subr.bf16.mxu0 %v3241
    %3506 = vmatpush1.bf16.msra.mxu0 %v3240
    %3507 = vmatprep.subr.bf16.mxu0 %v3230
    %3508 = vmatpush1.bf16.msra.mxu0 %v3229
    %3509 = vmatprep.subr.bf16.mxu0 %v3219
    %3510 = vmatpush1.bf16.msra.mxu0 %v3218
    %3511 = vmatprep.subr.bf16.mxu0 %v3208
    %3512 = vmatpush1.bf16.msra.mxu0 %v3207
    %3513 = vmatprep.subr.bf16.mxu0 %v3197
    %3514 = vmatpush1.bf16.msra.mxu0 %v3196
    %3515 = vmatprep.subr.bf16.mxu0 %v3186
    %3516 = vmatpush1.bf16.msra.mxu0 %v3185
    %3517 = vmatprep.subr.bf16.mxu0 %v3175
    %3518 = vmatpush1.bf16.msra.mxu0 %v3174
    %3519 = vmatprep.subr.bf16.mxu0 0
    %3520 = vmatpush2.bf16.msra.mxu0 0
    %3521 = vmatprep.subr.bf16.mxu0 0
    %3522 = vmatpush2.bf16.msra.mxu0 0
    %3523 = vmatprep.subr.bf16.mxu0 0
    %3524 = vmatpush2.bf16.msra.mxu0 0
    %3525 = vmatprep.subr.bf16.mxu0 0
    %3526 = vmatpush2.bf16.msra.mxu0 0
    %3527 = vmatprep.subr.bf16.mxu0 0
    %3528 = vmatpush2.bf16.msra.mxu0 0
    %3529 = vmatprep.subr.bf16.mxu0 0
    %3530 = vmatpush2.bf16.msra.mxu0 0
    %3531 = vmatprep.subr.bf16.mxu0 0
    %3532 = vmatpush2.bf16.msra.mxu0 0
    %3533 = vmatprep.subr.bf16.mxu0 0
    %3534 = vmatpush2.bf16.msra.mxu0 0
    %3535 = vmatprep.mubr.bf16.mxu0 0
    %3536 = vmatmul.mubr.bf16.gmra.mxu0 %v2798
    %v3537 = vpop.f32.mrf.mxu0
    %v3538 = vadd.f32 0.0, %v3537
    %v3539 = vpop.f32.mrf.mxu0
    %v3540 = vpop.f32.mrf.mxu0
    %v3541 = vadd.f32 0.0, %v3540
    %v3542 = vpop.f32.mrf.mxu0
    %3543 = vmatprep.mubr.bf16.mxu0 0
    %3544 = vmatmul.mubr.bf16.gmra.mxu0 %v2799
    %v3545 = vpop.f32.mrf.mxu0
    %v3546 = vadd.f32 0.0, %v3545
    %v3547 = vpop.f32.mrf.mxu0
    %v3548 = vpop.f32.mrf.mxu0
    %v3549 = vadd.f32 0.0, %v3548
    %v3550 = vpop.f32.mrf.mxu0
    %3551 = vdwg.mxu0
    %3552 = vmatprep.subr.bf16.mxu0 %v3254
    %3553 = vmatpush1.bf16.msra.mxu0 %v3253
    %3554 = vmatprep.subr.bf16.mxu0 %v3243
    %3555 = vmatpush1.bf16.msra.mxu0 %v3242
    %3556 = vmatprep.subr.bf16.mxu0 %v3232
    %3557 = vmatpush1.bf16.msra.mxu0 %v3231
    %3558 = vmatprep.subr.bf16.mxu0 %v3221
    %3559 = vmatpush1.bf16.msra.mxu0 %v3220
    %3560 = vmatprep.subr.bf16.mxu0 %v3210
    %3561 = vmatpush1.bf16.msra.mxu0 %v3209
    %3562 = vmatprep.subr.bf16.mxu0 %v3199
    %3563 = vmatpush1.bf16.msra.mxu0 %v3198
    %3564 = vmatprep.subr.bf16.mxu0 %v3188
    %3565 = vmatpush1.bf16.msra.mxu0 %v3187
    %3566 = vmatprep.subr.bf16.mxu0 %v3177
    %3567 = vmatpush1.bf16.msra.mxu0 %v3176
    %3568 = vmatprep.subr.bf16.mxu0 0
    %3569 = vmatpush2.bf16.msra.mxu0 0
    %3570 = vmatprep.subr.bf16.mxu0 0
    %3571 = vmatpush2.bf16.msra.mxu0 0
    %3572 = vmatprep.subr.bf16.mxu0 0
    %3573 = vmatpush2.bf16.msra.mxu0 0
    %3574 = vmatprep.subr.bf16.mxu0 0
    %3575 = vmatpush2.bf16.msra.mxu0 0
    %3576 = vmatprep.subr.bf16.mxu0 0
    %3577 = vmatpush2.bf16.msra.mxu0 0
    %3578 = vmatprep.subr.bf16.mxu0 0
    %3579 = vmatpush2.bf16.msra.mxu0 0
    %3580 = vmatprep.subr.bf16.mxu0 0
    %3581 = vmatpush2.bf16.msra.mxu0 0
    %3582 = vmatprep.subr.bf16.mxu0 0
    %3583 = vmatpush2.bf16.msra.mxu0 0
    %3584 = vmatprep.mubr.bf16.mxu0 0
    %3585 = vmatmul.mubr.bf16.gmra.mxu0 %v2798
    %v3586 = vpop.f32.mrf.mxu0
    %v3587 = vadd.f32 0.0, %v3586
    %v3588 = vpop.f32.mrf.mxu0
    %v3589 = vpop.f32.mrf.mxu0
    %v3590 = vadd.f32 0.0, %v3589
    %v3591 = vpop.f32.mrf.mxu0
    %3592 = vmatprep.mubr.bf16.mxu0 0
    %3593 = vmatmul.mubr.bf16.gmra.mxu0 %v2799
    %v3594 = vpop.f32.mrf.mxu0
    %v3595 = vadd.f32 0.0, %v3594
    %v3596 = vpop.f32.mrf.mxu0
    %v3597 = vpop.f32.mrf.mxu0
    %v3598 = vadd.f32 0.0, %v3597
    %v3599 = vpop.f32.mrf.mxu0
    %3600 = vdwg.mxu0
    %3601 = vmatprep.subr.bf16.mxu0 0
    %3602 = vmatpush1.bf16.msra.mxu0 %v3255
    %3603 = vmatprep.subr.bf16.mxu0 0
    %3604 = vmatpush1.bf16.msra.mxu0 %v3244
    %3605 = vmatprep.subr.bf16.mxu0 0
    %3606 = vmatpush1.bf16.msra.mxu0 %v3233
    %3607 = vmatprep.subr.bf16.mxu0 0
    %3608 = vmatpush1.bf16.msra.mxu0 %v3222
    %3609 = vmatprep.subr.bf16.mxu0 0
    %3610 = vmatpush1.bf16.msra.mxu0 %v3211
    %3611 = vmatprep.subr.bf16.mxu0 0
    %3612 = vmatpush1.bf16.msra.mxu0 %v3200
    %3613 = vmatprep.subr.bf16.mxu0 0
    %3614 = vmatpush1.bf16.msra.mxu0 %v3189
    %3615 = vmatprep.subr.bf16.mxu0 0
    %3616 = vmatpush1.bf16.msra.mxu0 %v3178
    %3617 = vmatprep.subr.bf16.mxu0 0
    %3618 = vmatpush2.bf16.msra.mxu0 0
    %3619 = vmatprep.subr.bf16.mxu0 0
    %3620 = vmatpush2.bf16.msra.mxu0 0
    %3621 = vmatprep.subr.bf16.mxu0 0
    %3622 = vmatpush2.bf16.msra.mxu0 0
    %3623 = vmatprep.subr.bf16.mxu0 0
    %3624 = vmatpush2.bf16.msra.mxu0 0
    %3625 = vmatprep.subr.bf16.mxu0 0
    %3626 = vmatpush2.bf16.msra.mxu0 0
    %3627 = vmatprep.subr.bf16.mxu0 0
    %3628 = vmatpush2.bf16.msra.mxu0 0
    %3629 = vmatprep.subr.bf16.mxu0 0
    %3630 = vmatpush2.bf16.msra.mxu0 0
    %3631 = vmatprep.subr.bf16.mxu0 0
    %3632 = vmatpush2.bf16.msra.mxu0 0
    %3633 = vmatprep.mubr.bf16.mxu0 0
    %3634 = vmatmul.mubr.bf16.gmra.mxu0 %v2798
    %v3635 = vpop.f32.mrf.mxu0
    %v3636 = vadd.f32 0.0, %v3635
    %v3637 = vpop.f32.mrf.mxu0
    %v3638 = vpop.f32.mrf.mxu0
    %v3639 = vadd.f32 0.0, %v3638
    %v3640 = vpop.f32.mrf.mxu0
    %3641 = vmatprep.mubr.bf16.mxu0 0
    %3642 = vmatmul.mubr.bf16.gmra.mxu0 %v2799
    %v3643 = vpop.f32.mrf.mxu0
    %v3644 = vadd.f32 0.0, %v3643
    %v3645 = vpop.f32.mrf.mxu0
    %v3646 = vpop.f32.mrf.mxu0
    %v3647 = vadd.f32 0.0, %v3646
    %v3648 = vpop.f32.mrf.mxu0
    %3649 = vdwg.mxu0
    %v3650 = vld [vmem:[%s61] sm:$0x1]
    %v3652 = vlaneseq
    %v3653 = vshrl.u32 %v3652, 7
    %v3654 = vsub.s32 0, %v3653
    %v3655 = vrot.slane %v3650, %v3654
    %v3657 = vadd.f32 %v3379, %v3655
    %v3658 = vadd.f32 %v3383, %v3655
    %v3659 = vadd.f32 %v3389, %v3655
    %v3660 = vadd.f32 %v3393, %v3655
    %v3661 = vmax.f32 %v3657, 0.0
    %v3662 = vmax.f32 %v3658, 0.0
    %v3663 = vmax.f32 %v3659, 0.0
    %v3664 = vmax.f32 %v3660, 0.0
    %v3665 = vpack.c.bf16 %v3662, %v3661
    %v3666 = vpack.c.bf16 %v3664, %v3663
    %v3667 = vld [vmem:[#allocation20] sm:$0xf]
    %v3668 = vld [vmem:[#allocation20 + $0x4] sm:$0xf]
    %v3669 = vld [vmem:[#allocation20 + $0x8] sm:$0xf]
    %v3670 = vld [vmem:[#allocation20 + $0xc] sm:$0xf]
    %v3671 = vld [vmem:[#allocation20 + $0x10] sm:$0xf]
    %v3672 = vld [vmem:[#allocation20 + $0x14] sm:$0xf]
    %v3673 = vld [vmem:[#allocation20 + $0x18] sm:$0xf]
    %v3674 = vld [vmem:[#allocation20 + $0x1c] sm:$0xf]
    %v3675 = vld [vmem:[#allocation20 + $0x20] sm:$0xf]
    %v3676 = vld [vmem:[#allocation20 + $0x24] sm:$0xf]
    %v3677 = vld [vmem:[#allocation20 + $0x28] sm:$0xf]
    %v3678 = vld [vmem:[#allocation20 + $0x2c] sm:$0xf]
    %v3679 = vld [vmem:[#allocation20 + $0x30] sm:$0xf]
    %v3680 = vld [vmem:[#allocation20 + $0x34] sm:$0xf]
    %v3681 = vld [vmem:[#allocation20 + $0x38] sm:$0xf]
    %v3682 = vld [vmem:[#allocation20 + $0x3c] sm:$0xf]
    %v3683 = vrot.slane %v3381, 2
    %v3684 = vrot.slane %v3385, 2
    %v3685 = vrot.slane %v3391, 2
    %v3686 = vrot.slane %v3395, 2
    %v3687 = vsel %vm1152, %v3685, %v3686
    %v3688 = vsel %vm1152, %v3684, %v3685
    %v3689 = vsel %vm1152, %v3683, %v3684
    %v3690 = vsel %vm1152, %v3686, %v3683
    %vm3691 = vcmp.ge.s32.totalorder %v306, 6
    %vm3692 = vcmp.ge.s32.totalorder %v307, 6
    %v3693 = vsel %vm3691, %v3690, 0.0
    %v3694 = vsel %vm3692, %v3689, 0.0
    %v3695 = vsel %vm3691, %v3688, 0.0
    %v3696 = vsel %vm3692, %v3687, 0.0
    %v3697 = vadd.f32 %v3693, 0.0
    %v3698 = vadd.f32 %v3694, 0.0
    %v3699 = vadd.f32 %v3695, 0.0
    %v3700 = vadd.f32 %v3696, 0.0
    %v3701 = vadd.f32 %v3697, %v3432
    %v3702 = vadd.f32 %v3698, %v3436
    %v3703 = vadd.f32 %v3699, %v3442
    %v3704 = vadd.f32 %v3700, %v3446
    %v3705 = vrot.slane %v3434, 6
    %v3706 = vrot.slane %v3438, 6
    %v3707 = vrot.slane %v3444, 6
    %v3708 = vrot.slane %v3448, 6
    %v3709 = vsel %vm1060, %v3707, %v3708
    %v3710 = vsel %vm1060, %v3706, %v3707
    %v3711 = vsel %vm1060, %v3705, %v3706
    %v3712 = vsel %vm1060, %v3708, %v3705
    %vm3713 = vcmp.lt.s32.totalorder %v306, 10
    %vm3714 = vcmp.lt.s32.totalorder %v307, 10
    %v3715 = vsel %vm3713, %v3711, 0.0
    %v3716 = vsel %vm3714, %v3710, 0.0
    %v3717 = vsel %vm3713, %v3709, 0.0
    %v3718 = vsel %vm3714, %v3712, 0.0
    %v3719 = vadd.f32 %v3701, %v3715
    %v3720 = vadd.f32 %v3702, %v3716
    %v3721 = vadd.f32 %v3703, %v3717
    %v3722 = vadd.f32 %v3704, %v3718
    %v3723 = vld [vmem:[%s63] sm:$0x1]
    %v3725 = vlaneseq
    %v3726 = vshrl.u32 %v3725, 7
    %v3727 = vsub.s32 0, %v3726
    %v3728 = vrot.slane %v3723, %v3727
    %v3730 = vadd.f32 %v3719, %v3728
    %v3731 = vadd.f32 %v3720, %v3728
    %v3732 = vadd.f32 %v3721, %v3728
    %v3733 = vadd.f32 %v3722, %v3728
    %v3734 = vmax.f32 %v3730, 0.0
    %v3735 = vmax.f32 %v3731, 0.0
    %v3736 = vmax.f32 %v3732, 0.0
    %v3737 = vmax.f32 %v3733, 0.0
    %v3738 = vpack.c.bf16 %v3735, %v3734
    %v3739 = vpack.c.bf16 %v3737, %v3736
    %s3740 = scalar_lea.vmem [#allocation20], 64
    %v3741 = vld [vmem:[%s3740] sm:$0xf]
    %v3742 = vld [vmem:[%s3740 + $0x4] sm:$0xf]
    %v3743 = vld [vmem:[%s3740 + $0x8] sm:$0xf]
    %v3744 = vld [vmem:[%s3740 + $0xc] sm:$0xf]
    %v3745 = vld [vmem:[%s3740 + $0x10] sm:$0xf]
    %v3746 = vld [vmem:[%s3740 + $0x14] sm:$0xf]
    %v3747 = vld [vmem:[%s3740 + $0x18] sm:$0xf]
    %v3748 = vld [vmem:[%s3740 + $0x1c] sm:$0xf]
    %v3749 = vld [vmem:[%s3740 + $0x20] sm:$0xf]
    %v3750 = vld [vmem:[%s3740 + $0x24] sm:$0xf]
    %v3751 = vld [vmem:[%s3740 + $0x28] sm:$0xf]
    %v3752 = vld [vmem:[%s3740 + $0x2c] sm:$0xf]
    %v3753 = vld [vmem:[%s3740 + $0x30] sm:$0xf]
    %v3754 = vld [vmem:[%s3740 + $0x34] sm:$0xf]
    %v3755 = vld [vmem:[%s3740 + $0x38] sm:$0xf]
    %v3756 = vld [vmem:[%s3740 + $0x3c] sm:$0xf]
    %v3773 = vunpack.c.l.b16 %v3741
    %v3774 = vunpack.c.l.b16 %v3742
    %v3775 = vunpack.c.l.b16 %v3743
    %v3776 = vunpack.c.l.b16 %v3744
    %v3777 = vunpack.c.l.b16 %v3745
    %v3778 = vunpack.c.l.b16 %v3746
    %v3779 = vunpack.c.l.b16 %v3747
    %v3780 = vunpack.c.l.b16 %v3748
    %v3781 = vunpack.c.l.b16 %v3749
    %v3782 = vunpack.c.l.b16 %v3750
    %v3783 = vunpack.c.l.b16 %v3751
    %v3784 = vunpack.c.l.b16 %v3752
    %v3785 = vunpack.c.l.b16 %v3753
    %v3786 = vunpack.c.l.b16 %v3754
    %v3787 = vunpack.c.l.b16 %v3755
    %v3788 = vunpack.c.l.b16 %v3756
    %v3789 = vpack.c.b16 %v3774, %v3773
    %v3790 = vpack.c.b16 %v3776, %v3775
    %v3791 = vpack.c.b16 %v3778, %v3777
    %v3792 = vpack.c.b16 %v3780, %v3779
    %v3793 = vpack.c.b16 %v3782, %v3781
    %v3794 = vpack.c.b16 %v3784, %v3783
    %v3795 = vpack.c.b16 %v3786, %v3785
    %v3796 = vpack.c.b16 %v3788, %v3787
    %3805 = vmatprep.subr.bf16.mxu0 0
    %3806 = vmatpush1.bf16.msra.mxu0 %v3796
    %3807 = vmatprep.subr.bf16.mxu0 0
    %3808 = vmatpush1.bf16.msra.mxu0 %v3795
    %3809 = vmatprep.subr.bf16.mxu0 0
    %3810 = vmatpush1.bf16.msra.mxu0 %v3794
    %3811 = vmatprep.subr.bf16.mxu0 0
    %3812 = vmatpush1.bf16.msra.mxu0 %v3793
    %3813 = vmatprep.subr.bf16.mxu0 0
    %3814 = vmatpush1.bf16.msra.mxu0 %v3792
    %3815 = vmatprep.subr.bf16.mxu0 0
    %3816 = vmatpush1.bf16.msra.mxu0 %v3791
    %3817 = vmatprep.subr.bf16.mxu0 0
    %3818 = vmatpush1.bf16.msra.mxu0 %v3790
    %3819 = vmatprep.subr.bf16.mxu0 0
    %3820 = vmatpush1.bf16.msra.mxu0 %v3789
    %3821 = vmatprep.subr.bf16.mxu0 0
    %3822 = vmatpush2.bf16.msra.mxu0 0
    %3823 = vmatprep.subr.bf16.mxu0 0
    %3824 = vmatpush2.bf16.msra.mxu0 0
    %3825 = vmatprep.subr.bf16.mxu0 0
    %3826 = vmatpush2.bf16.msra.mxu0 0
    %3827 = vmatprep.subr.bf16.mxu0 0
    %3828 = vmatpush2.bf16.msra.mxu0 0
    %3829 = vmatprep.subr.bf16.mxu0 0
    %3830 = vmatpush2.bf16.msra.mxu0 0
    %3831 = vmatprep.subr.bf16.mxu0 0
    %3832 = vmatpush2.bf16.msra.mxu0 0
    %3833 = vmatprep.subr.bf16.mxu0 0
    %3834 = vmatpush2.bf16.msra.mxu0 0
    %3835 = vmatprep.subr.bf16.mxu0 0
    %3836 = vmatpush2.bf16.msra.mxu0 0
    %3837 = vmatprep.mubr.bf16.mxu0 0
    %3838 = vmatmul.mubr.bf16.gmra.mxu0 %v3738
    %v3839 = vpop.f32.mrf.mxu0
    %v3840 = vadd.f32 0.0, %v3839
    %v3841 = vpop.f32.mrf.mxu0
    %v3842 = vpop.f32.mrf.mxu0
    %v3843 = vadd.f32 0.0, %v3842
    %v3844 = vpop.f32.mrf.mxu0
    %3845 = vmatprep.mubr.bf16.mxu0 0
    %3846 = vmatmul.mubr.bf16.gmra.mxu0 %v3739
    %v3847 = vpop.f32.mrf.mxu0
    %v3848 = vadd.f32 0.0, %v3847
    %v3849 = vpop.f32.mrf.mxu0
    %v3850 = vpop.f32.mrf.mxu0
    %v3851 = vadd.f32 0.0, %v3850
    %v3852 = vpop.f32.mrf.mxu0
    %3853 = vdwg.mxu0
    %v3870 = vunpack.c.l.b16 %v3667
    %v3871 = vunpack.c.l.b16 %v3668
    %v3872 = vunpack.c.l.b16 %v3669
    %v3873 = vunpack.c.l.b16 %v3670
    %v3874 = vunpack.c.l.b16 %v3671
    %v3875 = vunpack.c.l.b16 %v3672
    %v3876 = vunpack.c.l.b16 %v3673
    %v3877 = vunpack.c.l.b16 %v3674
    %v3878 = vunpack.c.l.b16 %v3675
    %v3879 = vunpack.c.l.b16 %v3676
    %v3880 = vunpack.c.l.b16 %v3677
    %v3881 = vunpack.c.l.b16 %v3678
    %v3882 = vunpack.c.l.b16 %v3679
    %v3883 = vunpack.c.l.b16 %v3680
    %v3884 = vunpack.c.l.b16 %v3681
    %v3885 = vunpack.c.l.b16 %v3682
    %v3886 = vpack.c.b16 %v3871, %v3870
    %v3887 = vpack.c.b16 %v3873, %v3872
    %v3888 = vpack.c.b16 %v3875, %v3874
    %v3889 = vpack.c.b16 %v3877, %v3876
    %v3890 = vpack.c.b16 %v3879, %v3878
    %v3891 = vpack.c.b16 %v3881, %v3880
    %v3892 = vpack.c.b16 %v3883, %v3882
    %v3893 = vpack.c.b16 %v3885, %v3884
    %3902 = vmatprep.subr.bf16.mxu0 0
    %3903 = vmatpush1.bf16.msra.mxu0 %v3893
    %3904 = vmatprep.subr.bf16.mxu0 0
    %3905 = vmatpush1.bf16.msra.mxu0 %v3892
    %3906 = vmatprep.subr.bf16.mxu0 0
    %3907 = vmatpush1.bf16.msra.mxu0 %v3891
    %3908 = vmatprep.subr.bf16.mxu0 0
    %3909 = vmatpush1.bf16.msra.mxu0 %v3890
    %3910 = vmatprep.subr.bf16.mxu0 0
    %3911 = vmatpush1.bf16.msra.mxu0 %v3889
    %3912 = vmatprep.subr.bf16.mxu0 0
    %3913 = vmatpush1.bf16.msra.mxu0 %v3888
    %3914 = vmatprep.subr.bf16.mxu0 0
    %3915 = vmatpush1.bf16.msra.mxu0 %v3887
    %3916 = vmatprep.subr.bf16.mxu0 0
    %3917 = vmatpush1.bf16.msra.mxu0 %v3886
    %3918 = vmatprep.subr.bf16.mxu0 0
    %3919 = vmatpush2.bf16.msra.mxu0 0
    %3920 = vmatprep.subr.bf16.mxu0 0
    %3921 = vmatpush2.bf16.msra.mxu0 0
    %3922 = vmatprep.subr.bf16.mxu0 0
    %3923 = vmatpush2.bf16.msra.mxu0 0
    %3924 = vmatprep.subr.bf16.mxu0 0
    %3925 = vmatpush2.bf16.msra.mxu0 0
    %3926 = vmatprep.subr.bf16.mxu0 0
    %3927 = vmatpush2.bf16.msra.mxu0 0
    %3928 = vmatprep.subr.bf16.mxu0 0
    %3929 = vmatpush2.bf16.msra.mxu0 0
    %3930 = vmatprep.subr.bf16.mxu0 0
    %3931 = vmatpush2.bf16.msra.mxu0 0
    %3932 = vmatprep.subr.bf16.mxu0 0
    %3933 = vmatpush2.bf16.msra.mxu0 0
    %3934 = vmatprep.mubr.bf16.mxu0 0
    %3935 = vmatmul.mubr.bf16.gmra.mxu0 %v3665
    %v3936 = vpop.f32.mrf.mxu0
    %v3937 = vadd.f32 %v3840, %v3936
    %v3938 = vpop.f32.mrf.mxu0
    %v3939 = vpop.f32.mrf.mxu0
    %v3940 = vadd.f32 %v3843, %v3939
    %v3941 = vpop.f32.mrf.mxu0
    %3942 = vmatprep.mubr.bf16.mxu0 0
    %3943 = vmatmul.mubr.bf16.gmra.mxu0 %v3666
    %v3944 = vpop.f32.mrf.mxu0
    %v3945 = vadd.f32 %v3848, %v3944
    %v3946 = vpop.f32.mrf.mxu0
    %v3947 = vpop.f32.mrf.mxu0
    %v3948 = vadd.f32 %v3851, %v3947
    %v3949 = vpop.f32.mrf.mxu0
    %3950 = vdwg.mxu0
    %v3951 = vrot.slane %v3485, 4
    %v3952 = vrot.slane %v3489, 4
    %v3953 = vrot.slane %v3495, 4
    %v3954 = vrot.slane %v3499, 4
    %vm3955 = vcmp.lt.s32.totalorder %v306, 4
    %v3956 = vsel %vm3955, %v3953, %v3954
    %v3957 = vsel %vm3955, %v3952, %v3953
    %v3958 = vsel %vm3955, %v3951, %v3952
    %v3959 = vsel %vm3955, %v3954, %v3951
    %vm3960 = vcmp.ge.s32.totalorder %v306, 12
    %vm3961 = vcmp.ge.s32.totalorder %v307, 12
    %v3962 = vsel %vm3960, %v3956, 0.0
    %v3963 = vsel %vm3961, %v3959, 0.0
    %v3964 = vsel %vm3960, %v3958, 0.0
    %v3965 = vsel %vm3961, %v3957, 0.0
    %v3966 = vadd.f32 %v3962, 0.0
    %v3967 = vadd.f32 %v3963, 0.0
    %v3968 = vadd.f32 %v3964, 0.0
    %v3969 = vadd.f32 %v3965, 0.0
    %v3970 = vadd.f32 %v3966, %v3487
    %v3971 = vadd.f32 %v3967, %v3491
    %v3972 = vadd.f32 %v3968, %v3497
    %v3973 = vadd.f32 %v3969, %v3501
    %v3974 = vrot.slane %v3538, 4
    %v3975 = vrot.slane %v3541, 4
    %v3976 = vrot.slane %v3546, 4
    %v3977 = vrot.slane %v3549, 4
    %v3978 = vsel %vm3955, %v3976, %v3977
    %v3979 = vsel %vm3955, %v3975, %v3976
    %v3980 = vsel %vm3955, %v3974, %v3975
    %v3981 = vsel %vm3955, %v3977, %v3974
    %vm3982 = vcmp.lt.s32.totalorder %v307, 4
    %v3983 = vsel %vm3955, %v3979, 0.0
    %v3984 = vsel %vm3982, %v3978, 0.0
    %v3985 = vsel %vm3955, %v3981, 0.0
    %v3986 = vsel %vm3982, %v3980, 0.0
    %v3987 = vadd.f32 %v3970, %v3983
    %v3988 = vadd.f32 %v3971, %v3984
    %v3989 = vadd.f32 %v3972, %v3985
    %v3990 = vadd.f32 %v3973, %v3986
    %s3991 = scalar_lea.vmem %s63, 1
    %v3992 = vld [vmem:[%s3991] sm:$0x1]
    %v3994 = vlaneseq
    %v3995 = vshrl.u32 %v3994, 7
    %v3996 = vsub.s32 0, %v3995
    %v3997 = vrot.slane %v3992, %v3996
    %v3999 = vadd.f32 %v3987, %v3997
    %v4000 = vadd.f32 %v3988, %v3997
    %v4001 = vadd.f32 %v3989, %v3997
    %v4002 = vadd.f32 %v3990, %v3997
    %v4003 = vmax.f32 %v3999, 0.0
    %v4004 = vmax.f32 %v4000, 0.0
    %v4005 = vmax.f32 %v4001, 0.0
    %v4006 = vmax.f32 %v4002, 0.0
    %v4007 = vpack.c.bf16 %v4004, %v4003
    %v4008 = vpack.c.bf16 %v4006, %v4005
    %s4009 = scalar_lea.vmem [#allocation20], 128
    %v4010 = vld [vmem:[%s4009] sm:$0xf]
    %v4011 = vld [vmem:[%s4009 + $0x4] sm:$0xf]
    %v4012 = vld [vmem:[%s4009 + $0x8] sm:$0xf]
    %v4013 = vld [vmem:[%s4009 + $0xc] sm:$0xf]
    %v4014 = vld [vmem:[%s4009 + $0x10] sm:$0xf]
    %v4015 = vld [vmem:[%s4009 + $0x14] sm:$0xf]
    %v4016 = vld [vmem:[%s4009 + $0x18] sm:$0xf]
    %v4017 = vld [vmem:[%s4009 + $0x1c] sm:$0xf]
    %v4018 = vld [vmem:[%s4009 + $0x20] sm:$0xf]
    %v4019 = vld [vmem:[%s4009 + $0x24] sm:$0xf]
    %v4020 = vld [vmem:[%s4009 + $0x28] sm:$0xf]
    %v4021 = vld [vmem:[%s4009 + $0x2c] sm:$0xf]
    %v4022 = vld [vmem:[%s4009 + $0x30] sm:$0xf]
    %v4023 = vld [vmem:[%s4009 + $0x34] sm:$0xf]
    %v4024 = vld [vmem:[%s4009 + $0x38] sm:$0xf]
    %v4025 = vld [vmem:[%s4009 + $0x3c] sm:$0xf]
    %v4042 = vunpack.c.l.b16 %v4010
    %v4043 = vunpack.c.l.b16 %v4011
    %v4044 = vunpack.c.l.b16 %v4012
    %v4045 = vunpack.c.l.b16 %v4013
    %v4046 = vunpack.c.l.b16 %v4014
    %v4047 = vunpack.c.l.b16 %v4015
    %v4048 = vunpack.c.l.b16 %v4016
    %v4049 = vunpack.c.l.b16 %v4017
    %v4050 = vunpack.c.l.b16 %v4018
    %v4051 = vunpack.c.l.b16 %v4019
    %v4052 = vunpack.c.l.b16 %v4020
    %v4053 = vunpack.c.l.b16 %v4021
    %v4054 = vunpack.c.l.b16 %v4022
    %v4055 = vunpack.c.l.b16 %v4023
    %v4056 = vunpack.c.l.b16 %v4024
    %v4057 = vunpack.c.l.b16 %v4025
    %v4058 = vpack.c.b16 %v4043, %v4042
    %v4059 = vpack.c.b16 %v4045, %v4044
    %v4060 = vpack.c.b16 %v4047, %v4046
    %v4061 = vpack.c.b16 %v4049, %v4048
    %v4062 = vpack.c.b16 %v4051, %v4050
    %v4063 = vpack.c.b16 %v4053, %v4052
    %v4064 = vpack.c.b16 %v4055, %v4054
    %v4065 = vpack.c.b16 %v4057, %v4056
    %4074 = vmatprep.subr.bf16.mxu0 0
    %4075 = vmatpush1.bf16.msra.mxu0 %v4065
    %4076 = vmatprep.subr.bf16.mxu0 0
    %4077 = vmatpush1.bf16.msra.mxu0 %v4064
    %4078 = vmatprep.subr.bf16.mxu0 0
    %4079 = vmatpush1.bf16.msra.mxu0 %v4063
    %4080 = vmatprep.subr.bf16.mxu0 0
    %4081 = vmatpush1.bf16.msra.mxu0 %v4062
    %4082 = vmatprep.subr.bf16.mxu0 0
    %4083 = vmatpush1.bf16.msra.mxu0 %v4061
    %4084 = vmatprep.subr.bf16.mxu0 0
    %4085 = vmatpush1.bf16.msra.mxu0 %v4060
    %4086 = vmatprep.subr.bf16.mxu0 0
    %4087 = vmatpush1.bf16.msra.mxu0 %v4059
    %4088 = vmatprep.subr.bf16.mxu0 0
    %4089 = vmatpush1.bf16.msra.mxu0 %v4058
    %4090 = vmatprep.subr.bf16.mxu0 0
    %4091 = vmatpush2.bf16.msra.mxu0 0
    %4092 = vmatprep.subr.bf16.mxu0 0
    %4093 = vmatpush2.bf16.msra.mxu0 0
    %4094 = vmatprep.subr.bf16.mxu0 0
    %4095 = vmatpush2.bf16.msra.mxu0 0
    %4096 = vmatprep.subr.bf16.mxu0 0
    %4097 = vmatpush2.bf16.msra.mxu0 0
    %4098 = vmatprep.subr.bf16.mxu0 0
    %4099 = vmatpush2.bf16.msra.mxu0 0
    %4100 = vmatprep.subr.bf16.mxu0 0
    %4101 = vmatpush2.bf16.msra.mxu0 0
    %4102 = vmatprep.subr.bf16.mxu0 0
    %4103 = vmatpush2.bf16.msra.mxu0 0
    %4104 = vmatprep.subr.bf16.mxu0 0
    %4105 = vmatpush2.bf16.msra.mxu0 0
    %4106 = vmatprep.mubr.bf16.mxu0 0
    %4107 = vmatmul.mubr.bf16.gmra.mxu0 %v4007
    %v4108 = vpop.f32.mrf.mxu0
    %v4109 = vadd.f32 0.0, %v4108
    %v4110 = vpop.f32.mrf.mxu0
    %v4111 = vpop.f32.mrf.mxu0
    %v4112 = vadd.f32 0.0, %v4111
    %v4113 = vpop.f32.mrf.mxu0
    %4114 = vmatprep.mubr.bf16.mxu0 0
    %4115 = vmatmul.mubr.bf16.gmra.mxu0 %v4008
    %v4116 = vpop.f32.mrf.mxu0
    %v4117 = vadd.f32 0.0, %v4116
    %v4118 = vpop.f32.mrf.mxu0
    %v4119 = vpop.f32.mrf.mxu0
    %v4120 = vadd.f32 0.0, %v4119
    %v4121 = vpop.f32.mrf.mxu0
    %4122 = vdwg.mxu0
    %v4123 = vadd.f32 %v3937, %v4109
    %v4124 = vadd.f32 %v3940, %v4112
    %v4125 = vadd.f32 %v3945, %v4117
    %v4126 = vadd.f32 %v3948, %v4120
    %v4127 = vadd.f32 %v3587, 0.0
    %v4128 = vadd.f32 %v3590, 0.0
    %v4129 = vadd.f32 %v3595, 0.0
    %v4130 = vadd.f32 %v3598, 0.0
    %v4131 = vadd.f32 %v4127, 0.0
    %v4132 = vadd.f32 %v4128, 0.0
    %v4133 = vadd.f32 %v4129, 0.0
    %v4134 = vadd.f32 %v4130, 0.0
    %s4135 = scalar_lea.vmem %s63, 2
    %v4136 = vld [vmem:[%s4135] sm:$0x1]
    %v4138 = vlaneseq
    %v4139 = vshrl.u32 %v4138, 7
    %v4140 = vsub.s32 0, %v4139
    %v4141 = vrot.slane %v4136, %v4140
    %v4143 = vadd.f32 %v4131, %v4141
    %v4144 = vadd.f32 %v4132, %v4141
    %v4145 = vadd.f32 %v4133, %v4141
    %v4146 = vadd.f32 %v4134, %v4141
    %v4147 = vmax.f32 %v4143, 0.0
    %v4148 = vmax.f32 %v4144, 0.0
    %v4149 = vmax.f32 %v4145, 0.0
    %v4150 = vmax.f32 %v4146, 0.0
    %v4151 = vpack.c.bf16 %v4148, %v4147
    %v4152 = vpack.c.bf16 %v4150, %v4149
    %s4153 = scalar_lea.vmem [#allocation20], 192
    %v4154 = vld [vmem:[%s4153] sm:$0xf]
    %v4155 = vld [vmem:[%s4153 + $0x4] sm:$0xf]
    %v4156 = vld [vmem:[%s4153 + $0x8] sm:$0xf]
    %v4157 = vld [vmem:[%s4153 + $0xc] sm:$0xf]
    %v4158 = vld [vmem:[%s4153 + $0x10] sm:$0xf]
    %v4159 = vld [vmem:[%s4153 + $0x14] sm:$0xf]
    %v4160 = vld [vmem:[%s4153 + $0x18] sm:$0xf]
    %v4161 = vld [vmem:[%s4153 + $0x1c] sm:$0xf]
    %v4162 = vld [vmem:[%s4153 + $0x20] sm:$0xf]
    %v4163 = vld [vmem:[%s4153 + $0x24] sm:$0xf]
    %v4164 = vld [vmem:[%s4153 + $0x28] sm:$0xf]
    %v4165 = vld [vmem:[%s4153 + $0x2c] sm:$0xf]
    %v4166 = vld [vmem:[%s4153 + $0x30] sm:$0xf]
    %v4167 = vld [vmem:[%s4153 + $0x34] sm:$0xf]
    %v4168 = vld [vmem:[%s4153 + $0x38] sm:$0xf]
    %v4169 = vld [vmem:[%s4153 + $0x3c] sm:$0xf]
    %v4186 = vunpack.c.l.b16 %v4154
    %v4187 = vunpack.c.l.b16 %v4155
    %v4188 = vunpack.c.l.b16 %v4156
    %v4189 = vunpack.c.l.b16 %v4157
    %v4190 = vunpack.c.l.b16 %v4158
    %v4191 = vunpack.c.l.b16 %v4159
    %v4192 = vunpack.c.l.b16 %v4160
    %v4193 = vunpack.c.l.b16 %v4161
    %v4194 = vunpack.c.l.b16 %v4162
    %v4195 = vunpack.c.l.b16 %v4163
    %v4196 = vunpack.c.l.b16 %v4164
    %v4197 = vunpack.c.l.b16 %v4165
    %v4198 = vunpack.c.l.b16 %v4166
    %v4199 = vunpack.c.l.b16 %v4167
    %v4200 = vunpack.c.l.b16 %v4168
    %v4201 = vunpack.c.l.b16 %v4169
    %v4202 = vpack.c.b16 %v4187, %v4186
    %v4203 = vpack.c.b16 %v4189, %v4188
    %v4204 = vpack.c.b16 %v4191, %v4190
    %v4205 = vpack.c.b16 %v4193, %v4192
    %v4206 = vpack.c.b16 %v4195, %v4194
    %v4207 = vpack.c.b16 %v4197, %v4196
    %v4208 = vpack.c.b16 %v4199, %v4198
    %v4209 = vpack.c.b16 %v4201, %v4200
    %4218 = vmatprep.subr.bf16.mxu0 0
    %4219 = vmatpush1.bf16.msra.mxu0 %v4209
    %4220 = vmatprep.subr.bf16.mxu0 0
    %4221 = vmatpush1.bf16.msra.mxu0 %v4208
    %4222 = vmatprep.subr.bf16.mxu0 0
    %4223 = vmatpush1.bf16.msra.mxu0 %v4207
    %4224 = vmatprep.subr.bf16.mxu0 0
    %4225 = vmatpush1.bf16.msra.mxu0 %v4206
    %4226 = vmatprep.subr.bf16.mxu0 0
    %4227 = vmatpush1.bf16.msra.mxu0 %v4205
    %4228 = vmatprep.subr.bf16.mxu0 0
    %4229 = vmatpush1.bf16.msra.mxu0 %v4204
    %4230 = vmatprep.subr.bf16.mxu0 0
    %4231 = vmatpush1.bf16.msra.mxu0 %v4203
    %4232 = vmatprep.subr.bf16.mxu0 0
    %4233 = vmatpush1.bf16.msra.mxu0 %v4202
    %4234 = vmatprep.subr.bf16.mxu0 0
    %4235 = vmatpush2.bf16.msra.mxu0 0
    %4236 = vmatprep.subr.bf16.mxu0 0
    %4237 = vmatpush2.bf16.msra.mxu0 0
    %4238 = vmatprep.subr.bf16.mxu0 0
    %4239 = vmatpush2.bf16.msra.mxu0 0
    %4240 = vmatprep.subr.bf16.mxu0 0
    %4241 = vmatpush2.bf16.msra.mxu0 0
    %4242 = vmatprep.subr.bf16.mxu0 0
    %4243 = vmatpush2.bf16.msra.mxu0 0
    %4244 = vmatprep.subr.bf16.mxu0 0
    %4245 = vmatpush2.bf16.msra.mxu0 0
    %4246 = vmatprep.subr.bf16.mxu0 0
    %4247 = vmatpush2.bf16.msra.mxu0 0
    %4248 = vmatprep.subr.bf16.mxu0 0
    %4249 = vmatpush2.bf16.msra.mxu0 0
    %4250 = vmatprep.mubr.bf16.mxu0 0
    %4251 = vmatmul.mubr.bf16.gmra.mxu0 %v4151
    %v4252 = vpop.f32.mrf.mxu0
    %v4253 = vadd.f32 0.0, %v4252
    %v4254 = vpop.f32.mrf.mxu0
    %v4255 = vpop.f32.mrf.mxu0
    %v4256 = vadd.f32 0.0, %v4255
    %v4257 = vpop.f32.mrf.mxu0
    %4258 = vmatprep.mubr.bf16.mxu0 0
    %4259 = vmatmul.mubr.bf16.gmra.mxu0 %v4152
    %v4260 = vpop.f32.mrf.mxu0
    %v4261 = vadd.f32 0.0, %v4260
    %v4262 = vpop.f32.mrf.mxu0
    %v4263 = vpop.f32.mrf.mxu0
    %v4264 = vadd.f32 0.0, %v4263
    %v4265 = vpop.f32.mrf.mxu0
    %4266 = vdwg.mxu0
    %v4267 = vadd.f32 %v4123, %v4253
    %v4268 = vadd.f32 %v4124, %v4256
    %v4269 = vadd.f32 %v4125, %v4261
    %v4270 = vadd.f32 %v4126, %v4264
    %v4271 = vadd.f32 %v3636, %v3639
    %v4272 = vrot.slane %v4271, 4
    %v4273 = vadd.f32 %v4271, %v4272
    %v4274 = vrot.slane %v4273, 2
    %v4275 = vadd.f32 %v4273, %v4274
    %v4276 = vrot.slane %v4275, 1
    %v4277 = vadd.f32 %v4275, %v4276
    %v4278 = vadd.f32 %v3644, %v3647
    %v4279 = vrot.slane %v4278, 4
    %v4280 = vadd.f32 %v4278, %v4279
    %v4281 = vrot.slane %v4280, 2
    %v4282 = vadd.f32 %v4280, %v4281
    %v4283 = vrot.slane %v4282, 1
    %v4284 = vadd.f32 %v4282, %v4283
    %v4285 = vmul.f32 %v4277, %v1480
    %v4286 = vmul.f32 %v4284, %v1480
    %v4287 = vld [vmem:[%s65] sm:$0x1]
    %v4289 = vlaneseq
    %v4290 = vshrl.u32 %v4289, 7
    %v4291 = vsub.s32 0, %v4290
    %v4292 = vrot.slane %v4287, %v4291
    %v4294 = vadd.f32 %v4285, %v4292
    %v4295 = vadd.f32 %v4286, %v4292
    %v4296 = vmax.f32 %v4294, 0.0
    %v4297 = vmax.f32 %v4295, 0.0
    %v4298 = vpack.c.bf16 %v4296, %v4296
    %v4299 = vpack.c.bf16 %v4297, %v4297
    %s4300 = scalar_lea.vmem [#allocation20], 256
    %v4301 = vld [vmem:[%s4300] sm:$0xf]
    %v4302 = vld [vmem:[%s4300 + $0x4] sm:$0xf]
    %v4303 = vld [vmem:[%s4300 + $0x8] sm:$0xf]
    %v4304 = vld [vmem:[%s4300 + $0xc] sm:$0xf]
    %v4305 = vld [vmem:[%s4300 + $0x10] sm:$0xf]
    %v4306 = vld [vmem:[%s4300 + $0x14] sm:$0xf]
    %v4307 = vld [vmem:[%s4300 + $0x18] sm:$0xf]
    %v4308 = vld [vmem:[%s4300 + $0x1c] sm:$0xf]
    %v4309 = vld [vmem:[%s4300 + $0x20] sm:$0xf]
    %v4310 = vld [vmem:[%s4300 + $0x24] sm:$0xf]
    %v4311 = vld [vmem:[%s4300 + $0x28] sm:$0xf]
    %v4312 = vld [vmem:[%s4300 + $0x2c] sm:$0xf]
    %v4313 = vld [vmem:[%s4300 + $0x30] sm:$0xf]
    %v4314 = vld [vmem:[%s4300 + $0x34] sm:$0xf]
    %v4315 = vld [vmem:[%s4300 + $0x38] sm:$0xf]
    %v4316 = vld [vmem:[%s4300 + $0x3c] sm:$0xf]
    %v4319 = vunpack.c.l.b16 %v4298
    %v4320 = vunpack.c.l.b16 %v4299
    %v4321 = vrot.slane %v4320, 7
    %vm4322 = vcmask 1041409
    %v4323 = vsel %vm4322, %v4321, %v4319
    %v4324 = vpack.c.b16 %v4323, %v4323
    %v4342 = vunpack.c.l.b16 %v4301
    %v4343 = vunpack.c.l.b16 %v4302
    %v4344 = vunpack.c.l.b16 %v4303
    %v4345 = vunpack.c.l.b16 %v4304
    %v4346 = vunpack.c.l.b16 %v4305
    %v4347 = vunpack.c.l.b16 %v4306
    %v4348 = vunpack.c.l.b16 %v4307
    %v4349 = vunpack.c.l.b16 %v4308
    %v4350 = vunpack.c.l.b16 %v4309
    %v4351 = vunpack.c.l.b16 %v4310
    %v4352 = vunpack.c.l.b16 %v4311
    %v4353 = vunpack.c.l.b16 %v4312
    %v4354 = vunpack.c.l.b16 %v4313
    %v4355 = vunpack.c.l.b16 %v4314
    %v4356 = vunpack.c.l.b16 %v4315
    %v4357 = vunpack.c.l.b16 %v4316
    %v4358 = vpack.c.b16 %v4343, %v4342
    %v4359 = vpack.c.b16 %v4345, %v4344
    %v4360 = vpack.c.b16 %v4347, %v4346
    %v4361 = vpack.c.b16 %v4349, %v4348
    %v4362 = vpack.c.b16 %v4351, %v4350
    %v4363 = vpack.c.b16 %v4353, %v4352
    %v4364 = vpack.c.b16 %v4355, %v4354
    %v4365 = vpack.c.b16 %v4357, %v4356
    %4374 = vmatprep.subr.bf16.mxu0 0
    %4375 = vmatpush1.bf16.msra.mxu0 %v4365
    %4376 = vmatprep.subr.bf16.mxu0 0
    %4377 = vmatpush1.bf16.msra.mxu0 %v4364
    %4378 = vmatprep.subr.bf16.mxu0 0
    %4379 = vmatpush1.bf16.msra.mxu0 %v4363
    %4380 = vmatprep.subr.bf16.mxu0 0
    %4381 = vmatpush1.bf16.msra.mxu0 %v4362
    %4382 = vmatprep.subr.bf16.mxu0 0
    %4383 = vmatpush1.bf16.msra.mxu0 %v4361
    %4384 = vmatprep.subr.bf16.mxu0 0
    %4385 = vmatpush1.bf16.msra.mxu0 %v4360
    %4386 = vmatprep.subr.bf16.mxu0 0
    %4387 = vmatpush1.bf16.msra.mxu0 %v4359
    %4388 = vmatprep.subr.bf16.mxu0 0
    %4389 = vmatpush1.bf16.msra.mxu0 %v4358
    %4390 = vmatprep.subr.bf16.mxu0 0
    %4391 = vmatpush2.bf16.msra.mxu0 0
    %4392 = vmatprep.subr.bf16.mxu0 0
    %4393 = vmatpush2.bf16.msra.mxu0 0
    %4394 = vmatprep.subr.bf16.mxu0 0
    %4395 = vmatpush2.bf16.msra.mxu0 0
    %4396 = vmatprep.subr.bf16.mxu0 0
    %4397 = vmatpush2.bf16.msra.mxu0 0
    %4398 = vmatprep.subr.bf16.mxu0 0
    %4399 = vmatpush2.bf16.msra.mxu0 0
    %4400 = vmatprep.subr.bf16.mxu0 0
    %4401 = vmatpush2.bf16.msra.mxu0 0
    %4402 = vmatprep.subr.bf16.mxu0 0
    %4403 = vmatpush2.bf16.msra.mxu0 0
    %4404 = vmatprep.subr.bf16.mxu0 0
    %4405 = vmatpush2.bf16.msra.mxu0 0
    %4406 = vmatprep.mubr.bf16.mxu0 0
    %4407 = vmatmul.mubr.bf16.gmra.mxu0 %v4324
    %v4408 = vpop.f32.mrf.mxu0
    %v4409 = vadd.f32 0.0, %v4408
    %v4410 = vpop.f32.mrf.mxu0
    %v4411 = vpop.f32.mrf.mxu0
    %v4412 = vpop.f32.mrf.mxu0
    %4413 = vdwg.mxu0
    %v4416 = vunpack.c.l.s4 1966171168
    %v4417 = vunpack.c.0.s8 %v4416
    %v4418 = vlaneseq
    %v4419 = vshrl.u32 %v4418, 7
    %v4420 = vsub.s32 %v4417, %v4419
    %v4421 = vrot.slane %v4409, %v4420
    %v4422 = vcombine.high %v4421, %v4421
    %v4424 = vunpack.c.l.s4 1966171168
    %v4425 = vunpack.c.0.s8 %v4424
    %v4426 = vlaneseq
    %v4427 = vshrl.u32 %v4426, 7
    %v4428 = vsub.s32 %v4425, %v4427
    %v4429 = vrot.slane %v4421, %v4428
    %v4431 = vunpack.c.l.s4 1966171168
    %v4432 = vunpack.c.0.s8 %v4431
    %v4433 = vlaneseq
    %v4434 = vshrl.u32 %v4433, 7
    %v4435 = vsub.s32 %v4432, %v4434
    %v4436 = vrot.slane %v4422, %v4435
    %v4437 = vlaneseq
    %v4438 = vshrl.u32 %v4437, 7
    %v4439 = vsub.s32 0, %v4438
    %v4440 = vrot.slane %v4429, %v4439
    %v4441 = vlaneseq
    %v4442 = vshrl.u32 %v4441, 7
    %v4443 = vsub.s32 0, %v4442
    %v4444 = vrot.slane %v4436, %v4443
    %v4447 = vadd.f32 %v4267, %v4440
    %v4448 = vadd.f32 %v4268, %v4440
    %v4449 = vadd.f32 %v4269, %v4444
    %v4450 = vadd.f32 %v4270, %v4444
    %v4451 = vld [vmem:[%s69] sm:$0x1]
    %v4453 = vlaneseq
    %v4454 = vshrl.u32 %v4453, 7
    %v4455 = vsub.s32 0, %v4454
    %v4456 = vrot.slane %v4451, %v4455
    %v4458 = vadd.f32 %v4447, %v4456
    %v4459 = vadd.f32 %v4448, %v4456
    %v4460 = vadd.f32 %v4449, %v4456
    %v4461 = vadd.f32 %v4450, %v4456
    %v4462 = vmax.f32 %v4458, 0.0
    %v4463 = vmax.f32 %v4459, 0.0
    %v4464 = vmax.f32 %v4460, 0.0
    %v4465 = vmax.f32 %v4461, 0.0
    %v4466 = vadd.f32 %v2794, %v4462
    %v4467 = vadd.f32 %v2795, %v4463
    %v4468 = vadd.f32 %v2796, %v4464
    %v4469 = vadd.f32 %v2797, %v4465
    %4470 = vst [vmem:[#allocation22] sm:$0xff] %v4466
    %4471 = vst [vmem:[#allocation22 + $0x8] sm:$0xff] %v4467
    %4472 = vst [vmem:[#allocation22 + $0x10] sm:$0xff] %v4468
    %4473 = vst [vmem:[#allocation22 + $0x18] sm:$0xff] %v4469
    // Predicated region
    $region190: #{tpu_custom_call.1} parent=1 // pred_check
      _
    $region191: #{tpu_custom_call.1} parent=1 // pred_check_branch
      %4475 = sbr.rel (0) target = $region193
    $region192: #{tpu_custom_call.1} parent=1 // pred_region
      %s4477 = ssub.s32 512, 512
      %4478 = vsyncadd [#allocation4], %s4477
      %s4479 = sshll.u32 [#allocation22], 4
      %s4480 = int_to_ptr.vmem [resolvable:$true] %s4479
      %4485 = dma.vmem_to_hbm [thread:$0]  %s4480, 512, %s71, [#allocation4], 128, 128, 8
    $region193: #{tpu_custom_call.1} parent=1 // pred_fallthru
      _
    // Predicated region
    $region194: #{tpu_custom_call.1} parent=1 // pred_check
      _
    $region195: #{tpu_custom_call.1} parent=1 // pred_check_branch
      %4487 = sbr.rel (0) target = $region197
    $region196: #{tpu_custom_call.1} parent=1 // pred_region
      %4488 = dma.done [#allocation4], 512
    $region197: #{tpu_custom_call.1} parent=1 // pred_fallthru
      _
    %4489 = vsyncpa [#allocation3], 1
    %4490 = vsyncpa [#allocation6], 1
    %4491 = vsyncpa [#allocation9], 1
    %4492 = vsyncpa [#allocation12], 1
    %4493 = vsyncpa [#allocation15], 1
    %4494 = vsyncpa [#allocation18], 1
    %4495 = vsyncpa [#allocation21], 1
    %4496 = vsyncpa [#allocation4], 1

</llo_original>
